<compile_context>
chip_gen: v7x
topology: tpu7x:2x2x1
jax: 0.10.0
libtpu: 0.0.40
codegen_flags: <defaults>
</compile_context>

<pallas_src>
import functools

import jax
import jax.numpy as jnp
from jax.experimental import pallas as pl
from jax.experimental.pallas import tpu as pltpu

LN_EPS = 1e-5      # nn.LayerNorm default
ATS_EPS = 1e-6
_F32_MAX = float(jnp.finfo(jnp.float32).max)
_NEG_BIG = -1e30   # softmax mask sentinel (same post-softmax result as -f32max)


# ----------------------------------------------------------------------------
# in-kernel helpers
# ----------------------------------------------------------------------------
def _erf_f32(x):
    # Abramowitz & Stegun 7.1.26 polynomial (abs err ~1.5e-7, f32 rounding
    # level), built only from exp/mul/add/div.
    # TODO(synk): jax.lax.erf may lower in Mosaic; polynomial kept for compile
    # safety and exactness vs the torch erf-GELU.
    a1, a2, a3, a4, a5 = (0.254829592, -0.284496736, 1.421413741,
                          -1.453152027, 1.061405429)
    p = 0.3275911
    s = jnp.where(x >= 0.0, 1.0, -1.0)
    z = jnp.abs(x)
    t = 1.0 / (1.0 + p * z)
    poly = ((((a5 * t + a4) * t + a3) * t + a2) * t + a1) * t
    return s * (1.0 - poly * jnp.exp(-z * z))


def _gelu(x):
    # nn.GELU() default is the exact (erf) formulation.
    return 0.5 * x * (1.0 + _erf_f32(x * 0.7071067811865476))


def _layernorm(x, g, b):
    mu = jnp.mean(x, axis=-1, keepdims=True)
    xc = x - mu
    var = jnp.mean(xc * xc, axis=-1, keepdims=True)
    return xc * jax.lax.rsqrt(var + LN_EPS) * g + b


# ----------------------------------------------------------------------------
# Kernel A: LayerNorm + QKV projection + masked softmax
#           -> attn probs, lane-dense V, ATS cls-score vector
#   single invocation (no grid), whole batch resident in VMEM
# ----------------------------------------------------------------------------
def _attn_pre_kernel(x_ref, m_ref, g_ref, b_ref, wqkv_ref,
                     attn_ref, v_ref, score_ref, *,
                     bsz, n, dim, heads, dim_head, scale):
    inner = heads * dim_head
    x = x_ref[...]                                    # (b, n, dim)
    m = m_ref[...]                                    # (b, n) float {0,1}

    # LayerNorm + QKV on all rows at once: one (b*n, dim) x (dim, 3*inner) dot.
    xn = _layernorm(x.reshape(bsz * n, dim), g_ref[...], b_ref[...])
    qkv = jnp.dot(xn, wqkv_ref[...], preferred_element_type=jnp.float32)
    qkv = qkv.reshape(bsz, n, 3 * inner)
    v = qkv[:, :, 2 * inner:]                         # lane-dense (b, n, inner)
    v_ref[...] = v

    # keep[b,i,j] = mask[b,i] & mask[b,j], built in-register from (b, n)
    keep = (m[:, :, None] * m[:, None, :]) > 0.5      # (b, n, n)

    score = jnp.zeros((bsz, n - 1), jnp.float32)
    for h in range(heads):                            # heads: tiny static unroll
        lo = h * dim_head
        q_h = qkv[:, :, lo:lo + dim_head]             # (b, n, dh)
        k_h = qkv[:, :, inner + lo:inner + lo + dim_head]
        v_h = v[:, :, lo:lo + dim_head]
        dots = jnp.einsum('bid,bjd->bij', q_h, k_h,
                          preferred_element_type=jnp.float32) * scale
        dots = jnp.where(keep, dots, _NEG_BIG)
        dots = dots - jnp.max(dots, axis=-1, keepdims=True)
        e = jnp.exp(dots)
        attn_h = e / jnp.sum(e, axis=-1, keepdims=True)   # exact softmax
        attn_ref[h] = attn_h                          # (b, n, n) per head
        # ATS cls-score contribution: attn[cls, 1:] * ||v_h[1:, :]||
        vnorm = jnp.sqrt(jnp.sum(v_h[:, 1:, :] * v_h[:, 1:, :], axis=-1))
        score = score + attn_h[:, 0, 1:] * vnorm
    score_ref[...] = score


def run_attn_pre(x, maskf, p, heads, dim_head):
    bsz, n, dim = x.shape
    inner = heads * dim_head
    kern = functools.partial(_attn_pre_kernel, bsz=bsz, n=n, dim=dim,
                             heads=heads, dim_head=dim_head,
                             scale=dim_head ** -0.5)
    return pl.pallas_call(
        kern,
        out_shape=(jax.ShapeDtypeStruct((heads, bsz, n, n), jnp.float32),
                   jax.ShapeDtypeStruct((bsz, n, inner), jnp.float32),
                   jax.ShapeDtypeStruct((bsz, n - 1), jnp.float32)),
        compiler_params=pltpu.CompilerParams(vmem_limit_bytes=64 * 1024 * 1024),
    )(x, maskf, p['ln1_g'], p['ln1_b'], p['w_qkv'])


# ----------------------------------------------------------------------------
# Kernel B (fused): one-hot ATS gather of attn & residual x  ->  attn @ V
#   -> output projection (+bias) + residual -> LayerNorm -> Linear -> GELU
#   -> Linear -> residual
# ----------------------------------------------------------------------------
def _post_ff_kernel(ids_ref, attn_ref, v_ref, x_ref, wout_ref, bout_ref,
                    g2_ref, beta2_ref, w1_ref, b1_ref, w2_ref, b2_ref,
                    y_ref, *, bsz, heads, dim_head, n_in, n_out, dim):
    # One-hot gather matrix from the sampled token ids: the ATS row gather of
    # both attn and the residual x becomes an MXU matmul (no XLA gather HLO).
    ids = ids_ref[...]                                # (b, n_out) int32
    iota = jax.lax.broadcasted_iota(jnp.int32, (bsz, n_out, n_in), 2)
    gmat = (ids[:, :, None] == iota).astype(jnp.float32)   # (b, n_out, n_in)

    x = x_ref[...]                                    # (b, n_in, dim)
    v = v_ref[...]                                    # (b, n_in, inner)
    x_g = jnp.einsum('brm,bmd->brd', gmat, x,
                     preferred_element_type=jnp.float32)
    x_g = x_g.reshape(bsz * n_out, dim)

    # attn@V with gather folded in; per-head result accumulated straight
    # through its w_out row-slice (no in-kernel concatenate).
    acc = jnp.zeros((bsz * n_out, dim), jnp.float32)
    for h in range(heads):
        lo = h * dim_head
        a_g = jnp.einsum('brm,bmk->brk', gmat, attn_ref[h],
                         preferred_element_type=jnp.float32)     # (b, n_out, n_in)
        o_h = jnp.einsum('brk,bkd->brd', a_g, v[:, :, lo:lo + dim_head],
                         preferred_element_type=jnp.float32)     # (b, n_out, dh)
        acc = acc + jnp.dot(o_h.reshape(bsz * n_out, dim_head),
                            wout_ref[lo:lo + dim_head, :],
                            preferred_element_type=jnp.float32)

    x1 = x_g + acc + bout_ref[...]                    # attention residual
    xn = _layernorm(x1, g2_ref[...], beta2_ref[...])
    hmid = _gelu(jnp.dot(xn, w1_ref[...], preferred_element_type=jnp.float32)
                 + b1_ref[...])
    y = jnp.dot(hmid, w2_ref[...], preferred_element_type=jnp.float32) + b2_ref[...]
    y_ref[...] = x1 + y                               # FFN residual (flat rows)


def run_post_ff(ids, attn, v, x, p, heads, dim_head):
    _, bsz, n_in, _ = attn.shape
    n_out = ids.shape[1]
    dim = x.shape[-1]
    kern = functools.partial(_post_ff_kernel, bsz=bsz, heads=heads,
                             dim_head=dim_head, n_in=n_in, n_out=n_out, dim=dim)
    y = pl.pallas_call(
        kern,
        out_shape=jax.ShapeDtypeStruct((bsz * n_out, dim), jnp.float32),
        compiler_params=pltpu.CompilerParams(vmem_limit_bytes=64 * 1024 * 1024),
    )(ids, attn, v, x, p['w_out'], p['b_out'], p['ln2_g'], p['ln2_b'],
      p['w1'], p['b1'], p['w2'], p['b2'])
    return y.reshape(bsz, n_out, dim)


# ----------------------------------------------------------------------------
# Adaptive Token Sampling glue (tiny tensors only: gumbel sampling + unique)
# ----------------------------------------------------------------------------
def ats_select(scores, mask, output_num_tokens, key):
    """scores: (b, n-1) cls-attn * value-norm contraction emitted by kernel A.
    Returns (unique_ids (b, k+1) int32, new_mask (b, k+1) bool)."""
    # TODO(synk): torch.unique + pad_sequence yield data-dependent ragged
    # shapes; emulated with fixed width (output_num_tokens + 1), 0-padded at
    # the end with mask=False, which matches the valid-token semantics.
    bsz, nm1 = scores.shape
    normed = scores / (jnp.sum(scores, axis=-1, keepdims=True) + ATS_EPS)
    logits = jnp.log(normed + ATS_EPS)
    logits = jnp.where(mask[:, 1:], logits, -_F32_MAX / 2.0)
    logits = jnp.broadcast_to(logits[:, None, :], (bsz, output_num_tokens, nm1))
    u = jax.random.uniform(key, logits.shape, dtype=jnp.float32)
    gumbel = -jnp.log(-jnp.log(u + ATS_EPS) + ATS_EPS)
    sampled = jnp.argmax(logits + gumbel, axis=-1).astype(jnp.int32) + 1  # (b,k)

    # unique(sorted=True) with trailing 0-padding (pad_sequence analog)
    s = jnp.sort(sampled, axis=-1)
    dup = jnp.concatenate(
        [jnp.zeros((bsz, 1), dtype=bool), s[:, 1:] == s[:, :-1]], axis=-1)
    sentinel = jnp.int32(nm1 + 2)
    s = jnp.where(dup, sentinel, s)
    s = jnp.sort(s, axis=-1)
    unique_ids = jnp.where(s == sentinel, jnp.int32(0), s)               # (b, k)

    new_mask = jnp.concatenate(
        [jnp.ones((bsz, 1), dtype=bool), unique_ids != 0], axis=-1)
    unique_ids = jnp.concatenate(
        [jnp.zeros((bsz, 1), dtype=jnp.int32), unique_ids], axis=-1)     # (b, k+1)
    return unique_ids, new_mask


# ----------------------------------------------------------------------------
# Transformer forward
# ----------------------------------------------------------------------------
def init_params(key, dim, depth, heads, dim_head, mlp_dim):
    inner = heads * dim_head
    params = []
    for _ in range(depth):
        key, k0, k1, k2, k3 = jax.random.split(key, 5)
        params.append(dict(
            ln1_g=jnp.ones((1, dim), jnp.float32),
            ln1_b=jnp.zeros((1, dim), jnp.float32),
            w_qkv=0.02 * jax.random.normal(k0, (dim, 3 * inner), jnp.float32),
            w_out=0.02 * jax.random.normal(k1, (inner, dim), jnp.float32),
            b_out=jnp.zeros((1, dim), jnp.float32),
            ln2_g=jnp.ones((1, dim), jnp.float32),
            ln2_b=jnp.zeros((1, dim), jnp.float32),
            w1=0.02 * jax.random.normal(k2, (dim, mlp_dim), jnp.float32),
            b1=jnp.zeros((1, mlp_dim), jnp.float32),
            w2=0.02 * jax.random.normal(k3, (mlp_dim, dim), jnp.float32),
            b2=jnp.zeros((1, dim), jnp.float32),
        ))
    return params


def transformer_forward(x, params, max_tokens_per_depth, heads, dim_head, key):
    bsz, n, dim = x.shape
    mask = jnp.ones((bsz, n), dtype=bool)
    token_ids = jnp.broadcast_to(jnp.arange(n, dtype=jnp.int32)[None, :], (bsz, n))

    for layer_idx, p in enumerate(params):
        output_num_tokens = max_tokens_per_depth[layer_idx]
        n_in = x.shape[1]

        # Kernel A: LN + QKV + masked softmax (+ ATS cls-score vector)
        attn, v, scores = run_attn_pre(x, mask.astype(jnp.float32),
                                       p, heads, dim_head)

        if n_in - 1 > output_num_tokens:
            key, sk = jax.random.split(key)
            ids, mask = ats_select(scores, mask, output_num_tokens, sk)
            token_ids = jnp.take_along_axis(token_ids, ids, axis=1)
        else:
            ids = jnp.broadcast_to(jnp.arange(n_in, dtype=jnp.int32)[None, :],
                                   (bsz, n_in))                  # identity gather

        # Kernel B: gather(attn,x) + attn@V + out-proj + residual + LN + MLP
        x = run_post_ff(ids, attn, v, x, p, heads, dim_head)

    return x, token_ids


# ----------------------------------------------------------------------------
if __name__ == "__main__":
    dim, depth, heads, dim_head, mlp_dim = 32, 2, 2, 8, 64
    max_tokens_per_depth = (6, 4)
    batch, seq = 2, 9   # 8 patch tokens + 1 cls token

    root = jax.random.PRNGKey(0)
    kx, kp, ks = jax.random.split(root, 3)
    x = jax.random.normal(kx, (batch, seq, dim), dtype=jnp.float32)
    params = init_params(kp, dim, depth, heads, dim_head, mlp_dim)

    fwd = jax.jit(transformer_forward, static_argnums=(2, 3, 4))
    out, token_ids = fwd(x, params, max_tokens_per_depth, heads, dim_head, ks)
    jax.block_until_ready(out)
    jax.block_until_ready(token_ids)

    assert out.shape == (batch, max_tokens_per_depth[-1] + 1, dim)
    assert token_ids.shape == (batch, max_tokens_per_depth[-1] + 1)
    print("KERNEL_OK")
</pallas_src>

<mosaic_0001>
module attributes {stable_mosaic.version = 11 : i64} {
  func.func @_attn_pre_kernel(%arg0: memref<2x9x32xf32, #tpu.memory_space<vmem>>, %arg1: memref<2x9xf32, #tpu.memory_space<vmem>>, %arg2: memref<1x32xf32, #tpu.memory_space<vmem>>, %arg3: memref<1x32xf32, #tpu.memory_space<vmem>>, %arg4: memref<32x48xf32, #tpu.memory_space<vmem>>, %arg5: memref<2x2x9x9xf32, #tpu.memory_space<vmem>>, %arg6: memref<2x9x16xf32, #tpu.memory_space<vmem>>, %arg7: memref<2x8xf32, #tpu.memory_space<vmem>>) attributes {dimension_semantics = [], scalar_prefetch = 0 : i64, scratch_operands = 0 : i64, tpu.core_type = #tpu.core_type<tc>} {
    %c0 = arith.constant 0 : index
    %c0_0 = arith.constant 0 : index
    %c0_1 = arith.constant 0 : index
    %0 = vector.load %arg0[%c0, %c0_0, %c0_1] : memref<2x9x32xf32, #tpu.memory_space<vmem>>, vector<2x9x32xf32>
    %c0_2 = arith.constant 0 : index
    %c0_3 = arith.constant 0 : index
    %1 = vector.load %arg1[%c0_2, %c0_3] : memref<2x9xf32, #tpu.memory_space<vmem>>, vector<2x9xf32>
    %2 = vector.shape_cast %0 : vector<2x9x32xf32> to vector<18x32xf32>
    %c0_4 = arith.constant 0 : index
    %c0_5 = arith.constant 0 : index
    %3 = vector.load %arg2[%c0_4, %c0_5] : memref<1x32xf32, #tpu.memory_space<vmem>>, vector<1x32xf32>
    %c0_6 = arith.constant 0 : index
    %c0_7 = arith.constant 0 : index
    %4 = vector.load %arg3[%c0_6, %c0_7] : memref<1x32xf32, #tpu.memory_space<vmem>>, vector<1x32xf32>
    %cst = arith.constant dense<0.000000e+00> : vector<18xf32>
    %5 = vector.multi_reduction <add>, %2, %cst [1] : vector<18x32xf32> to vector<18xf32>
    %6 = vector.shape_cast %5 : vector<18xf32> to vector<18x1xf32>
    %cst_8 = arith.constant 3.200000e+01 : f32
    %7 = vector.broadcast %cst_8 : f32 to vector<18x1xf32>
    %8 = arith.divf %6, %7 : vector<18x1xf32>
    %9 = vector.broadcast %8 : vector<18x1xf32> to vector<18x32xf32>
    %10 = arith.subf %2, %9 : vector<18x32xf32>
    %11 = arith.mulf %10, %10 : vector<18x32xf32>
    %cst_9 = arith.constant dense<0.000000e+00> : vector<18xf32>
    %12 = vector.multi_reduction <add>, %11, %cst_9 [1] : vector<18x32xf32> to vector<18xf32>
    %13 = vector.shape_cast %12 : vector<18xf32> to vector<18x1xf32>
    %cst_10 = arith.constant 3.200000e+01 : f32
    %14 = vector.broadcast %cst_10 : f32 to vector<18x1xf32>
    %15 = arith.divf %13, %14 : vector<18x1xf32>
    %cst_11 = arith.constant 9.99999974E-6 : f32
    %16 = vector.broadcast %cst_11 : f32 to vector<18x1xf32>
    %17 = arith.addf %15, %16 : vector<18x1xf32>
    %18 = math.rsqrt %17 : vector<18x1xf32>
    %19 = vector.broadcast %18 : vector<18x1xf32> to vector<18x32xf32>
    %20 = arith.mulf %10, %19 : vector<18x32xf32>
    %21 = vector.broadcast %3 : vector<1x32xf32> to vector<18x32xf32>
    %22 = arith.mulf %20, %21 : vector<18x32xf32>
    %23 = vector.broadcast %4 : vector<1x32xf32> to vector<18x32xf32>
    %24 = arith.addf %22, %23 : vector<18x32xf32>
    %c0_12 = arith.constant 0 : index
    %c0_13 = arith.constant 0 : index
    %25 = vector.load %arg4[%c0_12, %c0_13] : memref<32x48xf32, #tpu.memory_space<vmem>>, vector<32x48xf32>
    %cst_14 = arith.constant dense<0.000000e+00> : vector<18x48xf32>
    %26 = tpu.matmul %24, %25, %cst_14 {dimension_numbers = #tpu.dot_dimension_numbers<[1], [0], [0], [1], [0, 0, 1, 1], [], []>} : vector<18x32xf32>, vector<32x48xf32>, vector<18x48xf32> -> vector<18x48xf32>
    %27 = vector.shape_cast %26 : vector<18x48xf32> to vector<2x9x48xf32>
    %28 = vector.extract_strided_slice %27 {offsets = [0, 0, 32], sizes = [2, 9, 16], strides = [1, 1, 1]} : vector<2x9x48xf32> to vector<2x9x16xf32>
    %c0_15 = arith.constant 0 : index
    %c0_16 = arith.constant 0 : index
    %c0_17 = arith.constant 0 : index
    %29 = vector.load %arg6[%c0_15, %c0_16, %c0_17] : memref<2x9x16xf32, #tpu.memory_space<vmem>>, vector<2x9x16xf32>
    tpu.vector_store %arg6[%c0_15, %c0_16, %c0_17], %28 {strides = array<i32>} : memref<2x9x16xf32, #tpu.memory_space<vmem>>, vector<2x9x16xf32>,
    %30 = vector.shape_cast %1 : vector<2x9xf32> to vector<2x9x1xf32>
    %31 = vector.shape_cast %1 : vector<2x9xf32> to vector<2x1x9xf32>
    %32 = vector.broadcast %30 : vector<2x9x1xf32> to vector<2x9x9xf32>
    %33 = vector.broadcast %31 : vector<2x1x9xf32> to vector<2x9x9xf32>
    %34 = arith.mulf %32, %33 : vector<2x9x9xf32>
    %cst_18 = arith.constant 5.000000e-01 : f32
    %35 = vector.broadcast %cst_18 : f32 to vector<2x9x9xf32>
    %36 = arith.cmpf ogt, %34, %35 : vector<2x9x9xf32>
    %cst_19 = arith.constant 0.000000e+00 : f32
    %37 = vector.broadcast %cst_19 : f32 to vector<2x8xf32>
    %38 = vector.extract_strided_slice %27 {offsets = [0, 0, 0], sizes = [2, 9, 8], strides = [1, 1, 1]} : vector<2x9x48xf32> to vector<2x9x8xf32>
    %39 = vector.extract_strided_slice %27 {offsets = [0, 0, 16], sizes = [2, 9, 8], strides = [1, 1, 1]} : vector<2x9x48xf32> to vector<2x9x8xf32>
    %40 = vector.extract_strided_slice %28 {offsets = [0, 0, 0], sizes = [2, 9, 8], strides = [1, 1, 1]} : vector<2x9x16xf32> to vector<2x9x8xf32>
    "tpu.trace_start"() <{level = 10 : i32, message = "bid,bjd->bij"}> : () -> ()
    %cst_20 = arith.constant dense<0.000000e+00> : vector<2x9x9xf32>
    %41 = tpu.matmul %38, %39, %cst_20 {dimension_numbers = #tpu.dot_dimension_numbers<[2], [2], [1], [1], [0, 0, 0, 1, 1, 1], [0], [0]>} : vector<2x9x8xf32>, vector<2x9x8xf32>, vector<2x9x9xf32> -> vector<2x9x9xf32>
    "tpu.trace_stop"() : () -> ()
    %cst_21 = arith.constant 0.353553385 : f32
    %42 = vector.broadcast %cst_21 : f32 to vector<2x9x9xf32>
    %43 = arith.mulf %41, %42 : vector<2x9x9xf32>
    %cst_22 = arith.constant -1.000000e+30 : f32
    %44 = vector.broadcast %cst_22 : f32 to vector<2x9x9xf32>
    %45 = arith.select %36, %43, %44 : vector<2x9x9xi1>, vector<2x9x9xf32>
    %cst_23 = arith.constant dense<0xFF800000> : vector<2x9xf32>
    %46 = vector.multi_reduction <maximumf>, %45, %cst_23 [2] : vector<2x9x9xf32> to vector<2x9xf32>
    %47 = vector.shape_cast %46 : vector<2x9xf32> to vector<2x9x1xf32>
    %48 = vector.broadcast %47 : vector<2x9x1xf32> to vector<2x9x9xf32>
    %49 = arith.subf %45, %48 : vector<2x9x9xf32>
    %50 = math.exp %49 : vector<2x9x9xf32>
    %cst_24 = arith.constant dense<0.000000e+00> : vector<2x9xf32>
    %51 = vector.multi_reduction <add>, %50, %cst_24 [2] : vector<2x9x9xf32> to vector<2x9xf32>
    %52 = vector.shape_cast %51 : vector<2x9xf32> to vector<2x9x1xf32>
    %53 = vector.broadcast %52 : vector<2x9x1xf32> to vector<2x9x9xf32>
    %54 = arith.divf %50, %53 : vector<2x9x9xf32>
    %c0_25 = arith.constant 0 : index
    %c0_26 = arith.constant 0 : index
    %c0_27 = arith.constant 0 : index
    %c0_28 = arith.constant 0 : index
    %55 = vector.load %arg5[%c0_25, %c0_26, %c0_27, %c0_28] : memref<2x2x9x9xf32, #tpu.memory_space<vmem>>, vector<1x2x9x9xf32>
    %56 = vector.shape_cast %55 : vector<1x2x9x9xf32> to vector<2x9x9xf32>
    %57 = vector.shape_cast %54 : vector<2x9x9xf32> to vector<1x2x9x9xf32>
    tpu.vector_store %arg5[%c0_25, %c0_26, %c0_27, %c0_28], %57 {strides = array<i32>} : memref<2x2x9x9xf32, #tpu.memory_space<vmem>>, vector<1x2x9x9xf32>,
    %58 = vector.extract_strided_slice %40 {offsets = [0, 1, 0], sizes = [2, 8, 8], strides = [1, 1, 1]} : vector<2x9x8xf32> to vector<2x8x8xf32>
    %59 = vector.extract_strided_slice %40 {offsets = [0, 1, 0], sizes = [2, 8, 8], strides = [1, 1, 1]} : vector<2x9x8xf32> to vector<2x8x8xf32>
    %60 = arith.mulf %58, %59 : vector<2x8x8xf32>
    %cst_29 = arith.constant dense<0.000000e+00> : vector<2x8xf32>
    %61 = vector.multi_reduction <add>, %60, %cst_29 [2] : vector<2x8x8xf32> to vector<2x8xf32>
    %62 = math.sqrt %61 : vector<2x8xf32>
    %63 = vector.extract_strided_slice %54 {offsets = [0, 0, 1], sizes = [2, 1, 8], strides = [1, 1, 1]} : vector<2x9x9xf32> to vector<2x1x8xf32>
    %64 = vector.shape_cast %63 : vector<2x1x8xf32> to vector<2x8xf32>
    %65 = arith.mulf %64, %62 : vector<2x8xf32>
    %66 = arith.addf %37, %65 : vector<2x8xf32>
    %67 = vector.extract_strided_slice %27 {offsets = [0, 0, 8], sizes = [2, 9, 8], strides = [1, 1, 1]} : vector<2x9x48xf32> to vector<2x9x8xf32>
    %68 = vector.extract_strided_slice %27 {offsets = [0, 0, 24], sizes = [2, 9, 8], strides = [1, 1, 1]} : vector<2x9x48xf32> to vector<2x9x8xf32>
    %69 = vector.extract_strided_slice %28 {offsets = [0, 0, 8], sizes = [2, 9, 8], strides = [1, 1, 1]} : vector<2x9x16xf32> to vector<2x9x8xf32>
    "tpu.trace_start"() <{level = 10 : i32, message = "bid,bjd->bij"}> : () -> ()
    %cst_30 = arith.constant dense<0.000000e+00> : vector<2x9x9xf32>
    %70 = tpu.matmul %67, %68, %cst_30 {dimension_numbers = #tpu.dot_dimension_numbers<[2], [2], [1], [1], [0, 0, 0, 1, 1, 1], [0], [0]>} : vector<2x9x8xf32>, vector<2x9x8xf32>, vector<2x9x9xf32> -> vector<2x9x9xf32>
    "tpu.trace_stop"() : () -> ()
    %cst_31 = arith.constant 0.353553385 : f32
    %71 = vector.broadcast %cst_31 : f32 to vector<2x9x9xf32>
    %72 = arith.mulf %70, %71 : vector<2x9x9xf32>
    %cst_32 = arith.constant -1.000000e+30 : f32
    %73 = vector.broadcast %cst_32 : f32 to vector<2x9x9xf32>
    %74 = arith.select %36, %72, %73 : vector<2x9x9xi1>, vector<2x9x9xf32>
    %cst_33 = arith.constant dense<0xFF800000> : vector<2x9xf32>
    %75 = vector.multi_reduction <maximumf>, %74, %cst_33 [2] : vector<2x9x9xf32> to vector<2x9xf32>
    %76 = vector.shape_cast %75 : vector<2x9xf32> to vector<2x9x1xf32>
    %77 = vector.broadcast %76 : vector<2x9x1xf32> to vector<2x9x9xf32>
    %78 = arith.subf %74, %77 : vector<2x9x9xf32>
    %79 = math.exp %78 : vector<2x9x9xf32>
    %cst_34 = arith.constant dense<0.000000e+00> : vector<2x9xf32>
    %80 = vector.multi_reduction <add>, %79, %cst_34 [2] : vector<2x9x9xf32> to vector<2x9xf32>
    %81 = vector.shape_cast %80 : vector<2x9xf32> to vector<2x9x1xf32>
    %82 = vector.broadcast %81 : vector<2x9x1xf32> to vector<2x9x9xf32>
    %83 = arith.divf %79, %82 : vector<2x9x9xf32>
    %c1 = arith.constant 1 : index
    %c0_35 = arith.constant 0 : index
    %c0_36 = arith.constant 0 : index
    %c0_37 = arith.constant 0 : index
    %84 = vector.load %arg5[%c1, %c0_35, %c0_36, %c0_37] : memref<2x2x9x9xf32, #tpu.memory_space<vmem>>, vector<1x2x9x9xf32>
    %85 = vector.shape_cast %84 : vector<1x2x9x9xf32> to vector<2x9x9xf32>
    %86 = vector.shape_cast %83 : vector<2x9x9xf32> to vector<1x2x9x9xf32>
    tpu.vector_store %arg5[%c1, %c0_35, %c0_36, %c0_37], %86 {strides = array<i32>} : memref<2x2x9x9xf32, #tpu.memory_space<vmem>>, vector<1x2x9x9xf32>,
    %87 = vector.extract_strided_slice %69 {offsets = [0, 1, 0], sizes = [2, 8, 8], strides = [1, 1, 1]} : vector<2x9x8xf32> to vector<2x8x8xf32>
    %88 = vector.extract_strided_slice %69 {offsets = [0, 1, 0], sizes = [2, 8, 8], strides = [1, 1, 1]} : vector<2x9x8xf32> to vector<2x8x8xf32>
    %89 = arith.mulf %87, %88 : vector<2x8x8xf32>
    %cst_38 = arith.constant dense<0.000000e+00> : vector<2x8xf32>
    %90 = vector.multi_reduction <add>, %89, %cst_38 [2] : vector<2x8x8xf32> to vector<2x8xf32>
    %91 = math.sqrt %90 : vector<2x8xf32>
    %92 = vector.extract_strided_slice %83 {offsets = [0, 0, 1], sizes = [2, 1, 8], strides = [1, 1, 1]} : vector<2x9x9xf32> to vector<2x1x8xf32>
    %93 = vector.shape_cast %92 : vector<2x1x8xf32> to vector<2x8xf32>
    %94 = arith.mulf %93, %91 : vector<2x8xf32>
    %95 = arith.addf %66, %94 : vector<2x8xf32>
    %c0_39 = arith.constant 0 : index
    %c0_40 = arith.constant 0 : index
    %96 = vector.load %arg7[%c0_39, %c0_40] : memref<2x8xf32, #tpu.memory_space<vmem>>, vector<2x8xf32>
    tpu.vector_store %arg7[%c0_39, %c0_40], %95 {strides = array<i32>} : memref<2x8xf32, #tpu.memory_space<vmem>>, vector<2x8xf32>,
    return
  }
}

module attributes {stable_mosaic.version = 11 : i64} {
  func.func @_post_ff_kernel(%arg0: memref<2x7xi32, #tpu.memory_space<vmem>>, %arg1: memref<2x2x9x9xf32, #tpu.memory_space<vmem>>, %arg2: memref<2x9x16xf32, #tpu.memory_space<vmem>>, %arg3: memref<2x9x32xf32, #tpu.memory_space<vmem>>, %arg4: memref<16x32xf32, #tpu.memory_space<vmem>>, %arg5: memref<1x32xf32, #tpu.memory_space<vmem>>, %arg6: memref<1x32xf32, #tpu.memory_space<vmem>>, %arg7: memref<1x32xf32, #tpu.memory_space<vmem>>, %arg8: memref<32x64xf32, #tpu.memory_space<vmem>>, %arg9: memref<1x64xf32, #tpu.memory_space<vmem>>, %arg10: memref<64x32xf32, #tpu.memory_space<vmem>>, %arg11: memref<1x32xf32, #tpu.memory_space<vmem>>, %arg12: memref<14x32xf32, #tpu.memory_space<vmem>>) attributes {dimension_semantics = [], scalar_prefetch = 0 : i64, scratch_operands = 0 : i64, tpu.core_type = #tpu.core_type<tc>} {
    %c0 = arith.constant 0 : index
    %c0_0 = arith.constant 0 : index
    %0 = vector.load %arg0[%c0, %c0_0] : memref<2x7xi32, #tpu.memory_space<vmem>>, vector<2x7xi32>
    %1 = tpu.iota {dimensions = array<i32: 2>} : vector<2x7x9xi32>
    %2 = vector.shape_cast %0 : vector<2x7xi32> to vector<2x7x1xi32>
    %3 = vector.broadcast %2 : vector<2x7x1xi32> to vector<2x7x9xi32>
    %4 = arith.cmpi eq, %3, %1 : vector<2x7x9xi32>
    %5 = arith.extui %4 : vector<2x7x9xi1> to vector<2x7x9xi32>
    %6 = arith.sitofp %5 : vector<2x7x9xi32> to vector<2x7x9xf32>
    %c0_1 = arith.constant 0 : index
    %c0_2 = arith.constant 0 : index
    %c0_3 = arith.constant 0 : index
    %7 = vector.load %arg3[%c0_1, %c0_2, %c0_3] : memref<2x9x32xf32, #tpu.memory_space<vmem>>, vector<2x9x32xf32>
    %c0_4 = arith.constant 0 : index
    %c0_5 = arith.constant 0 : index
    %c0_6 = arith.constant 0 : index
    %8 = vector.load %arg2[%c0_4, %c0_5, %c0_6] : memref<2x9x16xf32, #tpu.memory_space<vmem>>, vector<2x9x16xf32>
    "tpu.trace_start"() <{level = 10 : i32, message = "brm,bmd->brd"}> : () -> ()
    %cst = arith.constant dense<0.000000e+00> : vector<2x7x32xf32>
    %9 = tpu.matmul %6, %7, %cst {dimension_numbers = #tpu.dot_dimension_numbers<[2], [1], [1], [2], [0, 0, 0, 1, 1, 2], [0], [0]>} : vector<2x7x9xf32>, vector<2x9x32xf32>, vector<2x7x32xf32> -> vector<2x7x32xf32>
    "tpu.trace_stop"() : () -> ()
    %10 = vector.shape_cast %9 : vector<2x7x32xf32> to vector<14x32xf32>
    %cst_7 = arith.constant 0.000000e+00 : f32
    %11 = vector.broadcast %cst_7 : f32 to vector<14x32xf32>
    %c0_8 = arith.constant 0 : index
    %c0_9 = arith.constant 0 : index
    %c0_10 = arith.constant 0 : index
    %c0_11 = arith.constant 0 : index
    %12 = vector.load %arg1[%c0_8, %c0_9, %c0_10, %c0_11] : memref<2x2x9x9xf32, #tpu.memory_space<vmem>>, vector<1x2x9x9xf32>
    %13 = vector.shape_cast %12 : vector<1x2x9x9xf32> to vector<2x9x9xf32>
    "tpu.trace_start"() <{level = 10 : i32, message = "brm,bmk->brk"}> : () -> ()
    %cst_12 = arith.constant dense<0.000000e+00> : vector<2x7x9xf32>
    %14 = tpu.matmul %6, %13, %cst_12 {dimension_numbers = #tpu.dot_dimension_numbers<[2], [1], [1], [2], [0, 0, 0, 1, 1, 2], [0], [0]>} : vector<2x7x9xf32>, vector<2x9x9xf32>, vector<2x7x9xf32> -> vector<2x7x9xf32>
    "tpu.trace_stop"() : () -> ()
    %15 = vector.extract_strided_slice %8 {offsets = [0, 0, 0], sizes = [2, 9, 8], strides = [1, 1, 1]} : vector<2x9x16xf32> to vector<2x9x8xf32>
    "tpu.trace_start"() <{level = 10 : i32, message = "brk,bkd->brd"}> : () -> ()
    %cst_13 = arith.constant dense<0.000000e+00> : vector<2x7x8xf32>
    %16 = tpu.matmul %14, %15, %cst_13 {dimension_numbers = #tpu.dot_dimension_numbers<[2], [1], [1], [2], [0, 0, 0, 1, 1, 2], [0], [0]>} : vector<2x7x9xf32>, vector<2x9x8xf32>, vector<2x7x8xf32> -> vector<2x7x8xf32>
    "tpu.trace_stop"() : () -> ()
    %17 = vector.shape_cast %16 : vector<2x7x8xf32> to vector<14x8xf32>
    %c0_14 = arith.constant 0 : index
    %c0_15 = arith.constant 0 : index
    %18 = vector.load %arg4[%c0_14, %c0_15] : memref<16x32xf32, #tpu.memory_space<vmem>>, vector<8x32xf32>
    %cst_16 = arith.constant dense<0.000000e+00> : vector<14x32xf32>
    %19 = tpu.matmul %17, %18, %cst_16 {dimension_numbers = #tpu.dot_dimension_numbers<[1], [0], [0], [1], [0, 0, 1, 1], [], []>} : vector<14x8xf32>, vector<8x32xf32>, vector<14x32xf32> -> vector<14x32xf32>
    %20 = arith.addf %11, %19 : vector<14x32xf32>
    %c1 = arith.constant 1 : index
    %c0_17 = arith.constant 0 : index
    %c0_18 = arith.constant 0 : index
    %c0_19 = arith.constant 0 : index
    %21 = vector.load %arg1[%c1, %c0_17, %c0_18, %c0_19] : memref<2x2x9x9xf32, #tpu.memory_space<vmem>>, vector<1x2x9x9xf32>
    %22 = vector.shape_cast %21 : vector<1x2x9x9xf32> to vector<2x9x9xf32>
    "tpu.trace_start"() <{level = 10 : i32, message = "brm,bmk->brk"}> : () -> ()
    %cst_20 = arith.constant dense<0.000000e+00> : vector<2x7x9xf32>
    %23 = tpu.matmul %6, %22, %cst_20 {dimension_numbers = #tpu.dot_dimension_numbers<[2], [1], [1], [2], [0, 0, 0, 1, 1, 2], [0], [0]>} : vector<2x7x9xf32>, vector<2x9x9xf32>, vector<2x7x9xf32> -> vector<2x7x9xf32>
    "tpu.trace_stop"() : () -> ()
    %24 = vector.extract_strided_slice %8 {offsets = [0, 0, 8], sizes = [2, 9, 8], strides = [1, 1, 1]} : vector<2x9x16xf32> to vector<2x9x8xf32>
    "tpu.trace_start"() <{level = 10 : i32, message = "brk,bkd->brd"}> : () -> ()
    %cst_21 = arith.constant dense<0.000000e+00> : vector<2x7x8xf32>
    %25 = tpu.matmul %23, %24, %cst_21 {dimension_numbers = #tpu.dot_dimension_numbers<[2], [1], [1], [2], [0, 0, 0, 1, 1, 2], [0], [0]>} : vector<2x7x9xf32>, vector<2x9x8xf32>, vector<2x7x8xf32> -> vector<2x7x8xf32>
    "tpu.trace_stop"() : () -> ()
    %26 = vector.shape_cast %25 : vector<2x7x8xf32> to vector<14x8xf32>
    %c8 = arith.constant 8 : index
    %c0_22 = arith.constant 0 : index
    %27 = vector.load %arg4[%c8, %c0_22] : memref<16x32xf32, #tpu.memory_space<vmem>>, vector<8x32xf32>
    %cst_23 = arith.constant dense<0.000000e+00> : vector<14x32xf32>
    %28 = tpu.matmul %26, %27, %cst_23 {dimension_numbers = #tpu.dot_dimension_numbers<[1], [0], [0], [1], [0, 0, 1, 1], [], []>} : vector<14x8xf32>, vector<8x32xf32>, vector<14x32xf32> -> vector<14x32xf32>
    %29 = arith.addf %20, %28 : vector<14x32xf32>
    %30 = arith.addf %10, %29 : vector<14x32xf32>
    %c0_24 = arith.constant 0 : index
    %c0_25 = arith.constant 0 : index
    %31 = vector.load %arg5[%c0_24, %c0_25] : memref<1x32xf32, #tpu.memory_space<vmem>>, vector<1x32xf32>
    %32 = vector.broadcast %31 : vector<1x32xf32> to vector<14x32xf32>
    %33 = arith.addf %30, %32 : vector<14x32xf32>
    %c0_26 = arith.constant 0 : index
    %c0_27 = arith.constant 0 : index
    %34 = vector.load %arg6[%c0_26, %c0_27] : memref<1x32xf32, #tpu.memory_space<vmem>>, vector<1x32xf32>
    %c0_28 = arith.constant 0 : index
    %c0_29 = arith.constant 0 : index
    %35 = vector.load %arg7[%c0_28, %c0_29] : memref<1x32xf32, #tpu.memory_space<vmem>>, vector<1x32xf32>
    %cst_30 = arith.constant dense<0.000000e+00> : vector<14xf32>
    %36 = vector.multi_reduction <add>, %33, %cst_30 [1] : vector<14x32xf32> to vector<14xf32>
    %37 = vector.shape_cast %36 : vector<14xf32> to vector<14x1xf32>
    %cst_31 = arith.constant 3.200000e+01 : f32
    %38 = vector.broadcast %cst_31 : f32 to vector<14x1xf32>
    %39 = arith.divf %37, %38 : vector<14x1xf32>
    %40 = vector.broadcast %39 : vector<14x1xf32> to vector<14x32xf32>
    %41 = arith.subf %33, %40 : vector<14x32xf32>
    %42 = arith.mulf %41, %41 : vector<14x32xf32>
    %cst_32 = arith.constant dense<0.000000e+00> : vector<14xf32>
    %43 = vector.multi_reduction <add>, %42, %cst_32 [1] : vector<14x32xf32> to vector<14xf32>
    %44 = vector.shape_cast %43 : vector<14xf32> to vector<14x1xf32>
    %cst_33 = arith.constant 3.200000e+01 : f32
    %45 = vector.broadcast %cst_33 : f32 to vector<14x1xf32>
    %46 = arith.divf %44, %45 : vector<14x1xf32>
    %cst_34 = arith.constant 9.99999974E-6 : f32
    %47 = vector.broadcast %cst_34 : f32 to vector<14x1xf32>
    %48 = arith.addf %46, %47 : vector<14x1xf32>
    %49 = math.rsqrt %48 : vector<14x1xf32>
    %50 = vector.broadcast %49 : vector<14x1xf32> to vector<14x32xf32>
    %51 = arith.mulf %41, %50 : vector<14x32xf32>
    %52 = vector.broadcast %34 : vector<1x32xf32> to vector<14x32xf32>
    %53 = arith.mulf %51, %52 : vector<14x32xf32>
    %54 = vector.broadcast %35 : vector<1x32xf32> to vector<14x32xf32>
    %55 = arith.addf %53, %54 : vector<14x32xf32>
    %c0_35 = arith.constant 0 : index
    %c0_36 = arith.constant 0 : index
    %56 = vector.load %arg8[%c0_35, %c0_36] : memref<32x64xf32, #tpu.memory_space<vmem>>, vector<32x64xf32>
    %cst_37 = arith.constant dense<0.000000e+00> : vector<14x64xf32>
    %57 = tpu.matmul %55, %56, %cst_37 {dimension_numbers = #tpu.dot_dimension_numbers<[1], [0], [0], [1], [0, 0, 1, 1], [], []>} : vector<14x32xf32>, vector<32x64xf32>, vector<14x64xf32> -> vector<14x64xf32>
    %c0_38 = arith.constant 0 : index
    %c0_39 = arith.constant 0 : index
    %58 = vector.load %arg9[%c0_38, %c0_39] : memref<1x64xf32, #tpu.memory_space<vmem>>, vector<1x64xf32>
    %59 = vector.broadcast %58 : vector<1x64xf32> to vector<14x64xf32>
    %60 = arith.addf %57, %59 : vector<14x64xf32>
    %cst_40 = arith.constant 5.000000e-01 : f32
    %61 = vector.broadcast %cst_40 : f32 to vector<14x64xf32>
    %62 = arith.mulf %61, %60 : vector<14x64xf32>
    %cst_41 = arith.constant 0.707106769 : f32
    %63 = vector.broadcast %cst_41 : f32 to vector<14x64xf32>
    %64 = arith.mulf %60, %63 : vector<14x64xf32>
    %cst_42 = arith.constant 0.000000e+00 : f32
    %65 = vector.broadcast %cst_42 : f32 to vector<14x64xf32>
    %66 = arith.cmpf oge, %64, %65 : vector<14x64xf32>
    %cst_43 = arith.constant 1.000000e+00 : f32
    %cst_44 = arith.constant -1.000000e+00 : f32
    %67 = vector.broadcast %cst_43 : f32 to vector<14x64xf32>
    %68 = vector.broadcast %cst_44 : f32 to vector<14x64xf32>
    %69 = arith.select %66, %67, %68 : vector<14x64xi1>, vector<14x64xf32>
    %70 = math.absf %64 : vector<14x64xf32>
    %cst_45 = arith.constant 0.327591091 : f32
    %71 = vector.broadcast %cst_45 : f32 to vector<14x64xf32>
    %72 = arith.mulf %71, %70 : vector<14x64xf32>
    %cst_46 = arith.constant 1.000000e+00 : f32
    %73 = vector.broadcast %cst_46 : f32 to vector<14x64xf32>
    %74 = arith.addf %73, %72 : vector<14x64xf32>
    %cst_47 = arith.constant 1.000000e+00 : f32
    %75 = vector.broadcast %cst_47 : f32 to vector<14x64xf32>
    %76 = arith.divf %75, %74 : vector<14x64xf32>
    %cst_48 = arith.constant 1.06140542 : f32
    %77 = vector.broadcast %cst_48 : f32 to vector<14x64xf32>
    %78 = arith.mulf %77, %76 : vector<14x64xf32>
    %cst_49 = arith.constant -1.45315206 : f32
    %79 = vector.broadcast %cst_49 : f32 to vector<14x64xf32>
    %80 = arith.addf %78, %79 : vector<14x64xf32>
    %81 = arith.mulf %80, %76 : vector<14x64xf32>
    %cst_50 = arith.constant 1.42141378 : f32
    %82 = vector.broadcast %cst_50 : f32 to vector<14x64xf32>
    %83 = arith.addf %81, %82 : vector<14x64xf32>
    %84 = arith.mulf %83, %76 : vector<14x64xf32>
    %cst_51 = arith.constant -0.284496725 : f32
    %85 = vector.broadcast %cst_51 : f32 to vector<14x64xf32>
    %86 = arith.addf %84, %85 : vector<14x64xf32>
    %87 = arith.mulf %86, %76 : vector<14x64xf32>
    %cst_52 = arith.constant 0.254829586 : f32
    %88 = vector.broadcast %cst_52 : f32 to vector<14x64xf32>
    %89 = arith.addf %87, %88 : vector<14x64xf32>
    %90 = arith.mulf %89, %76 : vector<14x64xf32>
    %cst_53 = arith.constant 0.000000e+00 : f32
    %91 = vector.broadcast %cst_53 : f32 to vector<14x64xf32>
    %92 = arith.subf %91, %70 : vector<14x64xf32>
    %93 = arith.mulf %92, %70 : vector<14x64xf32>
    %94 = math.exp %93 : vector<14x64xf32>
    %95 = arith.mulf %90, %94 : vector<14x64xf32>
    %cst_54 = arith.constant 1.000000e+00 : f32
    %96 = vector.broadcast %cst_54 : f32 to vector<14x64xf32>
    %97 = arith.subf %96, %95 : vector<14x64xf32>
    %98 = arith.mulf %69, %97 : vector<14x64xf32>
    %cst_55 = arith.constant 1.000000e+00 : f32
    %99 = vector.broadcast %cst_55 : f32 to vector<14x64xf32>
    %100 = arith.addf %99, %98 : vector<14x64xf32>
    %101 = arith.mulf %62, %100 : vector<14x64xf32>
    %c0_56 = arith.constant 0 : index
    %c0_57 = arith.constant 0 : index
    %102 = vector.load %arg10[%c0_56, %c0_57] : memref<64x32xf32, #tpu.memory_space<vmem>>, vector<64x32xf32>
    %cst_58 = arith.constant dense<0.000000e+00> : vector<14x32xf32>
    %103 = tpu.matmul %101, %102, %cst_58 {dimension_numbers = #tpu.dot_dimension_numbers<[1], [0], [0], [1], [0, 0, 1, 1], [], []>} : vector<14x64xf32>, vector<64x32xf32>, vector<14x32xf32> -> vector<14x32xf32>
    %c0_59 = arith.constant 0 : index
    %c0_60 = arith.constant 0 : index
    %104 = vector.load %arg11[%c0_59, %c0_60] : memref<1x32xf32, #tpu.memory_space<vmem>>, vector<1x32xf32>
    %105 = vector.broadcast %104 : vector<1x32xf32> to vector<14x32xf32>
    %106 = arith.addf %103, %105 : vector<14x32xf32>
    %107 = arith.addf %33, %106 : vector<14x32xf32>
    %c0_61 = arith.constant 0 : index
    %c0_62 = arith.constant 0 : index
    %108 = vector.load %arg12[%c0_61, %c0_62] : memref<14x32xf32, #tpu.memory_space<vmem>>, vector<14x32xf32>
    tpu.vector_store %arg12[%c0_61, %c0_62], %107 {strides = array<i32>} : memref<14x32xf32, #tpu.memory_space<vmem>>, vector<14x32xf32>,
    return
  }
}

module attributes {stable_mosaic.version = 11 : i64} {
  func.func @_attn_pre_kernel(%arg0: memref<2x7x32xf32, #tpu.memory_space<vmem>>, %arg1: memref<2x7xf32, #tpu.memory_space<vmem>>, %arg2: memref<1x32xf32, #tpu.memory_space<vmem>>, %arg3: memref<1x32xf32, #tpu.memory_space<vmem>>, %arg4: memref<32x48xf32, #tpu.memory_space<vmem>>, %arg5: memref<2x2x7x7xf32, #tpu.memory_space<vmem>>, %arg6: memref<2x7x16xf32, #tpu.memory_space<vmem>>, %arg7: memref<2x6xf32, #tpu.memory_space<vmem>>) attributes {dimension_semantics = [], scalar_prefetch = 0 : i64, scratch_operands = 0 : i64, tpu.core_type = #tpu.core_type<tc>} {
    %c0 = arith.constant 0 : index
    %c0_0 = arith.constant 0 : index
    %c0_1 = arith.constant 0 : index
    %0 = vector.load %arg0[%c0, %c0_0, %c0_1] : memref<2x7x32xf32, #tpu.memory_space<vmem>>, vector<2x7x32xf32>
    %c0_2 = arith.constant 0 : index
    %c0_3 = arith.constant 0 : index
    %1 = vector.load %arg1[%c0_2, %c0_3] : memref<2x7xf32, #tpu.memory_space<vmem>>, vector<2x7xf32>
    %2 = vector.shape_cast %0 : vector<2x7x32xf32> to vector<14x32xf32>
    %c0_4 = arith.constant 0 : index
    %c0_5 = arith.constant 0 : index
    %3 = vector.load %arg2[%c0_4, %c0_5] : memref<1x32xf32, #tpu.memory_space<vmem>>, vector<1x32xf32>
    %c0_6 = arith.constant 0 : index
    %c0_7 = arith.constant 0 : index
    %4 = vector.load %arg3[%c0_6, %c0_7] : memref<1x32xf32, #tpu.memory_space<vmem>>, vector<1x32xf32>
    %cst = arith.constant dense<0.000000e+00> : vector<14xf32>
    %5 = vector.multi_reduction <add>, %2, %cst [1] : vector<14x32xf32> to vector<14xf32>
    %6 = vector.shape_cast %5 : vector<14xf32> to vector<14x1xf32>
    %cst_8 = arith.constant 3.200000e+01 : f32
    %7 = vector.broadcast %cst_8 : f32 to vector<14x1xf32>
    %8 = arith.divf %6, %7 : vector<14x1xf32>
    %9 = vector.broadcast %8 : vector<14x1xf32> to vector<14x32xf32>
    %10 = arith.subf %2, %9 : vector<14x32xf32>
    %11 = arith.mulf %10, %10 : vector<14x32xf32>
    %cst_9 = arith.constant dense<0.000000e+00> : vector<14xf32>
    %12 = vector.multi_reduction <add>, %11, %cst_9 [1] : vector<14x32xf32> to vector<14xf32>
    %13 = vector.shape_cast %12 : vector<14xf32> to vector<14x1xf32>
    %cst_10 = arith.constant 3.200000e+01 : f32
    %14 = vector.broadcast %cst_10 : f32 to vector<14x1xf32>
    %15 = arith.divf %13, %14 : vector<14x1xf32>
    %cst_11 = arith.constant 9.99999974E-6 : f32
    %16 = vector.broadcast %cst_11 : f32 to vector<14x1xf32>
    %17 = arith.addf %15, %16 : vector<14x1xf32>
    %18 = math.rsqrt %17 : vector<14x1xf32>
    %19 = vector.broadcast %18 : vector<14x1xf32> to vector<14x32xf32>
    %20 = arith.mulf %10, %19 : vector<14x32xf32>
    %21 = vector.broadcast %3 : vector<1x32xf32> to vector<14x32xf32>
    %22 = arith.mulf %20, %21 : vector<14x32xf32>
    %23 = vector.broadcast %4 : vector<1x32xf32> to vector<14x32xf32>
    %24 = arith.addf %22, %23 : vector<14x32xf32>
    %c0_12 = arith.constant 0 : index
    %c0_13 = arith.constant 0 : index
    %25 = vector.load %arg4[%c0_12, %c0_13] : memref<32x48xf32, #tpu.memory_space<vmem>>, vector<32x48xf32>
    %cst_14 = arith.constant dense<0.000000e+00> : vector<14x48xf32>
    %26 = tpu.matmul %24, %25, %cst_14 {dimension_numbers = #tpu.dot_dimension_numbers<[1], [0], [0], [1], [0, 0, 1, 1], [], []>} : vector<14x32xf32>, vector<32x48xf32>, vector<14x48xf32> -> vector<14x48xf32>
    %27 = vector.shape_cast %26 : vector<14x48xf32> to vector<2x7x48xf32>
    %28 = vector.extract_strided_slice %27 {offsets = [0, 0, 32], sizes = [2, 7, 16], strides = [1, 1, 1]} : vector<2x7x48xf32> to vector<2x7x16xf32>
    %c0_15 = arith.constant 0 : index
    %c0_16 = arith.constant 0 : index
    %c0_17 = arith.constant 0 : index
    %29 = vector.load %arg6[%c0_15, %c0_16, %c0_17] : memref<2x7x16xf32, #tpu.memory_space<vmem>>, vector<2x7x16xf32>
    tpu.vector_store %arg6[%c0_15, %c0_16, %c0_17], %28 {strides = array<i32>} : memref<2x7x16xf32, #tpu.memory_space<vmem>>, vector<2x7x16xf32>,
    %30 = vector.shape_cast %1 : vector<2x7xf32> to vector<2x7x1xf32>
    %31 = vector.shape_cast %1 : vector<2x7xf32> to vector<2x1x7xf32>
    %32 = vector.broadcast %30 : vector<2x7x1xf32> to vector<2x7x7xf32>
    %33 = vector.broadcast %31 : vector<2x1x7xf32> to vector<2x7x7xf32>
    %34 = arith.mulf %32, %33 : vector<2x7x7xf32>
    %cst_18 = arith.constant 5.000000e-01 : f32
    %35 = vector.broadcast %cst_18 : f32 to vector<2x7x7xf32>
    %36 = arith.cmpf ogt, %34, %35 : vector<2x7x7xf32>
    %cst_19 = arith.constant 0.000000e+00 : f32
    %37 = vector.broadcast %cst_19 : f32 to vector<2x6xf32>
    %38 = vector.extract_strided_slice %27 {offsets = [0, 0, 0], sizes = [2, 7, 8], strides = [1, 1, 1]} : vector<2x7x48xf32> to vector<2x7x8xf32>
    %39 = vector.extract_strided_slice %27 {offsets = [0, 0, 16], sizes = [2, 7, 8], strides = [1, 1, 1]} : vector<2x7x48xf32> to vector<2x7x8xf32>
    %40 = vector.extract_strided_slice %28 {offsets = [0, 0, 0], sizes = [2, 7, 8], strides = [1, 1, 1]} : vector<2x7x16xf32> to vector<2x7x8xf32>
    "tpu.trace_start"() <{level = 10 : i32, message = "bid,bjd->bij"}> : () -> ()
    %cst_20 = arith.constant dense<0.000000e+00> : vector<2x7x7xf32>
    %41 = tpu.matmul %38, %39, %cst_20 {dimension_numbers = #tpu.dot_dimension_numbers<[2], [2], [1], [1], [0, 0, 0, 1, 1, 1], [0], [0]>} : vector<2x7x8xf32>, vector<2x7x8xf32>, vector<2x7x7xf32> -> vector<2x7x7xf32>
    "tpu.trace_stop"() : () -> ()
    %cst_21 = arith.constant 0.353553385 : f32
    %42 = vector.broadcast %cst_21 : f32 to vector<2x7x7xf32>
    %43 = arith.mulf %41, %42 : vector<2x7x7xf32>
    %cst_22 = arith.constant -1.000000e+30 : f32
    %44 = vector.broadcast %cst_22 : f32 to vector<2x7x7xf32>
    %45 = arith.select %36, %43, %44 : vector<2x7x7xi1>, vector<2x7x7xf32>
    %cst_23 = arith.constant dense<0xFF800000> : vector<2x7xf32>
    %46 = vector.multi_reduction <maximumf>, %45, %cst_23 [2] : vector<2x7x7xf32> to vector<2x7xf32>
    %47 = vector.shape_cast %46 : vector<2x7xf32> to vector<2x7x1xf32>
    %48 = vector.broadcast %47 : vector<2x7x1xf32> to vector<2x7x7xf32>
    %49 = arith.subf %45, %48 : vector<2x7x7xf32>
    %50 = math.exp %49 : vector<2x7x7xf32>
    %cst_24 = arith.constant dense<0.000000e+00> : vector<2x7xf32>
    %51 = vector.multi_reduction <add>, %50, %cst_24 [2] : vector<2x7x7xf32> to vector<2x7xf32>
    %52 = vector.shape_cast %51 : vector<2x7xf32> to vector<2x7x1xf32>
    %53 = vector.broadcast %52 : vector<2x7x1xf32> to vector<2x7x7xf32>
    %54 = arith.divf %50, %53 : vector<2x7x7xf32>
    %c0_25 = arith.constant 0 : index
    %c0_26 = arith.constant 0 : index
    %c0_27 = arith.constant 0 : index
    %c0_28 = arith.constant 0 : index
    %55 = vector.load %arg5[%c0_25, %c0_26, %c0_27, %c0_28] : memref<2x2x7x7xf32, #tpu.memory_space<vmem>>, vector<1x2x7x7xf32>
    %56 = vector.shape_cast %55 : vector<1x2x7x7xf32> to vector<2x7x7xf32>
    %57 = vector.shape_cast %54 : vector<2x7x7xf32> to vector<1x2x7x7xf32>
    tpu.vector_store %arg5[%c0_25, %c0_26, %c0_27, %c0_28], %57 {strides = array<i32>} : memref<2x2x7x7xf32, #tpu.memory_space<vmem>>, vector<1x2x7x7xf32>,
    %58 = vector.extract_strided_slice %40 {offsets = [0, 1, 0], sizes = [2, 6, 8], strides = [1, 1, 1]} : vector<2x7x8xf32> to vector<2x6x8xf32>
    %59 = vector.extract_strided_slice %40 {offsets = [0, 1, 0], sizes = [2, 6, 8], strides = [1, 1, 1]} : vector<2x7x8xf32> to vector<2x6x8xf32>
    %60 = arith.mulf %58, %59 : vector<2x6x8xf32>
    %cst_29 = arith.constant dense<0.000000e+00> : vector<2x6xf32>
    %61 = vector.multi_reduction <add>, %60, %cst_29 [2] : vector<2x6x8xf32> to vector<2x6xf32>
    %62 = math.sqrt %61 : vector<2x6xf32>
    %63 = vector.extract_strided_slice %54 {offsets = [0, 0, 1], sizes = [2, 1, 6], strides = [1, 1, 1]} : vector<2x7x7xf32> to vector<2x1x6xf32>
    %64 = vector.shape_cast %63 : vector<2x1x6xf32> to vector<2x6xf32>
    %65 = arith.mulf %64, %62 : vector<2x6xf32>
    %66 = arith.addf %37, %65 : vector<2x6xf32>
    %67 = vector.extract_strided_slice %27 {offsets = [0, 0, 8], sizes = [2, 7, 8], strides = [1, 1, 1]} : vector<2x7x48xf32> to vector<2x7x8xf32>
    %68 = vector.extract_strided_slice %27 {offsets = [0, 0, 24], sizes = [2, 7, 8], strides = [1, 1, 1]} : vector<2x7x48xf32> to vector<2x7x8xf32>
    %69 = vector.extract_strided_slice %28 {offsets = [0, 0, 8], sizes = [2, 7, 8], strides = [1, 1, 1]} : vector<2x7x16xf32> to vector<2x7x8xf32>
    "tpu.trace_start"() <{level = 10 : i32, message = "bid,bjd->bij"}> : () -> ()
    %cst_30 = arith.constant dense<0.000000e+00> : vector<2x7x7xf32>
    %70 = tpu.matmul %67, %68, %cst_30 {dimension_numbers = #tpu.dot_dimension_numbers<[2], [2], [1], [1], [0, 0, 0, 1, 1, 1], [0], [0]>} : vector<2x7x8xf32>, vector<2x7x8xf32>, vector<2x7x7xf32> -> vector<2x7x7xf32>
    "tpu.trace_stop"() : () -> ()
    %cst_31 = arith.constant 0.353553385 : f32
    %71 = vector.broadcast %cst_31 : f32 to vector<2x7x7xf32>
    %72 = arith.mulf %70, %71 : vector<2x7x7xf32>
    %cst_32 = arith.constant -1.000000e+30 : f32
    %73 = vector.broadcast %cst_32 : f32 to vector<2x7x7xf32>
    %74 = arith.select %36, %72, %73 : vector<2x7x7xi1>, vector<2x7x7xf32>
    %cst_33 = arith.constant dense<0xFF800000> : vector<2x7xf32>
    %75 = vector.multi_reduction <maximumf>, %74, %cst_33 [2] : vector<2x7x7xf32> to vector<2x7xf32>
    %76 = vector.shape_cast %75 : vector<2x7xf32> to vector<2x7x1xf32>
    %77 = vector.broadcast %76 : vector<2x7x1xf32> to vector<2x7x7xf32>
    %78 = arith.subf %74, %77 : vector<2x7x7xf32>
    %79 = math.exp %78 : vector<2x7x7xf32>
    %cst_34 = arith.constant dense<0.000000e+00> : vector<2x7xf32>
    %80 = vector.multi_reduction <add>, %79, %cst_34 [2] : vector<2x7x7xf32> to vector<2x7xf32>
    %81 = vector.shape_cast %80 : vector<2x7xf32> to vector<2x7x1xf32>
    %82 = vector.broadcast %81 : vector<2x7x1xf32> to vector<2x7x7xf32>
    %83 = arith.divf %79, %82 : vector<2x7x7xf32>
    %c1 = arith.constant 1 : index
    %c0_35 = arith.constant 0 : index
    %c0_36 = arith.constant 0 : index
    %c0_37 = arith.constant 0 : index
    %84 = vector.load %arg5[%c1, %c0_35, %c0_36, %c0_37] : memref<2x2x7x7xf32, #tpu.memory_space<vmem>>, vector<1x2x7x7xf32>
    %85 = vector.shape_cast %84 : vector<1x2x7x7xf32> to vector<2x7x7xf32>
    %86 = vector.shape_cast %83 : vector<2x7x7xf32> to vector<1x2x7x7xf32>
    tpu.vector_store %arg5[%c1, %c0_35, %c0_36, %c0_37], %86 {strides = array<i32>} : memref<2x2x7x7xf32, #tpu.memory_space<vmem>>, vector<1x2x7x7xf32>,
    %87 = vector.extract_strided_slice %69 {offsets = [0, 1, 0], sizes = [2, 6, 8], strides = [1, 1, 1]} : vector<2x7x8xf32> to vector<2x6x8xf32>
    %88 = vector.extract_strided_slice %69 {offsets = [0, 1, 0], sizes = [2, 6, 8], strides = [1, 1, 1]} : vector<2x7x8xf32> to vector<2x6x8xf32>
    %89 = arith.mulf %87, %88 : vector<2x6x8xf32>
    %cst_38 = arith.constant dense<0.000000e+00> : vector<2x6xf32>
    %90 = vector.multi_reduction <add>, %89, %cst_38 [2] : vector<2x6x8xf32> to vector<2x6xf32>
    %91 = math.sqrt %90 : vector<2x6xf32>
    %92 = vector.extract_strided_slice %83 {offsets = [0, 0, 1], sizes = [2, 1, 6], strides = [1, 1, 1]} : vector<2x7x7xf32> to vector<2x1x6xf32>
    %93 = vector.shape_cast %92 : vector<2x1x6xf32> to vector<2x6xf32>
    %94 = arith.mulf %93, %91 : vector<2x6xf32>
    %95 = arith.addf %66, %94 : vector<2x6xf32>
    %c0_39 = arith.constant 0 : index
    %c0_40 = arith.constant 0 : index
    %96 = vector.load %arg7[%c0_39, %c0_40] : memref<2x6xf32, #tpu.memory_space<vmem>>, vector<2x6xf32>
    tpu.vector_store %arg7[%c0_39, %c0_40], %95 {strides = array<i32>} : memref<2x6xf32, #tpu.memory_space<vmem>>, vector<2x6xf32>,
    return
  }
}

module attributes {stable_mosaic.version = 11 : i64} {
  func.func @_post_ff_kernel(%arg0: memref<2x5xi32, #tpu.memory_space<vmem>>, %arg1: memref<2x2x7x7xf32, #tpu.memory_space<vmem>>, %arg2: memref<2x7x16xf32, #tpu.memory_space<vmem>>, %arg3: memref<2x7x32xf32, #tpu.memory_space<vmem>>, %arg4: memref<16x32xf32, #tpu.memory_space<vmem>>, %arg5: memref<1x32xf32, #tpu.memory_space<vmem>>, %arg6: memref<1x32xf32, #tpu.memory_space<vmem>>, %arg7: memref<1x32xf32, #tpu.memory_space<vmem>>, %arg8: memref<32x64xf32, #tpu.memory_space<vmem>>, %arg9: memref<1x64xf32, #tpu.memory_space<vmem>>, %arg10: memref<64x32xf32, #tpu.memory_space<vmem>>, %arg11: memref<1x32xf32, #tpu.memory_space<vmem>>, %arg12: memref<10x32xf32, #tpu.memory_space<vmem>>) attributes {dimension_semantics = [], scalar_prefetch = 0 : i64, scratch_operands = 0 : i64, tpu.core_type = #tpu.core_type<tc>} {
    %c0 = arith.constant 0 : index
    %c0_0 = arith.constant 0 : index
    %0 = vector.load %arg0[%c0, %c0_0] : memref<2x5xi32, #tpu.memory_space<vmem>>, vector<2x5xi32>
    %1 = tpu.iota {dimensions = array<i32: 2>} : vector<2x5x7xi32>
    %2 = vector.shape_cast %0 : vector<2x5xi32> to vector<2x5x1xi32>
    %3 = vector.broadcast %2 : vector<2x5x1xi32> to vector<2x5x7xi32>
    %4 = arith.cmpi eq, %3, %1 : vector<2x5x7xi32>
    %5 = arith.extui %4 : vector<2x5x7xi1> to vector<2x5x7xi32>
    %6 = arith.sitofp %5 : vector<2x5x7xi32> to vector<2x5x7xf32>
    %c0_1 = arith.constant 0 : index
    %c0_2 = arith.constant 0 : index
    %c0_3 = arith.constant 0 : index
    %7 = vector.load %arg3[%c0_1, %c0_2, %c0_3] : memref<2x7x32xf32, #tpu.memory_space<vmem>>, vector<2x7x32xf32>
    %c0_4 = arith.constant 0 : index
    %c0_5 = arith.constant 0 : index
    %c0_6 = arith.constant 0 : index
    %8 = vector.load %arg2[%c0_4, %c0_5, %c0_6] : memref<2x7x16xf32, #tpu.memory_space<vmem>>, vector<2x7x16xf32>
    "tpu.trace_start"() <{level = 10 : i32, message = "brm,bmd->brd"}> : () -> ()
    %cst = arith.constant dense<0.000000e+00> : vector<2x5x32xf32>
    %9 = tpu.matmul %6, %7, %cst {dimension_numbers = #tpu.dot_dimension_numbers<[2], [1], [1], [2], [0, 0, 0, 1, 1, 2], [0], [0]>} : vector<2x5x7xf32>, vector<2x7x32xf32>, vector<2x5x32xf32> -> vector<2x5x32xf32>
    "tpu.trace_stop"() : () -> ()
    %10 = vector.shape_cast %9 : vector<2x5x32xf32> to vector<10x32xf32>
    %cst_7 = arith.constant 0.000000e+00 : f32
    %11 = vector.broadcast %cst_7 : f32 to vector<10x32xf32>
    %c0_8 = arith.constant 0 : index
    %c0_9 = arith.constant 0 : index
    %c0_10 = arith.constant 0 : index
    %c0_11 = arith.constant 0 : index
    %12 = vector.load %arg1[%c0_8, %c0_9, %c0_10, %c0_11] : memref<2x2x7x7xf32, #tpu.memory_space<vmem>>, vector<1x2x7x7xf32>
    %13 = vector.shape_cast %12 : vector<1x2x7x7xf32> to vector<2x7x7xf32>
    "tpu.trace_start"() <{level = 10 : i32, message = "brm,bmk->brk"}> : () -> ()
    %cst_12 = arith.constant dense<0.000000e+00> : vector<2x5x7xf32>
    %14 = tpu.matmul %6, %13, %cst_12 {dimension_numbers = #tpu.dot_dimension_numbers<[2], [1], [1], [2], [0, 0, 0, 1, 1, 2], [0], [0]>} : vector<2x5x7xf32>, vector<2x7x7xf32>, vector<2x5x7xf32> -> vector<2x5x7xf32>
    "tpu.trace_stop"() : () -> ()
    %15 = vector.extract_strided_slice %8 {offsets = [0, 0, 0], sizes = [2, 7, 8], strides = [1, 1, 1]} : vector<2x7x16xf32> to vector<2x7x8xf32>
    "tpu.trace_start"() <{level = 10 : i32, message = "brk,bkd->brd"}> : () -> ()
    %cst_13 = arith.constant dense<0.000000e+00> : vector<2x5x8xf32>
    %16 = tpu.matmul %14, %15, %cst_13 {dimension_numbers = #tpu.dot_dimension_numbers<[2], [1], [1], [2], [0, 0, 0, 1, 1, 2], [0], [0]>} : vector<2x5x7xf32>, vector<2x7x8xf32>, vector<2x5x8xf32> -> vector<2x5x8xf32>
    "tpu.trace_stop"() : () -> ()
    %17 = vector.shape_cast %16 : vector<2x5x8xf32> to vector<10x8xf32>
    %c0_14 = arith.constant 0 : index
    %c0_15 = arith.constant 0 : index
    %18 = vector.load %arg4[%c0_14, %c0_15] : memref<16x32xf32, #tpu.memory_space<vmem>>, vector<8x32xf32>
    %cst_16 = arith.constant dense<0.000000e+00> : vector<10x32xf32>
    %19 = tpu.matmul %17, %18, %cst_16 {dimension_numbers = #tpu.dot_dimension_numbers<[1], [0], [0], [1], [0, 0, 1, 1], [], []>} : vector<10x8xf32>, vector<8x32xf32>, vector<10x32xf32> -> vector<10x32xf32>
    %20 = arith.addf %11, %19 : vector<10x32xf32>
    %c1 = arith.constant 1 : index
    %c0_17 = arith.constant 0 : index
    %c0_18 = arith.constant 0 : index
    %c0_19 = arith.constant 0 : index
    %21 = vector.load %arg1[%c1, %c0_17, %c0_18, %c0_19] : memref<2x2x7x7xf32, #tpu.memory_space<vmem>>, vector<1x2x7x7xf32>
    %22 = vector.shape_cast %21 : vector<1x2x7x7xf32> to vector<2x7x7xf32>
    "tpu.trace_start"() <{level = 10 : i32, message = "brm,bmk->brk"}> : () -> ()
    %cst_20 = arith.constant dense<0.000000e+00> : vector<2x5x7xf32>
    %23 = tpu.matmul %6, %22, %cst_20 {dimension_numbers = #tpu.dot_dimension_numbers<[2], [1], [1], [2], [0, 0, 0, 1, 1, 2], [0], [0]>} : vector<2x5x7xf32>, vector<2x7x7xf32>, vector<2x5x7xf32> -> vector<2x5x7xf32>
    "tpu.trace_stop"() : () -> ()
    %24 = vector.extract_strided_slice %8 {offsets = [0, 0, 8], sizes = [2, 7, 8], strides = [1, 1, 1]} : vector<2x7x16xf32> to vector<2x7x8xf32>
    "tpu.trace_start"() <{level = 10 : i32, message = "brk,bkd->brd"}> : () -> ()
    %cst_21 = arith.constant dense<0.000000e+00> : vector<2x5x8xf32>
    %25 = tpu.matmul %23, %24, %cst_21 {dimension_numbers = #tpu.dot_dimension_numbers<[2], [1], [1], [2], [0, 0, 0, 1, 1, 2], [0], [0]>} : vector<2x5x7xf32>, vector<2x7x8xf32>, vector<2x5x8xf32> -> vector<2x5x8xf32>
    "tpu.trace_stop"() : () -> ()
    %26 = vector.shape_cast %25 : vector<2x5x8xf32> to vector<10x8xf32>
    %c8 = arith.constant 8 : index
    %c0_22 = arith.constant 0 : index
    %27 = vector.load %arg4[%c8, %c0_22] : memref<16x32xf32, #tpu.memory_space<vmem>>, vector<8x32xf32>
    %cst_23 = arith.constant dense<0.000000e+00> : vector<10x32xf32>
    %28 = tpu.matmul %26, %27, %cst_23 {dimension_numbers = #tpu.dot_dimension_numbers<[1], [0], [0], [1], [0, 0, 1, 1], [], []>} : vector<10x8xf32>, vector<8x32xf32>, vector<10x32xf32> -> vector<10x32xf32>
    %29 = arith.addf %20, %28 : vector<10x32xf32>
    %30 = arith.addf %10, %29 : vector<10x32xf32>
    %c0_24 = arith.constant 0 : index
    %c0_25 = arith.constant 0 : index
    %31 = vector.load %arg5[%c0_24, %c0_25] : memref<1x32xf32, #tpu.memory_space<vmem>>, vector<1x32xf32>
    %32 = vector.broadcast %31 : vector<1x32xf32> to vector<10x32xf32>
    %33 = arith.addf %30, %32 : vector<10x32xf32>
    %c0_26 = arith.constant 0 : index
    %c0_27 = arith.constant 0 : index
    %34 = vector.load %arg6[%c0_26, %c0_27] : memref<1x32xf32, #tpu.memory_space<vmem>>, vector<1x32xf32>
    %c0_28 = arith.constant 0 : index
    %c0_29 = arith.constant 0 : index
    %35 = vector.load %arg7[%c0_28, %c0_29] : memref<1x32xf32, #tpu.memory_space<vmem>>, vector<1x32xf32>
    %cst_30 = arith.constant dense<0.000000e+00> : vector<10xf32>
    %36 = vector.multi_reduction <add>, %33, %cst_30 [1] : vector<10x32xf32> to vector<10xf32>
    %37 = vector.shape_cast %36 : vector<10xf32> to vector<10x1xf32>
    %cst_31 = arith.constant 3.200000e+01 : f32
    %38 = vector.broadcast %cst_31 : f32 to vector<10x1xf32>
    %39 = arith.divf %37, %38 : vector<10x1xf32>
    %40 = vector.broadcast %39 : vector<10x1xf32> to vector<10x32xf32>
    %41 = arith.subf %33, %40 : vector<10x32xf32>
    %42 = arith.mulf %41, %41 : vector<10x32xf32>
    %cst_32 = arith.constant dense<0.000000e+00> : vector<10xf32>
    %43 = vector.multi_reduction <add>, %42, %cst_32 [1] : vector<10x32xf32> to vector<10xf32>
    %44 = vector.shape_cast %43 : vector<10xf32> to vector<10x1xf32>
    %cst_33 = arith.constant 3.200000e+01 : f32
    %45 = vector.broadcast %cst_33 : f32 to vector<10x1xf32>
    %46 = arith.divf %44, %45 : vector<10x1xf32>
    %cst_34 = arith.constant 9.99999974E-6 : f32
    %47 = vector.broadcast %cst_34 : f32 to vector<10x1xf32>
    %48 = arith.addf %46, %47 : vector<10x1xf32>
    %49 = math.rsqrt %48 : vector<10x1xf32>
    %50 = vector.broadcast %49 : vector<10x1xf32> to vector<10x32xf32>
    %51 = arith.mulf %41, %50 : vector<10x32xf32>
    %52 = vector.broadcast %34 : vector<1x32xf32> to vector<10x32xf32>
    %53 = arith.mulf %51, %52 : vector<10x32xf32>
    %54 = vector.broadcast %35 : vector<1x32xf32> to vector<10x32xf32>
    %55 = arith.addf %53, %54 : vector<10x32xf32>
    %c0_35 = arith.constant 0 : index
    %c0_36 = arith.constant 0 : index
    %56 = vector.load %arg8[%c0_35, %c0_36] : memref<32x64xf32, #tpu.memory_space<vmem>>, vector<32x64xf32>
    %cst_37 = arith.constant dense<0.000000e+00> : vector<10x64xf32>
    %57 = tpu.matmul %55, %56, %cst_37 {dimension_numbers = #tpu.dot_dimension_numbers<[1], [0], [0], [1], [0, 0, 1, 1], [], []>} : vector<10x32xf32>, vector<32x64xf32>, vector<10x64xf32> -> vector<10x64xf32>
    %c0_38 = arith.constant 0 : index
    %c0_39 = arith.constant 0 : index
    %58 = vector.load %arg9[%c0_38, %c0_39] : memref<1x64xf32, #tpu.memory_space<vmem>>, vector<1x64xf32>
    %59 = vector.broadcast %58 : vector<1x64xf32> to vector<10x64xf32>
    %60 = arith.addf %57, %59 : vector<10x64xf32>
    %cst_40 = arith.constant 5.000000e-01 : f32
    %61 = vector.broadcast %cst_40 : f32 to vector<10x64xf32>
    %62 = arith.mulf %61, %60 : vector<10x64xf32>
    %cst_41 = arith.constant 0.707106769 : f32
    %63 = vector.broadcast %cst_41 : f32 to vector<10x64xf32>
    %64 = arith.mulf %60, %63 : vector<10x64xf32>
    %cst_42 = arith.constant 0.000000e+00 : f32
    %65 = vector.broadcast %cst_42 : f32 to vector<10x64xf32>
    %66 = arith.cmpf oge, %64, %65 : vector<10x64xf32>
    %cst_43 = arith.constant 1.000000e+00 : f32
    %cst_44 = arith.constant -1.000000e+00 : f32
    %67 = vector.broadcast %cst_43 : f32 to vector<10x64xf32>
    %68 = vector.broadcast %cst_44 : f32 to vector<10x64xf32>
    %69 = arith.select %66, %67, %68 : vector<10x64xi1>, vector<10x64xf32>
    %70 = math.absf %64 : vector<10x64xf32>
    %cst_45 = arith.constant 0.327591091 : f32
    %71 = vector.broadcast %cst_45 : f32 to vector<10x64xf32>
    %72 = arith.mulf %71, %70 : vector<10x64xf32>
    %cst_46 = arith.constant 1.000000e+00 : f32
    %73 = vector.broadcast %cst_46 : f32 to vector<10x64xf32>
    %74 = arith.addf %73, %72 : vector<10x64xf32>
    %cst_47 = arith.constant 1.000000e+00 : f32
    %75 = vector.broadcast %cst_47 : f32 to vector<10x64xf32>
    %76 = arith.divf %75, %74 : vector<10x64xf32>
    %cst_48 = arith.constant 1.06140542 : f32
    %77 = vector.broadcast %cst_48 : f32 to vector<10x64xf32>
    %78 = arith.mulf %77, %76 : vector<10x64xf32>
    %cst_49 = arith.constant -1.45315206 : f32
    %79 = vector.broadcast %cst_49 : f32 to vector<10x64xf32>
    %80 = arith.addf %78, %79 : vector<10x64xf32>
    %81 = arith.mulf %80, %76 : vector<10x64xf32>
    %cst_50 = arith.constant 1.42141378 : f32
    %82 = vector.broadcast %cst_50 : f32 to vector<10x64xf32>
    %83 = arith.addf %81, %82 : vector<10x64xf32>
    %84 = arith.mulf %83, %76 : vector<10x64xf32>
    %cst_51 = arith.constant -0.284496725 : f32
    %85 = vector.broadcast %cst_51 : f32 to vector<10x64xf32>
    %86 = arith.addf %84, %85 : vector<10x64xf32>
    %87 = arith.mulf %86, %76 : vector<10x64xf32>
    %cst_52 = arith.constant 0.254829586 : f32
    %88 = vector.broadcast %cst_52 : f32 to vector<10x64xf32>
    %89 = arith.addf %87, %88 : vector<10x64xf32>
    %90 = arith.mulf %89, %76 : vector<10x64xf32>
    %cst_53 = arith.constant 0.000000e+00 : f32
    %91 = vector.broadcast %cst_53 : f32 to vector<10x64xf32>
    %92 = arith.subf %91, %70 : vector<10x64xf32>
    %93 = arith.mulf %92, %70 : vector<10x64xf32>
    %94 = math.exp %93 : vector<10x64xf32>
    %95 = arith.mulf %90, %94 : vector<10x64xf32>
    %cst_54 = arith.constant 1.000000e+00 : f32
    %96 = vector.broadcast %cst_54 : f32 to vector<10x64xf32>
    %97 = arith.subf %96, %95 : vector<10x64xf32>
    %98 = arith.mulf %69, %97 : vector<10x64xf32>
    %cst_55 = arith.constant 1.000000e+00 : f32
    %99 = vector.broadcast %cst_55 : f32 to vector<10x64xf32>
    %100 = arith.addf %99, %98 : vector<10x64xf32>
    %101 = arith.mulf %62, %100 : vector<10x64xf32>
    %c0_56 = arith.constant 0 : index
    %c0_57 = arith.constant 0 : index
    %102 = vector.load %arg10[%c0_56, %c0_57] : memref<64x32xf32, #tpu.memory_space<vmem>>, vector<64x32xf32>
    %cst_58 = arith.constant dense<0.000000e+00> : vector<10x32xf32>
    %103 = tpu.matmul %101, %102, %cst_58 {dimension_numbers = #tpu.dot_dimension_numbers<[1], [0], [0], [1], [0, 0, 1, 1], [], []>} : vector<10x64xf32>, vector<64x32xf32>, vector<10x32xf32> -> vector<10x32xf32>
    %c0_59 = arith.constant 0 : index
    %c0_60 = arith.constant 0 : index
    %104 = vector.load %arg11[%c0_59, %c0_60] : memref<1x32xf32, #tpu.memory_space<vmem>>, vector<1x32xf32>
    %105 = vector.broadcast %104 : vector<1x32xf32> to vector<10x32xf32>
    %106 = arith.addf %103, %105 : vector<10x32xf32>
    %107 = arith.addf %33, %106 : vector<10x32xf32>
    %c0_61 = arith.constant 0 : index
    %c0_62 = arith.constant 0 : index
    %108 = vector.load %arg12[%c0_61, %c0_62] : memref<10x32xf32, #tpu.memory_space<vmem>>, vector<10x32xf32>
    tpu.vector_store %arg12[%c0_61, %c0_62], %107 {strides = array<i32>} : memref<10x32xf32, #tpu.memory_space<vmem>>, vector<10x32xf32>,
    return
  }
}

</mosaic_0001>

<llo_original>
// kernel: transformer_forward.6
$region0: #{transformer_forward.6}
  #allocation0 [shape = 'u32[]', space=smem, size = 0x4, offset = 0x4, fixed_abs, tag = 'smem constant byte address 0x4 - core index']
  #allocation1 [shape = 'u32[144,128]{1,0:T(1,128)}', space=vmem, size = 0x12000, scoped, tag = 'internal scratch']
  %s0 = inlined_call_operand.hbm [shape: f32[2,7,32], index: 0, kind: input, shape index: {}]
  %s1 = inlined_call_operand.hbm [shape: f32[2,7], index: 1, kind: input, shape index: {}]
  %s2 = inlined_call_operand.hbm [shape: f32[1,32], index: 2, kind: input, shape index: {}]
  %s3 = inlined_call_operand.hbm [shape: f32[1,32], index: 3, kind: input, shape index: {}]
  %s4 = inlined_call_operand.hbm [shape: f32[32,48], index: 4, kind: input, shape index: {}]
  %s5 = inlined_call_operand.hbm [shape: f32[2,2,7,7], index: 5, kind: output, shape index: {0}]
  %s6 = inlined_call_operand.hbm [shape: f32[2,7,16], index: 6, kind: output, shape index: {1}]
  %s7 = inlined_call_operand.hbm [shape: f32[2,6], index: 7, kind: output, shape index: {2}]
  %8 = xla_tuple %s5, %s6, %s7
  %s9 = sld [smem:[#allocation0]]
  $region66: #{transformer_forward.6} parent=0
    _
  %s11 = ssub.s32 1, %s9
  %s12 = scalar_select 0, %s11, %s9
  $region1: #{transformer_forward.6} parent=0
    #allocation2 [shape = 'u8[8192]{0}', space=vmem, size = 0x2000, scoped, tag = 'input window, operand 0, single buffered']
    #allocation3 [shape = 's32[1]{0}', space=sflag, size = 0x4, scoped, tag = 'scoped memory for transformer_forward.6']
    #allocation4 [shape = 's32[1]{0}', space=sflag, size = 0x4, scoped, tag = 'scoped memory for transformer_forward.6']
    #allocation5 [shape = 'u8[1024]{0}', space=vmem, size = 0x400, scoped, tag = 'input window, operand 1, single buffered']
    #allocation6 [shape = 's32[1]{0}', space=sflag, size = 0x4, scoped, tag = 'scoped memory for transformer_forward.6']
    #allocation7 [shape = 'u8[512]{0}', space=vmem, size = 0x400, scoped, tag = 'input window, operand 2, single buffered']
    #allocation8 [shape = 'u8[512]{0}', space=vmem, size = 0x400, scoped, tag = 'input window, operand 3, single buffered']
    #allocation9 [shape = 's32[1]{0}', space=sflag, size = 0x4, scoped, tag = 'scoped memory for transformer_forward.6']
    #allocation10 [shape = 'u8[16384]{0}', space=vmem, size = 0x4000, scoped, tag = 'input window, operand 4, single buffered']
    #allocation11 [shape = 'u8[16384]{0}', space=vmem, size = 0x4000, scoped, tag = 'output window, operand 0, single buffered']
    #allocation12 [shape = 'u8[8192]{0}', space=vmem, size = 0x2000, scoped, tag = 'output window, operand 1, single buffered']
    #allocation13 [shape = 's32[1]{0}', space=sflag, size = 0x4, scoped, tag = 'scoped memory for transformer_forward.6']
    #allocation14 [shape = 'u8[1024]{0}', space=vmem, size = 0x400, scoped, tag = 'output window, operand 2, single buffered']
    %13 = vsyncpa [#allocation3], 0
    %14 = vsyncpa [#allocation6], 0
    %15 = vsyncpa [#allocation9], 0
    %16 = vsyncpa [#allocation4], 0
    %17 = vsyncpa [#allocation13], 0
    // Predicated region
    $region2: #{transformer_forward.6} parent=1 // pred_check
      _
    $region3: #{transformer_forward.6} parent=1 // pred_check_branch
      %19 = sbr.rel (0) target = $region5
    $region4: #{transformer_forward.6} parent=1 // pred_region
      %s21 = ssub.s32 256, 256
      %22 = vsyncadd [#allocation3], %s21
      %s23 = sshll.u32 [#allocation2], 4
      %s24 = int_to_ptr.vmem [resolvable:$true] %s23
      %29 = dma.hbm_to_vmem [thread:$0]  %s0, 256, %s24, [#allocation3], 128, 128, 8
    $region5: #{transformer_forward.6} parent=1 // pred_fallthru
      _
    // Predicated region
    $region6: #{transformer_forward.6} parent=1 // pred_check
      _
    $region7: #{transformer_forward.6} parent=1 // pred_check_branch
      %31 = sbr.rel (0) target = $region9
    $region8: #{transformer_forward.6} parent=1 // pred_region
      %s33 = ssub.s32 32, 32
      %34 = vsyncadd [#allocation6], %s33
      %s36 = sshll.u32 [#allocation5], 4
      %s37 = int_to_ptr.vmem [resolvable:$true] %s36
      %39 = dma.hbm_to_vmem [thread:$0]  %s1, 32, %s37, [#allocation6]
    $region9: #{transformer_forward.6} parent=1 // pred_fallthru
      _
    // Predicated region
    $region10: #{transformer_forward.6} parent=1 // pred_check
      _
    $region11: #{transformer_forward.6} parent=1 // pred_check_branch
      %41 = sbr.rel (0) target = $region13
    $region12: #{transformer_forward.6} parent=1 // pred_region
      %s43 = ssub.s32 16, 16
      %44 = vsyncadd [#allocation6], %s43
      %s46 = sshll.u32 [#allocation7], 4
      %s47 = int_to_ptr.vmem [resolvable:$true] %s46
      %49 = dma.hbm_to_vmem [thread:$0]  %s2, 16, %s47, [#allocation6]
    $region13: #{transformer_forward.6} parent=1 // pred_fallthru
      _
    // Predicated region
    $region14: #{transformer_forward.6} parent=1 // pred_check
      _
    $region15: #{transformer_forward.6} parent=1 // pred_check_branch
      %51 = sbr.rel (0) target = $region17
    $region16: #{transformer_forward.6} parent=1 // pred_region
      %s53 = ssub.s32 16, 16
      %54 = vsyncadd [#allocation9], %s53
      %s56 = sshll.u32 [#allocation8], 4
      %s57 = int_to_ptr.vmem [resolvable:$true] %s56
      %59 = dma.hbm_to_vmem [thread:$0]  %s3, 16, %s57, [#allocation9]
    $region17: #{transformer_forward.6} parent=1 // pred_fallthru
      _
    // Predicated region
    $region18: #{transformer_forward.6} parent=1 // pred_check
      _
    $region19: #{transformer_forward.6} parent=1 // pred_check_branch
      %61 = sbr.rel (0) target = $region21
    $region20: #{transformer_forward.6} parent=1 // pred_region
      %s63 = ssub.s32 512, 512
      %64 = vsyncadd [#allocation9], %s63
      %s65 = sshll.u32 [#allocation10], 4
      %s66 = int_to_ptr.vmem [resolvable:$true] %s65
      %71 = dma.hbm_to_vmem [thread:$0]  %s4, 512, %s66, [#allocation9], 128, 128, 8
    $region21: #{transformer_forward.6} parent=1 // pred_fallthru
      _
    // Predicated region
    $region22: #{transformer_forward.6} parent=1 // pred_check
      _
    $region23: #{transformer_forward.6} parent=1 // pred_check_branch
      %73 = sbr.rel (0) target = $region25
    $region24: #{transformer_forward.6} parent=1 // pred_region
      %74 = dma.done [#allocation3], 256
    $region25: #{transformer_forward.6} parent=1 // pred_fallthru
      _
    // Predicated region
    $region26: #{transformer_forward.6} parent=1 // pred_check
      _
    $region27: #{transformer_forward.6} parent=1 // pred_check_branch
      %76 = sbr.rel (0) target = $region29
    $region28: #{transformer_forward.6} parent=1 // pred_region
      %77 = dma.done [#allocation6], 32
    $region29: #{transformer_forward.6} parent=1 // pred_fallthru
      _
    // Predicated region
    $region30: #{transformer_forward.6} parent=1 // pred_check
      _
    $region31: #{transformer_forward.6} parent=1 // pred_check_branch
      %79 = sbr.rel (0) target = $region33
    $region32: #{transformer_forward.6} parent=1 // pred_region
      %80 = dma.done [#allocation6], 16
    $region33: #{transformer_forward.6} parent=1 // pred_fallthru
      _
    // Predicated region
    $region34: #{transformer_forward.6} parent=1 // pred_check
      _
    $region35: #{transformer_forward.6} parent=1 // pred_check_branch
      %82 = sbr.rel (0) target = $region37
    $region36: #{transformer_forward.6} parent=1 // pred_region
      %83 = dma.done [#allocation9], 16
    $region37: #{transformer_forward.6} parent=1 // pred_fallthru
      _
    // Predicated region
    $region38: #{transformer_forward.6} parent=1 // pred_check
      _
    $region39: #{transformer_forward.6} parent=1 // pred_check_branch
      %85 = sbr.rel (0) target = $region41
    $region40: #{transformer_forward.6} parent=1 // pred_region
      %86 = dma.done [#allocation9], 512
    $region41: #{transformer_forward.6} parent=1 // pred_fallthru
      _
    %v87 = vld [vmem:[#allocation2] sm:$0x7f]
    %v88 = vld [vmem:[#allocation2 + $0x8] sm:$0x7f]
    %v89 = vld [vmem:[#allocation5] sm:$0x3]
    %v92 = vcombine.high %v87, %v87
    %v94 = vunpack.c.l.s4 1966171168
    %v95 = vunpack.c.0.s8 %v94
    %v96 = vlaneseq
    %v97 = vshrl.u32 %v96, 7
    %v98 = vsub.s32 %v95, %v97
    %v99 = vrot.slane %v87, %v98
    %v101 = vunpack.c.l.s4 1966171168
    %v102 = vunpack.c.0.s8 %v101
    %v103 = vlaneseq
    %v104 = vshrl.u32 %v103, 7
    %v105 = vsub.s32 %v102, %v104
    %v106 = vrot.slane %v92, %v105
    %v107 = vcombine.high %v99, %v99
    %v108 = vcombine.high %v106, %v106
    %v110 = vunpack.c.l.s4 1966171168
    %v111 = vunpack.c.0.s8 %v110
    %v112 = vlaneseq
    %v113 = vshrl.u32 %v112, 7
    %v114 = vsub.s32 %v111, %v113
    %v115 = vrot.slane %v99, %v114
    %v117 = vunpack.c.l.s4 1966171168
    %v118 = vunpack.c.0.s8 %v117
    %v119 = vlaneseq
    %v120 = vshrl.u32 %v119, 7
    %v121 = vsub.s32 %v118, %v120
    %v122 = vrot.slane %v106, %v121
    %v124 = vunpack.c.l.s4 1966171168
    %v125 = vunpack.c.0.s8 %v124
    %v126 = vlaneseq
    %v127 = vshrl.u32 %v126, 7
    %v128 = vsub.s32 %v125, %v127
    %v129 = vrot.slane %v107, %v128
    %v131 = vunpack.c.l.s4 1966171168
    %v132 = vunpack.c.0.s8 %v131
    %v133 = vlaneseq
    %v134 = vshrl.u32 %v133, 7
    %v135 = vsub.s32 %v132, %v134
    %v136 = vrot.slane %v108, %v135
    %v137 = vcombine.high %v115, %v115
    %v138 = vcombine.high %v122, %v122
    %v139 = vcombine.high %v129, %v129
    %v140 = vcombine.high %v88, %v88
    %v142 = vunpack.c.l.s4 1966171168
    %v143 = vunpack.c.0.s8 %v142
    %v144 = vlaneseq
    %v145 = vshrl.u32 %v144, 7
    %v146 = vsub.s32 %v143, %v145
    %v147 = vrot.slane %v88, %v146
    %v149 = vunpack.c.l.s4 1966171168
    %v150 = vunpack.c.0.s8 %v149
    %v151 = vlaneseq
    %v152 = vshrl.u32 %v151, 7
    %v153 = vsub.s32 %v150, %v152
    %v154 = vrot.slane %v140, %v153
    %v155 = vcombine.high %v147, %v147
    %v156 = vcombine.high %v154, %v154
    %v158 = vunpack.c.l.s4 1966171168
    %v159 = vunpack.c.0.s8 %v158
    %v160 = vlaneseq
    %v161 = vshrl.u32 %v160, 7
    %v162 = vsub.s32 %v159, %v161
    %v163 = vrot.slane %v147, %v162
    %v165 = vunpack.c.l.s4 1966171168
    %v166 = vunpack.c.0.s8 %v165
    %v167 = vlaneseq
    %v168 = vshrl.u32 %v167, 7
    %v169 = vsub.s32 %v166, %v168
    %v170 = vrot.slane %v154, %v169
    %v172 = vunpack.c.l.s4 1966171168
    %v173 = vunpack.c.0.s8 %v172
    %v174 = vlaneseq
    %v175 = vshrl.u32 %v174, 7
    %v176 = vsub.s32 %v173, %v175
    %v177 = vrot.slane %v155, %v176
    %v179 = vunpack.c.l.s4 1966171168
    %v180 = vunpack.c.0.s8 %v179
    %v181 = vlaneseq
    %v182 = vshrl.u32 %v181, 7
    %v183 = vsub.s32 %v180, %v182
    %v184 = vrot.slane %v156, %v183
    %v185 = vcombine.high %v163, %v163
    %v186 = vcombine.high %v170, %v170
    %v187 = vcombine.high %v177, %v177
    %v202 = vld [vmem:[#allocation7] sm:$0x1]
    %v203 = vld [vmem:[#allocation8] sm:$0x1]
    %v204 = vcombine.low %v115, %v129
    %v205 = vcombine.low %v137, %v139
    %v206 = vcombine.low %v122, %v136
    %v207 = vcombine.low %v138, %v163
    %v209 = vunpack.c.l.s4 1966171168
    %v210 = vunpack.c.0.s8 %v209
    %v211 = vlaneseq
    %v212 = vshrl.u32 %v211, 7
    %v213 = vsub.s32 %v210, %v212
    %v214 = vrot.slane %v204, %v213
    %v216 = vunpack.c.l.s4 1966171168
    %v217 = vunpack.c.0.s8 %v216
    %v218 = vlaneseq
    %v219 = vshrl.u32 %v218, 7
    %v220 = vsub.s32 %v217, %v219
    %v221 = vrot.slane %v205, %v220
    %v223 = vunpack.c.l.s4 1966171168
    %v224 = vunpack.c.0.s8 %v223
    %v225 = vlaneseq
    %v226 = vshrl.u32 %v225, 7
    %v227 = vsub.s32 %v224, %v226
    %v228 = vrot.slane %v206, %v227
    %v230 = vunpack.c.l.s4 1966171168
    %v231 = vunpack.c.0.s8 %v230
    %v232 = vlaneseq
    %v233 = vshrl.u32 %v232, 7
    %v234 = vsub.s32 %v231, %v233
    %v235 = vrot.slane %v207, %v234
    %v236 = vcombine.low %v214, %v221
    %v237 = vcombine.low %v228, %v235
    %v239 = vunpack.c.l.s4 1966171168
    %v240 = vunpack.c.0.s8 %v239
    %v241 = vlaneseq
    %v242 = vshrl.u32 %v241, 7
    %v243 = vsub.s32 %v240, %v242
    %v244 = vrot.slane %v236, %v243
    %v246 = vunpack.c.l.s4 1966171168
    %v247 = vunpack.c.0.s8 %v246
    %v248 = vlaneseq
    %v249 = vshrl.u32 %v248, 7
    %v250 = vsub.s32 %v247, %v249
    %v251 = vrot.slane %v237, %v250
    %v252 = vcombine.low %v244, %v251
    %v253 = vcombine.low %v177, %v185
    %v254 = vcombine.low %v187, %v170
    %v255 = vcombine.low %v184, %v186
    %v257 = vunpack.c.l.s4 1966171168
    %v258 = vunpack.c.0.s8 %v257
    %v259 = vlaneseq
    %v260 = vshrl.u32 %v259, 7
    %v261 = vsub.s32 %v258, %v260
    %v262 = vrot.slane %v253, %v261
    %v264 = vunpack.c.l.s4 1966171168
    %v265 = vunpack.c.0.s8 %v264
    %v266 = vlaneseq
    %v267 = vshrl.u32 %v266, 7
    %v268 = vsub.s32 %v265, %v267
    %v269 = vrot.slane %v254, %v268
    %v271 = vunpack.c.l.s4 1966171168
    %v272 = vunpack.c.0.s8 %v271
    %v273 = vlaneseq
    %v274 = vshrl.u32 %v273, 7
    %v275 = vsub.s32 %v272, %v274
    %v276 = vrot.slane %v255, %v275
    %v277 = vcombine.low %v262, %v269
    %v279 = vunpack.c.l.s4 1966171168
    %v280 = vunpack.c.0.s8 %v279
    %v281 = vlaneseq
    %v282 = vshrl.u32 %v281, 7
    %v283 = vsub.s32 %v280, %v282
    %v284 = vrot.slane %v277, %v283
    %v286 = vunpack.c.l.s4 1966171168
    %v287 = vunpack.c.0.s8 %v286
    %v288 = vlaneseq
    %v289 = vshrl.u32 %v288, 7
    %v290 = vsub.s32 %v287, %v289
    %v291 = vrot.slane %v276, %v290
    %v292 = vcombine.low %v284, %v291
    %vm295 = vcmask 261120
    %v296 = vsel %vm295, %v252, 0.0
    %297 = vadd.xlane.f32.xlu0 %v296
    %v298 = vpop.xlane.xlu0 %297
    %vm299 = vcmask 259072
    %v300 = vsel %vm299, %v292, 0.0
    %301 = vadd.xlane.f32.xlu0 %v300
    %v302 = vpop.xlane.xlu0 %301
    %v303 = vrcp.pop 32.0
    %v304 = vmul.f32 %v298, %v303
    %v305 = vmul.f32 %v302, %v303
    %v308 = vlaneseq
    %v309 = vshrl.u32 %v308, 7
    %v310 = vsub.s32 0, %v309
    %v311 = vrot.slane %v304, %v310
    %v312 = vlaneseq
    %v313 = vshrl.u32 %v312, 7
    %v314 = vsub.s32 1, %v313
    %v315 = vrot.slane %v304, %v314
    %v316 = vlaneseq
    %v317 = vshrl.u32 %v316, 7
    %v318 = vsub.s32 2, %v317
    %v319 = vrot.slane %v304, %v318
    %v320 = vlaneseq
    %v321 = vshrl.u32 %v320, 7
    %v322 = vsub.s32 3, %v321
    %v323 = vrot.slane %v304, %v322
    %v324 = vlaneseq
    %v325 = vshrl.u32 %v324, 7
    %v326 = vsub.s32 4, %v325
    %v327 = vrot.slane %v304, %v326
    %v328 = vlaneseq
    %v329 = vshrl.u32 %v328, 7
    %v330 = vsub.s32 5, %v329
    %v331 = vrot.slane %v304, %v330
    %v332 = vlaneseq
    %v333 = vshrl.u32 %v332, 7
    %v334 = vsub.s32 6, %v333
    %v335 = vrot.slane %v304, %v334
    %v336 = vlaneseq
    %v337 = vshrl.u32 %v336, 7
    %v338 = vsub.s32 7, %v337
    %v339 = vrot.slane %v304, %v338
    %v340 = vlaneseq
    %v341 = vshrl.u32 %v340, 7
    %v342 = vsub.s32 0, %v341
    %v343 = vrot.slane %v305, %v342
    %v344 = vlaneseq
    %v345 = vshrl.u32 %v344, 7
    %v346 = vsub.s32 1, %v345
    %v347 = vrot.slane %v305, %v346
    %v348 = vlaneseq
    %v349 = vshrl.u32 %v348, 7
    %v350 = vsub.s32 2, %v349
    %v351 = vrot.slane %v305, %v350
    %v352 = vlaneseq
    %v353 = vshrl.u32 %v352, 7
    %v354 = vsub.s32 3, %v353
    %v355 = vrot.slane %v305, %v354
    %v356 = vlaneseq
    %v357 = vshrl.u32 %v356, 7
    %v358 = vsub.s32 4, %v357
    %v359 = vrot.slane %v305, %v358
    %v360 = vlaneseq
    %v361 = vshrl.u32 %v360, 7
    %v362 = vsub.s32 5, %v361
    %v363 = vrot.slane %v305, %v362
    %v378 = vsub.f32 %v115, %v311
    %v379 = vsub.f32 %v129, %v315
    %v380 = vsub.f32 %v137, %v319
    %v381 = vsub.f32 %v139, %v323
    %v382 = vsub.f32 %v122, %v327
    %v383 = vsub.f32 %v136, %v331
    %v384 = vsub.f32 %v138, %v335
    %v385 = vsub.f32 %v163, %v339
    %v386 = vsub.f32 %v177, %v343
    %v387 = vsub.f32 %v185, %v347
    %v388 = vsub.f32 %v187, %v351
    %v389 = vsub.f32 %v170, %v355
    %v390 = vsub.f32 %v184, %v359
    %v391 = vsub.f32 %v186, %v363
    %v392 = vmul.f32 %v378, %v378
    %v393 = vmul.f32 %v379, %v379
    %v394 = vmul.f32 %v380, %v380
    %v395 = vmul.f32 %v381, %v381
    %v396 = vmul.f32 %v382, %v382
    %v397 = vmul.f32 %v383, %v383
    %v398 = vmul.f32 %v384, %v384
    %v399 = vmul.f32 %v385, %v385
    %v400 = vmul.f32 %v386, %v386
    %v401 = vmul.f32 %v387, %v387
    %v402 = vmul.f32 %v388, %v388
    %v403 = vmul.f32 %v389, %v389
    %v404 = vmul.f32 %v390, %v390
    %v405 = vmul.f32 %v391, %v391
    %v420 = vcombine.low %v392, %v393
    %v421 = vcombine.low %v394, %v395
    %v422 = vcombine.low %v396, %v397
    %v423 = vcombine.low %v398, %v399
    %v425 = vunpack.c.l.s4 1966171168
    %v426 = vunpack.c.0.s8 %v425
    %v427 = vlaneseq
    %v428 = vshrl.u32 %v427, 7
    %v429 = vsub.s32 %v426, %v428
    %v430 = vrot.slane %v420, %v429
    %v432 = vunpack.c.l.s4 1966171168
    %v433 = vunpack.c.0.s8 %v432
    %v434 = vlaneseq
    %v435 = vshrl.u32 %v434, 7
    %v436 = vsub.s32 %v433, %v435
    %v437 = vrot.slane %v421, %v436
    %v439 = vunpack.c.l.s4 1966171168
    %v440 = vunpack.c.0.s8 %v439
    %v441 = vlaneseq
    %v442 = vshrl.u32 %v441, 7
    %v443 = vsub.s32 %v440, %v442
    %v444 = vrot.slane %v422, %v443
    %v446 = vunpack.c.l.s4 1966171168
    %v447 = vunpack.c.0.s8 %v446
    %v448 = vlaneseq
    %v449 = vshrl.u32 %v448, 7
    %v450 = vsub.s32 %v447, %v449
    %v451 = vrot.slane %v423, %v450
    %v452 = vcombine.low %v430, %v437
    %v453 = vcombine.low %v444, %v451
    %v455 = vunpack.c.l.s4 1966171168
    %v456 = vunpack.c.0.s8 %v455
    %v457 = vlaneseq
    %v458 = vshrl.u32 %v457, 7
    %v459 = vsub.s32 %v456, %v458
    %v460 = vrot.slane %v452, %v459
    %v462 = vunpack.c.l.s4 1966171168
    %v463 = vunpack.c.0.s8 %v462
    %v464 = vlaneseq
    %v465 = vshrl.u32 %v464, 7
    %v466 = vsub.s32 %v463, %v465
    %v467 = vrot.slane %v453, %v466
    %v468 = vcombine.low %v460, %v467
    %v469 = vcombine.low %v400, %v401
    %v470 = vcombine.low %v402, %v403
    %v471 = vcombine.low %v404, %v405
    %v473 = vunpack.c.l.s4 1966171168
    %v474 = vunpack.c.0.s8 %v473
    %v475 = vlaneseq
    %v476 = vshrl.u32 %v475, 7
    %v477 = vsub.s32 %v474, %v476
    %v478 = vrot.slane %v469, %v477
    %v480 = vunpack.c.l.s4 1966171168
    %v481 = vunpack.c.0.s8 %v480
    %v482 = vlaneseq
    %v483 = vshrl.u32 %v482, 7
    %v484 = vsub.s32 %v481, %v483
    %v485 = vrot.slane %v470, %v484
    %v487 = vunpack.c.l.s4 1966171168
    %v488 = vunpack.c.0.s8 %v487
    %v489 = vlaneseq
    %v490 = vshrl.u32 %v489, 7
    %v491 = vsub.s32 %v488, %v490
    %v492 = vrot.slane %v471, %v491
    %v493 = vcombine.low %v478, %v485
    %v495 = vunpack.c.l.s4 1966171168
    %v496 = vunpack.c.0.s8 %v495
    %v497 = vlaneseq
    %v498 = vshrl.u32 %v497, 7
    %v499 = vsub.s32 %v496, %v498
    %v500 = vrot.slane %v493, %v499
    %v502 = vunpack.c.l.s4 1966171168
    %v503 = vunpack.c.0.s8 %v502
    %v504 = vlaneseq
    %v505 = vshrl.u32 %v504, 7
    %v506 = vsub.s32 %v503, %v505
    %v507 = vrot.slane %v492, %v506
    %v508 = vcombine.low %v500, %v507
    %v511 = vsel %vm295, %v468, 0.0
    %512 = vadd.xlane.f32.xlu0 %v511
    %v513 = vpop.xlane.xlu0 %512
    %v514 = vsel %vm299, %v508, 0.0
    %515 = vadd.xlane.f32.xlu0 %v514
    %v516 = vpop.xlane.xlu0 %515
    %v517 = vmul.f32 %v513, %v303
    %v518 = vmul.f32 %v516, %v303
    %v519 = vadd.f32 %v517, 1e-05
    %v520 = vadd.f32 %v518, 1e-05
    %v521 = vrsqrt.pop %v519
    %v522 = vrsqrt.pop %v520
    %v525 = vlaneseq
    %v526 = vshrl.u32 %v525, 7
    %v527 = vsub.s32 0, %v526
    %v528 = vrot.slane %v521, %v527
    %v529 = vlaneseq
    %v530 = vshrl.u32 %v529, 7
    %v531 = vsub.s32 1, %v530
    %v532 = vrot.slane %v521, %v531
    %v533 = vlaneseq
    %v534 = vshrl.u32 %v533, 7
    %v535 = vsub.s32 2, %v534
    %v536 = vrot.slane %v521, %v535
    %v537 = vlaneseq
    %v538 = vshrl.u32 %v537, 7
    %v539 = vsub.s32 3, %v538
    %v540 = vrot.slane %v521, %v539
    %v541 = vlaneseq
    %v542 = vshrl.u32 %v541, 7
    %v543 = vsub.s32 4, %v542
    %v544 = vrot.slane %v521, %v543
    %v545 = vlaneseq
    %v546 = vshrl.u32 %v545, 7
    %v547 = vsub.s32 5, %v546
    %v548 = vrot.slane %v521, %v547
    %v549 = vlaneseq
    %v550 = vshrl.u32 %v549, 7
    %v551 = vsub.s32 6, %v550
    %v552 = vrot.slane %v521, %v551
    %v553 = vlaneseq
    %v554 = vshrl.u32 %v553, 7
    %v555 = vsub.s32 7, %v554
    %v556 = vrot.slane %v521, %v555
    %v557 = vlaneseq
    %v558 = vshrl.u32 %v557, 7
    %v559 = vsub.s32 0, %v558
    %v560 = vrot.slane %v522, %v559
    %v561 = vlaneseq
    %v562 = vshrl.u32 %v561, 7
    %v563 = vsub.s32 1, %v562
    %v564 = vrot.slane %v522, %v563
    %v565 = vlaneseq
    %v566 = vshrl.u32 %v565, 7
    %v567 = vsub.s32 2, %v566
    %v568 = vrot.slane %v522, %v567
    %v569 = vlaneseq
    %v570 = vshrl.u32 %v569, 7
    %v571 = vsub.s32 3, %v570
    %v572 = vrot.slane %v522, %v571
    %v573 = vlaneseq
    %v574 = vshrl.u32 %v573, 7
    %v575 = vsub.s32 4, %v574
    %v576 = vrot.slane %v522, %v575
    %v577 = vlaneseq
    %v578 = vshrl.u32 %v577, 7
    %v579 = vsub.s32 5, %v578
    %v580 = vrot.slane %v522, %v579
    %v595 = vmul.f32 %v378, %v528
    %v596 = vmul.f32 %v379, %v532
    %v597 = vmul.f32 %v380, %v536
    %v598 = vmul.f32 %v381, %v540
    %v599 = vmul.f32 %v382, %v544
    %v600 = vmul.f32 %v383, %v548
    %v601 = vmul.f32 %v384, %v552
    %v602 = vmul.f32 %v385, %v556
    %v603 = vmul.f32 %v386, %v560
    %v604 = vmul.f32 %v387, %v564
    %v605 = vmul.f32 %v388, %v568
    %v606 = vmul.f32 %v389, %v572
    %v607 = vmul.f32 %v390, %v576
    %v608 = vmul.f32 %v391, %v580
    %v610 = vlaneseq
    %v611 = vshrl.u32 %v610, 7
    %v612 = vsub.s32 0, %v611
    %v613 = vrot.slane %v202, %v612
    %v614 = vcombine.high %v613, %v613
    %v616 = vunpack.c.l.s4 1966171168
    %v617 = vunpack.c.0.s8 %v616
    %v618 = vlaneseq
    %v619 = vshrl.u32 %v618, 7
    %v620 = vsub.s32 %v617, %v619
    %v621 = vrot.slane %v613, %v620
    %v623 = vunpack.c.l.s4 1966171168
    %v624 = vunpack.c.0.s8 %v623
    %v625 = vlaneseq
    %v626 = vshrl.u32 %v625, 7
    %v627 = vsub.s32 %v624, %v626
    %v628 = vrot.slane %v614, %v627
    %v629 = vcombine.high %v621, %v621
    %v630 = vcombine.high %v628, %v628
    %v632 = vunpack.c.l.s4 1966171168
    %v633 = vunpack.c.0.s8 %v632
    %v634 = vlaneseq
    %v635 = vshrl.u32 %v634, 7
    %v636 = vsub.s32 %v633, %v635
    %v637 = vrot.slane %v621, %v636
    %v639 = vunpack.c.l.s4 1966171168
    %v640 = vunpack.c.0.s8 %v639
    %v641 = vlaneseq
    %v642 = vshrl.u32 %v641, 7
    %v643 = vsub.s32 %v640, %v642
    %v644 = vrot.slane %v628, %v643
    %v646 = vunpack.c.l.s4 1966171168
    %v647 = vunpack.c.0.s8 %v646
    %v648 = vlaneseq
    %v649 = vshrl.u32 %v648, 7
    %v650 = vsub.s32 %v647, %v649
    %v651 = vrot.slane %v629, %v650
    %v653 = vunpack.c.l.s4 1966171168
    %v654 = vunpack.c.0.s8 %v653
    %v655 = vlaneseq
    %v656 = vshrl.u32 %v655, 7
    %v657 = vsub.s32 %v654, %v656
    %v658 = vrot.slane %v630, %v657
    %v659 = vcombine.high %v637, %v637
    %v660 = vcombine.high %v644, %v644
    %v661 = vcombine.high %v651, %v651
    %v662 = vcombine.high %v658, %v658
    %v671 = vmul.f32 %v595, %v637
    %v672 = vmul.f32 %v596, %v651
    %v673 = vmul.f32 %v597, %v659
    %v674 = vmul.f32 %v598, %v661
    %v675 = vmul.f32 %v599, %v644
    %v676 = vmul.f32 %v600, %v658
    %v677 = vmul.f32 %v601, %v660
    %v678 = vmul.f32 %v602, %v662
    %v679 = vmul.f32 %v603, %v637
    %v680 = vmul.f32 %v604, %v651
    %v681 = vmul.f32 %v605, %v659
    %v682 = vmul.f32 %v606, %v661
    %v683 = vmul.f32 %v607, %v644
    %v684 = vmul.f32 %v608, %v658
    %v686 = vlaneseq
    %v687 = vshrl.u32 %v686, 7
    %v688 = vsub.s32 0, %v687
    %v689 = vrot.slane %v203, %v688
    %v690 = vcombine.high %v689, %v689
    %v692 = vunpack.c.l.s4 1966171168
    %v693 = vunpack.c.0.s8 %v692
    %v694 = vlaneseq
    %v695 = vshrl.u32 %v694, 7
    %v696 = vsub.s32 %v693, %v695
    %v697 = vrot.slane %v689, %v696
    %v699 = vunpack.c.l.s4 1966171168
    %v700 = vunpack.c.0.s8 %v699
    %v701 = vlaneseq
    %v702 = vshrl.u32 %v701, 7
    %v703 = vsub.s32 %v700, %v702
    %v704 = vrot.slane %v690, %v703
    %v705 = vcombine.high %v697, %v697
    %v706 = vcombine.high %v704, %v704
    %v708 = vunpack.c.l.s4 1966171168
    %v709 = vunpack.c.0.s8 %v708
    %v710 = vlaneseq
    %v711 = vshrl.u32 %v710, 7
    %v712 = vsub.s32 %v709, %v711
    %v713 = vrot.slane %v697, %v712
    %v715 = vunpack.c.l.s4 1966171168
    %v716 = vunpack.c.0.s8 %v715
    %v717 = vlaneseq
    %v718 = vshrl.u32 %v717, 7
    %v719 = vsub.s32 %v716, %v718
    %v720 = vrot.slane %v704, %v719
    %v722 = vunpack.c.l.s4 1966171168
    %v723 = vunpack.c.0.s8 %v722
    %v724 = vlaneseq
    %v725 = vshrl.u32 %v724, 7
    %v726 = vsub.s32 %v723, %v725
    %v727 = vrot.slane %v705, %v726
    %v729 = vunpack.c.l.s4 1966171168
    %v730 = vunpack.c.0.s8 %v729
    %v731 = vlaneseq
    %v732 = vshrl.u32 %v731, 7
    %v733 = vsub.s32 %v730, %v732
    %v734 = vrot.slane %v706, %v733
    %v735 = vcombine.high %v713, %v713
    %v736 = vcombine.high %v720, %v720
    %v737 = vcombine.high %v727, %v727
    %v738 = vcombine.high %v734, %v734
    %v747 = vadd.f32 %v671, %v713
    %v748 = vadd.f32 %v672, %v727
    %v749 = vadd.f32 %v673, %v735
    %v750 = vadd.f32 %v674, %v737
    %v751 = vadd.f32 %v675, %v720
    %v752 = vadd.f32 %v676, %v734
    %v753 = vadd.f32 %v677, %v736
    %v754 = vadd.f32 %v678, %v738
    %v755 = vadd.f32 %v679, %v713
    %v756 = vadd.f32 %v680, %v727
    %v757 = vadd.f32 %v681, %v735
    %v758 = vadd.f32 %v682, %v737
    %v759 = vadd.f32 %v683, %v720
    %v760 = vadd.f32 %v684, %v734
    %v761 = vld [vmem:[#allocation10] sm:$0xff]
    %v762 = vld [vmem:[#allocation10 + $0x8] sm:$0xff]
    %v763 = vld [vmem:[#allocation10 + $0x10] sm:$0xff]
    %v764 = vld [vmem:[#allocation10 + $0x18] sm:$0xff]
    %v779 = vcombine.low %v747, %v748
    %v780 = vcombine.low %v749, %v750
    %v781 = vcombine.low %v751, %v752
    %v782 = vcombine.low %v753, %v754
    %v784 = vunpack.c.l.s4 1966171168
    %v785 = vunpack.c.0.s8 %v784
    %v786 = vlaneseq
    %v787 = vshrl.u32 %v786, 7
    %v788 = vsub.s32 %v785, %v787
    %v789 = vrot.slane %v779, %v788
    %v791 = vunpack.c.l.s4 1966171168
    %v792 = vunpack.c.0.s8 %v791
    %v793 = vlaneseq
    %v794 = vshrl.u32 %v793, 7
    %v795 = vsub.s32 %v792, %v794
    %v796 = vrot.slane %v780, %v795
    %v798 = vunpack.c.l.s4 1966171168
    %v799 = vunpack.c.0.s8 %v798
    %v800 = vlaneseq
    %v801 = vshrl.u32 %v800, 7
    %v802 = vsub.s32 %v799, %v801
    %v803 = vrot.slane %v781, %v802
    %v805 = vunpack.c.l.s4 1966171168
    %v806 = vunpack.c.0.s8 %v805
    %v807 = vlaneseq
    %v808 = vshrl.u32 %v807, 7
    %v809 = vsub.s32 %v806, %v808
    %v810 = vrot.slane %v782, %v809
    %v811 = vcombine.low %v789, %v796
    %v812 = vcombine.low %v803, %v810
    %v814 = vunpack.c.l.s4 1966171168
    %v815 = vunpack.c.0.s8 %v814
    %v816 = vlaneseq
    %v817 = vshrl.u32 %v816, 7
    %v818 = vsub.s32 %v815, %v817
    %v819 = vrot.slane %v811, %v818
    %v821 = vunpack.c.l.s4 1966171168
    %v822 = vunpack.c.0.s8 %v821
    %v823 = vlaneseq
    %v824 = vshrl.u32 %v823, 7
    %v825 = vsub.s32 %v822, %v824
    %v826 = vrot.slane %v812, %v825
    %v827 = vcombine.low %v819, %v826
    %v828 = vcombine.low %v755, %v756
    %v829 = vcombine.low %v757, %v758
    %v830 = vcombine.low %v759, %v760
    %v832 = vunpack.c.l.s4 1966171168
    %v833 = vunpack.c.0.s8 %v832
    %v834 = vlaneseq
    %v835 = vshrl.u32 %v834, 7
    %v836 = vsub.s32 %v833, %v835
    %v837 = vrot.slane %v828, %v836
    %v839 = vunpack.c.l.s4 1966171168
    %v840 = vunpack.c.0.s8 %v839
    %v841 = vlaneseq
    %v842 = vshrl.u32 %v841, 7
    %v843 = vsub.s32 %v840, %v842
    %v844 = vrot.slane %v829, %v843
    %v846 = vunpack.c.l.s4 1966171168
    %v847 = vunpack.c.0.s8 %v846
    %v848 = vlaneseq
    %v849 = vshrl.u32 %v848, 7
    %v850 = vsub.s32 %v847, %v849
    %v851 = vrot.slane %v830, %v850
    %v852 = vcombine.low %v837, %v844
    %v854 = vunpack.c.l.s4 1966171168
    %v855 = vunpack.c.0.s8 %v854
    %v856 = vlaneseq
    %v857 = vshrl.u32 %v856, 7
    %v858 = vsub.s32 %v855, %v857
    %v859 = vrot.slane %v852, %v858
    %v861 = vunpack.c.l.s4 1966171168
    %v862 = vunpack.c.0.s8 %v861
    %v863 = vlaneseq
    %v864 = vshrl.u32 %v863, 7
    %v865 = vsub.s32 %v862, %v864
    %v866 = vrot.slane %v851, %v865
    %v867 = vcombine.low %v859, %v866
    %v868 = vsel %vm295, %v827, 0
    %v870 = vsel %vm295, %v867, 0
    %872 = vmatprep.subr.mxu0 0.0
    %873 = vmatpush1.msra.mxu0 %v761
    %874 = vmatprep.subr.mxu0 0.0
    %875 = vmatpush1.msra.mxu0 %v762
    %876 = vmatprep.subr.mxu0 0.0
    %877 = vmatpush1.msra.mxu0 %v763
    %878 = vmatprep.subr.mxu0 0.0
    %879 = vmatpush1.msra.mxu0 %v764
    %880 = vmatprep.subr.mxu0 0.0
    %881 = vmatpush1.msra.mxu0 0.0
    %882 = vmatprep.subr.mxu0 0.0
    %883 = vmatpush1.msra.mxu0 0.0
    %884 = vmatprep.subr.mxu0 0.0
    %885 = vmatpush1.msra.mxu0 0.0
    %886 = vmatprep.subr.mxu0 0.0
    %887 = vmatpush1.msra.mxu0 0.0
    %888 = vmatprep.subr.mxu0 0.0
    %889 = vmatpush1.msra.mxu0 0.0
    %890 = vmatprep.subr.mxu0 0.0
    %891 = vmatpush1.msra.mxu0 0.0
    %892 = vmatprep.subr.mxu0 0.0
    %893 = vmatpush1.msra.mxu0 0.0
    %894 = vmatprep.subr.mxu0 0.0
    %895 = vmatpush1.msra.mxu0 0.0
    %896 = vmatprep.subr.mxu0 0.0
    %897 = vmatpush1.msra.mxu0 0.0
    %898 = vmatprep.subr.mxu0 0.0
    %899 = vmatpush1.msra.mxu0 0.0
    %900 = vmatprep.subr.mxu0 0.0
    %901 = vmatpush1.msra.mxu0 0.0
    %902 = vmatprep.subr.mxu0 0.0
    %903 = vmatpush1.msra.mxu0 0.0
    %904 = vmatprep.subr.mxu0 0.0
    %905 = vmatpush1.msra.mxu0 0.0
    %906 = vmatprep.subr.mxu0 0.0
    %907 = vmatpush1.msra.mxu0 0.0
    %908 = vmatprep.subr.mxu0 0.0
    %909 = vmatpush1.msra.mxu0 0.0
    %910 = vmatprep.subr.mxu0 0.0
    %911 = vmatpush1.msra.mxu0 0.0
    %912 = vmatprep.subr.mxu0 0.0
    %913 = vmatpush1.msra.mxu0 0.0
    %914 = vmatprep.subr.mxu0 0.0
    %915 = vmatpush1.msra.mxu0 0.0
    %916 = vmatprep.subr.mxu0 0.0
    %917 = vmatpush1.msra.mxu0 0.0
    %918 = vmatprep.subr.mxu0 0.0
    %919 = vmatpush1.msra.mxu0 0.0
    %920 = vmatprep.subr.mxu0 0.0
    %921 = vmatpush1.msra.mxu0 0.0
    %922 = vmatprep.subr.mxu0 0.0
    %923 = vmatpush1.msra.mxu0 0.0
    %924 = vmatprep.subr.mxu0 0.0
    %925 = vmatpush1.msra.mxu0 0.0
    %926 = vmatprep.subr.mxu0 0.0
    %927 = vmatpush1.msra.mxu0 0.0
    %928 = vmatprep.subr.mxu0 0.0
    %929 = vmatpush1.msra.mxu0 0.0
    %930 = vmatprep.subr.mxu0 0.0
    %931 = vmatpush1.msra.mxu0 0.0
    %932 = vmatprep.subr.mxu0 0.0
    %933 = vmatpush1.msra.mxu0 0.0
    %934 = vmatprep.subr.mxu0 0.0
    %935 = vmatpush1.msra.mxu0 0.0
    %936 = vmatprep.mubr.f32.mxu0 0.0
    %937 = vmatmul.mubr.f32.gmra.mrb[0].mxu0 %v868
    %v938 = vpop.f32.mrb[0].mxu0
    %v939 = vadd.f32 0.0, %v938
    %v940 = vpop.f32.mrb[0].mxu0
    %941 = vmatprep.mubr.f32.mxu0 0.0
    %942 = vmatmul.mubr.f32.gmra.mrb[0].mxu0 %v870
    %v943 = vpop.f32.mrb[0].mxu0
    %v944 = vadd.f32 0.0, %v943
    %v945 = vpop.f32.mrb[0].mxu0
    %946 = vdwg.mxu0
    %v949 = vcombine.high %v939, %v939
    %v951 = vunpack.c.l.s4 1966171168
    %v952 = vunpack.c.0.s8 %v951
    %v953 = vlaneseq
    %v954 = vshrl.u32 %v953, 7
    %v955 = vsub.s32 %v952, %v954
    %v956 = vrot.slane %v939, %v955
    %v958 = vunpack.c.l.s4 1966171168
    %v959 = vunpack.c.0.s8 %v958
    %v960 = vlaneseq
    %v961 = vshrl.u32 %v960, 7
    %v962 = vsub.s32 %v959, %v961
    %v963 = vrot.slane %v949, %v962
    %v964 = vcombine.high %v956, %v956
    %v965 = vcombine.high %v963, %v963
    %v967 = vunpack.c.l.s4 1966171168
    %v968 = vunpack.c.0.s8 %v967
    %v969 = vlaneseq
    %v970 = vshrl.u32 %v969, 7
    %v971 = vsub.s32 %v968, %v970
    %v972 = vrot.slane %v956, %v971
    %v974 = vunpack.c.l.s4 1966171168
    %v975 = vunpack.c.0.s8 %v974
    %v976 = vlaneseq
    %v977 = vshrl.u32 %v976, 7
    %v978 = vsub.s32 %v975, %v977
    %v979 = vrot.slane %v963, %v978
    %v981 = vunpack.c.l.s4 1966171168
    %v982 = vunpack.c.0.s8 %v981
    %v983 = vlaneseq
    %v984 = vshrl.u32 %v983, 7
    %v985 = vsub.s32 %v982, %v984
    %v986 = vrot.slane %v964, %v985
    %v988 = vunpack.c.l.s4 1966171168
    %v989 = vunpack.c.0.s8 %v988
    %v990 = vlaneseq
    %v991 = vshrl.u32 %v990, 7
    %v992 = vsub.s32 %v989, %v991
    %v993 = vrot.slane %v965, %v992
    %v994 = vcombine.high %v972, %v972
    %v995 = vcombine.high %v979, %v979
    %v996 = vcombine.high %v986, %v986
    %v997 = vcombine.high %v993, %v993
    %v998 = vcombine.high %v944, %v944
    %v1000 = vunpack.c.l.s4 1966171168
    %v1001 = vunpack.c.0.s8 %v1000
    %v1002 = vlaneseq
    %v1003 = vshrl.u32 %v1002, 7
    %v1004 = vsub.s32 %v1001, %v1003
    %v1005 = vrot.slane %v944, %v1004
    %v1007 = vunpack.c.l.s4 1966171168
    %v1008 = vunpack.c.0.s8 %v1007
    %v1009 = vlaneseq
    %v1010 = vshrl.u32 %v1009, 7
    %v1011 = vsub.s32 %v1008, %v1010
    %v1012 = vrot.slane %v998, %v1011
    %v1013 = vcombine.high %v1005, %v1005
    %v1014 = vcombine.high %v1012, %v1012
    %v1016 = vunpack.c.l.s4 1966171168
    %v1017 = vunpack.c.0.s8 %v1016
    %v1018 = vlaneseq
    %v1019 = vshrl.u32 %v1018, 7
    %v1020 = vsub.s32 %v1017, %v1019
    %v1021 = vrot.slane %v1005, %v1020
    %v1023 = vunpack.c.l.s4 1966171168
    %v1024 = vunpack.c.0.s8 %v1023
    %v1025 = vlaneseq
    %v1026 = vshrl.u32 %v1025, 7
    %v1027 = vsub.s32 %v1024, %v1026
    %v1028 = vrot.slane %v1012, %v1027
    %v1030 = vunpack.c.l.s4 1966171168
    %v1031 = vunpack.c.0.s8 %v1030
    %v1032 = vlaneseq
    %v1033 = vshrl.u32 %v1032, 7
    %v1034 = vsub.s32 %v1031, %v1033
    %v1035 = vrot.slane %v1013, %v1034
    %v1037 = vunpack.c.l.s4 1966171168
    %v1038 = vunpack.c.0.s8 %v1037
    %v1039 = vlaneseq
    %v1040 = vshrl.u32 %v1039, 7
    %v1041 = vsub.s32 %v1038, %v1040
    %v1042 = vrot.slane %v1014, %v1041
    %v1043 = vcombine.high %v1021, %v1021
    %v1044 = vcombine.high %v1035, %v1035
    %v1057 = vcombine.low %v972, %v986
    %v1058 = vcombine.low %v994, %v996
    %v1059 = vcombine.low %v979, %v993
    %v1061 = vunpack.c.l.s4 1966171168
    %v1062 = vunpack.c.0.s8 %v1061
    %v1063 = vlaneseq
    %v1064 = vshrl.u32 %v1063, 7
    %v1065 = vsub.s32 %v1062, %v1064
    %v1066 = vrot.slane %v1057, %v1065
    %v1068 = vunpack.c.l.s4 1966171168
    %v1069 = vunpack.c.0.s8 %v1068
    %v1070 = vlaneseq
    %v1071 = vshrl.u32 %v1070, 7
    %v1072 = vsub.s32 %v1069, %v1071
    %v1073 = vrot.slane %v1058, %v1072
    %v1075 = vunpack.c.l.s4 1966171168
    %v1076 = vunpack.c.0.s8 %v1075
    %v1077 = vlaneseq
    %v1078 = vshrl.u32 %v1077, 7
    %v1079 = vsub.s32 %v1076, %v1078
    %v1080 = vrot.slane %v1059, %v1079
    %v1082 = vunpack.c.l.s4 1966171168
    %v1083 = vunpack.c.0.s8 %v1082
    %v1084 = vlaneseq
    %v1085 = vshrl.u32 %v1084, 7
    %v1086 = vsub.s32 %v1083, %v1085
    %v1087 = vrot.slane %v995, %v1086
    %v1088 = vcombine.low %v1066, %v1073
    %v1089 = vcombine.low %v1080, %v1087
    %v1091 = vunpack.c.l.s4 1966171168
    %v1092 = vunpack.c.0.s8 %v1091
    %v1093 = vlaneseq
    %v1094 = vshrl.u32 %v1093, 7
    %v1095 = vsub.s32 %v1092, %v1094
    %v1096 = vrot.slane %v1088, %v1095
    %v1098 = vunpack.c.l.s4 1966171168
    %v1099 = vunpack.c.0.s8 %v1098
    %v1100 = vlaneseq
    %v1101 = vshrl.u32 %v1100, 7
    %v1102 = vsub.s32 %v1099, %v1101
    %v1103 = vrot.slane %v1089, %v1102
    %v1104 = vcombine.low %v1096, %v1103
    %v1105 = vcombine.low %v997, %v1021
    %v1106 = vcombine.low %v1035, %v1043
    %v1107 = vcombine.low %v1044, %v1028
    %v1109 = vunpack.c.l.s4 1966171168
    %v1110 = vunpack.c.0.s8 %v1109
    %v1111 = vlaneseq
    %v1112 = vshrl.u32 %v1111, 7
    %v1113 = vsub.s32 %v1110, %v1112
    %v1114 = vrot.slane %v1105, %v1113
    %v1116 = vunpack.c.l.s4 1966171168
    %v1117 = vunpack.c.0.s8 %v1116
    %v1118 = vlaneseq
    %v1119 = vshrl.u32 %v1118, 7
    %v1120 = vsub.s32 %v1117, %v1119
    %v1121 = vrot.slane %v1106, %v1120
    %v1123 = vunpack.c.l.s4 1966171168
    %v1124 = vunpack.c.0.s8 %v1123
    %v1125 = vlaneseq
    %v1126 = vshrl.u32 %v1125, 7
    %v1127 = vsub.s32 %v1124, %v1126
    %v1128 = vrot.slane %v1107, %v1127
    %v1130 = vunpack.c.l.s4 1966171168
    %v1131 = vunpack.c.0.s8 %v1130
    %v1132 = vlaneseq
    %v1133 = vshrl.u32 %v1132, 7
    %v1134 = vsub.s32 %v1131, %v1133
    %v1135 = vrot.slane %v1042, %v1134
    %v1136 = vcombine.low %v1114, %v1121
    %v1137 = vcombine.low %v1128, %v1135
    %v1139 = vunpack.c.l.s4 1966171168
    %v1140 = vunpack.c.0.s8 %v1139
    %v1141 = vlaneseq
    %v1142 = vshrl.u32 %v1141, 7
    %v1143 = vsub.s32 %v1140, %v1142
    %v1144 = vrot.slane %v1136, %v1143
    %v1146 = vunpack.c.l.s4 1966171168
    %v1147 = vunpack.c.0.s8 %v1146
    %v1148 = vlaneseq
    %v1149 = vshrl.u32 %v1148, 7
    %v1150 = vsub.s32 %v1147, %v1149
    %v1151 = vrot.slane %v1137, %v1150
    %v1152 = vcombine.low %v1144, %v1151
    %1153 = vrot.lane.b32.xlu0 %v1104, 96
    %v1154 = vpop.permute.xlu0 %1153
    %1155 = vrot.lane.b32.xlu0 %v1152, 96
    %v1156 = vpop.permute.xlu0 %1155
    %vm1159 = vcmask 129024
    %1160 = vst.msk [vmem:[#allocation12] sm:$0x7f] %vm1159, %v1154
    %1161 = vst.msk [vmem:[#allocation12 + $0x8] sm:$0x7f] %vm1159, %v1156
    %v1162 = vlaneseq
    %v1163 = vshrl.u32 %v1162, 7
    %v1164 = vsub.s32 0, %v1163
    %v1165 = vrot.slane %v89, %v1164
    %1167 = vbcast.lane.b32.xlu0 %v1165, 256
    %v1168 = vpop.permute.xlu0 %1167
    %v1169 = vlaneseq
    %v1170 = vshrl.u32 %v1169, 7
    %v1171 = vsub.s32 1, %v1170
    %v1172 = vrot.slane %v89, %v1171
    %1174 = vbcast.lane.b32.xlu0 %v1172, 256
    %v1175 = vpop.permute.xlu0 %1174
    %v1178 = vunpack.c.l.s4 1966171168
    %v1179 = vunpack.c.0.s8 %v1178
    %v1180 = vlaneseq
    %v1181 = vshrl.u32 %v1180, 7
    %v1182 = vsub.s32 %v1179, %v1181
    %v1183 = vrot.slane %v89, %v1182
    %v1184 = vcombine.high %v1183, %v1183
    %v1186 = vunpack.c.l.s4 1966171168
    %v1187 = vunpack.c.0.s8 %v1186
    %v1188 = vlaneseq
    %v1189 = vshrl.u32 %v1188, 7
    %v1190 = vsub.s32 %v1187, %v1189
    %v1191 = vrot.slane %v1183, %v1190
    %v1193 = vunpack.c.l.s4 1966171168
    %v1194 = vunpack.c.0.s8 %v1193
    %v1195 = vlaneseq
    %v1196 = vshrl.u32 %v1195, 7
    %v1197 = vsub.s32 %v1194, %v1196
    %v1198 = vrot.slane %v1184, %v1197
    %v1199 = vlaneseq
    %v1200 = vshrl.u32 %v1199, 7
    %v1201 = vsub.s32 0, %v1200
    %v1202 = vrot.slane %v1191, %v1201
    %v1203 = vlaneseq
    %v1204 = vshrl.u32 %v1203, 7
    %v1205 = vsub.s32 0, %v1204
    %v1206 = vrot.slane %v1198, %v1205
    %v1209 = vmul.f32 %v1168, %v1202
    %v1210 = vmul.f32 %v1175, %v1206
    %vm1211 = vcmp.gt.f32.partialorder %v1209, 0.5
    %vm1212 = vcmp.gt.f32.partialorder %v1210, 0.5
    %1213 = vrot.lane.b32.xlu0 %v1104, 112
    %v1214 = vpop.permute.xlu0 %1213
    %vm1215 = vcmask 64512
    %v1216 = vsel %vm1215, %v1104, 0
    %v1218 = vsel %vm1215, %v1214, 0
    %1220 = vmatprep.subr.mxu0 0.0
    %1221 = vmatpush1.xpose.msra.mxu0 %v1218
    %1222 = vmatprep.subr.mxu0 0.0
    %1223 = vmatpush1.xpose.msra.mxu0 0.0
    %1224 = vmatprep.subr.mxu0 0.0
    %1225 = vmatpush1.xpose.msra.mxu0 0.0
    %1226 = vmatprep.subr.mxu0 0.0
    %1227 = vmatpush1.xpose.msra.mxu0 0.0
    %1228 = vmatprep.subr.mxu0 0.0
    %1229 = vmatpush1.xpose.msra.mxu0 0.0
    %1230 = vmatprep.subr.mxu0 0.0
    %1231 = vmatpush1.xpose.msra.mxu0 0.0
    %1232 = vmatprep.subr.mxu0 0.0
    %1233 = vmatpush1.xpose.msra.mxu0 0.0
    %1234 = vmatprep.subr.mxu0 0.0
    %1235 = vmatpush1.xpose.msra.mxu0 0.0
    %1236 = vmatprep.subr.mxu0 0.0
    %1237 = vmatpush1.xpose.msra.mxu0 0.0
    %1238 = vmatprep.subr.mxu0 0.0
    %1239 = vmatpush1.xpose.msra.mxu0 0.0
    %1240 = vmatprep.subr.mxu0 0.0
    %1241 = vmatpush1.xpose.msra.mxu0 0.0
    %1242 = vmatprep.subr.mxu0 0.0
    %1243 = vmatpush1.xpose.msra.mxu0 0.0
    %1244 = vmatprep.subr.mxu0 0.0
    %1245 = vmatpush1.xpose.msra.mxu0 0.0
    %1246 = vmatprep.subr.mxu0 0.0
    %1247 = vmatpush1.xpose.msra.mxu0 0.0
    %1248 = vmatprep.subr.mxu0 0.0
    %1249 = vmatpush1.xpose.msra.mxu0 0.0
    %1250 = vmatprep.subr.mxu0 0.0
    %1251 = vmatpush1.xpose.msra.mxu0 0.0
    %1252 = vmatprep.subr.mxu0 0.0
    %1253 = vmatpush1.xpose.msra.mxu0 0.0
    %1254 = vmatprep.subr.mxu0 0.0
    %1255 = vmatpush1.xpose.msra.mxu0 0.0
    %1256 = vmatprep.subr.mxu0 0.0
    %1257 = vmatpush1.xpose.msra.mxu0 0.0
    %1258 = vmatprep.subr.mxu0 0.0
    %1259 = vmatpush1.xpose.msra.mxu0 0.0
    %1260 = vmatprep.subr.mxu0 0.0
    %1261 = vmatpush1.xpose.msra.mxu0 0.0
    %1262 = vmatprep.subr.mxu0 0.0
    %1263 = vmatpush1.xpose.msra.mxu0 0.0
    %1264 = vmatprep.subr.mxu0 0.0
    %1265 = vmatpush1.xpose.msra.mxu0 0.0
    %1266 = vmatprep.subr.mxu0 0.0
    %1267 = vmatpush1.xpose.msra.mxu0 0.0
    %1268 = vmatprep.subr.mxu0 0.0
    %1269 = vmatpush1.xpose.msra.mxu0 0.0
    %1270 = vmatprep.subr.mxu0 0.0
    %1271 = vmatpush1.xpose.msra.mxu0 0.0
    %1272 = vmatprep.subr.mxu0 0.0
    %1273 = vmatpush1.xpose.msra.mxu0 0.0
    %1274 = vmatprep.subr.mxu0 0.0
    %1275 = vmatpush1.xpose.msra.mxu0 0.0
    %1276 = vmatprep.subr.mxu0 0.0
    %1277 = vmatpush1.xpose.msra.mxu0 0.0
    %1278 = vmatprep.subr.mxu0 0.0
    %1279 = vmatpush1.xpose.msra.mxu0 0.0
    %1280 = vmatprep.subr.mxu0 0.0
    %1281 = vmatpush1.xpose.msra.mxu0 0.0
    %1282 = vmatprep.subr.mxu0 0.0
    %1283 = vmatpush1.xpose.msra.mxu0 0.0
    %1284 = vmatprep.mubr.f32.mxu0 0.0
    %1285 = vmatmul.mubr.f32.gmra.mrb[0].mxu0 %v1216
    %v1286 = vpop.f32.mrb[0].mxu0
    %v1287 = vadd.f32 0.0, %v1286
    %v1288 = vpop.f32.mrb[0].mxu0
    %1289 = vdwg.mxu0
    %1290 = vrot.lane.b32.xlu0 %v1152, 112
    %v1291 = vpop.permute.xlu0 %1290
    %v1292 = vsel %vm1215, %v1152, 0
    %v1294 = vsel %vm1215, %v1291, 0
    %1296 = vmatprep.subr.mxu0 0.0
    %1297 = vmatpush1.xpose.msra.mxu0 %v1294
    %1298 = vmatprep.subr.mxu0 0.0
    %1299 = vmatpush1.xpose.msra.mxu0 0.0
    %1300 = vmatprep.subr.mxu0 0.0
    %1301 = vmatpush1.xpose.msra.mxu0 0.0
    %1302 = vmatprep.subr.mxu0 0.0
    %1303 = vmatpush1.xpose.msra.mxu0 0.0
    %1304 = vmatprep.subr.mxu0 0.0
    %1305 = vmatpush1.xpose.msra.mxu0 0.0
    %1306 = vmatprep.subr.mxu0 0.0
    %1307 = vmatpush1.xpose.msra.mxu0 0.0
    %1308 = vmatprep.subr.mxu0 0.0
    %1309 = vmatpush1.xpose.msra.mxu0 0.0
    %1310 = vmatprep.subr.mxu0 0.0
    %1311 = vmatpush1.xpose.msra.mxu0 0.0
    %1312 = vmatprep.subr.mxu0 0.0
    %1313 = vmatpush1.xpose.msra.mxu0 0.0
    %1314 = vmatprep.subr.mxu0 0.0
    %1315 = vmatpush1.xpose.msra.mxu0 0.0
    %1316 = vmatprep.subr.mxu0 0.0
    %1317 = vmatpush1.xpose.msra.mxu0 0.0
    %1318 = vmatprep.subr.mxu0 0.0
    %1319 = vmatpush1.xpose.msra.mxu0 0.0
    %1320 = vmatprep.subr.mxu0 0.0
    %1321 = vmatpush1.xpose.msra.mxu0 0.0
    %1322 = vmatprep.subr.mxu0 0.0
    %1323 = vmatpush1.xpose.msra.mxu0 0.0
    %1324 = vmatprep.subr.mxu0 0.0
    %1325 = vmatpush1.xpose.msra.mxu0 0.0
    %1326 = vmatprep.subr.mxu0 0.0
    %1327 = vmatpush1.xpose.msra.mxu0 0.0
    %1328 = vmatprep.subr.mxu0 0.0
    %1329 = vmatpush1.xpose.msra.mxu0 0.0
    %1330 = vmatprep.subr.mxu0 0.0
    %1331 = vmatpush1.xpose.msra.mxu0 0.0
    %1332 = vmatprep.subr.mxu0 0.0
    %1333 = vmatpush1.xpose.msra.mxu0 0.0
    %1334 = vmatprep.subr.mxu0 0.0
    %1335 = vmatpush1.xpose.msra.mxu0 0.0
    %1336 = vmatprep.subr.mxu0 0.0
    %1337 = vmatpush1.xpose.msra.mxu0 0.0
    %1338 = vmatprep.subr.mxu0 0.0
    %1339 = vmatpush1.xpose.msra.mxu0 0.0
    %1340 = vmatprep.subr.mxu0 0.0
    %1341 = vmatpush1.xpose.msra.mxu0 0.0
    %1342 = vmatprep.subr.mxu0 0.0
    %1343 = vmatpush1.xpose.msra.mxu0 0.0
    %1344 = vmatprep.subr.mxu0 0.0
    %1345 = vmatpush1.xpose.msra.mxu0 0.0
    %1346 = vmatprep.subr.mxu0 0.0
    %1347 = vmatpush1.xpose.msra.mxu0 0.0
    %1348 = vmatprep.subr.mxu0 0.0
    %1349 = vmatpush1.xpose.msra.mxu0 0.0
    %1350 = vmatprep.subr.mxu0 0.0
    %1351 = vmatpush1.xpose.msra.mxu0 0.0
    %1352 = vmatprep.subr.mxu0 0.0
    %1353 = vmatpush1.xpose.msra.mxu0 0.0
    %1354 = vmatprep.subr.mxu0 0.0
    %1355 = vmatpush1.xpose.msra.mxu0 0.0
    %1356 = vmatprep.subr.mxu0 0.0
    %1357 = vmatpush1.xpose.msra.mxu0 0.0
    %1358 = vmatprep.subr.mxu0 0.0
    %1359 = vmatpush1.xpose.msra.mxu0 0.0
    %1360 = vmatprep.mubr.f32.mxu0 0.0
    %1361 = vmatmul.mubr.f32.gmra.mrb[0].mxu0 %v1292
    %v1362 = vpop.f32.mrb[0].mxu0
    %v1363 = vadd.f32 0.0, %v1362
    %v1364 = vpop.f32.mrb[0].mxu0
    %1365 = vdwg.mxu0
    %v1366 = vmul.f32 %v1287, 0.35355338
    %v1367 = vmul.f32 %v1363, 0.35355338
    %v1368 = vsel %vm1211, %v1366, -1e+30
    %v1369 = vsel %vm1212, %v1367, -1e+30
    %vm1370 = vcmask 55296
    %v1371 = vsel %vm1370, %v1368, -inf
    %1372 = vmax.xlane.f32.xlu0 %v1371
    %v1373 = vpop.xlane.xlu0 %1372
    %v1374 = vsel %vm1370, %v1369, -inf
    %1375 = vmax.xlane.f32.xlu0 %v1374
    %v1376 = vpop.xlane.xlu0 %1375
    %v1377 = vsub.f32 %v1368, %v1373
    %v1378 = vsub.f32 %v1369, %v1376
    %v1379 = vmul.f32 %v1377, 1.442695
    %v1380 = vpow.pop %v1379
    %v1381 = vmul.f32 %v1378, 1.442695
    %v1382 = vpow.pop %v1381
    %v1383 = vsel %vm1370, %v1380, 0.0
    %1384 = vadd.xlane.f32.xlu0 %v1383
    %v1385 = vpop.xlane.xlu0 %1384
    %v1386 = vsel %vm1370, %v1382, 0.0
    %1387 = vadd.xlane.f32.xlu0 %v1386
    %v1388 = vpop.xlane.xlu0 %1387
    %v1389 = vrcp.pop %v1385
    %v1390 = vmul.f32 %v1380, %v1389
    %v1391 = vrcp.pop %v1388
    %v1392 = vmul.f32 %v1382, %v1391
    %1393 = vst.msk [vmem:[#allocation11] sm:$0x7f] %vm1370, %v1390
    %1394 = vst.msk [vmem:[#allocation11 + $0x8] sm:$0x7f] %vm1370, %v1392
    %v1395 = vmul.f32 %v986, %v986
    %v1396 = vmul.f32 %v994, %v994
    %v1397 = vmul.f32 %v996, %v996
    %v1398 = vmul.f32 %v979, %v979
    %v1399 = vmul.f32 %v993, %v993
    %v1400 = vmul.f32 %v995, %v995
    %v1401 = vmul.f32 %v1021, %v1021
    %v1402 = vmul.f32 %v1035, %v1035
    %v1403 = vmul.f32 %v1043, %v1043
    %v1404 = vmul.f32 %v1044, %v1044
    %v1405 = vmul.f32 %v1028, %v1028
    %v1406 = vmul.f32 %v1042, %v1042
    %v1419 = vcombine.low %v1395, %v1396
    %v1420 = vcombine.low %v1397, %v1398
    %v1421 = vcombine.low %v1399, %v1400
    %v1423 = vunpack.c.l.s4 1966171168
    %v1424 = vunpack.c.0.s8 %v1423
    %v1425 = vlaneseq
    %v1426 = vshrl.u32 %v1425, 7
    %v1427 = vsub.s32 %v1424, %v1426
    %v1428 = vrot.slane %v1419, %v1427
    %v1430 = vunpack.c.l.s4 1966171168
    %v1431 = vunpack.c.0.s8 %v1430
    %v1432 = vlaneseq
    %v1433 = vshrl.u32 %v1432, 7
    %v1434 = vsub.s32 %v1431, %v1433
    %v1435 = vrot.slane %v1420, %v1434
    %v1437 = vunpack.c.l.s4 1966171168
    %v1438 = vunpack.c.0.s8 %v1437
    %v1439 = vlaneseq
    %v1440 = vshrl.u32 %v1439, 7
    %v1441 = vsub.s32 %v1438, %v1440
    %v1442 = vrot.slane %v1421, %v1441
    %v1443 = vcombine.low %v1428, %v1435
    %v1445 = vunpack.c.l.s4 1966171168
    %v1446 = vunpack.c.0.s8 %v1445
    %v1447 = vlaneseq
    %v1448 = vshrl.u32 %v1447, 7
    %v1449 = vsub.s32 %v1446, %v1448
    %v1450 = vrot.slane %v1443, %v1449
    %v1452 = vunpack.c.l.s4 1966171168
    %v1453 = vunpack.c.0.s8 %v1452
    %v1454 = vlaneseq
    %v1455 = vshrl.u32 %v1454, 7
    %v1456 = vsub.s32 %v1453, %v1455
    %v1457 = vrot.slane %v1442, %v1456
    %v1458 = vcombine.low %v1450, %v1457
    %v1459 = vcombine.low %v1401, %v1402
    %v1460 = vcombine.low %v1403, %v1404
    %v1461 = vcombine.low %v1405, %v1406
    %v1463 = vunpack.c.l.s4 1966171168
    %v1464 = vunpack.c.0.s8 %v1463
    %v1465 = vlaneseq
    %v1466 = vshrl.u32 %v1465, 7
    %v1467 = vsub.s32 %v1464, %v1466
    %v1468 = vrot.slane %v1459, %v1467
    %v1470 = vunpack.c.l.s4 1966171168
    %v1471 = vunpack.c.0.s8 %v1470
    %v1472 = vlaneseq
    %v1473 = vshrl.u32 %v1472, 7
    %v1474 = vsub.s32 %v1471, %v1473
    %v1475 = vrot.slane %v1460, %v1474
    %v1477 = vunpack.c.l.s4 1966171168
    %v1478 = vunpack.c.0.s8 %v1477
    %v1479 = vlaneseq
    %v1480 = vshrl.u32 %v1479, 7
    %v1481 = vsub.s32 %v1478, %v1480
    %v1482 = vrot.slane %v1461, %v1481
    %v1483 = vcombine.low %v1468, %v1475
    %v1485 = vunpack.c.l.s4 1966171168
    %v1486 = vunpack.c.0.s8 %v1485
    %v1487 = vlaneseq
    %v1488 = vshrl.u32 %v1487, 7
    %v1489 = vsub.s32 %v1486, %v1488
    %v1490 = vrot.slane %v1483, %v1489
    %v1492 = vunpack.c.l.s4 1966171168
    %v1493 = vunpack.c.0.s8 %v1492
    %v1494 = vlaneseq
    %v1495 = vshrl.u32 %v1494, 7
    %v1496 = vsub.s32 %v1493, %v1495
    %v1497 = vrot.slane %v1482, %v1496
    %v1498 = vcombine.low %v1490, %v1497
    %1499 = vrot.lane.b32.xlu0 %v1458, 96
    %v1500 = vpop.permute.xlu0 %1499
    %1501 = vrot.lane.b32.xlu0 %v1498, 96
    %v1502 = vpop.permute.xlu0 %1501
    %vm1505 = vcmask 62464
    %v1506 = vsel %vm1505, %v1500, 0.0
    %1507 = vadd.xlane.f32.xlu0 %v1506
    %v1508 = vpop.xlane.xlu0 %1507
    %v1509 = vsel %vm1505, %v1502, 0.0
    %1510 = vadd.xlane.f32.xlu0 %v1509
    %v1511 = vpop.xlane.xlu0 %1510
    %v1512 = vrsqrt.pop %v1508
    %v1513 = vmul.f32 %v1508, %v1512
    %vm1514 = vcmp.eq.f32.partialorder %v1508, inf
    %v1515 = vsel %vm1514, %v1508, %v1513
    %vm1516 = vcmp.eq.f32.partialorder %v1508, 0.0
    %v1517 = vand.u32 %v1508, 2147483648
    %v1518 = vsel %vm1516, %v1517, %v1515
    %v1519 = vrsqrt.pop %v1511
    %v1520 = vmul.f32 %v1511, %v1519
    %vm1521 = vcmp.eq.f32.partialorder %v1511, inf
    %v1522 = vsel %vm1521, %v1511, %v1520
    %vm1523 = vcmp.eq.f32.partialorder %v1511, 0.0
    %v1524 = vand.u32 %v1511, 2147483648
    %v1525 = vsel %vm1523, %v1524, %v1522
    %v1528 = vlaneseq
    %v1529 = vand.u32 %v1528, 127
    %v1530 = vadd.s32 %v1529, 4294967295
    %v1531 = vlaneseq
    %v1532 = vshrl.u32 %v1531, 7
    %v1533 = vsub.s32 %v1530, %v1532
    %v1534 = vrot.slane %v1518, %v1533
    %v1535 = vlaneseq
    %v1536 = vshrl.u32 %v1535, 7
    %v1537 = vsub.s32 %v1530, %v1536
    %v1538 = vrot.slane %v1525, %v1537
    %v1541 = vmul.f32 %v1390, %v1534
    %v1542 = vmul.f32 %v1392, %v1538
    %v1543 = vadd.f32 %v1541, 0.0
    %v1544 = vadd.f32 %v1542, 0.0
    %1545 = vrot.lane.b32.xlu0 %v1104, 120
    %v1546 = vpop.permute.xlu0 %1545
    %1547 = vrot.lane.b32.xlu0 %v1104, 104
    %v1548 = vpop.permute.xlu0 %1547
    %v1549 = vsel %vm1215, %v1546, 0
    %v1551 = vsel %vm1215, %v1548, 0
    %1553 = vmatprep.subr.mxu0 0.0
    %1554 = vmatpush1.xpose.msra.mxu0 %v1551
    %1555 = vmatprep.subr.mxu0 0.0
    %1556 = vmatpush1.xpose.msra.mxu0 0.0
    %1557 = vmatprep.subr.mxu0 0.0
    %1558 = vmatpush1.xpose.msra.mxu0 0.0
    %1559 = vmatprep.subr.mxu0 0.0
    %1560 = vmatpush1.xpose.msra.mxu0 0.0
    %1561 = vmatprep.subr.mxu0 0.0
    %1562 = vmatpush1.xpose.msra.mxu0 0.0
    %1563 = vmatprep.subr.mxu0 0.0
    %1564 = vmatpush1.xpose.msra.mxu0 0.0
    %1565 = vmatprep.subr.mxu0 0.0
    %1566 = vmatpush1.xpose.msra.mxu0 0.0
    %1567 = vmatprep.subr.mxu0 0.0
    %1568 = vmatpush1.xpose.msra.mxu0 0.0
    %1569 = vmatprep.subr.mxu0 0.0
    %1570 = vmatpush1.xpose.msra.mxu0 0.0
    %1571 = vmatprep.subr.mxu0 0.0
    %1572 = vmatpush1.xpose.msra.mxu0 0.0
    %1573 = vmatprep.subr.mxu0 0.0
    %1574 = vmatpush1.xpose.msra.mxu0 0.0
    %1575 = vmatprep.subr.mxu0 0.0
    %1576 = vmatpush1.xpose.msra.mxu0 0.0
    %1577 = vmatprep.subr.mxu0 0.0
    %1578 = vmatpush1.xpose.msra.mxu0 0.0
    %1579 = vmatprep.subr.mxu0 0.0
    %1580 = vmatpush1.xpose.msra.mxu0 0.0
    %1581 = vmatprep.subr.mxu0 0.0
    %1582 = vmatpush1.xpose.msra.mxu0 0.0
    %1583 = vmatprep.subr.mxu0 0.0
    %1584 = vmatpush1.xpose.msra.mxu0 0.0
    %1585 = vmatprep.subr.mxu0 0.0
    %1586 = vmatpush1.xpose.msra.mxu0 0.0
    %1587 = vmatprep.subr.mxu0 0.0
    %1588 = vmatpush1.xpose.msra.mxu0 0.0
    %1589 = vmatprep.subr.mxu0 0.0
    %1590 = vmatpush1.xpose.msra.mxu0 0.0
    %1591 = vmatprep.subr.mxu0 0.0
    %1592 = vmatpush1.xpose.msra.mxu0 0.0
    %1593 = vmatprep.subr.mxu0 0.0
    %1594 = vmatpush1.xpose.msra.mxu0 0.0
    %1595 = vmatprep.subr.mxu0 0.0
    %1596 = vmatpush1.xpose.msra.mxu0 0.0
    %1597 = vmatprep.subr.mxu0 0.0
    %1598 = vmatpush1.xpose.msra.mxu0 0.0
    %1599 = vmatprep.subr.mxu0 0.0
    %1600 = vmatpush1.xpose.msra.mxu0 0.0
    %1601 = vmatprep.subr.mxu0 0.0
    %1602 = vmatpush1.xpose.msra.mxu0 0.0
    %1603 = vmatprep.subr.mxu0 0.0
    %1604 = vmatpush1.xpose.msra.mxu0 0.0
    %1605 = vmatprep.subr.mxu0 0.0
    %1606 = vmatpush1.xpose.msra.mxu0 0.0
    %1607 = vmatprep.subr.mxu0 0.0
    %1608 = vmatpush1.xpose.msra.mxu0 0.0
    %1609 = vmatprep.subr.mxu0 0.0
    %1610 = vmatpush1.xpose.msra.mxu0 0.0
    %1611 = vmatprep.subr.mxu0 0.0
    %1612 = vmatpush1.xpose.msra.mxu0 0.0
    %1613 = vmatprep.subr.mxu0 0.0
    %1614 = vmatpush1.xpose.msra.mxu0 0.0
    %1615 = vmatprep.subr.mxu0 0.0
    %1616 = vmatpush1.xpose.msra.mxu0 0.0
    %1617 = vmatprep.mubr.f32.mxu0 0.0
    %1618 = vmatmul.mubr.f32.gmra.mrb[0].mxu0 %v1549
    %v1619 = vpop.f32.mrb[0].mxu0
    %v1620 = vadd.f32 0.0, %v1619
    %v1621 = vpop.f32.mrb[0].mxu0
    %1622 = vdwg.mxu0
    %1623 = vrot.lane.b32.xlu0 %v1152, 120
    %v1624 = vpop.permute.xlu0 %1623
    %1625 = vrot.lane.b32.xlu0 %v1152, 104
    %v1626 = vpop.permute.xlu0 %1625
    %v1627 = vsel %vm1215, %v1624, 0
    %v1629 = vsel %vm1215, %v1626, 0
    %1631 = vmatprep.subr.mxu0 0.0
    %1632 = vmatpush1.xpose.msra.mxu0 %v1629
    %1633 = vmatprep.subr.mxu0 0.0
    %1634 = vmatpush1.xpose.msra.mxu0 0.0
    %1635 = vmatprep.subr.mxu0 0.0
    %1636 = vmatpush1.xpose.msra.mxu0 0.0
    %1637 = vmatprep.subr.mxu0 0.0
    %1638 = vmatpush1.xpose.msra.mxu0 0.0
    %1639 = vmatprep.subr.mxu0 0.0
    %1640 = vmatpush1.xpose.msra.mxu0 0.0
    %1641 = vmatprep.subr.mxu0 0.0
    %1642 = vmatpush1.xpose.msra.mxu0 0.0
    %1643 = vmatprep.subr.mxu0 0.0
    %1644 = vmatpush1.xpose.msra.mxu0 0.0
    %1645 = vmatprep.subr.mxu0 0.0
    %1646 = vmatpush1.xpose.msra.mxu0 0.0
    %1647 = vmatprep.subr.mxu0 0.0
    %1648 = vmatpush1.xpose.msra.mxu0 0.0
    %1649 = vmatprep.subr.mxu0 0.0
    %1650 = vmatpush1.xpose.msra.mxu0 0.0
    %1651 = vmatprep.subr.mxu0 0.0
    %1652 = vmatpush1.xpose.msra.mxu0 0.0
    %1653 = vmatprep.subr.mxu0 0.0
    %1654 = vmatpush1.xpose.msra.mxu0 0.0
    %1655 = vmatprep.subr.mxu0 0.0
    %1656 = vmatpush1.xpose.msra.mxu0 0.0
    %1657 = vmatprep.subr.mxu0 0.0
    %1658 = vmatpush1.xpose.msra.mxu0 0.0
    %1659 = vmatprep.subr.mxu0 0.0
    %1660 = vmatpush1.xpose.msra.mxu0 0.0
    %1661 = vmatprep.subr.mxu0 0.0
    %1662 = vmatpush1.xpose.msra.mxu0 0.0
    %1663 = vmatprep.subr.mxu0 0.0
    %1664 = vmatpush1.xpose.msra.mxu0 0.0
    %1665 = vmatprep.subr.mxu0 0.0
    %1666 = vmatpush1.xpose.msra.mxu0 0.0
    %1667 = vmatprep.subr.mxu0 0.0
    %1668 = vmatpush1.xpose.msra.mxu0 0.0
    %1669 = vmatprep.subr.mxu0 0.0
    %1670 = vmatpush1.xpose.msra.mxu0 0.0
    %1671 = vmatprep.subr.mxu0 0.0
    %1672 = vmatpush1.xpose.msra.mxu0 0.0
    %1673 = vmatprep.subr.mxu0 0.0
    %1674 = vmatpush1.xpose.msra.mxu0 0.0
    %1675 = vmatprep.subr.mxu0 0.0
    %1676 = vmatpush1.xpose.msra.mxu0 0.0
    %1677 = vmatprep.subr.mxu0 0.0
    %1678 = vmatpush1.xpose.msra.mxu0 0.0
    %1679 = vmatprep.subr.mxu0 0.0
    %1680 = vmatpush1.xpose.msra.mxu0 0.0
    %1681 = vmatprep.subr.mxu0 0.0
    %1682 = vmatpush1.xpose.msra.mxu0 0.0
    %1683 = vmatprep.subr.mxu0 0.0
    %1684 = vmatpush1.xpose.msra.mxu0 0.0
    %1685 = vmatprep.subr.mxu0 0.0
    %1686 = vmatpush1.xpose.msra.mxu0 0.0
    %1687 = vmatprep.subr.mxu0 0.0
    %1688 = vmatpush1.xpose.msra.mxu0 0.0
    %1689 = vmatprep.subr.mxu0 0.0
    %1690 = vmatpush1.xpose.msra.mxu0 0.0
    %1691 = vmatprep.subr.mxu0 0.0
    %1692 = vmatpush1.xpose.msra.mxu0 0.0
    %1693 = vmatprep.subr.mxu0 0.0
    %1694 = vmatpush1.xpose.msra.mxu0 0.0
    %1695 = vmatprep.mubr.f32.mxu0 0.0
    %1696 = vmatmul.mubr.f32.gmra.mrb[0].mxu0 %v1627
    %v1697 = vpop.f32.mrb[0].mxu0
    %v1698 = vadd.f32 0.0, %v1697
    %v1699 = vpop.f32.mrb[0].mxu0
    %1700 = vdwg.mxu0
    %v1701 = vmul.f32 %v1620, 0.35355338
    %v1702 = vmul.f32 %v1698, 0.35355338
    %v1703 = vsel %vm1211, %v1701, -1e+30
    %v1704 = vsel %vm1212, %v1702, -1e+30
    %v1705 = vsel %vm1370, %v1703, -inf
    %1706 = vmax.xlane.f32.xlu0 %v1705
    %v1707 = vpop.xlane.xlu0 %1706
    %v1708 = vsel %vm1370, %v1704, -inf
    %1709 = vmax.xlane.f32.xlu0 %v1708
    %v1710 = vpop.xlane.xlu0 %1709
    %v1711 = vsub.f32 %v1703, %v1707
    %v1712 = vsub.f32 %v1704, %v1710
    %v1713 = vmul.f32 %v1711, 1.442695
    %v1714 = vpow.pop %v1713
    %v1715 = vmul.f32 %v1712, 1.442695
    %v1716 = vpow.pop %v1715
    %v1717 = vsel %vm1370, %v1714, 0.0
    %1718 = vadd.xlane.f32.xlu0 %v1717
    %v1719 = vpop.xlane.xlu0 %1718
    %v1720 = vsel %vm1370, %v1716, 0.0
    %1721 = vadd.xlane.f32.xlu0 %v1720
    %v1722 = vpop.xlane.xlu0 %1721
    %v1723 = vrcp.pop %v1719
    %v1724 = vmul.f32 %v1714, %v1723
    %v1725 = vrcp.pop %v1722
    %v1726 = vmul.f32 %v1716, %v1725
    %s1727 = scalar_lea.vmem [#allocation11], 16
    %1728 = vst.msk [vmem:[%s1727] sm:$0x7f] %vm1370, %v1724
    %1729 = vst.msk [vmem:[%s1727 + $0x8] sm:$0x7f] %vm1370, %v1726
    %1730 = vrot.lane.b32.xlu0 %v1458, 88
    %v1731 = vpop.permute.xlu0 %1730
    %1732 = vrot.lane.b32.xlu0 %v1498, 88
    %v1733 = vpop.permute.xlu0 %1732
    %v1736 = vsel %vm1505, %v1731, 0.0
    %1737 = vadd.xlane.f32.xlu0 %v1736
    %v1738 = vpop.xlane.xlu0 %1737
    %v1739 = vsel %vm1505, %v1733, 0.0
    %1740 = vadd.xlane.f32.xlu0 %v1739
    %v1741 = vpop.xlane.xlu0 %1740
    %v1742 = vrsqrt.pop %v1738
    %v1743 = vmul.f32 %v1738, %v1742
    %vm1744 = vcmp.eq.f32.partialorder %v1738, inf
    %v1745 = vsel %vm1744, %v1738, %v1743
    %vm1746 = vcmp.eq.f32.partialorder %v1738, 0.0
    %v1747 = vand.u32 %v1738, 2147483648
    %v1748 = vsel %vm1746, %v1747, %v1745
    %v1749 = vrsqrt.pop %v1741
    %v1750 = vmul.f32 %v1741, %v1749
    %vm1751 = vcmp.eq.f32.partialorder %v1741, inf
    %v1752 = vsel %vm1751, %v1741, %v1750
    %vm1753 = vcmp.eq.f32.partialorder %v1741, 0.0
    %v1754 = vand.u32 %v1741, 2147483648
    %v1755 = vsel %vm1753, %v1754, %v1752
    %v1758 = vlaneseq
    %v1759 = vshrl.u32 %v1758, 7
    %v1760 = vsub.s32 %v1530, %v1759
    %v1761 = vrot.slane %v1748, %v1760
    %v1762 = vlaneseq
    %v1763 = vshrl.u32 %v1762, 7
    %v1764 = vsub.s32 %v1530, %v1763
    %v1765 = vrot.slane %v1755, %v1764
    %v1768 = vmul.f32 %v1724, %v1761
    %v1769 = vmul.f32 %v1726, %v1765
    %v1770 = vadd.f32 %v1543, %v1768
    %v1771 = vadd.f32 %v1544, %v1769
    %v1774 = vrot.slane %v1771, 7
    %vm1775 = vcmask 1041409
    %v1776 = vsel %vm1775, %v1774, %v1770
    %1777 = vrot.lane.b32.xlu0 %v1776, 127
    %v1778 = vpop.permute.xlu0 %1777
    %vm1780 = vcmask 41984
    %1781 = vst.msk [vmem:[#allocation14] sm:$0x3] %vm1780, %v1778
    // Predicated region
    $region42: #{transformer_forward.6} parent=1 // pred_check
      _
    $region43: #{transformer_forward.6} parent=1 // pred_check_branch
      %1783 = sbr.rel (0) target = $region45
    $region44: #{transformer_forward.6} parent=1 // pred_region
      %s1785 = ssub.s32 512, 512
      %1786 = vsyncadd [#allocation4], %s1785
      %s1787 = sshll.u32 [#allocation11], 4
      %s1788 = int_to_ptr.vmem [resolvable:$true] %s1787
      %1793 = dma.vmem_to_hbm [thread:$0]  %s1788, 512, %s5, [#allocation4], 128, 128, 8
    $region45: #{transformer_forward.6} parent=1 // pred_fallthru
      _
    // Predicated region
    $region46: #{transformer_forward.6} parent=1 // pred_check
      _
    $region47: #{transformer_forward.6} parent=1 // pred_check_branch
      %1795 = sbr.rel (0) target = $region49
    $region48: #{transformer_forward.6} parent=1 // pred_region
      %s1797 = ssub.s32 256, 256
      %1798 = vsyncadd [#allocation13], %s1797
      %s1799 = sshll.u32 [#allocation12], 4
      %s1800 = int_to_ptr.vmem [resolvable:$true] %s1799
      %1805 = dma.vmem_to_hbm [thread:$0]  %s1800, 256, %s6, [#allocation13], 128, 128, 8
    $region49: #{transformer_forward.6} parent=1 // pred_fallthru
      _
    // Predicated region
    $region50: #{transformer_forward.6} parent=1 // pred_check
      _
    $region51: #{transformer_forward.6} parent=1 // pred_check_branch
      %1807 = sbr.rel (0) target = $region53
    $region52: #{transformer_forward.6} parent=1 // pred_region
      %s1809 = ssub.s32 32, 32
      %1810 = vsyncadd [#allocation13], %s1809
      %s1812 = sshll.u32 [#allocation14], 4
      %s1813 = int_to_ptr.vmem [resolvable:$true] %s1812
      %1815 = dma.vmem_to_hbm [thread:$0]  %s1813, 32, %s7, [#allocation13]
    $region53: #{transformer_forward.6} parent=1 // pred_fallthru
      _
    // Predicated region
    $region54: #{transformer_forward.6} parent=1 // pred_check
      _
    $region55: #{transformer_forward.6} parent=1 // pred_check_branch
      %1817 = sbr.rel (0) target = $region57
    $region56: #{transformer_forward.6} parent=1 // pred_region
      %1818 = dma.done [#allocation4], 512
    $region57: #{transformer_forward.6} parent=1 // pred_fallthru
      _
    // Predicated region
    $region58: #{transformer_forward.6} parent=1 // pred_check
      _
    $region59: #{transformer_forward.6} parent=1 // pred_check_branch
      %1820 = sbr.rel (0) target = $region61
    $region60: #{transformer_forward.6} parent=1 // pred_region
      %1821 = dma.done [#allocation13], 256
    $region61: #{transformer_forward.6} parent=1 // pred_fallthru
      _
    // Predicated region
    $region62: #{transformer_forward.6} parent=1 // pred_check
      _
    $region63: #{transformer_forward.6} parent=1 // pred_check_branch
      %1823 = sbr.rel (0) target = $region65
    $region64: #{transformer_forward.6} parent=1 // pred_region
      %1824 = dma.done [#allocation13], 32
    $region65: #{transformer_forward.6} parent=1 // pred_fallthru
      _
    %1825 = vsyncpa [#allocation3], 1
    %1826 = vsyncpa [#allocation6], 1
    %1827 = vsyncpa [#allocation9], 1
    %1828 = vsyncpa [#allocation4], 1
    %1829 = vsyncpa [#allocation13], 1

// kernel: transformer_forward.4
$region0: #{transformer_forward.4}
  #allocation0 [shape = 'u32[]', space=smem, size = 0x4, offset = 0x4, fixed_abs, tag = 'smem constant byte address 0x4 - core index']
  #allocation1 [shape = 'u32[144,128]{1,0:T(1,128)}', space=vmem, size = 0x12000, scoped, tag = 'internal scratch']
  %s0 = inlined_call_operand.hbm [shape: f32[2,9,32], index: 0, kind: input, shape index: {}]
  %s1 = inlined_call_operand.hbm [shape: f32[2,9], index: 1, kind: input, shape index: {}]
  %s2 = inlined_call_operand.hbm [shape: f32[1,32], index: 2, kind: input, shape index: {}]
  %s3 = inlined_call_operand.hbm [shape: f32[1,32], index: 3, kind: input, shape index: {}]
  %s4 = inlined_call_operand.hbm [shape: f32[32,48], index: 4, kind: input, shape index: {}]
  %s5 = inlined_call_operand.hbm [shape: f32[2,2,9,9], index: 5, kind: output, shape index: {0}]
  %s6 = inlined_call_operand.hbm [shape: f32[2,9,16], index: 6, kind: output, shape index: {1}]
  %s7 = inlined_call_operand.hbm [shape: f32[2,8], index: 7, kind: output, shape index: {2}]
  %8 = xla_tuple %s5, %s6, %s7
  %s9 = sld [smem:[#allocation0]]
  $region66: #{transformer_forward.4} parent=0
    _
  %s11 = ssub.s32 1, %s9
  %s12 = scalar_select 0, %s11, %s9
  $region1: #{transformer_forward.4} parent=0
    #allocation2 [shape = 'u8[16384]{0}', space=vmem, size = 0x4000, scoped, tag = 'input window, operand 0, single buffered']
    #allocation3 [shape = 's32[1]{0}', space=sflag, size = 0x4, scoped, tag = 'scoped memory for transformer_forward.4']
    #allocation4 [shape = 's32[1]{0}', space=sflag, size = 0x4, scoped, tag = 'scoped memory for transformer_forward.4']
    #allocation5 [shape = 'u8[1024]{0}', space=vmem, size = 0x400, scoped, tag = 'input window, operand 1, single buffered']
    #allocation6 [shape = 's32[1]{0}', space=sflag, size = 0x4, scoped, tag = 'scoped memory for transformer_forward.4']
    #allocation7 [shape = 'u8[512]{0}', space=vmem, size = 0x400, scoped, tag = 'input window, operand 2, single buffered']
    #allocation8 [shape = 'u8[512]{0}', space=vmem, size = 0x400, scoped, tag = 'input window, operand 3, single buffered']
    #allocation9 [shape = 's32[1]{0}', space=sflag, size = 0x4, scoped, tag = 'scoped memory for transformer_forward.4']
    #allocation10 [shape = 'u8[16384]{0}', space=vmem, size = 0x4000, scoped, tag = 'input window, operand 4, single buffered']
    #allocation11 [shape = 'u8[32768]{0}', space=vmem, size = 0x8000, scoped, tag = 'output window, operand 0, single buffered']
    #allocation12 [shape = 'u8[16384]{0}', space=vmem, size = 0x4000, scoped, tag = 'output window, operand 1, single buffered']
    #allocation13 [shape = 's32[1]{0}', space=sflag, size = 0x4, scoped, tag = 'scoped memory for transformer_forward.4']
    #allocation14 [shape = 'u8[1024]{0}', space=vmem, size = 0x400, scoped, tag = 'output window, operand 2, single buffered']
    %13 = vsyncpa [#allocation3], 0
    %14 = vsyncpa [#allocation6], 0
    %15 = vsyncpa [#allocation9], 0
    %16 = vsyncpa [#allocation4], 0
    %17 = vsyncpa [#allocation13], 0
    // Predicated region
    $region2: #{transformer_forward.4} parent=1 // pred_check
      _
    $region3: #{transformer_forward.4} parent=1 // pred_check_branch
      %19 = sbr.rel (0) target = $region5
    $region4: #{transformer_forward.4} parent=1 // pred_region
      %s21 = ssub.s32 512, 512
      %22 = vsyncadd [#allocation3], %s21
      %s23 = sshll.u32 [#allocation2], 4
      %s24 = int_to_ptr.vmem [resolvable:$true] %s23
      %29 = dma.hbm_to_vmem [thread:$0]  %s0, 512, %s24, [#allocation3], 128, 128, 8
    $region5: #{transformer_forward.4} parent=1 // pred_fallthru
      _
    // Predicated region
    $region6: #{transformer_forward.4} parent=1 // pred_check
      _
    $region7: #{transformer_forward.4} parent=1 // pred_check_branch
      %31 = sbr.rel (0) target = $region9
    $region8: #{transformer_forward.4} parent=1 // pred_region
      %s33 = ssub.s32 32, 32
      %34 = vsyncadd [#allocation6], %s33
      %s36 = sshll.u32 [#allocation5], 4
      %s37 = int_to_ptr.vmem [resolvable:$true] %s36
      %39 = dma.hbm_to_vmem [thread:$0]  %s1, 32, %s37, [#allocation6]
    $region9: #{transformer_forward.4} parent=1 // pred_fallthru
      _
    // Predicated region
    $region10: #{transformer_forward.4} parent=1 // pred_check
      _
    $region11: #{transformer_forward.4} parent=1 // pred_check_branch
      %41 = sbr.rel (0) target = $region13
    $region12: #{transformer_forward.4} parent=1 // pred_region
      %s43 = ssub.s32 16, 16
      %44 = vsyncadd [#allocation6], %s43
      %s46 = sshll.u32 [#allocation7], 4
      %s47 = int_to_ptr.vmem [resolvable:$true] %s46
      %49 = dma.hbm_to_vmem [thread:$0]  %s2, 16, %s47, [#allocation6]
    $region13: #{transformer_forward.4} parent=1 // pred_fallthru
      _
    // Predicated region
    $region14: #{transformer_forward.4} parent=1 // pred_check
      _
    $region15: #{transformer_forward.4} parent=1 // pred_check_branch
      %51 = sbr.rel (0) target = $region17
    $region16: #{transformer_forward.4} parent=1 // pred_region
      %s53 = ssub.s32 16, 16
      %54 = vsyncadd [#allocation9], %s53
      %s56 = sshll.u32 [#allocation8], 4
      %s57 = int_to_ptr.vmem [resolvable:$true] %s56
      %59 = dma.hbm_to_vmem [thread:$0]  %s3, 16, %s57, [#allocation9]
    $region17: #{transformer_forward.4} parent=1 // pred_fallthru
      _
    // Predicated region
    $region18: #{transformer_forward.4} parent=1 // pred_check
      _
    $region19: #{transformer_forward.4} parent=1 // pred_check_branch
      %61 = sbr.rel (0) target = $region21
    $region20: #{transformer_forward.4} parent=1 // pred_region
      %s63 = ssub.s32 512, 512
      %64 = vsyncadd [#allocation9], %s63
      %s65 = sshll.u32 [#allocation10], 4
      %s66 = int_to_ptr.vmem [resolvable:$true] %s65
      %71 = dma.hbm_to_vmem [thread:$0]  %s4, 512, %s66, [#allocation9], 128, 128, 8
    $region21: #{transformer_forward.4} parent=1 // pred_fallthru
      _
    // Predicated region
    $region22: #{transformer_forward.4} parent=1 // pred_check
      _
    $region23: #{transformer_forward.4} parent=1 // pred_check_branch
      %73 = sbr.rel (0) target = $region25
    $region24: #{transformer_forward.4} parent=1 // pred_region
      %74 = dma.done [#allocation3], 512
    $region25: #{transformer_forward.4} parent=1 // pred_fallthru
      _
    // Predicated region
    $region26: #{transformer_forward.4} parent=1 // pred_check
      _
    $region27: #{transformer_forward.4} parent=1 // pred_check_branch
      %76 = sbr.rel (0) target = $region29
    $region28: #{transformer_forward.4} parent=1 // pred_region
      %77 = dma.done [#allocation6], 32
    $region29: #{transformer_forward.4} parent=1 // pred_fallthru
      _
    // Predicated region
    $region30: #{transformer_forward.4} parent=1 // pred_check
      _
    $region31: #{transformer_forward.4} parent=1 // pred_check_branch
      %79 = sbr.rel (0) target = $region33
    $region32: #{transformer_forward.4} parent=1 // pred_region
      %80 = dma.done [#allocation6], 16
    $region33: #{transformer_forward.4} parent=1 // pred_fallthru
      _
    // Predicated region
    $region34: #{transformer_forward.4} parent=1 // pred_check
      _
    $region35: #{transformer_forward.4} parent=1 // pred_check_branch
      %82 = sbr.rel (0) target = $region37
    $region36: #{transformer_forward.4} parent=1 // pred_region
      %83 = dma.done [#allocation9], 16
    $region37: #{transformer_forward.4} parent=1 // pred_fallthru
      _
    // Predicated region
    $region38: #{transformer_forward.4} parent=1 // pred_check
      _
    $region39: #{transformer_forward.4} parent=1 // pred_check_branch
      %85 = sbr.rel (0) target = $region41
    $region40: #{transformer_forward.4} parent=1 // pred_region
      %86 = dma.done [#allocation9], 512
    $region41: #{transformer_forward.4} parent=1 // pred_fallthru
      _
    %v87 = vld [vmem:[#allocation2] sm:$0xff]
    %v88 = vld [vmem:[#allocation2 + $0x8] sm:$0x1]
    %v89 = vld [vmem:[#allocation2 + $0x10] sm:$0xff]
    %v90 = vld [vmem:[#allocation2 + $0x18] sm:$0x1]
    %v91 = vld [vmem:[#allocation5] sm:$0x3]
    %v96 = vcombine.high %v87, %v87
    %v98 = vunpack.c.l.s4 1966171168
    %v99 = vunpack.c.0.s8 %v98
    %v100 = vlaneseq
    %v101 = vshrl.u32 %v100, 7
    %v102 = vsub.s32 %v99, %v101
    %v103 = vrot.slane %v87, %v102
    %v105 = vunpack.c.l.s4 1966171168
    %v106 = vunpack.c.0.s8 %v105
    %v107 = vlaneseq
    %v108 = vshrl.u32 %v107, 7
    %v109 = vsub.s32 %v106, %v108
    %v110 = vrot.slane %v96, %v109
    %v111 = vcombine.high %v103, %v103
    %v112 = vcombine.high %v110, %v110
    %v114 = vunpack.c.l.s4 1966171168
    %v115 = vunpack.c.0.s8 %v114
    %v116 = vlaneseq
    %v117 = vshrl.u32 %v116, 7
    %v118 = vsub.s32 %v115, %v117
    %v119 = vrot.slane %v103, %v118
    %v121 = vunpack.c.l.s4 1966171168
    %v122 = vunpack.c.0.s8 %v121
    %v123 = vlaneseq
    %v124 = vshrl.u32 %v123, 7
    %v125 = vsub.s32 %v122, %v124
    %v126 = vrot.slane %v110, %v125
    %v128 = vunpack.c.l.s4 1966171168
    %v129 = vunpack.c.0.s8 %v128
    %v130 = vlaneseq
    %v131 = vshrl.u32 %v130, 7
    %v132 = vsub.s32 %v129, %v131
    %v133 = vrot.slane %v111, %v132
    %v135 = vunpack.c.l.s4 1966171168
    %v136 = vunpack.c.0.s8 %v135
    %v137 = vlaneseq
    %v138 = vshrl.u32 %v137, 7
    %v139 = vsub.s32 %v136, %v138
    %v140 = vrot.slane %v112, %v139
    %v141 = vcombine.high %v119, %v119
    %v142 = vcombine.high %v126, %v126
    %v143 = vcombine.high %v133, %v133
    %v144 = vcombine.high %v140, %v140
    %v146 = vunpack.c.l.s4 1966171168
    %v147 = vunpack.c.0.s8 %v146
    %v148 = vlaneseq
    %v149 = vshrl.u32 %v148, 7
    %v150 = vsub.s32 %v147, %v149
    %v151 = vrot.slane %v88, %v150
    %v153 = vunpack.c.l.s4 1966171168
    %v154 = vunpack.c.0.s8 %v153
    %v155 = vlaneseq
    %v156 = vshrl.u32 %v155, 7
    %v157 = vsub.s32 %v154, %v156
    %v158 = vrot.slane %v151, %v157
    %v159 = vcombine.high %v89, %v89
    %v161 = vunpack.c.l.s4 1966171168
    %v162 = vunpack.c.0.s8 %v161
    %v163 = vlaneseq
    %v164 = vshrl.u32 %v163, 7
    %v165 = vsub.s32 %v162, %v164
    %v166 = vrot.slane %v89, %v165
    %v168 = vunpack.c.l.s4 1966171168
    %v169 = vunpack.c.0.s8 %v168
    %v170 = vlaneseq
    %v171 = vshrl.u32 %v170, 7
    %v172 = vsub.s32 %v169, %v171
    %v173 = vrot.slane %v159, %v172
    %v174 = vcombine.high %v166, %v166
    %v175 = vcombine.high %v173, %v173
    %v177 = vunpack.c.l.s4 1966171168
    %v178 = vunpack.c.0.s8 %v177
    %v179 = vlaneseq
    %v180 = vshrl.u32 %v179, 7
    %v181 = vsub.s32 %v178, %v180
    %v182 = vrot.slane %v166, %v181
    %v184 = vunpack.c.l.s4 1966171168
    %v185 = vunpack.c.0.s8 %v184
    %v186 = vlaneseq
    %v187 = vshrl.u32 %v186, 7
    %v188 = vsub.s32 %v185, %v187
    %v189 = vrot.slane %v173, %v188
    %v191 = vunpack.c.l.s4 1966171168
    %v192 = vunpack.c.0.s8 %v191
    %v193 = vlaneseq
    %v194 = vshrl.u32 %v193, 7
    %v195 = vsub.s32 %v192, %v194
    %v196 = vrot.slane %v174, %v195
    %v198 = vunpack.c.l.s4 1966171168
    %v199 = vunpack.c.0.s8 %v198
    %v200 = vlaneseq
    %v201 = vshrl.u32 %v200, 7
    %v202 = vsub.s32 %v199, %v201
    %v203 = vrot.slane %v175, %v202
    %v204 = vcombine.high %v182, %v182
    %v205 = vcombine.high %v189, %v189
    %v206 = vcombine.high %v196, %v196
    %v207 = vcombine.high %v203, %v203
    %v209 = vunpack.c.l.s4 1966171168
    %v210 = vunpack.c.0.s8 %v209
    %v211 = vlaneseq
    %v212 = vshrl.u32 %v211, 7
    %v213 = vsub.s32 %v210, %v212
    %v214 = vrot.slane %v90, %v213
    %v216 = vunpack.c.l.s4 1966171168
    %v217 = vunpack.c.0.s8 %v216
    %v218 = vlaneseq
    %v219 = vshrl.u32 %v218, 7
    %v220 = vsub.s32 %v217, %v219
    %v221 = vrot.slane %v214, %v220
    %v240 = vld [vmem:[#allocation7] sm:$0x1]
    %v241 = vld [vmem:[#allocation8] sm:$0x1]
    %v242 = vcombine.low %v119, %v133
    %v243 = vcombine.low %v141, %v143
    %v244 = vcombine.low %v126, %v140
    %v245 = vcombine.low %v142, %v144
    %v247 = vunpack.c.l.s4 1966171168
    %v248 = vunpack.c.0.s8 %v247
    %v249 = vlaneseq
    %v250 = vshrl.u32 %v249, 7
    %v251 = vsub.s32 %v248, %v250
    %v252 = vrot.slane %v242, %v251
    %v254 = vunpack.c.l.s4 1966171168
    %v255 = vunpack.c.0.s8 %v254
    %v256 = vlaneseq
    %v257 = vshrl.u32 %v256, 7
    %v258 = vsub.s32 %v255, %v257
    %v259 = vrot.slane %v243, %v258
    %v261 = vunpack.c.l.s4 1966171168
    %v262 = vunpack.c.0.s8 %v261
    %v263 = vlaneseq
    %v264 = vshrl.u32 %v263, 7
    %v265 = vsub.s32 %v262, %v264
    %v266 = vrot.slane %v244, %v265
    %v268 = vunpack.c.l.s4 1966171168
    %v269 = vunpack.c.0.s8 %v268
    %v270 = vlaneseq
    %v271 = vshrl.u32 %v270, 7
    %v272 = vsub.s32 %v269, %v271
    %v273 = vrot.slane %v245, %v272
    %v274 = vcombine.low %v252, %v259
    %v275 = vcombine.low %v266, %v273
    %v277 = vunpack.c.l.s4 1966171168
    %v278 = vunpack.c.0.s8 %v277
    %v279 = vlaneseq
    %v280 = vshrl.u32 %v279, 7
    %v281 = vsub.s32 %v278, %v280
    %v282 = vrot.slane %v274, %v281
    %v284 = vunpack.c.l.s4 1966171168
    %v285 = vunpack.c.0.s8 %v284
    %v286 = vlaneseq
    %v287 = vshrl.u32 %v286, 7
    %v288 = vsub.s32 %v285, %v287
    %v289 = vrot.slane %v275, %v288
    %v290 = vcombine.low %v282, %v289
    %v291 = vcombine.low %v158, %v182
    %v292 = vcombine.low %v196, %v204
    %v293 = vcombine.low %v206, %v189
    %v294 = vcombine.low %v203, %v205
    %v296 = vunpack.c.l.s4 1966171168
    %v297 = vunpack.c.0.s8 %v296
    %v298 = vlaneseq
    %v299 = vshrl.u32 %v298, 7
    %v300 = vsub.s32 %v297, %v299
    %v301 = vrot.slane %v291, %v300
    %v303 = vunpack.c.l.s4 1966171168
    %v304 = vunpack.c.0.s8 %v303
    %v305 = vlaneseq
    %v306 = vshrl.u32 %v305, 7
    %v307 = vsub.s32 %v304, %v306
    %v308 = vrot.slane %v292, %v307
    %v310 = vunpack.c.l.s4 1966171168
    %v311 = vunpack.c.0.s8 %v310
    %v312 = vlaneseq
    %v313 = vshrl.u32 %v312, 7
    %v314 = vsub.s32 %v311, %v313
    %v315 = vrot.slane %v293, %v314
    %v317 = vunpack.c.l.s4 1966171168
    %v318 = vunpack.c.0.s8 %v317
    %v319 = vlaneseq
    %v320 = vshrl.u32 %v319, 7
    %v321 = vsub.s32 %v318, %v320
    %v322 = vrot.slane %v294, %v321
    %v323 = vcombine.low %v301, %v308
    %v324 = vcombine.low %v315, %v322
    %v326 = vunpack.c.l.s4 1966171168
    %v327 = vunpack.c.0.s8 %v326
    %v328 = vlaneseq
    %v329 = vshrl.u32 %v328, 7
    %v330 = vsub.s32 %v327, %v329
    %v331 = vrot.slane %v323, %v330
    %v333 = vunpack.c.l.s4 1966171168
    %v334 = vunpack.c.0.s8 %v333
    %v335 = vlaneseq
    %v336 = vshrl.u32 %v335, 7
    %v337 = vsub.s32 %v334, %v336
    %v338 = vrot.slane %v324, %v337
    %v339 = vcombine.low %v331, %v338
    %v340 = vcombine.low %v207, %v221
    %v342 = vunpack.c.l.s4 1966171168
    %v343 = vunpack.c.0.s8 %v342
    %v344 = vlaneseq
    %v345 = vshrl.u32 %v344, 7
    %v346 = vsub.s32 %v343, %v345
    %v347 = vrot.slane %v340, %v346
    %v349 = vunpack.c.l.s4 1966171168
    %v350 = vunpack.c.0.s8 %v349
    %v351 = vlaneseq
    %v352 = vshrl.u32 %v351, 7
    %v353 = vsub.s32 %v350, %v352
    %v354 = vrot.slane %v347, %v353
    %vm358 = vcmask 261120
    %v359 = vsel %vm358, %v290, 0.0
    %360 = vadd.xlane.f32.xlu0 %v359
    %v361 = vpop.xlane.xlu0 %360
    %v362 = vsel %vm358, %v339, 0.0
    %363 = vadd.xlane.f32.xlu0 %v362
    %v364 = vpop.xlane.xlu0 %363
    %vm365 = vcmask 254976
    %v366 = vsel %vm365, %v354, 0.0
    %367 = vadd.xlane.f32.xlu0 %v366
    %v368 = vpop.xlane.xlu0 %367
    %v369 = vrcp.pop 32.0
    %v370 = vmul.f32 %v361, %v369
    %v371 = vmul.f32 %v364, %v369
    %v372 = vmul.f32 %v368, %v369
    %v376 = vlaneseq
    %v377 = vshrl.u32 %v376, 7
    %v378 = vsub.s32 0, %v377
    %v379 = vrot.slane %v370, %v378
    %v380 = vlaneseq
    %v381 = vshrl.u32 %v380, 7
    %v382 = vsub.s32 1, %v381
    %v383 = vrot.slane %v370, %v382
    %v384 = vlaneseq
    %v385 = vshrl.u32 %v384, 7
    %v386 = vsub.s32 2, %v385
    %v387 = vrot.slane %v370, %v386
    %v388 = vlaneseq
    %v389 = vshrl.u32 %v388, 7
    %v390 = vsub.s32 3, %v389
    %v391 = vrot.slane %v370, %v390
    %v392 = vlaneseq
    %v393 = vshrl.u32 %v392, 7
    %v394 = vsub.s32 4, %v393
    %v395 = vrot.slane %v370, %v394
    %v396 = vlaneseq
    %v397 = vshrl.u32 %v396, 7
    %v398 = vsub.s32 5, %v397
    %v399 = vrot.slane %v370, %v398
    %v400 = vlaneseq
    %v401 = vshrl.u32 %v400, 7
    %v402 = vsub.s32 6, %v401
    %v403 = vrot.slane %v370, %v402
    %v404 = vlaneseq
    %v405 = vshrl.u32 %v404, 7
    %v406 = vsub.s32 7, %v405
    %v407 = vrot.slane %v370, %v406
    %v408 = vlaneseq
    %v409 = vshrl.u32 %v408, 7
    %v410 = vsub.s32 0, %v409
    %v411 = vrot.slane %v371, %v410
    %v412 = vlaneseq
    %v413 = vshrl.u32 %v412, 7
    %v414 = vsub.s32 1, %v413
    %v415 = vrot.slane %v371, %v414
    %v416 = vlaneseq
    %v417 = vshrl.u32 %v416, 7
    %v418 = vsub.s32 2, %v417
    %v419 = vrot.slane %v371, %v418
    %v420 = vlaneseq
    %v421 = vshrl.u32 %v420, 7
    %v422 = vsub.s32 3, %v421
    %v423 = vrot.slane %v371, %v422
    %v424 = vlaneseq
    %v425 = vshrl.u32 %v424, 7
    %v426 = vsub.s32 4, %v425
    %v427 = vrot.slane %v371, %v426
    %v428 = vlaneseq
    %v429 = vshrl.u32 %v428, 7
    %v430 = vsub.s32 5, %v429
    %v431 = vrot.slane %v371, %v430
    %v432 = vlaneseq
    %v433 = vshrl.u32 %v432, 7
    %v434 = vsub.s32 6, %v433
    %v435 = vrot.slane %v371, %v434
    %v436 = vlaneseq
    %v437 = vshrl.u32 %v436, 7
    %v438 = vsub.s32 7, %v437
    %v439 = vrot.slane %v371, %v438
    %v440 = vlaneseq
    %v441 = vshrl.u32 %v440, 7
    %v442 = vsub.s32 0, %v441
    %v443 = vrot.slane %v372, %v442
    %v444 = vlaneseq
    %v445 = vshrl.u32 %v444, 7
    %v446 = vsub.s32 1, %v445
    %v447 = vrot.slane %v372, %v446
    %v466 = vsub.f32 %v119, %v379
    %v467 = vsub.f32 %v133, %v383
    %v468 = vsub.f32 %v141, %v387
    %v469 = vsub.f32 %v143, %v391
    %v470 = vsub.f32 %v126, %v395
    %v471 = vsub.f32 %v140, %v399
    %v472 = vsub.f32 %v142, %v403
    %v473 = vsub.f32 %v144, %v407
    %v474 = vsub.f32 %v158, %v411
    %v475 = vsub.f32 %v182, %v415
    %v476 = vsub.f32 %v196, %v419
    %v477 = vsub.f32 %v204, %v423
    %v478 = vsub.f32 %v206, %v427
    %v479 = vsub.f32 %v189, %v431
    %v480 = vsub.f32 %v203, %v435
    %v481 = vsub.f32 %v205, %v439
    %v482 = vsub.f32 %v207, %v443
    %v483 = vsub.f32 %v221, %v447
    %v484 = vmul.f32 %v466, %v466
    %v485 = vmul.f32 %v467, %v467
    %v486 = vmul.f32 %v468, %v468
    %v487 = vmul.f32 %v469, %v469
    %v488 = vmul.f32 %v470, %v470
    %v489 = vmul.f32 %v471, %v471
    %v490 = vmul.f32 %v472, %v472
    %v491 = vmul.f32 %v473, %v473
    %v492 = vmul.f32 %v474, %v474
    %v493 = vmul.f32 %v475, %v475
    %v494 = vmul.f32 %v476, %v476
    %v495 = vmul.f32 %v477, %v477
    %v496 = vmul.f32 %v478, %v478
    %v497 = vmul.f32 %v479, %v479
    %v498 = vmul.f32 %v480, %v480
    %v499 = vmul.f32 %v481, %v481
    %v500 = vmul.f32 %v482, %v482
    %v501 = vmul.f32 %v483, %v483
    %v520 = vcombine.low %v484, %v485
    %v521 = vcombine.low %v486, %v487
    %v522 = vcombine.low %v488, %v489
    %v523 = vcombine.low %v490, %v491
    %v525 = vunpack.c.l.s4 1966171168
    %v526 = vunpack.c.0.s8 %v525
    %v527 = vlaneseq
    %v528 = vshrl.u32 %v527, 7
    %v529 = vsub.s32 %v526, %v528
    %v530 = vrot.slane %v520, %v529
    %v532 = vunpack.c.l.s4 1966171168
    %v533 = vunpack.c.0.s8 %v532
    %v534 = vlaneseq
    %v535 = vshrl.u32 %v534, 7
    %v536 = vsub.s32 %v533, %v535
    %v537 = vrot.slane %v521, %v536
    %v539 = vunpack.c.l.s4 1966171168
    %v540 = vunpack.c.0.s8 %v539
    %v541 = vlaneseq
    %v542 = vshrl.u32 %v541, 7
    %v543 = vsub.s32 %v540, %v542
    %v544 = vrot.slane %v522, %v543
    %v546 = vunpack.c.l.s4 1966171168
    %v547 = vunpack.c.0.s8 %v546
    %v548 = vlaneseq
    %v549 = vshrl.u32 %v548, 7
    %v550 = vsub.s32 %v547, %v549
    %v551 = vrot.slane %v523, %v550
    %v552 = vcombine.low %v530, %v537
    %v553 = vcombine.low %v544, %v551
    %v555 = vunpack.c.l.s4 1966171168
    %v556 = vunpack.c.0.s8 %v555
    %v557 = vlaneseq
    %v558 = vshrl.u32 %v557, 7
    %v559 = vsub.s32 %v556, %v558
    %v560 = vrot.slane %v552, %v559
    %v562 = vunpack.c.l.s4 1966171168
    %v563 = vunpack.c.0.s8 %v562
    %v564 = vlaneseq
    %v565 = vshrl.u32 %v564, 7
    %v566 = vsub.s32 %v563, %v565
    %v567 = vrot.slane %v553, %v566
    %v568 = vcombine.low %v560, %v567
    %v569 = vcombine.low %v492, %v493
    %v570 = vcombine.low %v494, %v495
    %v571 = vcombine.low %v496, %v497
    %v572 = vcombine.low %v498, %v499
    %v574 = vunpack.c.l.s4 1966171168
    %v575 = vunpack.c.0.s8 %v574
    %v576 = vlaneseq
    %v577 = vshrl.u32 %v576, 7
    %v578 = vsub.s32 %v575, %v577
    %v579 = vrot.slane %v569, %v578
    %v581 = vunpack.c.l.s4 1966171168
    %v582 = vunpack.c.0.s8 %v581
    %v583 = vlaneseq
    %v584 = vshrl.u32 %v583, 7
    %v585 = vsub.s32 %v582, %v584
    %v586 = vrot.slane %v570, %v585
    %v588 = vunpack.c.l.s4 1966171168
    %v589 = vunpack.c.0.s8 %v588
    %v590 = vlaneseq
    %v591 = vshrl.u32 %v590, 7
    %v592 = vsub.s32 %v589, %v591
    %v593 = vrot.slane %v571, %v592
    %v595 = vunpack.c.l.s4 1966171168
    %v596 = vunpack.c.0.s8 %v595
    %v597 = vlaneseq
    %v598 = vshrl.u32 %v597, 7
    %v599 = vsub.s32 %v596, %v598
    %v600 = vrot.slane %v572, %v599
    %v601 = vcombine.low %v579, %v586
    %v602 = vcombine.low %v593, %v600
    %v604 = vunpack.c.l.s4 1966171168
    %v605 = vunpack.c.0.s8 %v604
    %v606 = vlaneseq
    %v607 = vshrl.u32 %v606, 7
    %v608 = vsub.s32 %v605, %v607
    %v609 = vrot.slane %v601, %v608
    %v611 = vunpack.c.l.s4 1966171168
    %v612 = vunpack.c.0.s8 %v611
    %v613 = vlaneseq
    %v614 = vshrl.u32 %v613, 7
    %v615 = vsub.s32 %v612, %v614
    %v616 = vrot.slane %v602, %v615
    %v617 = vcombine.low %v609, %v616
    %v618 = vcombine.low %v500, %v501
    %v620 = vunpack.c.l.s4 1966171168
    %v621 = vunpack.c.0.s8 %v620
    %v622 = vlaneseq
    %v623 = vshrl.u32 %v622, 7
    %v624 = vsub.s32 %v621, %v623
    %v625 = vrot.slane %v618, %v624
    %v627 = vunpack.c.l.s4 1966171168
    %v628 = vunpack.c.0.s8 %v627
    %v629 = vlaneseq
    %v630 = vshrl.u32 %v629, 7
    %v631 = vsub.s32 %v628, %v630
    %v632 = vrot.slane %v625, %v631
    %v636 = vsel %vm358, %v568, 0.0
    %637 = vadd.xlane.f32.xlu0 %v636
    %v638 = vpop.xlane.xlu0 %637
    %v639 = vsel %vm358, %v617, 0.0
    %640 = vadd.xlane.f32.xlu0 %v639
    %v641 = vpop.xlane.xlu0 %640
    %v642 = vsel %vm365, %v632, 0.0
    %643 = vadd.xlane.f32.xlu0 %v642
    %v644 = vpop.xlane.xlu0 %643
    %v645 = vmul.f32 %v638, %v369
    %v646 = vmul.f32 %v641, %v369
    %v647 = vmul.f32 %v644, %v369
    %v648 = vadd.f32 %v645, 1e-05
    %v649 = vadd.f32 %v646, 1e-05
    %v650 = vadd.f32 %v647, 1e-05
    %v651 = vrsqrt.pop %v648
    %v652 = vrsqrt.pop %v649
    %v653 = vrsqrt.pop %v650
    %v657 = vlaneseq
    %v658 = vshrl.u32 %v657, 7
    %v659 = vsub.s32 0, %v658
    %v660 = vrot.slane %v651, %v659
    %v661 = vlaneseq
    %v662 = vshrl.u32 %v661, 7
    %v663 = vsub.s32 1, %v662
    %v664 = vrot.slane %v651, %v663
    %v665 = vlaneseq
    %v666 = vshrl.u32 %v665, 7
    %v667 = vsub.s32 2, %v666
    %v668 = vrot.slane %v651, %v667
    %v669 = vlaneseq
    %v670 = vshrl.u32 %v669, 7
    %v671 = vsub.s32 3, %v670
    %v672 = vrot.slane %v651, %v671
    %v673 = vlaneseq
    %v674 = vshrl.u32 %v673, 7
    %v675 = vsub.s32 4, %v674
    %v676 = vrot.slane %v651, %v675
    %v677 = vlaneseq
    %v678 = vshrl.u32 %v677, 7
    %v679 = vsub.s32 5, %v678
    %v680 = vrot.slane %v651, %v679
    %v681 = vlaneseq
    %v682 = vshrl.u32 %v681, 7
    %v683 = vsub.s32 6, %v682
    %v684 = vrot.slane %v651, %v683
    %v685 = vlaneseq
    %v686 = vshrl.u32 %v685, 7
    %v687 = vsub.s32 7, %v686
    %v688 = vrot.slane %v651, %v687
    %v689 = vlaneseq
    %v690 = vshrl.u32 %v689, 7
    %v691 = vsub.s32 0, %v690
    %v692 = vrot.slane %v652, %v691
    %v693 = vlaneseq
    %v694 = vshrl.u32 %v693, 7
    %v695 = vsub.s32 1, %v694
    %v696 = vrot.slane %v652, %v695
    %v697 = vlaneseq
    %v698 = vshrl.u32 %v697, 7
    %v699 = vsub.s32 2, %v698
    %v700 = vrot.slane %v652, %v699
    %v701 = vlaneseq
    %v702 = vshrl.u32 %v701, 7
    %v703 = vsub.s32 3, %v702
    %v704 = vrot.slane %v652, %v703
    %v705 = vlaneseq
    %v706 = vshrl.u32 %v705, 7
    %v707 = vsub.s32 4, %v706
    %v708 = vrot.slane %v652, %v707
    %v709 = vlaneseq
    %v710 = vshrl.u32 %v709, 7
    %v711 = vsub.s32 5, %v710
    %v712 = vrot.slane %v652, %v711
    %v713 = vlaneseq
    %v714 = vshrl.u32 %v713, 7
    %v715 = vsub.s32 6, %v714
    %v716 = vrot.slane %v652, %v715
    %v717 = vlaneseq
    %v718 = vshrl.u32 %v717, 7
    %v719 = vsub.s32 7, %v718
    %v720 = vrot.slane %v652, %v719
    %v721 = vlaneseq
    %v722 = vshrl.u32 %v721, 7
    %v723 = vsub.s32 0, %v722
    %v724 = vrot.slane %v653, %v723
    %v725 = vlaneseq
    %v726 = vshrl.u32 %v725, 7
    %v727 = vsub.s32 1, %v726
    %v728 = vrot.slane %v653, %v727
    %v747 = vmul.f32 %v466, %v660
    %v748 = vmul.f32 %v467, %v664
    %v749 = vmul.f32 %v468, %v668
    %v750 = vmul.f32 %v469, %v672
    %v751 = vmul.f32 %v470, %v676
    %v752 = vmul.f32 %v471, %v680
    %v753 = vmul.f32 %v472, %v684
    %v754 = vmul.f32 %v473, %v688
    %v755 = vmul.f32 %v474, %v692
    %v756 = vmul.f32 %v475, %v696
    %v757 = vmul.f32 %v476, %v700
    %v758 = vmul.f32 %v477, %v704
    %v759 = vmul.f32 %v478, %v708
    %v760 = vmul.f32 %v479, %v712
    %v761 = vmul.f32 %v480, %v716
    %v762 = vmul.f32 %v481, %v720
    %v763 = vmul.f32 %v482, %v724
    %v764 = vmul.f32 %v483, %v728
    %v766 = vlaneseq
    %v767 = vshrl.u32 %v766, 7
    %v768 = vsub.s32 0, %v767
    %v769 = vrot.slane %v240, %v768
    %v770 = vcombine.high %v769, %v769
    %v772 = vunpack.c.l.s4 1966171168
    %v773 = vunpack.c.0.s8 %v772
    %v774 = vlaneseq
    %v775 = vshrl.u32 %v774, 7
    %v776 = vsub.s32 %v773, %v775
    %v777 = vrot.slane %v769, %v776
    %v779 = vunpack.c.l.s4 1966171168
    %v780 = vunpack.c.0.s8 %v779
    %v781 = vlaneseq
    %v782 = vshrl.u32 %v781, 7
    %v783 = vsub.s32 %v780, %v782
    %v784 = vrot.slane %v770, %v783
    %v785 = vcombine.high %v777, %v777
    %v786 = vcombine.high %v784, %v784
    %v788 = vunpack.c.l.s4 1966171168
    %v789 = vunpack.c.0.s8 %v788
    %v790 = vlaneseq
    %v791 = vshrl.u32 %v790, 7
    %v792 = vsub.s32 %v789, %v791
    %v793 = vrot.slane %v777, %v792
    %v795 = vunpack.c.l.s4 1966171168
    %v796 = vunpack.c.0.s8 %v795
    %v797 = vlaneseq
    %v798 = vshrl.u32 %v797, 7
    %v799 = vsub.s32 %v796, %v798
    %v800 = vrot.slane %v784, %v799
    %v802 = vunpack.c.l.s4 1966171168
    %v803 = vunpack.c.0.s8 %v802
    %v804 = vlaneseq
    %v805 = vshrl.u32 %v804, 7
    %v806 = vsub.s32 %v803, %v805
    %v807 = vrot.slane %v785, %v806
    %v809 = vunpack.c.l.s4 1966171168
    %v810 = vunpack.c.0.s8 %v809
    %v811 = vlaneseq
    %v812 = vshrl.u32 %v811, 7
    %v813 = vsub.s32 %v810, %v812
    %v814 = vrot.slane %v786, %v813
    %v815 = vcombine.high %v793, %v793
    %v816 = vcombine.high %v800, %v800
    %v817 = vcombine.high %v807, %v807
    %v818 = vcombine.high %v814, %v814
    %v827 = vmul.f32 %v747, %v793
    %v828 = vmul.f32 %v748, %v807
    %v829 = vmul.f32 %v749, %v815
    %v830 = vmul.f32 %v750, %v817
    %v831 = vmul.f32 %v751, %v800
    %v832 = vmul.f32 %v752, %v814
    %v833 = vmul.f32 %v753, %v816
    %v834 = vmul.f32 %v754, %v818
    %v835 = vmul.f32 %v755, %v793
    %v836 = vmul.f32 %v756, %v807
    %v837 = vmul.f32 %v757, %v815
    %v838 = vmul.f32 %v758, %v817
    %v839 = vmul.f32 %v759, %v800
    %v840 = vmul.f32 %v760, %v814
    %v841 = vmul.f32 %v761, %v816
    %v842 = vmul.f32 %v762, %v818
    %v843 = vmul.f32 %v763, %v793
    %v844 = vmul.f32 %v764, %v807
    %v846 = vlaneseq
    %v847 = vshrl.u32 %v846, 7
    %v848 = vsub.s32 0, %v847
    %v849 = vrot.slane %v241, %v848
    %v850 = vcombine.high %v849, %v849
    %v852 = vunpack.c.l.s4 1966171168
    %v853 = vunpack.c.0.s8 %v852
    %v854 = vlaneseq
    %v855 = vshrl.u32 %v854, 7
    %v856 = vsub.s32 %v853, %v855
    %v857 = vrot.slane %v849, %v856
    %v859 = vunpack.c.l.s4 1966171168
    %v860 = vunpack.c.0.s8 %v859
    %v861 = vlaneseq
    %v862 = vshrl.u32 %v861, 7
    %v863 = vsub.s32 %v860, %v862
    %v864 = vrot.slane %v850, %v863
    %v865 = vcombine.high %v857, %v857
    %v866 = vcombine.high %v864, %v864
    %v868 = vunpack.c.l.s4 1966171168
    %v869 = vunpack.c.0.s8 %v868
    %v870 = vlaneseq
    %v871 = vshrl.u32 %v870, 7
    %v872 = vsub.s32 %v869, %v871
    %v873 = vrot.slane %v857, %v872
    %v875 = vunpack.c.l.s4 1966171168
    %v876 = vunpack.c.0.s8 %v875
    %v877 = vlaneseq
    %v878 = vshrl.u32 %v877, 7
    %v879 = vsub.s32 %v876, %v878
    %v880 = vrot.slane %v864, %v879
    %v882 = vunpack.c.l.s4 1966171168
    %v883 = vunpack.c.0.s8 %v882
    %v884 = vlaneseq
    %v885 = vshrl.u32 %v884, 7
    %v886 = vsub.s32 %v883, %v885
    %v887 = vrot.slane %v865, %v886
    %v889 = vunpack.c.l.s4 1966171168
    %v890 = vunpack.c.0.s8 %v889
    %v891 = vlaneseq
    %v892 = vshrl.u32 %v891, 7
    %v893 = vsub.s32 %v890, %v892
    %v894 = vrot.slane %v866, %v893
    %v895 = vcombine.high %v873, %v873
    %v896 = vcombine.high %v880, %v880
    %v897 = vcombine.high %v887, %v887
    %v898 = vcombine.high %v894, %v894
    %v907 = vadd.f32 %v827, %v873
    %v908 = vadd.f32 %v828, %v887
    %v909 = vadd.f32 %v829, %v895
    %v910 = vadd.f32 %v830, %v897
    %v911 = vadd.f32 %v831, %v880
    %v912 = vadd.f32 %v832, %v894
    %v913 = vadd.f32 %v833, %v896
    %v914 = vadd.f32 %v834, %v898
    %v915 = vadd.f32 %v835, %v873
    %v916 = vadd.f32 %v836, %v887
    %v917 = vadd.f32 %v837, %v895
    %v918 = vadd.f32 %v838, %v897
    %v919 = vadd.f32 %v839, %v880
    %v920 = vadd.f32 %v840, %v894
    %v921 = vadd.f32 %v841, %v896
    %v922 = vadd.f32 %v842, %v898
    %v923 = vadd.f32 %v843, %v873
    %v924 = vadd.f32 %v844, %v887
    %v925 = vld [vmem:[#allocation10] sm:$0xff]
    %v926 = vld [vmem:[#allocation10 + $0x8] sm:$0xff]
    %v927 = vld [vmem:[#allocation10 + $0x10] sm:$0xff]
    %v928 = vld [vmem:[#allocation10 + $0x18] sm:$0xff]
    %v947 = vcombine.low %v907, %v908
    %v948 = vcombine.low %v909, %v910
    %v949 = vcombine.low %v911, %v912
    %v950 = vcombine.low %v913, %v914
    %v952 = vunpack.c.l.s4 1966171168
    %v953 = vunpack.c.0.s8 %v952
    %v954 = vlaneseq
    %v955 = vshrl.u32 %v954, 7
    %v956 = vsub.s32 %v953, %v955
    %v957 = vrot.slane %v947, %v956
    %v959 = vunpack.c.l.s4 1966171168
    %v960 = vunpack.c.0.s8 %v959
    %v961 = vlaneseq
    %v962 = vshrl.u32 %v961, 7
    %v963 = vsub.s32 %v960, %v962
    %v964 = vrot.slane %v948, %v963
    %v966 = vunpack.c.l.s4 1966171168
    %v967 = vunpack.c.0.s8 %v966
    %v968 = vlaneseq
    %v969 = vshrl.u32 %v968, 7
    %v970 = vsub.s32 %v967, %v969
    %v971 = vrot.slane %v949, %v970
    %v973 = vunpack.c.l.s4 1966171168
    %v974 = vunpack.c.0.s8 %v973
    %v975 = vlaneseq
    %v976 = vshrl.u32 %v975, 7
    %v977 = vsub.s32 %v974, %v976
    %v978 = vrot.slane %v950, %v977
    %v979 = vcombine.low %v957, %v964
    %v980 = vcombine.low %v971, %v978
    %v982 = vunpack.c.l.s4 1966171168
    %v983 = vunpack.c.0.s8 %v982
    %v984 = vlaneseq
    %v985 = vshrl.u32 %v984, 7
    %v986 = vsub.s32 %v983, %v985
    %v987 = vrot.slane %v979, %v986
    %v989 = vunpack.c.l.s4 1966171168
    %v990 = vunpack.c.0.s8 %v989
    %v991 = vlaneseq
    %v992 = vshrl.u32 %v991, 7
    %v993 = vsub.s32 %v990, %v992
    %v994 = vrot.slane %v980, %v993
    %v995 = vcombine.low %v987, %v994
    %v996 = vcombine.low %v915, %v916
    %v997 = vcombine.low %v917, %v918
    %v998 = vcombine.low %v919, %v920
    %v999 = vcombine.low %v921, %v922
    %v1001 = vunpack.c.l.s4 1966171168
    %v1002 = vunpack.c.0.s8 %v1001
    %v1003 = vlaneseq
    %v1004 = vshrl.u32 %v1003, 7
    %v1005 = vsub.s32 %v1002, %v1004
    %v1006 = vrot.slane %v996, %v1005
    %v1008 = vunpack.c.l.s4 1966171168
    %v1009 = vunpack.c.0.s8 %v1008
    %v1010 = vlaneseq
    %v1011 = vshrl.u32 %v1010, 7
    %v1012 = vsub.s32 %v1009, %v1011
    %v1013 = vrot.slane %v997, %v1012
    %v1015 = vunpack.c.l.s4 1966171168
    %v1016 = vunpack.c.0.s8 %v1015
    %v1017 = vlaneseq
    %v1018 = vshrl.u32 %v1017, 7
    %v1019 = vsub.s32 %v1016, %v1018
    %v1020 = vrot.slane %v998, %v1019
    %v1022 = vunpack.c.l.s4 1966171168
    %v1023 = vunpack.c.0.s8 %v1022
    %v1024 = vlaneseq
    %v1025 = vshrl.u32 %v1024, 7
    %v1026 = vsub.s32 %v1023, %v1025
    %v1027 = vrot.slane %v999, %v1026
    %v1028 = vcombine.low %v1006, %v1013
    %v1029 = vcombine.low %v1020, %v1027
    %v1031 = vunpack.c.l.s4 1966171168
    %v1032 = vunpack.c.0.s8 %v1031
    %v1033 = vlaneseq
    %v1034 = vshrl.u32 %v1033, 7
    %v1035 = vsub.s32 %v1032, %v1034
    %v1036 = vrot.slane %v1028, %v1035
    %v1038 = vunpack.c.l.s4 1966171168
    %v1039 = vunpack.c.0.s8 %v1038
    %v1040 = vlaneseq
    %v1041 = vshrl.u32 %v1040, 7
    %v1042 = vsub.s32 %v1039, %v1041
    %v1043 = vrot.slane %v1029, %v1042
    %v1044 = vcombine.low %v1036, %v1043
    %v1045 = vcombine.low %v923, %v924
    %v1047 = vunpack.c.l.s4 1966171168
    %v1048 = vunpack.c.0.s8 %v1047
    %v1049 = vlaneseq
    %v1050 = vshrl.u32 %v1049, 7
    %v1051 = vsub.s32 %v1048, %v1050
    %v1052 = vrot.slane %v1045, %v1051
    %v1054 = vunpack.c.l.s4 1966171168
    %v1055 = vunpack.c.0.s8 %v1054
    %v1056 = vlaneseq
    %v1057 = vshrl.u32 %v1056, 7
    %v1058 = vsub.s32 %v1055, %v1057
    %v1059 = vrot.slane %v1052, %v1058
    %v1060 = vsel %vm358, %v995, 0
    %v1062 = vsel %vm358, %v1044, 0
    %v1064 = vsel %vm358, %v1059, 0
    %1066 = vmatprep.subr.mxu0 0.0
    %1067 = vmatpush1.msra.mxu0 %v925
    %1068 = vmatprep.subr.mxu0 0.0
    %1069 = vmatpush1.msra.mxu0 %v926
    %1070 = vmatprep.subr.mxu0 0.0
    %1071 = vmatpush1.msra.mxu0 %v927
    %1072 = vmatprep.subr.mxu0 0.0
    %1073 = vmatpush1.msra.mxu0 %v928
    %1074 = vmatprep.subr.mxu0 0.0
    %1075 = vmatpush1.msra.mxu0 0.0
    %1076 = vmatprep.subr.mxu0 0.0
    %1077 = vmatpush1.msra.mxu0 0.0
    %1078 = vmatprep.subr.mxu0 0.0
    %1079 = vmatpush1.msra.mxu0 0.0
    %1080 = vmatprep.subr.mxu0 0.0
    %1081 = vmatpush1.msra.mxu0 0.0
    %1082 = vmatprep.subr.mxu0 0.0
    %1083 = vmatpush1.msra.mxu0 0.0
    %1084 = vmatprep.subr.mxu0 0.0
    %1085 = vmatpush1.msra.mxu0 0.0
    %1086 = vmatprep.subr.mxu0 0.0
    %1087 = vmatpush1.msra.mxu0 0.0
    %1088 = vmatprep.subr.mxu0 0.0
    %1089 = vmatpush1.msra.mxu0 0.0
    %1090 = vmatprep.subr.mxu0 0.0
    %1091 = vmatpush1.msra.mxu0 0.0
    %1092 = vmatprep.subr.mxu0 0.0
    %1093 = vmatpush1.msra.mxu0 0.0
    %1094 = vmatprep.subr.mxu0 0.0
    %1095 = vmatpush1.msra.mxu0 0.0
    %1096 = vmatprep.subr.mxu0 0.0
    %1097 = vmatpush1.msra.mxu0 0.0
    %1098 = vmatprep.subr.mxu0 0.0
    %1099 = vmatpush1.msra.mxu0 0.0
    %1100 = vmatprep.subr.mxu0 0.0
    %1101 = vmatpush1.msra.mxu0 0.0
    %1102 = vmatprep.subr.mxu0 0.0
    %1103 = vmatpush1.msra.mxu0 0.0
    %1104 = vmatprep.subr.mxu0 0.0
    %1105 = vmatpush1.msra.mxu0 0.0
    %1106 = vmatprep.subr.mxu0 0.0
    %1107 = vmatpush1.msra.mxu0 0.0
    %1108 = vmatprep.subr.mxu0 0.0
    %1109 = vmatpush1.msra.mxu0 0.0
    %1110 = vmatprep.subr.mxu0 0.0
    %1111 = vmatpush1.msra.mxu0 0.0
    %1112 = vmatprep.subr.mxu0 0.0
    %1113 = vmatpush1.msra.mxu0 0.0
    %1114 = vmatprep.subr.mxu0 0.0
    %1115 = vmatpush1.msra.mxu0 0.0
    %1116 = vmatprep.subr.mxu0 0.0
    %1117 = vmatpush1.msra.mxu0 0.0
    %1118 = vmatprep.subr.mxu0 0.0
    %1119 = vmatpush1.msra.mxu0 0.0
    %1120 = vmatprep.subr.mxu0 0.0
    %1121 = vmatpush1.msra.mxu0 0.0
    %1122 = vmatprep.subr.mxu0 0.0
    %1123 = vmatpush1.msra.mxu0 0.0
    %1124 = vmatprep.subr.mxu0 0.0
    %1125 = vmatpush1.msra.mxu0 0.0
    %1126 = vmatprep.subr.mxu0 0.0
    %1127 = vmatpush1.msra.mxu0 0.0
    %1128 = vmatprep.subr.mxu0 0.0
    %1129 = vmatpush1.msra.mxu0 0.0
    %1130 = vmatprep.mubr.f32.mxu0 0.0
    %1131 = vmatmul.mubr.f32.gmra.mrb[0].mxu0 %v1060
    %v1132 = vpop.f32.mrb[0].mxu0
    %v1133 = vadd.f32 0.0, %v1132
    %v1134 = vpop.f32.mrb[0].mxu0
    %1135 = vmatprep.mubr.f32.mxu0 0.0
    %1136 = vmatmul.mubr.f32.gmra.mrb[0].mxu0 %v1062
    %v1137 = vpop.f32.mrb[0].mxu0
    %v1138 = vadd.f32 0.0, %v1137
    %v1139 = vpop.f32.mrb[0].mxu0
    %1140 = vmatprep.mubr.f32.mxu0 0.0
    %1141 = vmatmul.mubr.f32.gmra.mrb[0].mxu0 %v1064
    %v1142 = vpop.f32.mrb[0].mxu0
    %v1143 = vadd.f32 0.0, %v1142
    %v1144 = vpop.f32.mrb[0].mxu0
    %1145 = vdwg.mxu0
    %v1149 = vcombine.high %v1133, %v1133
    %v1151 = vunpack.c.l.s4 1966171168
    %v1152 = vunpack.c.0.s8 %v1151
    %v1153 = vlaneseq
    %v1154 = vshrl.u32 %v1153, 7
    %v1155 = vsub.s32 %v1152, %v1154
    %v1156 = vrot.slane %v1133, %v1155
    %v1158 = vunpack.c.l.s4 1966171168
    %v1159 = vunpack.c.0.s8 %v1158
    %v1160 = vlaneseq
    %v1161 = vshrl.u32 %v1160, 7
    %v1162 = vsub.s32 %v1159, %v1161
    %v1163 = vrot.slane %v1149, %v1162
    %v1164 = vcombine.high %v1156, %v1156
    %v1165 = vcombine.high %v1163, %v1163
    %v1167 = vunpack.c.l.s4 1966171168
    %v1168 = vunpack.c.0.s8 %v1167
    %v1169 = vlaneseq
    %v1170 = vshrl.u32 %v1169, 7
    %v1171 = vsub.s32 %v1168, %v1170
    %v1172 = vrot.slane %v1156, %v1171
    %v1174 = vunpack.c.l.s4 1966171168
    %v1175 = vunpack.c.0.s8 %v1174
    %v1176 = vlaneseq
    %v1177 = vshrl.u32 %v1176, 7
    %v1178 = vsub.s32 %v1175, %v1177
    %v1179 = vrot.slane %v1163, %v1178
    %v1181 = vunpack.c.l.s4 1966171168
    %v1182 = vunpack.c.0.s8 %v1181
    %v1183 = vlaneseq
    %v1184 = vshrl.u32 %v1183, 7
    %v1185 = vsub.s32 %v1182, %v1184
    %v1186 = vrot.slane %v1164, %v1185
    %v1188 = vunpack.c.l.s4 1966171168
    %v1189 = vunpack.c.0.s8 %v1188
    %v1190 = vlaneseq
    %v1191 = vshrl.u32 %v1190, 7
    %v1192 = vsub.s32 %v1189, %v1191
    %v1193 = vrot.slane %v1165, %v1192
    %v1194 = vcombine.high %v1172, %v1172
    %v1195 = vcombine.high %v1179, %v1179
    %v1196 = vcombine.high %v1186, %v1186
    %v1197 = vcombine.high %v1193, %v1193
    %v1198 = vcombine.high %v1138, %v1138
    %v1200 = vunpack.c.l.s4 1966171168
    %v1201 = vunpack.c.0.s8 %v1200
    %v1202 = vlaneseq
    %v1203 = vshrl.u32 %v1202, 7
    %v1204 = vsub.s32 %v1201, %v1203
    %v1205 = vrot.slane %v1138, %v1204
    %v1207 = vunpack.c.l.s4 1966171168
    %v1208 = vunpack.c.0.s8 %v1207
    %v1209 = vlaneseq
    %v1210 = vshrl.u32 %v1209, 7
    %v1211 = vsub.s32 %v1208, %v1210
    %v1212 = vrot.slane %v1198, %v1211
    %v1213 = vcombine.high %v1205, %v1205
    %v1214 = vcombine.high %v1212, %v1212
    %v1216 = vunpack.c.l.s4 1966171168
    %v1217 = vunpack.c.0.s8 %v1216
    %v1218 = vlaneseq
    %v1219 = vshrl.u32 %v1218, 7
    %v1220 = vsub.s32 %v1217, %v1219
    %v1221 = vrot.slane %v1205, %v1220
    %v1223 = vunpack.c.l.s4 1966171168
    %v1224 = vunpack.c.0.s8 %v1223
    %v1225 = vlaneseq
    %v1226 = vshrl.u32 %v1225, 7
    %v1227 = vsub.s32 %v1224, %v1226
    %v1228 = vrot.slane %v1212, %v1227
    %v1230 = vunpack.c.l.s4 1966171168
    %v1231 = vunpack.c.0.s8 %v1230
    %v1232 = vlaneseq
    %v1233 = vshrl.u32 %v1232, 7
    %v1234 = vsub.s32 %v1231, %v1233
    %v1235 = vrot.slane %v1213, %v1234
    %v1237 = vunpack.c.l.s4 1966171168
    %v1238 = vunpack.c.0.s8 %v1237
    %v1239 = vlaneseq
    %v1240 = vshrl.u32 %v1239, 7
    %v1241 = vsub.s32 %v1238, %v1240
    %v1242 = vrot.slane %v1214, %v1241
    %v1243 = vcombine.high %v1221, %v1221
    %v1244 = vcombine.high %v1228, %v1228
    %v1245 = vcombine.high %v1235, %v1235
    %v1246 = vcombine.high %v1242, %v1242
    %v1248 = vunpack.c.l.s4 1966171168
    %v1249 = vunpack.c.0.s8 %v1248
    %v1250 = vlaneseq
    %v1251 = vshrl.u32 %v1250, 7
    %v1252 = vsub.s32 %v1249, %v1251
    %v1253 = vrot.slane %v1143, %v1252
    %v1254 = vcombine.high %v1253, %v1253
    %v1256 = vunpack.c.l.s4 1966171168
    %v1257 = vunpack.c.0.s8 %v1256
    %v1258 = vlaneseq
    %v1259 = vshrl.u32 %v1258, 7
    %v1260 = vsub.s32 %v1257, %v1259
    %v1261 = vrot.slane %v1253, %v1260
    %v1263 = vunpack.c.l.s4 1966171168
    %v1264 = vunpack.c.0.s8 %v1263
    %v1265 = vlaneseq
    %v1266 = vshrl.u32 %v1265, 7
    %v1267 = vsub.s32 %v1264, %v1266
    %v1268 = vrot.slane %v1254, %v1267
    %v1285 = vcombine.low %v1172, %v1186
    %v1286 = vcombine.low %v1194, %v1196
    %v1287 = vcombine.low %v1179, %v1193
    %v1288 = vcombine.low %v1195, %v1197
    %v1290 = vunpack.c.l.s4 1966171168
    %v1291 = vunpack.c.0.s8 %v1290
    %v1292 = vlaneseq
    %v1293 = vshrl.u32 %v1292, 7
    %v1294 = vsub.s32 %v1291, %v1293
    %v1295 = vrot.slane %v1285, %v1294
    %v1297 = vunpack.c.l.s4 1966171168
    %v1298 = vunpack.c.0.s8 %v1297
    %v1299 = vlaneseq
    %v1300 = vshrl.u32 %v1299, 7
    %v1301 = vsub.s32 %v1298, %v1300
    %v1302 = vrot.slane %v1286, %v1301
    %v1304 = vunpack.c.l.s4 1966171168
    %v1305 = vunpack.c.0.s8 %v1304
    %v1306 = vlaneseq
    %v1307 = vshrl.u32 %v1306, 7
    %v1308 = vsub.s32 %v1305, %v1307
    %v1309 = vrot.slane %v1287, %v1308
    %v1311 = vunpack.c.l.s4 1966171168
    %v1312 = vunpack.c.0.s8 %v1311
    %v1313 = vlaneseq
    %v1314 = vshrl.u32 %v1313, 7
    %v1315 = vsub.s32 %v1312, %v1314
    %v1316 = vrot.slane %v1288, %v1315
    %v1317 = vcombine.low %v1295, %v1302
    %v1318 = vcombine.low %v1309, %v1316
    %v1320 = vunpack.c.l.s4 1966171168
    %v1321 = vunpack.c.0.s8 %v1320
    %v1322 = vlaneseq
    %v1323 = vshrl.u32 %v1322, 7
    %v1324 = vsub.s32 %v1321, %v1323
    %v1325 = vrot.slane %v1317, %v1324
    %v1327 = vunpack.c.l.s4 1966171168
    %v1328 = vunpack.c.0.s8 %v1327
    %v1329 = vlaneseq
    %v1330 = vshrl.u32 %v1329, 7
    %v1331 = vsub.s32 %v1328, %v1330
    %v1332 = vrot.slane %v1318, %v1331
    %v1333 = vcombine.low %v1325, %v1332
    %v1335 = vunpack.c.l.s4 1966171168
    %v1336 = vunpack.c.0.s8 %v1335
    %v1337 = vlaneseq
    %v1338 = vshrl.u32 %v1337, 7
    %v1339 = vsub.s32 %v1336, %v1338
    %v1340 = vrot.slane %v1221, %v1339
    %v1342 = vunpack.c.l.s4 1966171168
    %v1343 = vunpack.c.0.s8 %v1342
    %v1344 = vlaneseq
    %v1345 = vshrl.u32 %v1344, 7
    %v1346 = vsub.s32 %v1343, %v1345
    %v1347 = vrot.slane %v1340, %v1346
    %v1348 = vcombine.low %v1235, %v1243
    %v1349 = vcombine.low %v1245, %v1228
    %v1350 = vcombine.low %v1242, %v1244
    %v1351 = vcombine.low %v1246, %v1261
    %v1353 = vunpack.c.l.s4 1966171168
    %v1354 = vunpack.c.0.s8 %v1353
    %v1355 = vlaneseq
    %v1356 = vshrl.u32 %v1355, 7
    %v1357 = vsub.s32 %v1354, %v1356
    %v1358 = vrot.slane %v1348, %v1357
    %v1360 = vunpack.c.l.s4 1966171168
    %v1361 = vunpack.c.0.s8 %v1360
    %v1362 = vlaneseq
    %v1363 = vshrl.u32 %v1362, 7
    %v1364 = vsub.s32 %v1361, %v1363
    %v1365 = vrot.slane %v1349, %v1364
    %v1367 = vunpack.c.l.s4 1966171168
    %v1368 = vunpack.c.0.s8 %v1367
    %v1369 = vlaneseq
    %v1370 = vshrl.u32 %v1369, 7
    %v1371 = vsub.s32 %v1368, %v1370
    %v1372 = vrot.slane %v1350, %v1371
    %v1374 = vunpack.c.l.s4 1966171168
    %v1375 = vunpack.c.0.s8 %v1374
    %v1376 = vlaneseq
    %v1377 = vshrl.u32 %v1376, 7
    %v1378 = vsub.s32 %v1375, %v1377
    %v1379 = vrot.slane %v1351, %v1378
    %v1380 = vcombine.low %v1358, %v1365
    %v1381 = vcombine.low %v1372, %v1379
    %v1383 = vunpack.c.l.s4 1966171168
    %v1384 = vunpack.c.0.s8 %v1383
    %v1385 = vlaneseq
    %v1386 = vshrl.u32 %v1385, 7
    %v1387 = vsub.s32 %v1384, %v1386
    %v1388 = vrot.slane %v1380, %v1387
    %v1390 = vunpack.c.l.s4 1966171168
    %v1391 = vunpack.c.0.s8 %v1390
    %v1392 = vlaneseq
    %v1393 = vshrl.u32 %v1392, 7
    %v1394 = vsub.s32 %v1391, %v1393
    %v1395 = vrot.slane %v1381, %v1394
    %v1396 = vcombine.low %v1388, %v1395
    %v1398 = vunpack.c.l.s4 1966171168
    %v1399 = vunpack.c.0.s8 %v1398
    %v1400 = vlaneseq
    %v1401 = vshrl.u32 %v1400, 7
    %v1402 = vsub.s32 %v1399, %v1401
    %v1403 = vrot.slane %v1268, %v1402
    %v1405 = vunpack.c.l.s4 1966171168
    %v1406 = vunpack.c.0.s8 %v1405
    %v1407 = vlaneseq
    %v1408 = vshrl.u32 %v1407, 7
    %v1409 = vsub.s32 %v1406, %v1408
    %v1410 = vrot.slane %v1403, %v1409
    %1411 = vrot.lane.b32.xlu0 %v1333, 96
    %v1412 = vpop.permute.xlu0 %1411
    %1413 = vrot.lane.b32.xlu0 %v1347, 96
    %v1414 = vpop.permute.xlu0 %1413
    %1415 = vrot.lane.b32.xlu0 %v1396, 96
    %v1416 = vpop.permute.xlu0 %1415
    %1417 = vrot.lane.b32.xlu0 %v1410, 96
    %v1418 = vpop.permute.xlu0 %1417
    %vm1423 = vcmask 130048
    %1424 = vst.msk [vmem:[#allocation12] sm:$0xff] %vm1423, %v1412
    %vm1425 = vcmask 122880
    %1426 = vst.msk [vmem:[#allocation12 + $0x8] sm:$0x1] %vm1425, %v1414
    %1427 = vst.msk [vmem:[#allocation12 + $0x10] sm:$0xff] %vm1423, %v1416
    %1428 = vst.msk [vmem:[#allocation12 + $0x18] sm:$0x1] %vm1425, %v1418
    %v1429 = vlaneseq
    %v1430 = vshrl.u32 %v1429, 7
    %v1431 = vsub.s32 0, %v1430
    %v1432 = vrot.slane %v91, %v1431
    %1434 = vbcast.lane.b32.xlu0 %v1432, 256
    %v1435 = vpop.permute.xlu0 %1434
    %s1437 = sor.u32 256, 8
    %1438 = vbcast.lane.b32.xlu0 %v1432, %s1437
    %v1439 = vpop.permute.xlu0 %1438
    %v1440 = vlaneseq
    %v1441 = vshrl.u32 %v1440, 7
    %v1442 = vsub.s32 1, %v1441
    %v1443 = vrot.slane %v91, %v1442
    %1445 = vbcast.lane.b32.xlu0 %v1443, 256
    %v1446 = vpop.permute.xlu0 %1445
    %s1448 = sor.u32 256, 8
    %1449 = vbcast.lane.b32.xlu0 %v1443, %s1448
    %v1450 = vpop.permute.xlu0 %1449
    %v1453 = vunpack.c.l.s4 1966171168
    %v1454 = vunpack.c.0.s8 %v1453
    %v1455 = vlaneseq
    %v1456 = vshrl.u32 %v1455, 7
    %v1457 = vsub.s32 %v1454, %v1456
    %v1458 = vrot.slane %v91, %v1457
    %v1459 = vcombine.high %v1458, %v1458
    %v1461 = vunpack.c.l.s4 1966171168
    %v1462 = vunpack.c.0.s8 %v1461
    %v1463 = vlaneseq
    %v1464 = vshrl.u32 %v1463, 7
    %v1465 = vsub.s32 %v1462, %v1464
    %v1466 = vrot.slane %v1458, %v1465
    %v1468 = vunpack.c.l.s4 1966171168
    %v1469 = vunpack.c.0.s8 %v1468
    %v1470 = vlaneseq
    %v1471 = vshrl.u32 %v1470, 7
    %v1472 = vsub.s32 %v1469, %v1471
    %v1473 = vrot.slane %v1459, %v1472
    %v1474 = vlaneseq
    %v1475 = vshrl.u32 %v1474, 7
    %v1476 = vsub.s32 0, %v1475
    %v1477 = vrot.slane %v1466, %v1476
    %v1478 = vlaneseq
    %v1479 = vshrl.u32 %v1478, 7
    %v1480 = vsub.s32 0, %v1479
    %v1481 = vrot.slane %v1473, %v1480
    %v1484 = vmul.f32 %v1435, %v1477
    %v1485 = vmul.f32 %v1439, %v1477
    %v1486 = vmul.f32 %v1446, %v1481
    %v1487 = vmul.f32 %v1450, %v1481
    %vm1488 = vcmp.gt.f32.partialorder %v1484, 0.5
    %vm1489 = vcmp.gt.f32.partialorder %v1485, 0.5
    %vm1490 = vcmp.gt.f32.partialorder %v1486, 0.5
    %vm1491 = vcmp.gt.f32.partialorder %v1487, 0.5
    %1492 = vrot.lane.b32.xlu0 %v1333, 112
    %v1493 = vpop.permute.xlu0 %1492
    %1494 = vrot.lane.b32.xlu0 %v1347, 112
    %v1495 = vpop.permute.xlu0 %1494
    %vm1496 = vcmask 64512
    %v1497 = vsel %vm1496, %v1333, 0
    %v1499 = vsel %vm1496, %v1347, 0
    %v1501 = vsel %vm1496, %v1493, 0
    %v1503 = vsel %vm1496, %v1495, 0
    %1505 = vmatprep.subr.mxu0 0.0
    %1506 = vmatpush1.xpose.msra.mxu0 %v1501
    %1507 = vmatprep.subr.mxu0 0.0
    %1508 = vmatpush1.xpose.msra.mxu0 %v1503
    %1509 = vmatprep.subr.mxu0 0.0
    %1510 = vmatpush1.xpose.msra.mxu0 0.0
    %1511 = vmatprep.subr.mxu0 0.0
    %1512 = vmatpush1.xpose.msra.mxu0 0.0
    %1513 = vmatprep.subr.mxu0 0.0
    %1514 = vmatpush1.xpose.msra.mxu0 0.0
    %1515 = vmatprep.subr.mxu0 0.0
    %1516 = vmatpush1.xpose.msra.mxu0 0.0
    %1517 = vmatprep.subr.mxu0 0.0
    %1518 = vmatpush1.xpose.msra.mxu0 0.0
    %1519 = vmatprep.subr.mxu0 0.0
    %1520 = vmatpush1.xpose.msra.mxu0 0.0
    %1521 = vmatprep.subr.mxu0 0.0
    %1522 = vmatpush1.xpose.msra.mxu0 0.0
    %1523 = vmatprep.subr.mxu0 0.0
    %1524 = vmatpush1.xpose.msra.mxu0 0.0
    %1525 = vmatprep.subr.mxu0 0.0
    %1526 = vmatpush1.xpose.msra.mxu0 0.0
    %1527 = vmatprep.subr.mxu0 0.0
    %1528 = vmatpush1.xpose.msra.mxu0 0.0
    %1529 = vmatprep.subr.mxu0 0.0
    %1530 = vmatpush1.xpose.msra.mxu0 0.0
    %1531 = vmatprep.subr.mxu0 0.0
    %1532 = vmatpush1.xpose.msra.mxu0 0.0
    %1533 = vmatprep.subr.mxu0 0.0
    %1534 = vmatpush1.xpose.msra.mxu0 0.0
    %1535 = vmatprep.subr.mxu0 0.0
    %1536 = vmatpush1.xpose.msra.mxu0 0.0
    %1537 = vmatprep.subr.mxu0 0.0
    %1538 = vmatpush1.xpose.msra.mxu0 0.0
    %1539 = vmatprep.subr.mxu0 0.0
    %1540 = vmatpush1.xpose.msra.mxu0 0.0
    %1541 = vmatprep.subr.mxu0 0.0
    %1542 = vmatpush1.xpose.msra.mxu0 0.0
    %1543 = vmatprep.subr.mxu0 0.0
    %1544 = vmatpush1.xpose.msra.mxu0 0.0
    %1545 = vmatprep.subr.mxu0 0.0
    %1546 = vmatpush1.xpose.msra.mxu0 0.0
    %1547 = vmatprep.subr.mxu0 0.0
    %1548 = vmatpush1.xpose.msra.mxu0 0.0
    %1549 = vmatprep.subr.mxu0 0.0
    %1550 = vmatpush1.xpose.msra.mxu0 0.0
    %1551 = vmatprep.subr.mxu0 0.0
    %1552 = vmatpush1.xpose.msra.mxu0 0.0
    %1553 = vmatprep.subr.mxu0 0.0
    %1554 = vmatpush1.xpose.msra.mxu0 0.0
    %1555 = vmatprep.subr.mxu0 0.0
    %1556 = vmatpush1.xpose.msra.mxu0 0.0
    %1557 = vmatprep.subr.mxu0 0.0
    %1558 = vmatpush1.xpose.msra.mxu0 0.0
    %1559 = vmatprep.subr.mxu0 0.0
    %1560 = vmatpush1.xpose.msra.mxu0 0.0
    %1561 = vmatprep.subr.mxu0 0.0
    %1562 = vmatpush1.xpose.msra.mxu0 0.0
    %1563 = vmatprep.subr.mxu0 0.0
    %1564 = vmatpush1.xpose.msra.mxu0 0.0
    %1565 = vmatprep.subr.mxu0 0.0
    %1566 = vmatpush1.xpose.msra.mxu0 0.0
    %1567 = vmatprep.subr.mxu0 0.0
    %1568 = vmatpush1.xpose.msra.mxu0 0.0
    %1569 = vmatprep.mubr.f32.mxu0 0.0
    %1570 = vmatmul.mubr.f32.gmra.mrb[0].mxu0 %v1497
    %v1571 = vpop.f32.mrb[0].mxu0
    %v1572 = vadd.f32 0.0, %v1571
    %v1573 = vpop.f32.mrb[0].mxu0
    %1574 = vmatprep.mubr.f32.mxu0 0.0
    %1575 = vmatmul.mubr.f32.gmra.mrb[0].mxu0 %v1499
    %v1576 = vpop.f32.mrb[0].mxu0
    %v1577 = vadd.f32 0.0, %v1576
    %v1578 = vpop.f32.mrb[0].mxu0
    %1579 = vdwg.mxu0
    %1580 = vrot.lane.b32.xlu0 %v1396, 112
    %v1581 = vpop.permute.xlu0 %1580
    %1582 = vrot.lane.b32.xlu0 %v1410, 112
    %v1583 = vpop.permute.xlu0 %1582
    %v1584 = vsel %vm1496, %v1396, 0
    %v1586 = vsel %vm1496, %v1410, 0
    %v1588 = vsel %vm1496, %v1581, 0
    %v1590 = vsel %vm1496, %v1583, 0
    %1592 = vmatprep.subr.mxu0 0.0
    %1593 = vmatpush1.xpose.msra.mxu0 %v1588
    %1594 = vmatprep.subr.mxu0 0.0
    %1595 = vmatpush1.xpose.msra.mxu0 %v1590
    %1596 = vmatprep.subr.mxu0 0.0
    %1597 = vmatpush1.xpose.msra.mxu0 0.0
    %1598 = vmatprep.subr.mxu0 0.0
    %1599 = vmatpush1.xpose.msra.mxu0 0.0
    %1600 = vmatprep.subr.mxu0 0.0
    %1601 = vmatpush1.xpose.msra.mxu0 0.0
    %1602 = vmatprep.subr.mxu0 0.0
    %1603 = vmatpush1.xpose.msra.mxu0 0.0
    %1604 = vmatprep.subr.mxu0 0.0
    %1605 = vmatpush1.xpose.msra.mxu0 0.0
    %1606 = vmatprep.subr.mxu0 0.0
    %1607 = vmatpush1.xpose.msra.mxu0 0.0
    %1608 = vmatprep.subr.mxu0 0.0
    %1609 = vmatpush1.xpose.msra.mxu0 0.0
    %1610 = vmatprep.subr.mxu0 0.0
    %1611 = vmatpush1.xpose.msra.mxu0 0.0
    %1612 = vmatprep.subr.mxu0 0.0
    %1613 = vmatpush1.xpose.msra.mxu0 0.0
    %1614 = vmatprep.subr.mxu0 0.0
    %1615 = vmatpush1.xpose.msra.mxu0 0.0
    %1616 = vmatprep.subr.mxu0 0.0
    %1617 = vmatpush1.xpose.msra.mxu0 0.0
    %1618 = vmatprep.subr.mxu0 0.0
    %1619 = vmatpush1.xpose.msra.mxu0 0.0
    %1620 = vmatprep.subr.mxu0 0.0
    %1621 = vmatpush1.xpose.msra.mxu0 0.0
    %1622 = vmatprep.subr.mxu0 0.0
    %1623 = vmatpush1.xpose.msra.mxu0 0.0
    %1624 = vmatprep.subr.mxu0 0.0
    %1625 = vmatpush1.xpose.msra.mxu0 0.0
    %1626 = vmatprep.subr.mxu0 0.0
    %1627 = vmatpush1.xpose.msra.mxu0 0.0
    %1628 = vmatprep.subr.mxu0 0.0
    %1629 = vmatpush1.xpose.msra.mxu0 0.0
    %1630 = vmatprep.subr.mxu0 0.0
    %1631 = vmatpush1.xpose.msra.mxu0 0.0
    %1632 = vmatprep.subr.mxu0 0.0
    %1633 = vmatpush1.xpose.msra.mxu0 0.0
    %1634 = vmatprep.subr.mxu0 0.0
    %1635 = vmatpush1.xpose.msra.mxu0 0.0
    %1636 = vmatprep.subr.mxu0 0.0
    %1637 = vmatpush1.xpose.msra.mxu0 0.0
    %1638 = vmatprep.subr.mxu0 0.0
    %1639 = vmatpush1.xpose.msra.mxu0 0.0
    %1640 = vmatprep.subr.mxu0 0.0
    %1641 = vmatpush1.xpose.msra.mxu0 0.0
    %1642 = vmatprep.subr.mxu0 0.0
    %1643 = vmatpush1.xpose.msra.mxu0 0.0
    %1644 = vmatprep.subr.mxu0 0.0
    %1645 = vmatpush1.xpose.msra.mxu0 0.0
    %1646 = vmatprep.subr.mxu0 0.0
    %1647 = vmatpush1.xpose.msra.mxu0 0.0
    %1648 = vmatprep.subr.mxu0 0.0
    %1649 = vmatpush1.xpose.msra.mxu0 0.0
    %1650 = vmatprep.subr.mxu0 0.0
    %1651 = vmatpush1.xpose.msra.mxu0 0.0
    %1652 = vmatprep.subr.mxu0 0.0
    %1653 = vmatpush1.xpose.msra.mxu0 0.0
    %1654 = vmatprep.subr.mxu0 0.0
    %1655 = vmatpush1.xpose.msra.mxu0 0.0
    %1656 = vmatprep.mubr.f32.mxu0 0.0
    %1657 = vmatmul.mubr.f32.gmra.mrb[0].mxu0 %v1584
    %v1658 = vpop.f32.mrb[0].mxu0
    %v1659 = vadd.f32 0.0, %v1658
    %v1660 = vpop.f32.mrb[0].mxu0
    %1661 = vmatprep.mubr.f32.mxu0 0.0
    %1662 = vmatmul.mubr.f32.gmra.mrb[0].mxu0 %v1586
    %v1663 = vpop.f32.mrb[0].mxu0
    %v1664 = vadd.f32 0.0, %v1663
    %v1665 = vpop.f32.mrb[0].mxu0
    %1666 = vdwg.mxu0
    %v1667 = vmul.f32 %v1572, 0.35355338
    %v1668 = vmul.f32 %v1577, 0.35355338
    %v1669 = vmul.f32 %v1659, 0.35355338
    %v1670 = vmul.f32 %v1664, 0.35355338
    %v1671 = vsel %vm1488, %v1667, -1e+30
    %v1672 = vsel %vm1489, %v1668, -1e+30
    %v1673 = vsel %vm1490, %v1669, -1e+30
    %v1674 = vsel %vm1491, %v1670, -1e+30
    %vm1675 = vcmask 72704
    %v1676 = vsel %vm1675, %v1671, -inf
    %1677 = vmax.xlane.f32.xlu0 %v1676
    %v1678 = vpop.xlane.xlu0 %1677
    %vm1679 = vcmask 65536
    %v1680 = vsel %vm1679, %v1672, -inf
    %1681 = vmax.xlane.f32.xlu0 %v1680
    %v1682 = vpop.xlane.xlu0 %1681
    %v1683 = vsel %vm1675, %v1673, -inf
    %1684 = vmax.xlane.f32.xlu0 %v1683
    %v1685 = vpop.xlane.xlu0 %1684
    %v1686 = vsel %vm1679, %v1674, -inf
    %1687 = vmax.xlane.f32.xlu0 %v1686
    %v1688 = vpop.xlane.xlu0 %1687
    %v1689 = vsub.f32 %v1671, %v1678
    %v1690 = vsub.f32 %v1672, %v1682
    %v1691 = vsub.f32 %v1673, %v1685
    %v1692 = vsub.f32 %v1674, %v1688
    %v1693 = vmul.f32 %v1689, 1.442695
    %v1694 = vpow.pop %v1693
    %v1695 = vmul.f32 %v1690, 1.442695
    %v1696 = vpow.pop %v1695
    %v1697 = vmul.f32 %v1691, 1.442695
    %v1698 = vpow.pop %v1697
    %v1699 = vmul.f32 %v1692, 1.442695
    %v1700 = vpow.pop %v1699
    %v1701 = vsel %vm1675, %v1694, 0.0
    %1702 = vadd.xlane.f32.xlu0 %v1701
    %v1703 = vpop.xlane.xlu0 %1702
    %v1704 = vsel %vm1679, %v1696, 0.0
    %1705 = vadd.xlane.f32.xlu0 %v1704
    %v1706 = vpop.xlane.xlu0 %1705
    %v1707 = vsel %vm1675, %v1698, 0.0
    %1708 = vadd.xlane.f32.xlu0 %v1707
    %v1709 = vpop.xlane.xlu0 %1708
    %v1710 = vsel %vm1679, %v1700, 0.0
    %1711 = vadd.xlane.f32.xlu0 %v1710
    %v1712 = vpop.xlane.xlu0 %1711
    %v1713 = vrcp.pop %v1703
    %v1714 = vmul.f32 %v1694, %v1713
    %v1715 = vrcp.pop %v1706
    %v1716 = vmul.f32 %v1696, %v1715
    %v1717 = vrcp.pop %v1709
    %v1718 = vmul.f32 %v1698, %v1717
    %v1719 = vrcp.pop %v1712
    %v1720 = vmul.f32 %v1700, %v1719
    %1721 = vst.msk [vmem:[#allocation11] sm:$0xff] %vm1675, %v1714
    %1722 = vst.msk [vmem:[#allocation11 + $0x8] sm:$0x1] %vm1679, %v1716
    %1723 = vst.msk [vmem:[#allocation11 + $0x10] sm:$0xff] %vm1675, %v1718
    %1724 = vst.msk [vmem:[#allocation11 + $0x18] sm:$0x1] %vm1679, %v1720
    %v1725 = vmul.f32 %v1186, %v1186
    %v1726 = vmul.f32 %v1194, %v1194
    %v1727 = vmul.f32 %v1196, %v1196
    %v1728 = vmul.f32 %v1179, %v1179
    %v1729 = vmul.f32 %v1193, %v1193
    %v1730 = vmul.f32 %v1195, %v1195
    %v1731 = vmul.f32 %v1197, %v1197
    %v1732 = vmul.f32 %v1221, %v1221
    %v1733 = vmul.f32 %v1243, %v1243
    %v1734 = vmul.f32 %v1245, %v1245
    %v1735 = vmul.f32 %v1228, %v1228
    %v1736 = vmul.f32 %v1242, %v1242
    %v1737 = vmul.f32 %v1244, %v1244
    %v1738 = vmul.f32 %v1246, %v1246
    %v1739 = vmul.f32 %v1261, %v1261
    %v1740 = vmul.f32 %v1268, %v1268
    %v1757 = vcombine.low %v1725, %v1726
    %v1758 = vcombine.low %v1727, %v1728
    %v1759 = vcombine.low %v1729, %v1730
    %v1760 = vcombine.low %v1731, %v1732
    %v1762 = vunpack.c.l.s4 1966171168
    %v1763 = vunpack.c.0.s8 %v1762
    %v1764 = vlaneseq
    %v1765 = vshrl.u32 %v1764, 7
    %v1766 = vsub.s32 %v1763, %v1765
    %v1767 = vrot.slane %v1757, %v1766
    %v1769 = vunpack.c.l.s4 1966171168
    %v1770 = vunpack.c.0.s8 %v1769
    %v1771 = vlaneseq
    %v1772 = vshrl.u32 %v1771, 7
    %v1773 = vsub.s32 %v1770, %v1772
    %v1774 = vrot.slane %v1758, %v1773
    %v1776 = vunpack.c.l.s4 1966171168
    %v1777 = vunpack.c.0.s8 %v1776
    %v1778 = vlaneseq
    %v1779 = vshrl.u32 %v1778, 7
    %v1780 = vsub.s32 %v1777, %v1779
    %v1781 = vrot.slane %v1759, %v1780
    %v1783 = vunpack.c.l.s4 1966171168
    %v1784 = vunpack.c.0.s8 %v1783
    %v1785 = vlaneseq
    %v1786 = vshrl.u32 %v1785, 7
    %v1787 = vsub.s32 %v1784, %v1786
    %v1788 = vrot.slane %v1760, %v1787
    %v1789 = vcombine.low %v1767, %v1774
    %v1790 = vcombine.low %v1781, %v1788
    %v1792 = vunpack.c.l.s4 1966171168
    %v1793 = vunpack.c.0.s8 %v1792
    %v1794 = vlaneseq
    %v1795 = vshrl.u32 %v1794, 7
    %v1796 = vsub.s32 %v1793, %v1795
    %v1797 = vrot.slane %v1789, %v1796
    %v1799 = vunpack.c.l.s4 1966171168
    %v1800 = vunpack.c.0.s8 %v1799
    %v1801 = vlaneseq
    %v1802 = vshrl.u32 %v1801, 7
    %v1803 = vsub.s32 %v1800, %v1802
    %v1804 = vrot.slane %v1790, %v1803
    %v1805 = vcombine.low %v1797, %v1804
    %v1806 = vcombine.low %v1733, %v1734
    %v1807 = vcombine.low %v1735, %v1736
    %v1808 = vcombine.low %v1737, %v1738
    %v1809 = vcombine.low %v1739, %v1740
    %v1811 = vunpack.c.l.s4 1966171168
    %v1812 = vunpack.c.0.s8 %v1811
    %v1813 = vlaneseq
    %v1814 = vshrl.u32 %v1813, 7
    %v1815 = vsub.s32 %v1812, %v1814
    %v1816 = vrot.slane %v1806, %v1815
    %v1818 = vunpack.c.l.s4 1966171168
    %v1819 = vunpack.c.0.s8 %v1818
    %v1820 = vlaneseq
    %v1821 = vshrl.u32 %v1820, 7
    %v1822 = vsub.s32 %v1819, %v1821
    %v1823 = vrot.slane %v1807, %v1822
    %v1825 = vunpack.c.l.s4 1966171168
    %v1826 = vunpack.c.0.s8 %v1825
    %v1827 = vlaneseq
    %v1828 = vshrl.u32 %v1827, 7
    %v1829 = vsub.s32 %v1826, %v1828
    %v1830 = vrot.slane %v1808, %v1829
    %v1832 = vunpack.c.l.s4 1966171168
    %v1833 = vunpack.c.0.s8 %v1832
    %v1834 = vlaneseq
    %v1835 = vshrl.u32 %v1834, 7
    %v1836 = vsub.s32 %v1833, %v1835
    %v1837 = vrot.slane %v1809, %v1836
    %v1838 = vcombine.low %v1816, %v1823
    %v1839 = vcombine.low %v1830, %v1837
    %v1841 = vunpack.c.l.s4 1966171168
    %v1842 = vunpack.c.0.s8 %v1841
    %v1843 = vlaneseq
    %v1844 = vshrl.u32 %v1843, 7
    %v1845 = vsub.s32 %v1842, %v1844
    %v1846 = vrot.slane %v1838, %v1845
    %v1848 = vunpack.c.l.s4 1966171168
    %v1849 = vunpack.c.0.s8 %v1848
    %v1850 = vlaneseq
    %v1851 = vshrl.u32 %v1850, 7
    %v1852 = vsub.s32 %v1849, %v1851
    %v1853 = vrot.slane %v1839, %v1852
    %v1854 = vcombine.low %v1846, %v1853
    %1855 = vrot.lane.b32.xlu0 %v1805, 96
    %v1856 = vpop.permute.xlu0 %1855
    %1857 = vrot.lane.b32.xlu0 %v1854, 96
    %v1858 = vpop.permute.xlu0 %1857
    %v1861 = vsel %vm1496, %v1856, 0.0
    %1862 = vadd.xlane.f32.xlu0 %v1861
    %v1863 = vpop.xlane.xlu0 %1862
    %v1864 = vsel %vm1496, %v1858, 0.0
    %1865 = vadd.xlane.f32.xlu0 %v1864
    %v1866 = vpop.xlane.xlu0 %1865
    %v1867 = vrsqrt.pop %v1863
    %v1868 = vmul.f32 %v1863, %v1867
    %vm1869 = vcmp.eq.f32.partialorder %v1863, inf
    %v1870 = vsel %vm1869, %v1863, %v1868
    %vm1871 = vcmp.eq.f32.partialorder %v1863, 0.0
    %v1872 = vand.u32 %v1863, 2147483648
    %v1873 = vsel %vm1871, %v1872, %v1870
    %v1874 = vrsqrt.pop %v1866
    %v1875 = vmul.f32 %v1866, %v1874
    %vm1876 = vcmp.eq.f32.partialorder %v1866, inf
    %v1877 = vsel %vm1876, %v1866, %v1875
    %vm1878 = vcmp.eq.f32.partialorder %v1866, 0.0
    %v1879 = vand.u32 %v1866, 2147483648
    %v1880 = vsel %vm1878, %v1879, %v1877
    %v1883 = vlaneseq
    %v1884 = vand.u32 %v1883, 127
    %v1885 = vadd.s32 %v1884, 4294967295
    %v1886 = vlaneseq
    %v1887 = vshrl.u32 %v1886, 7
    %v1888 = vsub.s32 %v1885, %v1887
    %v1889 = vrot.slane %v1873, %v1888
    %v1890 = vlaneseq
    %v1891 = vshrl.u32 %v1890, 7
    %v1892 = vsub.s32 %v1885, %v1891
    %v1893 = vrot.slane %v1880, %v1892
    %v1896 = vmul.f32 %v1714, %v1889
    %v1897 = vmul.f32 %v1718, %v1893
    %v1898 = vadd.f32 %v1896, 0.0
    %v1899 = vadd.f32 %v1897, 0.0
    %1900 = vrot.lane.b32.xlu0 %v1333, 120
    %v1901 = vpop.permute.xlu0 %1900
    %1902 = vrot.lane.b32.xlu0 %v1347, 120
    %v1903 = vpop.permute.xlu0 %1902
    %1904 = vrot.lane.b32.xlu0 %v1333, 104
    %v1905 = vpop.permute.xlu0 %1904
    %1906 = vrot.lane.b32.xlu0 %v1347, 104
    %v1907 = vpop.permute.xlu0 %1906
    %v1908 = vsel %vm1496, %v1901, 0
    %v1910 = vsel %vm1496, %v1903, 0
    %v1912 = vsel %vm1496, %v1905, 0
    %v1914 = vsel %vm1496, %v1907, 0
    %1916 = vmatprep.subr.mxu0 0.0
    %1917 = vmatpush1.xpose.msra.mxu0 %v1912
    %1918 = vmatprep.subr.mxu0 0.0
    %1919 = vmatpush1.xpose.msra.mxu0 %v1914
    %1920 = vmatprep.subr.mxu0 0.0
    %1921 = vmatpush1.xpose.msra.mxu0 0.0
    %1922 = vmatprep.subr.mxu0 0.0
    %1923 = vmatpush1.xpose.msra.mxu0 0.0
    %1924 = vmatprep.subr.mxu0 0.0
    %1925 = vmatpush1.xpose.msra.mxu0 0.0
    %1926 = vmatprep.subr.mxu0 0.0
    %1927 = vmatpush1.xpose.msra.mxu0 0.0
    %1928 = vmatprep.subr.mxu0 0.0
    %1929 = vmatpush1.xpose.msra.mxu0 0.0
    %1930 = vmatprep.subr.mxu0 0.0
    %1931 = vmatpush1.xpose.msra.mxu0 0.0
    %1932 = vmatprep.subr.mxu0 0.0
    %1933 = vmatpush1.xpose.msra.mxu0 0.0
    %1934 = vmatprep.subr.mxu0 0.0
    %1935 = vmatpush1.xpose.msra.mxu0 0.0
    %1936 = vmatprep.subr.mxu0 0.0
    %1937 = vmatpush1.xpose.msra.mxu0 0.0
    %1938 = vmatprep.subr.mxu0 0.0
    %1939 = vmatpush1.xpose.msra.mxu0 0.0
    %1940 = vmatprep.subr.mxu0 0.0
    %1941 = vmatpush1.xpose.msra.mxu0 0.0
    %1942 = vmatprep.subr.mxu0 0.0
    %1943 = vmatpush1.xpose.msra.mxu0 0.0
    %1944 = vmatprep.subr.mxu0 0.0
    %1945 = vmatpush1.xpose.msra.mxu0 0.0
    %1946 = vmatprep.subr.mxu0 0.0
    %1947 = vmatpush1.xpose.msra.mxu0 0.0
    %1948 = vmatprep.subr.mxu0 0.0
    %1949 = vmatpush1.xpose.msra.mxu0 0.0
    %1950 = vmatprep.subr.mxu0 0.0
    %1951 = vmatpush1.xpose.msra.mxu0 0.0
    %1952 = vmatprep.subr.mxu0 0.0
    %1953 = vmatpush1.xpose.msra.mxu0 0.0
    %1954 = vmatprep.subr.mxu0 0.0
    %1955 = vmatpush1.xpose.msra.mxu0 0.0
    %1956 = vmatprep.subr.mxu0 0.0
    %1957 = vmatpush1.xpose.msra.mxu0 0.0
    %1958 = vmatprep.subr.mxu0 0.0
    %1959 = vmatpush1.xpose.msra.mxu0 0.0
    %1960 = vmatprep.subr.mxu0 0.0
    %1961 = vmatpush1.xpose.msra.mxu0 0.0
    %1962 = vmatprep.subr.mxu0 0.0
    %1963 = vmatpush1.xpose.msra.mxu0 0.0
    %1964 = vmatprep.subr.mxu0 0.0
    %1965 = vmatpush1.xpose.msra.mxu0 0.0
    %1966 = vmatprep.subr.mxu0 0.0
    %1967 = vmatpush1.xpose.msra.mxu0 0.0
    %1968 = vmatprep.subr.mxu0 0.0
    %1969 = vmatpush1.xpose.msra.mxu0 0.0
    %1970 = vmatprep.subr.mxu0 0.0
    %1971 = vmatpush1.xpose.msra.mxu0 0.0
    %1972 = vmatprep.subr.mxu0 0.0
    %1973 = vmatpush1.xpose.msra.mxu0 0.0
    %1974 = vmatprep.subr.mxu0 0.0
    %1975 = vmatpush1.xpose.msra.mxu0 0.0
    %1976 = vmatprep.subr.mxu0 0.0
    %1977 = vmatpush1.xpose.msra.mxu0 0.0
    %1978 = vmatprep.subr.mxu0 0.0
    %1979 = vmatpush1.xpose.msra.mxu0 0.0
    %1980 = vmatprep.mubr.f32.mxu0 0.0
    %1981 = vmatmul.mubr.f32.gmra.mrb[0].mxu0 %v1908
    %v1982 = vpop.f32.mrb[0].mxu0
    %v1983 = vadd.f32 0.0, %v1982
    %v1984 = vpop.f32.mrb[0].mxu0
    %1985 = vmatprep.mubr.f32.mxu0 0.0
    %1986 = vmatmul.mubr.f32.gmra.mrb[0].mxu0 %v1910
    %v1987 = vpop.f32.mrb[0].mxu0
    %v1988 = vadd.f32 0.0, %v1987
    %v1989 = vpop.f32.mrb[0].mxu0
    %1990 = vdwg.mxu0
    %1991 = vrot.lane.b32.xlu0 %v1396, 120
    %v1992 = vpop.permute.xlu0 %1991
    %1993 = vrot.lane.b32.xlu0 %v1410, 120
    %v1994 = vpop.permute.xlu0 %1993
    %1995 = vrot.lane.b32.xlu0 %v1396, 104
    %v1996 = vpop.permute.xlu0 %1995
    %1997 = vrot.lane.b32.xlu0 %v1410, 104
    %v1998 = vpop.permute.xlu0 %1997
    %v1999 = vsel %vm1496, %v1992, 0
    %v2001 = vsel %vm1496, %v1994, 0
    %v2003 = vsel %vm1496, %v1996, 0
    %v2005 = vsel %vm1496, %v1998, 0
    %2007 = vmatprep.subr.mxu0 0.0
    %2008 = vmatpush1.xpose.msra.mxu0 %v2003
    %2009 = vmatprep.subr.mxu0 0.0
    %2010 = vmatpush1.xpose.msra.mxu0 %v2005
    %2011 = vmatprep.subr.mxu0 0.0
    %2012 = vmatpush1.xpose.msra.mxu0 0.0
    %2013 = vmatprep.subr.mxu0 0.0
    %2014 = vmatpush1.xpose.msra.mxu0 0.0
    %2015 = vmatprep.subr.mxu0 0.0
    %2016 = vmatpush1.xpose.msra.mxu0 0.0
    %2017 = vmatprep.subr.mxu0 0.0
    %2018 = vmatpush1.xpose.msra.mxu0 0.0
    %2019 = vmatprep.subr.mxu0 0.0
    %2020 = vmatpush1.xpose.msra.mxu0 0.0
    %2021 = vmatprep.subr.mxu0 0.0
    %2022 = vmatpush1.xpose.msra.mxu0 0.0
    %2023 = vmatprep.subr.mxu0 0.0
    %2024 = vmatpush1.xpose.msra.mxu0 0.0
    %2025 = vmatprep.subr.mxu0 0.0
    %2026 = vmatpush1.xpose.msra.mxu0 0.0
    %2027 = vmatprep.subr.mxu0 0.0
    %2028 = vmatpush1.xpose.msra.mxu0 0.0
    %2029 = vmatprep.subr.mxu0 0.0
    %2030 = vmatpush1.xpose.msra.mxu0 0.0
    %2031 = vmatprep.subr.mxu0 0.0
    %2032 = vmatpush1.xpose.msra.mxu0 0.0
    %2033 = vmatprep.subr.mxu0 0.0
    %2034 = vmatpush1.xpose.msra.mxu0 0.0
    %2035 = vmatprep.subr.mxu0 0.0
    %2036 = vmatpush1.xpose.msra.mxu0 0.0
    %2037 = vmatprep.subr.mxu0 0.0
    %2038 = vmatpush1.xpose.msra.mxu0 0.0
    %2039 = vmatprep.subr.mxu0 0.0
    %2040 = vmatpush1.xpose.msra.mxu0 0.0
    %2041 = vmatprep.subr.mxu0 0.0
    %2042 = vmatpush1.xpose.msra.mxu0 0.0
    %2043 = vmatprep.subr.mxu0 0.0
    %2044 = vmatpush1.xpose.msra.mxu0 0.0
    %2045 = vmatprep.subr.mxu0 0.0
    %2046 = vmatpush1.xpose.msra.mxu0 0.0
    %2047 = vmatprep.subr.mxu0 0.0
    %2048 = vmatpush1.xpose.msra.mxu0 0.0
    %2049 = vmatprep.subr.mxu0 0.0
    %2050 = vmatpush1.xpose.msra.mxu0 0.0
    %2051 = vmatprep.subr.mxu0 0.0
    %2052 = vmatpush1.xpose.msra.mxu0 0.0
    %2053 = vmatprep.subr.mxu0 0.0
    %2054 = vmatpush1.xpose.msra.mxu0 0.0
    %2055 = vmatprep.subr.mxu0 0.0
    %2056 = vmatpush1.xpose.msra.mxu0 0.0
    %2057 = vmatprep.subr.mxu0 0.0
    %2058 = vmatpush1.xpose.msra.mxu0 0.0
    %2059 = vmatprep.subr.mxu0 0.0
    %2060 = vmatpush1.xpose.msra.mxu0 0.0
    %2061 = vmatprep.subr.mxu0 0.0
    %2062 = vmatpush1.xpose.msra.mxu0 0.0
    %2063 = vmatprep.subr.mxu0 0.0
    %2064 = vmatpush1.xpose.msra.mxu0 0.0
    %2065 = vmatprep.subr.mxu0 0.0
    %2066 = vmatpush1.xpose.msra.mxu0 0.0
    %2067 = vmatprep.subr.mxu0 0.0
    %2068 = vmatpush1.xpose.msra.mxu0 0.0
    %2069 = vmatprep.subr.mxu0 0.0
    %2070 = vmatpush1.xpose.msra.mxu0 0.0
    %2071 = vmatprep.mubr.f32.mxu0 0.0
    %2072 = vmatmul.mubr.f32.gmra.mrb[0].mxu0 %v1999
    %v2073 = vpop.f32.mrb[0].mxu0
    %v2074 = vadd.f32 0.0, %v2073
    %v2075 = vpop.f32.mrb[0].mxu0
    %2076 = vmatprep.mubr.f32.mxu0 0.0
    %2077 = vmatmul.mubr.f32.gmra.mrb[0].mxu0 %v2001
    %v2078 = vpop.f32.mrb[0].mxu0
    %v2079 = vadd.f32 0.0, %v2078
    %v2080 = vpop.f32.mrb[0].mxu0
    %2081 = vdwg.mxu0
    %v2082 = vmul.f32 %v1983, 0.35355338
    %v2083 = vmul.f32 %v1988, 0.35355338
    %v2084 = vmul.f32 %v2074, 0.35355338
    %v2085 = vmul.f32 %v2079, 0.35355338
    %v2086 = vsel %vm1488, %v2082, -1e+30
    %v2087 = vsel %vm1489, %v2083, -1e+30
    %v2088 = vsel %vm1490, %v2084, -1e+30
    %v2089 = vsel %vm1491, %v2085, -1e+30
    %v2090 = vsel %vm1675, %v2086, -inf
    %2091 = vmax.xlane.f32.xlu0 %v2090
    %v2092 = vpop.xlane.xlu0 %2091
    %v2093 = vsel %vm1679, %v2087, -inf
    %2094 = vmax.xlane.f32.xlu0 %v2093
    %v2095 = vpop.xlane.xlu0 %2094
    %v2096 = vsel %vm1675, %v2088, -inf
    %2097 = vmax.xlane.f32.xlu0 %v2096
    %v2098 = vpop.xlane.xlu0 %2097
    %v2099 = vsel %vm1679, %v2089, -inf
    %2100 = vmax.xlane.f32.xlu0 %v2099
    %v2101 = vpop.xlane.xlu0 %2100
    %v2102 = vsub.f32 %v2086, %v2092
    %v2103 = vsub.f32 %v2087, %v2095
    %v2104 = vsub.f32 %v2088, %v2098
    %v2105 = vsub.f32 %v2089, %v2101
    %v2106 = vmul.f32 %v2102, 1.442695
    %v2107 = vpow.pop %v2106
    %v2108 = vmul.f32 %v2103, 1.442695
    %v2109 = vpow.pop %v2108
    %v2110 = vmul.f32 %v2104, 1.442695
    %v2111 = vpow.pop %v2110
    %v2112 = vmul.f32 %v2105, 1.442695
    %v2113 = vpow.pop %v2112
    %v2114 = vsel %vm1675, %v2107, 0.0
    %2115 = vadd.xlane.f32.xlu0 %v2114
    %v2116 = vpop.xlane.xlu0 %2115
    %v2117 = vsel %vm1679, %v2109, 0.0
    %2118 = vadd.xlane.f32.xlu0 %v2117
    %v2119 = vpop.xlane.xlu0 %2118
    %v2120 = vsel %vm1675, %v2111, 0.0
    %2121 = vadd.xlane.f32.xlu0 %v2120
    %v2122 = vpop.xlane.xlu0 %2121
    %v2123 = vsel %vm1679, %v2113, 0.0
    %2124 = vadd.xlane.f32.xlu0 %v2123
    %v2125 = vpop.xlane.xlu0 %2124
    %v2126 = vrcp.pop %v2116
    %v2127 = vmul.f32 %v2107, %v2126
    %v2128 = vrcp.pop %v2119
    %v2129 = vmul.f32 %v2109, %v2128
    %v2130 = vrcp.pop %v2122
    %v2131 = vmul.f32 %v2111, %v2130
    %v2132 = vrcp.pop %v2125
    %v2133 = vmul.f32 %v2113, %v2132
    %s2134 = scalar_lea.vmem [#allocation11], 32
    %2135 = vst.msk [vmem:[%s2134] sm:$0xff] %vm1675, %v2127
    %2136 = vst.msk [vmem:[%s2134 + $0x8] sm:$0x1] %vm1679, %v2129
    %2137 = vst.msk [vmem:[%s2134 + $0x10] sm:$0xff] %vm1675, %v2131
    %2138 = vst.msk [vmem:[%s2134 + $0x18] sm:$0x1] %vm1679, %v2133
    %2139 = vrot.lane.b32.xlu0 %v1805, 88
    %v2140 = vpop.permute.xlu0 %2139
    %2141 = vrot.lane.b32.xlu0 %v1854, 88
    %v2142 = vpop.permute.xlu0 %2141
    %v2145 = vsel %vm1496, %v2140, 0.0
    %2146 = vadd.xlane.f32.xlu0 %v2145
    %v2147 = vpop.xlane.xlu0 %2146
    %v2148 = vsel %vm1496, %v2142, 0.0
    %2149 = vadd.xlane.f32.xlu0 %v2148
    %v2150 = vpop.xlane.xlu0 %2149
    %v2151 = vrsqrt.pop %v2147
    %v2152 = vmul.f32 %v2147, %v2151
    %vm2153 = vcmp.eq.f32.partialorder %v2147, inf
    %v2154 = vsel %vm2153, %v2147, %v2152
    %vm2155 = vcmp.eq.f32.partialorder %v2147, 0.0
    %v2156 = vand.u32 %v2147, 2147483648
    %v2157 = vsel %vm2155, %v2156, %v2154
    %v2158 = vrsqrt.pop %v2150
    %v2159 = vmul.f32 %v2150, %v2158
    %vm2160 = vcmp.eq.f32.partialorder %v2150, inf
    %v2161 = vsel %vm2160, %v2150, %v2159
    %vm2162 = vcmp.eq.f32.partialorder %v2150, 0.0
    %v2163 = vand.u32 %v2150, 2147483648
    %v2164 = vsel %vm2162, %v2163, %v2161
    %v2167 = vlaneseq
    %v2168 = vshrl.u32 %v2167, 7
    %v2169 = vsub.s32 %v1885, %v2168
    %v2170 = vrot.slane %v2157, %v2169
    %v2171 = vlaneseq
    %v2172 = vshrl.u32 %v2171, 7
    %v2173 = vsub.s32 %v1885, %v2172
    %v2174 = vrot.slane %v2164, %v2173
    %v2177 = vmul.f32 %v2127, %v2170
    %v2178 = vmul.f32 %v2131, %v2174
    %v2179 = vadd.f32 %v1898, %v2177
    %v2180 = vadd.f32 %v1899, %v2178
    %v2183 = vrot.slane %v2180, 7
    %vm2184 = vcmask 1041409
    %v2185 = vsel %vm2184, %v2183, %v2179
    %2186 = vrot.lane.b32.xlu0 %v2185, 127
    %v2187 = vpop.permute.xlu0 %2186
    %vm2189 = vcmask 58368
    %2190 = vst.msk [vmem:[#allocation14] sm:$0x3] %vm2189, %v2187
    // Predicated region
    $region42: #{transformer_forward.4} parent=1 // pred_check
      _
    $region43: #{transformer_forward.4} parent=1 // pred_check_branch
      %2192 = sbr.rel (0) target = $region45
    $region44: #{transformer_forward.4} parent=1 // pred_region
      %s2194 = ssub.s32 1024, 1024
      %2195 = vsyncadd [#allocation4], %s2194
      %s2196 = sshll.u32 [#allocation11], 4
      %s2197 = int_to_ptr.vmem [resolvable:$true] %s2196
      %2202 = dma.vmem_to_hbm [thread:$0]  %s2197, 1024, %s5, [#allocation4], 128, 128, 8
    $region45: #{transformer_forward.4} parent=1 // pred_fallthru
      _
    // Predicated region
    $region46: #{transformer_forward.4} parent=1 // pred_check
      _
    $region47: #{transformer_forward.4} parent=1 // pred_check_branch
      %2204 = sbr.rel (0) target = $region49
    $region48: #{transformer_forward.4} parent=1 // pred_region
      %s2206 = ssub.s32 512, 512
      %2207 = vsyncadd [#allocation13], %s2206
      %s2208 = sshll.u32 [#allocation12], 4
      %s2209 = int_to_ptr.vmem [resolvable:$true] %s2208
      %2214 = dma.vmem_to_hbm [thread:$0]  %s2209, 512, %s6, [#allocation13], 128, 128, 8
    $region49: #{transformer_forward.4} parent=1 // pred_fallthru
      _
    // Predicated region
    $region50: #{transformer_forward.4} parent=1 // pred_check
      _
    $region51: #{transformer_forward.4} parent=1 // pred_check_branch
      %2216 = sbr.rel (0) target = $region53
    $region52: #{transformer_forward.4} parent=1 // pred_region
      %s2218 = ssub.s32 32, 32
      %2219 = vsyncadd [#allocation13], %s2218
      %s2221 = sshll.u32 [#allocation14], 4
      %s2222 = int_to_ptr.vmem [resolvable:$true] %s2221
      %2224 = dma.vmem_to_hbm [thread:$0]  %s2222, 32, %s7, [#allocation13]
    $region53: #{transformer_forward.4} parent=1 // pred_fallthru
      _
    // Predicated region
    $region54: #{transformer_forward.4} parent=1 // pred_check
      _
    $region55: #{transformer_forward.4} parent=1 // pred_check_branch
      %2226 = sbr.rel (0) target = $region57
    $region56: #{transformer_forward.4} parent=1 // pred_region
      %2227 = dma.done [#allocation4], 1024
    $region57: #{transformer_forward.4} parent=1 // pred_fallthru
      _
    // Predicated region
    $region58: #{transformer_forward.4} parent=1 // pred_check
      _
    $region59: #{transformer_forward.4} parent=1 // pred_check_branch
      %2229 = sbr.rel (0) target = $region61
    $region60: #{transformer_forward.4} parent=1 // pred_region
      %2230 = dma.done [#allocation13], 512
    $region61: #{transformer_forward.4} parent=1 // pred_fallthru
      _
    // Predicated region
    $region62: #{transformer_forward.4} parent=1 // pred_check
      _
    $region63: #{transformer_forward.4} parent=1 // pred_check_branch
      %2232 = sbr.rel (0) target = $region65
    $region64: #{transformer_forward.4} parent=1 // pred_region
      %2233 = dma.done [#allocation13], 32
    $region65: #{transformer_forward.4} parent=1 // pred_fallthru
      _
    %2234 = vsyncpa [#allocation3], 1
    %2235 = vsyncpa [#allocation6], 1
    %2236 = vsyncpa [#allocation9], 1
    %2237 = vsyncpa [#allocation4], 1
    %2238 = vsyncpa [#allocation13], 1

// kernel: transformer_forward.5
$region0: #{transformer_forward.5}
  #allocation0 [shape = 'u32[]', space=smem, size = 0x4, offset = 0x4, fixed_abs, tag = 'smem constant byte address 0x4 - core index']
  #allocation1 [shape = 'u32[144,128]{1,0:T(1,128)}', space=vmem, size = 0x12000, scoped, tag = 'internal scratch']
  %s0 = inlined_call_operand.hbm [shape: s32[2,7], index: 0, kind: input, shape index: {}]
  %s1 = inlined_call_operand.hbm [shape: f32[2,2,9,9], index: 1, kind: input, shape index: {}]
  %s2 = inlined_call_operand.hbm [shape: f32[2,9,16], index: 2, kind: input, shape index: {}]
  %s3 = inlined_call_operand.hbm [shape: f32[2,9,32], index: 3, kind: input, shape index: {}]
  %s4 = inlined_call_operand.hbm [shape: f32[16,32], index: 4, kind: input, shape index: {}]
  %s5 = inlined_call_operand.hbm [shape: f32[1,32], index: 5, kind: input, shape index: {}]
  %s6 = inlined_call_operand.hbm [shape: f32[1,32], index: 6, kind: input, shape index: {}]
  %s7 = inlined_call_operand.hbm [shape: f32[1,32], index: 7, kind: input, shape index: {}]
  %s8 = inlined_call_operand.hbm [shape: f32[32,64], index: 8, kind: input, shape index: {}]
  %s9 = inlined_call_operand.hbm [shape: f32[1,64], index: 9, kind: input, shape index: {}]
  %s10 = inlined_call_operand.hbm [shape: f32[64,32], index: 10, kind: input, shape index: {}]
  %s11 = inlined_call_operand.hbm [shape: f32[1,32], index: 11, kind: input, shape index: {}]
  %s12 = inlined_call_operand.hbm [shape: f32[14,32], index: 12, kind: output, shape index: {}]
  %s13 = sld [smem:[#allocation0]]
  $region106: #{transformer_forward.5} parent=0
    _
  %s15 = ssub.s32 1, %s13
  %s16 = scalar_select 0, %s15, %s13
  $region1: #{transformer_forward.5} parent=0
    #allocation2 [shape = 'u8[1024]{0}', space=vmem, size = 0x400, scoped, tag = 'input window, operand 0, single buffered']
    #allocation3 [shape = 's32[1]{0}', space=sflag, size = 0x4, scoped, tag = 'scoped memory for transformer_forward.5']
    #allocation4 [shape = 's32[1]{0}', space=sflag, size = 0x4, scoped, tag = 'scoped memory for transformer_forward.5']
    #allocation5 [shape = 'u8[32768]{0}', space=vmem, size = 0x8000, scoped, tag = 'input window, operand 1, single buffered']
    #allocation6 [shape = 's32[1]{0}', space=sflag, size = 0x4, scoped, tag = 'scoped memory for transformer_forward.5']
    #allocation7 [shape = 'u8[16384]{0}', space=vmem, size = 0x4000, scoped, tag = 'input window, operand 2, single buffered']
    #allocation8 [shape = 'u8[16384]{0}', space=vmem, size = 0x4000, scoped, tag = 'input window, operand 3, single buffered']
    #allocation9 [shape = 's32[1]{0}', space=sflag, size = 0x4, scoped, tag = 'scoped memory for transformer_forward.5']
    #allocation10 [shape = 'u8[8192]{0}', space=vmem, size = 0x2000, scoped, tag = 'input window, operand 4, single buffered']
    #allocation11 [shape = 'u8[512]{0}', space=vmem, size = 0x400, scoped, tag = 'input window, operand 5, single buffered']
    #allocation12 [shape = 's32[1]{0}', space=sflag, size = 0x4, scoped, tag = 'scoped memory for transformer_forward.5']
    #allocation13 [shape = 'u8[512]{0}', space=vmem, size = 0x400, scoped, tag = 'input window, operand 6, single buffered']
    #allocation14 [shape = 'u8[512]{0}', space=vmem, size = 0x400, scoped, tag = 'input window, operand 7, single buffered']
    #allocation15 [shape = 's32[1]{0}', space=sflag, size = 0x4, scoped, tag = 'scoped memory for transformer_forward.5']
    #allocation16 [shape = 'u8[16384]{0}', space=vmem, size = 0x4000, scoped, tag = 'input window, operand 8, single buffered']
    #allocation17 [shape = 'u8[512]{0}', space=vmem, size = 0x400, scoped, tag = 'input window, operand 9, single buffered']
    #allocation18 [shape = 's32[1]{0}', space=sflag, size = 0x4, scoped, tag = 'scoped memory for transformer_forward.5']
    #allocation19 [shape = 'u8[32768]{0}', space=vmem, size = 0x8000, scoped, tag = 'input window, operand 10, single buffered']
    #allocation20 [shape = 'u8[512]{0}', space=vmem, size = 0x400, scoped, tag = 'input window, operand 11, single buffered']
    #allocation21 [shape = 's32[1]{0}', space=sflag, size = 0x4, scoped, tag = 'scoped memory for transformer_forward.5']
    #allocation22 [shape = 'u8[8192]{0}', space=vmem, size = 0x2000, scoped, tag = 'output window, operand 0, single buffered']
    %17 = vsyncpa [#allocation3], 0
    %18 = vsyncpa [#allocation6], 0
    %19 = vsyncpa [#allocation9], 0
    %20 = vsyncpa [#allocation12], 0
    %21 = vsyncpa [#allocation15], 0
    %22 = vsyncpa [#allocation18], 0
    %23 = vsyncpa [#allocation21], 0
    %24 = vsyncpa [#allocation4], 0
    // Predicated region
    $region2: #{transformer_forward.5} parent=1 // pred_check
      _
    $region3: #{transformer_forward.5} parent=1 // pred_check_branch
      %26 = sbr.rel (0) target = $region5
    $region4: #{transformer_forward.5} parent=1 // pred_region
      %s28 = ssub.s32 32, 32
      %29 = vsyncadd [#allocation3], %s28
      %s31 = sshll.u32 [#allocation2], 4
      %s32 = int_to_ptr.vmem [resolvable:$true] %s31
      %34 = dma.hbm_to_vmem [thread:$0]  %s0, 32, %s32, [#allocation3]
    $region5: #{transformer_forward.5} parent=1 // pred_fallthru
      _
    // Predicated region
    $region6: #{transformer_forward.5} parent=1 // pred_check
      _
    $region7: #{transformer_forward.5} parent=1 // pred_check_branch
      %36 = sbr.rel (0) target = $region9
    $region8: #{transformer_forward.5} parent=1 // pred_region
      %s38 = ssub.s32 1024, 1024
      %39 = vsyncadd [#allocation6], %s38
      %s40 = sshll.u32 [#allocation5], 4
      %s41 = int_to_ptr.vmem [resolvable:$true] %s40
      %46 = dma.hbm_to_vmem [thread:$0]  %s1, 1024, %s41, [#allocation6], 128, 128, 8
    $region9: #{transformer_forward.5} parent=1 // pred_fallthru
      _
    // Predicated region
    $region10: #{transformer_forward.5} parent=1 // pred_check
      _
    $region11: #{transformer_forward.5} parent=1 // pred_check_branch
      %48 = sbr.rel (0) target = $region13
    $region12: #{transformer_forward.5} parent=1 // pred_region
      %s50 = ssub.s32 512, 512
      %51 = vsyncadd [#allocation6], %s50
      %s52 = sshll.u32 [#allocation7], 4
      %s53 = int_to_ptr.vmem [resolvable:$true] %s52
      %58 = dma.hbm_to_vmem [thread:$0]  %s2, 512, %s53, [#allocation6], 128, 128, 8
    $region13: #{transformer_forward.5} parent=1 // pred_fallthru
      _
    // Predicated region
    $region14: #{transformer_forward.5} parent=1 // pred_check
      _
    $region15: #{transformer_forward.5} parent=1 // pred_check_branch
      %60 = sbr.rel (0) target = $region17
    $region16: #{transformer_forward.5} parent=1 // pred_region
      %s62 = ssub.s32 512, 512
      %63 = vsyncadd [#allocation9], %s62
      %s64 = sshll.u32 [#allocation8], 4
      %s65 = int_to_ptr.vmem [resolvable:$true] %s64
      %70 = dma.hbm_to_vmem [thread:$0]  %s3, 512, %s65, [#allocation9], 128, 128, 8
    $region17: #{transformer_forward.5} parent=1 // pred_fallthru
      _
    // Predicated region
    $region18: #{transformer_forward.5} parent=1 // pred_check
      _
    $region19: #{transformer_forward.5} parent=1 // pred_check_branch
      %72 = sbr.rel (0) target = $region21
    $region20: #{transformer_forward.5} parent=1 // pred_region
      %s74 = ssub.s32 256, 256
      %75 = vsyncadd [#allocation9], %s74
      %s76 = sshll.u32 [#allocation10], 4
      %s77 = int_to_ptr.vmem [resolvable:$true] %s76
      %82 = dma.hbm_to_vmem [thread:$0]  %s4, 256, %s77, [#allocation9], 128, 128, 8
    $region21: #{transformer_forward.5} parent=1 // pred_fallthru
      _
    // Predicated region
    $region22: #{transformer_forward.5} parent=1 // pred_check
      _
    $region23: #{transformer_forward.5} parent=1 // pred_check_branch
      %84 = sbr.rel (0) target = $region25
    $region24: #{transformer_forward.5} parent=1 // pred_region
      %s86 = ssub.s32 16, 16
      %87 = vsyncadd [#allocation12], %s86
      %s89 = sshll.u32 [#allocation11], 4
      %s90 = int_to_ptr.vmem [resolvable:$true] %s89
      %92 = dma.hbm_to_vmem [thread:$0]  %s5, 16, %s90, [#allocation12]
    $region25: #{transformer_forward.5} parent=1 // pred_fallthru
      _
    // Predicated region
    $region26: #{transformer_forward.5} parent=1 // pred_check
      _
    $region27: #{transformer_forward.5} parent=1 // pred_check_branch
      %94 = sbr.rel (0) target = $region29
    $region28: #{transformer_forward.5} parent=1 // pred_region
      %s96 = ssub.s32 16, 16
      %97 = vsyncadd [#allocation12], %s96
      %s99 = sshll.u32 [#allocation13], 4
      %s100 = int_to_ptr.vmem [resolvable:$true] %s99
      %102 = dma.hbm_to_vmem [thread:$0]  %s6, 16, %s100, [#allocation12]
    $region29: #{transformer_forward.5} parent=1 // pred_fallthru
      _
    // Predicated region
    $region30: #{transformer_forward.5} parent=1 // pred_check
      _
    $region31: #{transformer_forward.5} parent=1 // pred_check_branch
      %104 = sbr.rel (0) target = $region33
    $region32: #{transformer_forward.5} parent=1 // pred_region
      %s106 = ssub.s32 16, 16
      %107 = vsyncadd [#allocation15], %s106
      %s109 = sshll.u32 [#allocation14], 4
      %s110 = int_to_ptr.vmem [resolvable:$true] %s109
      %112 = dma.hbm_to_vmem [thread:$0]  %s7, 16, %s110, [#allocation15]
    $region33: #{transformer_forward.5} parent=1 // pred_fallthru
      _
    // Predicated region
    $region34: #{transformer_forward.5} parent=1 // pred_check
      _
    $region35: #{transformer_forward.5} parent=1 // pred_check_branch
      %114 = sbr.rel (0) target = $region37
    $region36: #{transformer_forward.5} parent=1 // pred_region
      %s116 = ssub.s32 512, 512
      %117 = vsyncadd [#allocation15], %s116
      %s118 = sshll.u32 [#allocation16], 4
      %s119 = int_to_ptr.vmem [resolvable:$true] %s118
      %124 = dma.hbm_to_vmem [thread:$0]  %s8, 512, %s119, [#allocation15], 128, 128, 8
    $region37: #{transformer_forward.5} parent=1 // pred_fallthru
      _
    // Predicated region
    $region38: #{transformer_forward.5} parent=1 // pred_check
      _
    $region39: #{transformer_forward.5} parent=1 // pred_check_branch
      %126 = sbr.rel (0) target = $region41
    $region40: #{transformer_forward.5} parent=1 // pred_region
      %s128 = ssub.s32 16, 16
      %129 = vsyncadd [#allocation18], %s128
      %s131 = sshll.u32 [#allocation17], 4
      %s132 = int_to_ptr.vmem [resolvable:$true] %s131
      %134 = dma.hbm_to_vmem [thread:$0]  %s9, 16, %s132, [#allocation18]
    $region41: #{transformer_forward.5} parent=1 // pred_fallthru
      _
    // Predicated region
    $region42: #{transformer_forward.5} parent=1 // pred_check
      _
    $region43: #{transformer_forward.5} parent=1 // pred_check_branch
      %136 = sbr.rel (0) target = $region45
    $region44: #{transformer_forward.5} parent=1 // pred_region
      %s138 = ssub.s32 1024, 1024
      %139 = vsyncadd [#allocation18], %s138
      %s140 = sshll.u32 [#allocation19], 4
      %s141 = int_to_ptr.vmem [resolvable:$true] %s140
      %146 = dma.hbm_to_vmem [thread:$0]  %s10, 1024, %s141, [#allocation18], 128, 128, 8
    $region45: #{transformer_forward.5} parent=1 // pred_fallthru
      _
    // Predicated region
    $region46: #{transformer_forward.5} parent=1 // pred_check
      _
    $region47: #{transformer_forward.5} parent=1 // pred_check_branch
      %148 = sbr.rel (0) target = $region49
    $region48: #{transformer_forward.5} parent=1 // pred_region
      %s150 = ssub.s32 16, 16
      %151 = vsyncadd [#allocation21], %s150
      %s153 = sshll.u32 [#allocation20], 4
      %s154 = int_to_ptr.vmem [resolvable:$true] %s153
      %156 = dma.hbm_to_vmem [thread:$0]  %s11, 16, %s154, [#allocation21]
    $region49: #{transformer_forward.5} parent=1 // pred_fallthru
      _
    // Predicated region
    $region50: #{transformer_forward.5} parent=1 // pred_check
      _
    $region51: #{transformer_forward.5} parent=1 // pred_check_branch
      %158 = sbr.rel (0) target = $region53
    $region52: #{transformer_forward.5} parent=1 // pred_region
      %159 = dma.done [#allocation3], 32
    $region53: #{transformer_forward.5} parent=1 // pred_fallthru
      _
    // Predicated region
    $region54: #{transformer_forward.5} parent=1 // pred_check
      _
    $region55: #{transformer_forward.5} parent=1 // pred_check_branch
      %161 = sbr.rel (0) target = $region57
    $region56: #{transformer_forward.5} parent=1 // pred_region
      %162 = dma.done [#allocation6], 1024
    $region57: #{transformer_forward.5} parent=1 // pred_fallthru
      _
    // Predicated region
    $region58: #{transformer_forward.5} parent=1 // pred_check
      _
    $region59: #{transformer_forward.5} parent=1 // pred_check_branch
      %164 = sbr.rel (0) target = $region61
    $region60: #{transformer_forward.5} parent=1 // pred_region
      %165 = dma.done [#allocation6], 512
    $region61: #{transformer_forward.5} parent=1 // pred_fallthru
      _
    // Predicated region
    $region62: #{transformer_forward.5} parent=1 // pred_check
      _
    $region63: #{transformer_forward.5} parent=1 // pred_check_branch
      %167 = sbr.rel (0) target = $region65
    $region64: #{transformer_forward.5} parent=1 // pred_region
      %168 = dma.done [#allocation9], 512
    $region65: #{transformer_forward.5} parent=1 // pred_fallthru
      _
    // Predicated region
    $region66: #{transformer_forward.5} parent=1 // pred_check
      _
    $region67: #{transformer_forward.5} parent=1 // pred_check_branch
      %170 = sbr.rel (0) target = $region69
    $region68: #{transformer_forward.5} parent=1 // pred_region
      %171 = dma.done [#allocation9], 256
    $region69: #{transformer_forward.5} parent=1 // pred_fallthru
      _
    // Predicated region
    $region70: #{transformer_forward.5} parent=1 // pred_check
      _
    $region71: #{transformer_forward.5} parent=1 // pred_check_branch
      %173 = sbr.rel (0) target = $region73
    $region72: #{transformer_forward.5} parent=1 // pred_region
      %174 = dma.done [#allocation12], 16
    $region73: #{transformer_forward.5} parent=1 // pred_fallthru
      _
    // Predicated region
    $region74: #{transformer_forward.5} parent=1 // pred_check
      _
    $region75: #{transformer_forward.5} parent=1 // pred_check_branch
      %176 = sbr.rel (0) target = $region77
    $region76: #{transformer_forward.5} parent=1 // pred_region
      %177 = dma.done [#allocation12], 16
    $region77: #{transformer_forward.5} parent=1 // pred_fallthru
      _
    // Predicated region
    $region78: #{transformer_forward.5} parent=1 // pred_check
      _
    $region79: #{transformer_forward.5} parent=1 // pred_check_branch
      %179 = sbr.rel (0) target = $region81
    $region80: #{transformer_forward.5} parent=1 // pred_region
      %180 = dma.done [#allocation15], 16
    $region81: #{transformer_forward.5} parent=1 // pred_fallthru
      _
    // Predicated region
    $region82: #{transformer_forward.5} parent=1 // pred_check
      _
    $region83: #{transformer_forward.5} parent=1 // pred_check_branch
      %182 = sbr.rel (0) target = $region85
    $region84: #{transformer_forward.5} parent=1 // pred_region
      %183 = dma.done [#allocation15], 512
    $region85: #{transformer_forward.5} parent=1 // pred_fallthru
      _
    // Predicated region
    $region86: #{transformer_forward.5} parent=1 // pred_check
      _
    $region87: #{transformer_forward.5} parent=1 // pred_check_branch
      %185 = sbr.rel (0) target = $region89
    $region88: #{transformer_forward.5} parent=1 // pred_region
      %186 = dma.done [#allocation18], 16
    $region89: #{transformer_forward.5} parent=1 // pred_fallthru
      _
    // Predicated region
    $region90: #{transformer_forward.5} parent=1 // pred_check
      _
    $region91: #{transformer_forward.5} parent=1 // pred_check_branch
      %188 = sbr.rel (0) target = $region93
    $region92: #{transformer_forward.5} parent=1 // pred_region
      %189 = dma.done [#allocation18], 1024
    $region93: #{transformer_forward.5} parent=1 // pred_fallthru
      _
    // Predicated region
    $region94: #{transformer_forward.5} parent=1 // pred_check
      _
    $region95: #{transformer_forward.5} parent=1 // pred_check_branch
      %191 = sbr.rel (0) target = $region97
    $region96: #{transformer_forward.5} parent=1 // pred_region
      %192 = dma.done [#allocation21], 16
    $region97: #{transformer_forward.5} parent=1 // pred_fallthru
      _
    %v193 = vld [vmem:[#allocation2] sm:$0x3]
    %v194 = vlaneseq
    %v195 = vand.u32 %v194, 127
    %v196 = vlaneseq
    %v197 = vshrl.u32 %v196, 7
    %v198 = vsub.s32 0, %v197
    %v199 = vrot.slane %v193, %v198
    %201 = vbcast.lane.b32.xlu0 %v199, 256
    %v202 = vpop.permute.xlu0 %201
    %v203 = vlaneseq
    %v204 = vshrl.u32 %v203, 7
    %v205 = vsub.s32 1, %v204
    %v206 = vrot.slane %v193, %v205
    %208 = vbcast.lane.b32.xlu0 %v206, 256
    %v209 = vpop.permute.xlu0 %208
    %vm210 = vcmp.eq.s32.totalorder %v202, %v195
    %vm211 = vcmp.eq.s32.totalorder %v209, %v195
    %v212 = vsel %vm210, 1, 0
    %v213 = vsel %vm211, 1, 0
    %v214 = vcvt.s32.f32 %v212
    %v215 = vcvt.s32.f32 %v213
    %v216 = vld [vmem:[#allocation8] sm:$0xff]
    %v217 = vld [vmem:[#allocation8 + $0x8] sm:$0x1]
    %v218 = vld [vmem:[#allocation8 + $0x10] sm:$0xff]
    %v219 = vld [vmem:[#allocation8 + $0x18] sm:$0x1]
    %v220 = vld [vmem:[#allocation7] sm:$0xff]
    %v221 = vld [vmem:[#allocation7 + $0x8] sm:$0x1]
    %v222 = vld [vmem:[#allocation7 + $0x10] sm:$0xff]
    %v223 = vld [vmem:[#allocation7 + $0x18] sm:$0x1]
    %vm224 = vcmask 72704
    %v226 = vsel %vm224, %v214, 0
    %vm228 = vcmask 1040384
    %v230 = vsel %vm228, %v217, 0
    %232 = vmatprep.subr.mxu0 0.0
    %233 = vmatpush1.msra.mxu0 %v216
    %234 = vmatprep.subr.mxu0 0.0
    %235 = vmatpush1.msra.mxu0 %v230
    %236 = vmatprep.subr.mxu0 0.0
    %237 = vmatpush1.msra.mxu0 0.0
    %238 = vmatprep.subr.mxu0 0.0
    %239 = vmatpush1.msra.mxu0 0.0
    %240 = vmatprep.subr.mxu0 0.0
    %241 = vmatpush1.msra.mxu0 0.0
    %242 = vmatprep.subr.mxu0 0.0
    %243 = vmatpush1.msra.mxu0 0.0
    %244 = vmatprep.subr.mxu0 0.0
    %245 = vmatpush1.msra.mxu0 0.0
    %246 = vmatprep.subr.mxu0 0.0
    %247 = vmatpush1.msra.mxu0 0.0
    %248 = vmatprep.subr.mxu0 0.0
    %249 = vmatpush1.msra.mxu0 0.0
    %250 = vmatprep.subr.mxu0 0.0
    %251 = vmatpush1.msra.mxu0 0.0
    %252 = vmatprep.subr.mxu0 0.0
    %253 = vmatpush1.msra.mxu0 0.0
    %254 = vmatprep.subr.mxu0 0.0
    %255 = vmatpush1.msra.mxu0 0.0
    %256 = vmatprep.subr.mxu0 0.0
    %257 = vmatpush1.msra.mxu0 0.0
    %258 = vmatprep.subr.mxu0 0.0
    %259 = vmatpush1.msra.mxu0 0.0
    %260 = vmatprep.subr.mxu0 0.0
    %261 = vmatpush1.msra.mxu0 0.0
    %262 = vmatprep.subr.mxu0 0.0
    %263 = vmatpush1.msra.mxu0 0.0
    %264 = vmatprep.subr.mxu0 0.0
    %265 = vmatpush1.msra.mxu0 0.0
    %266 = vmatprep.subr.mxu0 0.0
    %267 = vmatpush1.msra.mxu0 0.0
    %268 = vmatprep.subr.mxu0 0.0
    %269 = vmatpush1.msra.mxu0 0.0
    %270 = vmatprep.subr.mxu0 0.0
    %271 = vmatpush1.msra.mxu0 0.0
    %272 = vmatprep.subr.mxu0 0.0
    %273 = vmatpush1.msra.mxu0 0.0
    %274 = vmatprep.subr.mxu0 0.0
    %275 = vmatpush1.msra.mxu0 0.0
    %276 = vmatprep.subr.mxu0 0.0
    %277 = vmatpush1.msra.mxu0 0.0
    %278 = vmatprep.subr.mxu0 0.0
    %279 = vmatpush1.msra.mxu0 0.0
    %280 = vmatprep.subr.mxu0 0.0
    %281 = vmatpush1.msra.mxu0 0.0
    %282 = vmatprep.subr.mxu0 0.0
    %283 = vmatpush1.msra.mxu0 0.0
    %284 = vmatprep.subr.mxu0 0.0
    %285 = vmatpush1.msra.mxu0 0.0
    %286 = vmatprep.subr.mxu0 0.0
    %287 = vmatpush1.msra.mxu0 0.0
    %288 = vmatprep.subr.mxu0 0.0
    %289 = vmatpush1.msra.mxu0 0.0
    %290 = vmatprep.subr.mxu0 0.0
    %291 = vmatpush1.msra.mxu0 0.0
    %292 = vmatprep.subr.mxu0 0.0
    %293 = vmatpush1.msra.mxu0 0.0
    %294 = vmatprep.subr.mxu0 0.0
    %295 = vmatpush1.msra.mxu0 0.0
    %296 = vmatprep.mubr.f32.mxu0 0.0
    %297 = vmatmul.mubr.f32.gmra.mrb[0].mxu0 %v226
    %v298 = vpop.f32.mrb[0].mxu0
    %v299 = vadd.f32 0.0, %v298
    %v300 = vpop.f32.mrb[0].mxu0
    %301 = vdwg.mxu0
    %v303 = vsel %vm224, %v215, 0
    %v306 = vsel %vm228, %v219, 0
    %308 = vmatprep.subr.mxu0 0.0
    %309 = vmatpush1.msra.mxu0 %v218
    %310 = vmatprep.subr.mxu0 0.0
    %311 = vmatpush1.msra.mxu0 %v306
    %312 = vmatprep.subr.mxu0 0.0
    %313 = vmatpush1.msra.mxu0 0.0
    %314 = vmatprep.subr.mxu0 0.0
    %315 = vmatpush1.msra.mxu0 0.0
    %316 = vmatprep.subr.mxu0 0.0
    %317 = vmatpush1.msra.mxu0 0.0
    %318 = vmatprep.subr.mxu0 0.0
    %319 = vmatpush1.msra.mxu0 0.0
    %320 = vmatprep.subr.mxu0 0.0
    %321 = vmatpush1.msra.mxu0 0.0
    %322 = vmatprep.subr.mxu0 0.0
    %323 = vmatpush1.msra.mxu0 0.0
    %324 = vmatprep.subr.mxu0 0.0
    %325 = vmatpush1.msra.mxu0 0.0
    %326 = vmatprep.subr.mxu0 0.0
    %327 = vmatpush1.msra.mxu0 0.0
    %328 = vmatprep.subr.mxu0 0.0
    %329 = vmatpush1.msra.mxu0 0.0
    %330 = vmatprep.subr.mxu0 0.0
    %331 = vmatpush1.msra.mxu0 0.0
    %332 = vmatprep.subr.mxu0 0.0
    %333 = vmatpush1.msra.mxu0 0.0
    %334 = vmatprep.subr.mxu0 0.0
    %335 = vmatpush1.msra.mxu0 0.0
    %336 = vmatprep.subr.mxu0 0.0
    %337 = vmatpush1.msra.mxu0 0.0
    %338 = vmatprep.subr.mxu0 0.0
    %339 = vmatpush1.msra.mxu0 0.0
    %340 = vmatprep.subr.mxu0 0.0
    %341 = vmatpush1.msra.mxu0 0.0
    %342 = vmatprep.subr.mxu0 0.0
    %343 = vmatpush1.msra.mxu0 0.0
    %344 = vmatprep.subr.mxu0 0.0
    %345 = vmatpush1.msra.mxu0 0.0
    %346 = vmatprep.subr.mxu0 0.0
    %347 = vmatpush1.msra.mxu0 0.0
    %348 = vmatprep.subr.mxu0 0.0
    %349 = vmatpush1.msra.mxu0 0.0
    %350 = vmatprep.subr.mxu0 0.0
    %351 = vmatpush1.msra.mxu0 0.0
    %352 = vmatprep.subr.mxu0 0.0
    %353 = vmatpush1.msra.mxu0 0.0
    %354 = vmatprep.subr.mxu0 0.0
    %355 = vmatpush1.msra.mxu0 0.0
    %356 = vmatprep.subr.mxu0 0.0
    %357 = vmatpush1.msra.mxu0 0.0
    %358 = vmatprep.subr.mxu0 0.0
    %359 = vmatpush1.msra.mxu0 0.0
    %360 = vmatprep.subr.mxu0 0.0
    %361 = vmatpush1.msra.mxu0 0.0
    %362 = vmatprep.subr.mxu0 0.0
    %363 = vmatpush1.msra.mxu0 0.0
    %364 = vmatprep.subr.mxu0 0.0
    %365 = vmatpush1.msra.mxu0 0.0
    %366 = vmatprep.subr.mxu0 0.0
    %367 = vmatpush1.msra.mxu0 0.0
    %368 = vmatprep.subr.mxu0 0.0
    %369 = vmatpush1.msra.mxu0 0.0
    %370 = vmatprep.subr.mxu0 0.0
    %371 = vmatpush1.msra.mxu0 0.0
    %372 = vmatprep.mubr.f32.mxu0 0.0
    %373 = vmatmul.mubr.f32.gmra.mrb[0].mxu0 %v303
    %v374 = vpop.f32.mrb[0].mxu0
    %v375 = vadd.f32 0.0, %v374
    %v376 = vpop.f32.mrb[0].mxu0
    %377 = vdwg.mxu0
    %v380 = vcombine.high %v299, %v299
    %v382 = vunpack.c.l.s4 1966171168
    %v383 = vunpack.c.0.s8 %v382
    %v384 = vlaneseq
    %v385 = vshrl.u32 %v384, 7
    %v386 = vsub.s32 %v383, %v385
    %v387 = vrot.slane %v299, %v386
    %v389 = vunpack.c.l.s4 1966171168
    %v390 = vunpack.c.0.s8 %v389
    %v391 = vlaneseq
    %v392 = vshrl.u32 %v391, 7
    %v393 = vsub.s32 %v390, %v392
    %v394 = vrot.slane %v380, %v393
    %v395 = vcombine.high %v387, %v387
    %v396 = vcombine.high %v394, %v394
    %v398 = vunpack.c.l.s4 1966171168
    %v399 = vunpack.c.0.s8 %v398
    %v400 = vlaneseq
    %v401 = vshrl.u32 %v400, 7
    %v402 = vsub.s32 %v399, %v401
    %v403 = vrot.slane %v387, %v402
    %v405 = vunpack.c.l.s4 1966171168
    %v406 = vunpack.c.0.s8 %v405
    %v407 = vlaneseq
    %v408 = vshrl.u32 %v407, 7
    %v409 = vsub.s32 %v406, %v408
    %v410 = vrot.slane %v394, %v409
    %v412 = vunpack.c.l.s4 1966171168
    %v413 = vunpack.c.0.s8 %v412
    %v414 = vlaneseq
    %v415 = vshrl.u32 %v414, 7
    %v416 = vsub.s32 %v413, %v415
    %v417 = vrot.slane %v395, %v416
    %v419 = vunpack.c.l.s4 1966171168
    %v420 = vunpack.c.0.s8 %v419
    %v421 = vlaneseq
    %v422 = vshrl.u32 %v421, 7
    %v423 = vsub.s32 %v420, %v422
    %v424 = vrot.slane %v396, %v423
    %v425 = vcombine.high %v403, %v403
    %v426 = vcombine.high %v410, %v410
    %v427 = vcombine.high %v417, %v417
    %v428 = vcombine.high %v375, %v375
    %v430 = vunpack.c.l.s4 1966171168
    %v431 = vunpack.c.0.s8 %v430
    %v432 = vlaneseq
    %v433 = vshrl.u32 %v432, 7
    %v434 = vsub.s32 %v431, %v433
    %v435 = vrot.slane %v375, %v434
    %v437 = vunpack.c.l.s4 1966171168
    %v438 = vunpack.c.0.s8 %v437
    %v439 = vlaneseq
    %v440 = vshrl.u32 %v439, 7
    %v441 = vsub.s32 %v438, %v440
    %v442 = vrot.slane %v428, %v441
    %v443 = vcombine.high %v435, %v435
    %v444 = vcombine.high %v442, %v442
    %v446 = vunpack.c.l.s4 1966171168
    %v447 = vunpack.c.0.s8 %v446
    %v448 = vlaneseq
    %v449 = vshrl.u32 %v448, 7
    %v450 = vsub.s32 %v447, %v449
    %v451 = vrot.slane %v435, %v450
    %v453 = vunpack.c.l.s4 1966171168
    %v454 = vunpack.c.0.s8 %v453
    %v455 = vlaneseq
    %v456 = vshrl.u32 %v455, 7
    %v457 = vsub.s32 %v454, %v456
    %v458 = vrot.slane %v442, %v457
    %v460 = vunpack.c.l.s4 1966171168
    %v461 = vunpack.c.0.s8 %v460
    %v462 = vlaneseq
    %v463 = vshrl.u32 %v462, 7
    %v464 = vsub.s32 %v461, %v463
    %v465 = vrot.slane %v443, %v464
    %v467 = vunpack.c.l.s4 1966171168
    %v468 = vunpack.c.0.s8 %v467
    %v469 = vlaneseq
    %v470 = vshrl.u32 %v469, 7
    %v471 = vsub.s32 %v468, %v470
    %v472 = vrot.slane %v444, %v471
    %v473 = vcombine.high %v451, %v451
    %v474 = vcombine.high %v458, %v458
    %v475 = vcombine.high %v465, %v465
    %v490 = vld [vmem:[#allocation5] sm:$0xff]
    %v491 = vld [vmem:[#allocation5 + $0x8] sm:$0x1]
    %v492 = vld [vmem:[#allocation5 + $0x10] sm:$0xff]
    %v493 = vld [vmem:[#allocation5 + $0x18] sm:$0x1]
    %v495 = vsel %vm228, %v491, 0
    %497 = vmatprep.subr.mxu0 0.0
    %498 = vmatpush1.msra.mxu0 %v490
    %499 = vmatprep.subr.mxu0 0.0
    %500 = vmatpush1.msra.mxu0 %v495
    %501 = vmatprep.subr.mxu0 0.0
    %502 = vmatpush1.msra.mxu0 0.0
    %503 = vmatprep.subr.mxu0 0.0
    %504 = vmatpush1.msra.mxu0 0.0
    %505 = vmatprep.subr.mxu0 0.0
    %506 = vmatpush1.msra.mxu0 0.0
    %507 = vmatprep.subr.mxu0 0.0
    %508 = vmatpush1.msra.mxu0 0.0
    %509 = vmatprep.subr.mxu0 0.0
    %510 = vmatpush1.msra.mxu0 0.0
    %511 = vmatprep.subr.mxu0 0.0
    %512 = vmatpush1.msra.mxu0 0.0
    %513 = vmatprep.subr.mxu0 0.0
    %514 = vmatpush1.msra.mxu0 0.0
    %515 = vmatprep.subr.mxu0 0.0
    %516 = vmatpush1.msra.mxu0 0.0
    %517 = vmatprep.subr.mxu0 0.0
    %518 = vmatpush1.msra.mxu0 0.0
    %519 = vmatprep.subr.mxu0 0.0
    %520 = vmatpush1.msra.mxu0 0.0
    %521 = vmatprep.subr.mxu0 0.0
    %522 = vmatpush1.msra.mxu0 0.0
    %523 = vmatprep.subr.mxu0 0.0
    %524 = vmatpush1.msra.mxu0 0.0
    %525 = vmatprep.subr.mxu0 0.0
    %526 = vmatpush1.msra.mxu0 0.0
    %527 = vmatprep.subr.mxu0 0.0
    %528 = vmatpush1.msra.mxu0 0.0
    %529 = vmatprep.subr.mxu0 0.0
    %530 = vmatpush1.msra.mxu0 0.0
    %531 = vmatprep.subr.mxu0 0.0
    %532 = vmatpush1.msra.mxu0 0.0
    %533 = vmatprep.subr.mxu0 0.0
    %534 = vmatpush1.msra.mxu0 0.0
    %535 = vmatprep.subr.mxu0 0.0
    %536 = vmatpush1.msra.mxu0 0.0
    %537 = vmatprep.subr.mxu0 0.0
    %538 = vmatpush1.msra.mxu0 0.0
    %539 = vmatprep.subr.mxu0 0.0
    %540 = vmatpush1.msra.mxu0 0.0
    %541 = vmatprep.subr.mxu0 0.0
    %542 = vmatpush1.msra.mxu0 0.0
    %543 = vmatprep.subr.mxu0 0.0
    %544 = vmatpush1.msra.mxu0 0.0
    %545 = vmatprep.subr.mxu0 0.0
    %546 = vmatpush1.msra.mxu0 0.0
    %547 = vmatprep.subr.mxu0 0.0
    %548 = vmatpush1.msra.mxu0 0.0
    %549 = vmatprep.subr.mxu0 0.0
    %550 = vmatpush1.msra.mxu0 0.0
    %551 = vmatprep.subr.mxu0 0.0
    %552 = vmatpush1.msra.mxu0 0.0
    %553 = vmatprep.subr.mxu0 0.0
    %554 = vmatpush1.msra.mxu0 0.0
    %555 = vmatprep.subr.mxu0 0.0
    %556 = vmatpush1.msra.mxu0 0.0
    %557 = vmatprep.subr.mxu0 0.0
    %558 = vmatpush1.msra.mxu0 0.0
    %559 = vmatprep.subr.mxu0 0.0
    %560 = vmatpush1.msra.mxu0 0.0
    %561 = vmatprep.mubr.f32.mxu0 0.0
    %562 = vmatmul.mubr.f32.gmra.mrb[0].mxu0 %v226
    %v563 = vpop.f32.mrb[0].mxu0
    %v564 = vadd.f32 0.0, %v563
    %v565 = vpop.f32.mrb[0].mxu0
    %566 = vdwg.mxu0
    %v568 = vsel %vm228, %v493, 0
    %570 = vmatprep.subr.mxu0 0.0
    %571 = vmatpush1.msra.mxu0 %v492
    %572 = vmatprep.subr.mxu0 0.0
    %573 = vmatpush1.msra.mxu0 %v568
    %574 = vmatprep.subr.mxu0 0.0
    %575 = vmatpush1.msra.mxu0 0.0
    %576 = vmatprep.subr.mxu0 0.0
    %577 = vmatpush1.msra.mxu0 0.0
    %578 = vmatprep.subr.mxu0 0.0
    %579 = vmatpush1.msra.mxu0 0.0
    %580 = vmatprep.subr.mxu0 0.0
    %581 = vmatpush1.msra.mxu0 0.0
    %582 = vmatprep.subr.mxu0 0.0
    %583 = vmatpush1.msra.mxu0 0.0
    %584 = vmatprep.subr.mxu0 0.0
    %585 = vmatpush1.msra.mxu0 0.0
    %586 = vmatprep.subr.mxu0 0.0
    %587 = vmatpush1.msra.mxu0 0.0
    %588 = vmatprep.subr.mxu0 0.0
    %589 = vmatpush1.msra.mxu0 0.0
    %590 = vmatprep.subr.mxu0 0.0
    %591 = vmatpush1.msra.mxu0 0.0
    %592 = vmatprep.subr.mxu0 0.0
    %593 = vmatpush1.msra.mxu0 0.0
    %594 = vmatprep.subr.mxu0 0.0
    %595 = vmatpush1.msra.mxu0 0.0
    %596 = vmatprep.subr.mxu0 0.0
    %597 = vmatpush1.msra.mxu0 0.0
    %598 = vmatprep.subr.mxu0 0.0
    %599 = vmatpush1.msra.mxu0 0.0
    %600 = vmatprep.subr.mxu0 0.0
    %601 = vmatpush1.msra.mxu0 0.0
    %602 = vmatprep.subr.mxu0 0.0
    %603 = vmatpush1.msra.mxu0 0.0
    %604 = vmatprep.subr.mxu0 0.0
    %605 = vmatpush1.msra.mxu0 0.0
    %606 = vmatprep.subr.mxu0 0.0
    %607 = vmatpush1.msra.mxu0 0.0
    %608 = vmatprep.subr.mxu0 0.0
    %609 = vmatpush1.msra.mxu0 0.0
    %610 = vmatprep.subr.mxu0 0.0
    %611 = vmatpush1.msra.mxu0 0.0
    %612 = vmatprep.subr.mxu0 0.0
    %613 = vmatpush1.msra.mxu0 0.0
    %614 = vmatprep.subr.mxu0 0.0
    %615 = vmatpush1.msra.mxu0 0.0
    %616 = vmatprep.subr.mxu0 0.0
    %617 = vmatpush1.msra.mxu0 0.0
    %618 = vmatprep.subr.mxu0 0.0
    %619 = vmatpush1.msra.mxu0 0.0
    %620 = vmatprep.subr.mxu0 0.0
    %621 = vmatpush1.msra.mxu0 0.0
    %622 = vmatprep.subr.mxu0 0.0
    %623 = vmatpush1.msra.mxu0 0.0
    %624 = vmatprep.subr.mxu0 0.0
    %625 = vmatpush1.msra.mxu0 0.0
    %626 = vmatprep.subr.mxu0 0.0
    %627 = vmatpush1.msra.mxu0 0.0
    %628 = vmatprep.subr.mxu0 0.0
    %629 = vmatpush1.msra.mxu0 0.0
    %630 = vmatprep.subr.mxu0 0.0
    %631 = vmatpush1.msra.mxu0 0.0
    %632 = vmatprep.subr.mxu0 0.0
    %633 = vmatpush1.msra.mxu0 0.0
    %634 = vmatprep.mubr.f32.mxu0 0.0
    %635 = vmatmul.mubr.f32.gmra.mrb[0].mxu0 %v303
    %v636 = vpop.f32.mrb[0].mxu0
    %v637 = vadd.f32 0.0, %v636
    %v638 = vpop.f32.mrb[0].mxu0
    %639 = vdwg.mxu0
    %v641 = vsel %vm224, %v564, 0
    %v644 = vsel %vm228, %v221, 0
    %646 = vmatprep.subr.mxu0 0.0
    %647 = vmatpush1.msra.mxu0 %v220
    %648 = vmatprep.subr.mxu0 0.0
    %649 = vmatpush1.msra.mxu0 %v644
    %650 = vmatprep.subr.mxu0 0.0
    %651 = vmatpush1.msra.mxu0 0.0
    %652 = vmatprep.subr.mxu0 0.0
    %653 = vmatpush1.msra.mxu0 0.0
    %654 = vmatprep.subr.mxu0 0.0
    %655 = vmatpush1.msra.mxu0 0.0
    %656 = vmatprep.subr.mxu0 0.0
    %657 = vmatpush1.msra.mxu0 0.0
    %658 = vmatprep.subr.mxu0 0.0
    %659 = vmatpush1.msra.mxu0 0.0
    %660 = vmatprep.subr.mxu0 0.0
    %661 = vmatpush1.msra.mxu0 0.0
    %662 = vmatprep.subr.mxu0 0.0
    %663 = vmatpush1.msra.mxu0 0.0
    %664 = vmatprep.subr.mxu0 0.0
    %665 = vmatpush1.msra.mxu0 0.0
    %666 = vmatprep.subr.mxu0 0.0
    %667 = vmatpush1.msra.mxu0 0.0
    %668 = vmatprep.subr.mxu0 0.0
    %669 = vmatpush1.msra.mxu0 0.0
    %670 = vmatprep.subr.mxu0 0.0
    %671 = vmatpush1.msra.mxu0 0.0
    %672 = vmatprep.subr.mxu0 0.0
    %673 = vmatpush1.msra.mxu0 0.0
    %674 = vmatprep.subr.mxu0 0.0
    %675 = vmatpush1.msra.mxu0 0.0
    %676 = vmatprep.subr.mxu0 0.0
    %677 = vmatpush1.msra.mxu0 0.0
    %678 = vmatprep.subr.mxu0 0.0
    %679 = vmatpush1.msra.mxu0 0.0
    %680 = vmatprep.subr.mxu0 0.0
    %681 = vmatpush1.msra.mxu0 0.0
    %682 = vmatprep.subr.mxu0 0.0
    %683 = vmatpush1.msra.mxu0 0.0
    %684 = vmatprep.subr.mxu0 0.0
    %685 = vmatpush1.msra.mxu0 0.0
    %686 = vmatprep.subr.mxu0 0.0
    %687 = vmatpush1.msra.mxu0 0.0
    %688 = vmatprep.subr.mxu0 0.0
    %689 = vmatpush1.msra.mxu0 0.0
    %690 = vmatprep.subr.mxu0 0.0
    %691 = vmatpush1.msra.mxu0 0.0
    %692 = vmatprep.subr.mxu0 0.0
    %693 = vmatpush1.msra.mxu0 0.0
    %694 = vmatprep.subr.mxu0 0.0
    %695 = vmatpush1.msra.mxu0 0.0
    %696 = vmatprep.subr.mxu0 0.0
    %697 = vmatpush1.msra.mxu0 0.0
    %698 = vmatprep.subr.mxu0 0.0
    %699 = vmatpush1.msra.mxu0 0.0
    %700 = vmatprep.subr.mxu0 0.0
    %701 = vmatpush1.msra.mxu0 0.0
    %702 = vmatprep.subr.mxu0 0.0
    %703 = vmatpush1.msra.mxu0 0.0
    %704 = vmatprep.subr.mxu0 0.0
    %705 = vmatpush1.msra.mxu0 0.0
    %706 = vmatprep.subr.mxu0 0.0
    %707 = vmatpush1.msra.mxu0 0.0
    %708 = vmatprep.subr.mxu0 0.0
    %709 = vmatpush1.msra.mxu0 0.0
    %710 = vmatprep.mubr.f32.mxu0 0.0
    %711 = vmatmul.mubr.f32.gmra.mrb[0].mxu0 %v641
    %v712 = vpop.f32.mrb[0].mxu0
    %v713 = vadd.f32 0.0, %v712
    %v714 = vpop.f32.mrb[0].mxu0
    %715 = vdwg.mxu0
    %v717 = vsel %vm224, %v637, 0
    %v720 = vsel %vm228, %v223, 0
    %722 = vmatprep.subr.mxu0 0.0
    %723 = vmatpush1.msra.mxu0 %v222
    %724 = vmatprep.subr.mxu0 0.0
    %725 = vmatpush1.msra.mxu0 %v720
    %726 = vmatprep.subr.mxu0 0.0
    %727 = vmatpush1.msra.mxu0 0.0
    %728 = vmatprep.subr.mxu0 0.0
    %729 = vmatpush1.msra.mxu0 0.0
    %730 = vmatprep.subr.mxu0 0.0
    %731 = vmatpush1.msra.mxu0 0.0
    %732 = vmatprep.subr.mxu0 0.0
    %733 = vmatpush1.msra.mxu0 0.0
    %734 = vmatprep.subr.mxu0 0.0
    %735 = vmatpush1.msra.mxu0 0.0
    %736 = vmatprep.subr.mxu0 0.0
    %737 = vmatpush1.msra.mxu0 0.0
    %738 = vmatprep.subr.mxu0 0.0
    %739 = vmatpush1.msra.mxu0 0.0
    %740 = vmatprep.subr.mxu0 0.0
    %741 = vmatpush1.msra.mxu0 0.0
    %742 = vmatprep.subr.mxu0 0.0
    %743 = vmatpush1.msra.mxu0 0.0
    %744 = vmatprep.subr.mxu0 0.0
    %745 = vmatpush1.msra.mxu0 0.0
    %746 = vmatprep.subr.mxu0 0.0
    %747 = vmatpush1.msra.mxu0 0.0
    %748 = vmatprep.subr.mxu0 0.0
    %749 = vmatpush1.msra.mxu0 0.0
    %750 = vmatprep.subr.mxu0 0.0
    %751 = vmatpush1.msra.mxu0 0.0
    %752 = vmatprep.subr.mxu0 0.0
    %753 = vmatpush1.msra.mxu0 0.0
    %754 = vmatprep.subr.mxu0 0.0
    %755 = vmatpush1.msra.mxu0 0.0
    %756 = vmatprep.subr.mxu0 0.0
    %757 = vmatpush1.msra.mxu0 0.0
    %758 = vmatprep.subr.mxu0 0.0
    %759 = vmatpush1.msra.mxu0 0.0
    %760 = vmatprep.subr.mxu0 0.0
    %761 = vmatpush1.msra.mxu0 0.0
    %762 = vmatprep.subr.mxu0 0.0
    %763 = vmatpush1.msra.mxu0 0.0
    %764 = vmatprep.subr.mxu0 0.0
    %765 = vmatpush1.msra.mxu0 0.0
    %766 = vmatprep.subr.mxu0 0.0
    %767 = vmatpush1.msra.mxu0 0.0
    %768 = vmatprep.subr.mxu0 0.0
    %769 = vmatpush1.msra.mxu0 0.0
    %770 = vmatprep.subr.mxu0 0.0
    %771 = vmatpush1.msra.mxu0 0.0
    %772 = vmatprep.subr.mxu0 0.0
    %773 = vmatpush1.msra.mxu0 0.0
    %774 = vmatprep.subr.mxu0 0.0
    %775 = vmatpush1.msra.mxu0 0.0
    %776 = vmatprep.subr.mxu0 0.0
    %777 = vmatpush1.msra.mxu0 0.0
    %778 = vmatprep.subr.mxu0 0.0
    %779 = vmatpush1.msra.mxu0 0.0
    %780 = vmatprep.subr.mxu0 0.0
    %781 = vmatpush1.msra.mxu0 0.0
    %782 = vmatprep.subr.mxu0 0.0
    %783 = vmatpush1.msra.mxu0 0.0
    %784 = vmatprep.subr.mxu0 0.0
    %785 = vmatpush1.msra.mxu0 0.0
    %786 = vmatprep.mubr.f32.mxu0 0.0
    %787 = vmatmul.mubr.f32.gmra.mrb[0].mxu0 %v717
    %v788 = vpop.f32.mrb[0].mxu0
    %v789 = vadd.f32 0.0, %v788
    %v790 = vpop.f32.mrb[0].mxu0
    %791 = vdwg.mxu0
    %v794 = vcombine.high %v713, %v713
    %v796 = vunpack.c.l.s4 1966171168
    %v797 = vunpack.c.0.s8 %v796
    %v798 = vlaneseq
    %v799 = vshrl.u32 %v798, 7
    %v800 = vsub.s32 %v797, %v799
    %v801 = vrot.slane %v713, %v800
    %v803 = vunpack.c.l.s4 1966171168
    %v804 = vunpack.c.0.s8 %v803
    %v805 = vlaneseq
    %v806 = vshrl.u32 %v805, 7
    %v807 = vsub.s32 %v804, %v806
    %v808 = vrot.slane %v794, %v807
    %v809 = vcombine.high %v801, %v801
    %v810 = vcombine.high %v808, %v808
    %v812 = vunpack.c.l.s4 1966171168
    %v813 = vunpack.c.0.s8 %v812
    %v814 = vlaneseq
    %v815 = vshrl.u32 %v814, 7
    %v816 = vsub.s32 %v813, %v815
    %v817 = vrot.slane %v801, %v816
    %v819 = vunpack.c.l.s4 1966171168
    %v820 = vunpack.c.0.s8 %v819
    %v821 = vlaneseq
    %v822 = vshrl.u32 %v821, 7
    %v823 = vsub.s32 %v820, %v822
    %v824 = vrot.slane %v808, %v823
    %v826 = vunpack.c.l.s4 1966171168
    %v827 = vunpack.c.0.s8 %v826
    %v828 = vlaneseq
    %v829 = vshrl.u32 %v828, 7
    %v830 = vsub.s32 %v827, %v829
    %v831 = vrot.slane %v809, %v830
    %v833 = vunpack.c.l.s4 1966171168
    %v834 = vunpack.c.0.s8 %v833
    %v835 = vlaneseq
    %v836 = vshrl.u32 %v835, 7
    %v837 = vsub.s32 %v834, %v836
    %v838 = vrot.slane %v810, %v837
    %v839 = vcombine.high %v817, %v817
    %v840 = vcombine.high %v824, %v824
    %v841 = vcombine.high %v831, %v831
    %v842 = vcombine.high %v789, %v789
    %v844 = vunpack.c.l.s4 1966171168
    %v845 = vunpack.c.0.s8 %v844
    %v846 = vlaneseq
    %v847 = vshrl.u32 %v846, 7
    %v848 = vsub.s32 %v845, %v847
    %v849 = vrot.slane %v789, %v848
    %v851 = vunpack.c.l.s4 1966171168
    %v852 = vunpack.c.0.s8 %v851
    %v853 = vlaneseq
    %v854 = vshrl.u32 %v853, 7
    %v855 = vsub.s32 %v852, %v854
    %v856 = vrot.slane %v842, %v855
    %v857 = vcombine.high %v849, %v849
    %v858 = vcombine.high %v856, %v856
    %v860 = vunpack.c.l.s4 1966171168
    %v861 = vunpack.c.0.s8 %v860
    %v862 = vlaneseq
    %v863 = vshrl.u32 %v862, 7
    %v864 = vsub.s32 %v861, %v863
    %v865 = vrot.slane %v849, %v864
    %v867 = vunpack.c.l.s4 1966171168
    %v868 = vunpack.c.0.s8 %v867
    %v869 = vlaneseq
    %v870 = vshrl.u32 %v869, 7
    %v871 = vsub.s32 %v868, %v870
    %v872 = vrot.slane %v856, %v871
    %v874 = vunpack.c.l.s4 1966171168
    %v875 = vunpack.c.0.s8 %v874
    %v876 = vlaneseq
    %v877 = vshrl.u32 %v876, 7
    %v878 = vsub.s32 %v875, %v877
    %v879 = vrot.slane %v857, %v878
    %v881 = vunpack.c.l.s4 1966171168
    %v882 = vunpack.c.0.s8 %v881
    %v883 = vlaneseq
    %v884 = vshrl.u32 %v883, 7
    %v885 = vsub.s32 %v882, %v884
    %v886 = vrot.slane %v858, %v885
    %v887 = vcombine.high %v865, %v865
    %v888 = vcombine.high %v872, %v872
    %v889 = vcombine.high %v879, %v879
    %v890 = vld [vmem:[#allocation10] sm:$0xff]
    %s891 = scalar_lea.vmem [#allocation5], 32
    %v892 = vld [vmem:[%s891] sm:$0xff]
    %v893 = vld [vmem:[%s891 + $0x8] sm:$0x1]
    %v894 = vld [vmem:[%s891 + $0x10] sm:$0xff]
    %v895 = vld [vmem:[%s891 + $0x18] sm:$0x1]
    %v897 = vsel %vm228, %v893, 0
    %899 = vmatprep.subr.mxu0 0.0
    %900 = vmatpush1.msra.mxu0 %v892
    %901 = vmatprep.subr.mxu0 0.0
    %902 = vmatpush1.msra.mxu0 %v897
    %903 = vmatprep.subr.mxu0 0.0
    %904 = vmatpush1.msra.mxu0 0.0
    %905 = vmatprep.subr.mxu0 0.0
    %906 = vmatpush1.msra.mxu0 0.0
    %907 = vmatprep.subr.mxu0 0.0
    %908 = vmatpush1.msra.mxu0 0.0
    %909 = vmatprep.subr.mxu0 0.0
    %910 = vmatpush1.msra.mxu0 0.0
    %911 = vmatprep.subr.mxu0 0.0
    %912 = vmatpush1.msra.mxu0 0.0
    %913 = vmatprep.subr.mxu0 0.0
    %914 = vmatpush1.msra.mxu0 0.0
    %915 = vmatprep.subr.mxu0 0.0
    %916 = vmatpush1.msra.mxu0 0.0
    %917 = vmatprep.subr.mxu0 0.0
    %918 = vmatpush1.msra.mxu0 0.0
    %919 = vmatprep.subr.mxu0 0.0
    %920 = vmatpush1.msra.mxu0 0.0
    %921 = vmatprep.subr.mxu0 0.0
    %922 = vmatpush1.msra.mxu0 0.0
    %923 = vmatprep.subr.mxu0 0.0
    %924 = vmatpush1.msra.mxu0 0.0
    %925 = vmatprep.subr.mxu0 0.0
    %926 = vmatpush1.msra.mxu0 0.0
    %927 = vmatprep.subr.mxu0 0.0
    %928 = vmatpush1.msra.mxu0 0.0
    %929 = vmatprep.subr.mxu0 0.0
    %930 = vmatpush1.msra.mxu0 0.0
    %931 = vmatprep.subr.mxu0 0.0
    %932 = vmatpush1.msra.mxu0 0.0
    %933 = vmatprep.subr.mxu0 0.0
    %934 = vmatpush1.msra.mxu0 0.0
    %935 = vmatprep.subr.mxu0 0.0
    %936 = vmatpush1.msra.mxu0 0.0
    %937 = vmatprep.subr.mxu0 0.0
    %938 = vmatpush1.msra.mxu0 0.0
    %939 = vmatprep.subr.mxu0 0.0
    %940 = vmatpush1.msra.mxu0 0.0
    %941 = vmatprep.subr.mxu0 0.0
    %942 = vmatpush1.msra.mxu0 0.0
    %943 = vmatprep.subr.mxu0 0.0
    %944 = vmatpush1.msra.mxu0 0.0
    %945 = vmatprep.subr.mxu0 0.0
    %946 = vmatpush1.msra.mxu0 0.0
    %947 = vmatprep.subr.mxu0 0.0
    %948 = vmatpush1.msra.mxu0 0.0
    %949 = vmatprep.subr.mxu0 0.0
    %950 = vmatpush1.msra.mxu0 0.0
    %951 = vmatprep.subr.mxu0 0.0
    %952 = vmatpush1.msra.mxu0 0.0
    %953 = vmatprep.subr.mxu0 0.0
    %954 = vmatpush1.msra.mxu0 0.0
    %955 = vmatprep.subr.mxu0 0.0
    %956 = vmatpush1.msra.mxu0 0.0
    %957 = vmatprep.subr.mxu0 0.0
    %958 = vmatpush1.msra.mxu0 0.0
    %959 = vmatprep.subr.mxu0 0.0
    %960 = vmatpush1.msra.mxu0 0.0
    %961 = vmatprep.subr.mxu0 0.0
    %962 = vmatpush1.msra.mxu0 0.0
    %963 = vmatprep.mubr.f32.mxu0 0.0
    %964 = vmatmul.mubr.f32.gmra.mrb[0].mxu0 %v226
    %v965 = vpop.f32.mrb[0].mxu0
    %v966 = vadd.f32 0.0, %v965
    %v967 = vpop.f32.mrb[0].mxu0
    %968 = vdwg.mxu0
    %v970 = vsel %vm228, %v895, 0
    %972 = vmatprep.subr.mxu0 0.0
    %973 = vmatpush1.msra.mxu0 %v894
    %974 = vmatprep.subr.mxu0 0.0
    %975 = vmatpush1.msra.mxu0 %v970
    %976 = vmatprep.subr.mxu0 0.0
    %977 = vmatpush1.msra.mxu0 0.0
    %978 = vmatprep.subr.mxu0 0.0
    %979 = vmatpush1.msra.mxu0 0.0
    %980 = vmatprep.subr.mxu0 0.0
    %981 = vmatpush1.msra.mxu0 0.0
    %982 = vmatprep.subr.mxu0 0.0
    %983 = vmatpush1.msra.mxu0 0.0
    %984 = vmatprep.subr.mxu0 0.0
    %985 = vmatpush1.msra.mxu0 0.0
    %986 = vmatprep.subr.mxu0 0.0
    %987 = vmatpush1.msra.mxu0 0.0
    %988 = vmatprep.subr.mxu0 0.0
    %989 = vmatpush1.msra.mxu0 0.0
    %990 = vmatprep.subr.mxu0 0.0
    %991 = vmatpush1.msra.mxu0 0.0
    %992 = vmatprep.subr.mxu0 0.0
    %993 = vmatpush1.msra.mxu0 0.0
    %994 = vmatprep.subr.mxu0 0.0
    %995 = vmatpush1.msra.mxu0 0.0
    %996 = vmatprep.subr.mxu0 0.0
    %997 = vmatpush1.msra.mxu0 0.0
    %998 = vmatprep.subr.mxu0 0.0
    %999 = vmatpush1.msra.mxu0 0.0
    %1000 = vmatprep.subr.mxu0 0.0
    %1001 = vmatpush1.msra.mxu0 0.0
    %1002 = vmatprep.subr.mxu0 0.0
    %1003 = vmatpush1.msra.mxu0 0.0
    %1004 = vmatprep.subr.mxu0 0.0
    %1005 = vmatpush1.msra.mxu0 0.0
    %1006 = vmatprep.subr.mxu0 0.0
    %1007 = vmatpush1.msra.mxu0 0.0
    %1008 = vmatprep.subr.mxu0 0.0
    %1009 = vmatpush1.msra.mxu0 0.0
    %1010 = vmatprep.subr.mxu0 0.0
    %1011 = vmatpush1.msra.mxu0 0.0
    %1012 = vmatprep.subr.mxu0 0.0
    %1013 = vmatpush1.msra.mxu0 0.0
    %1014 = vmatprep.subr.mxu0 0.0
    %1015 = vmatpush1.msra.mxu0 0.0
    %1016 = vmatprep.subr.mxu0 0.0
    %1017 = vmatpush1.msra.mxu0 0.0
    %1018 = vmatprep.subr.mxu0 0.0
    %1019 = vmatpush1.msra.mxu0 0.0
    %1020 = vmatprep.subr.mxu0 0.0
    %1021 = vmatpush1.msra.mxu0 0.0
    %1022 = vmatprep.subr.mxu0 0.0
    %1023 = vmatpush1.msra.mxu0 0.0
    %1024 = vmatprep.subr.mxu0 0.0
    %1025 = vmatpush1.msra.mxu0 0.0
    %1026 = vmatprep.subr.mxu0 0.0
    %1027 = vmatpush1.msra.mxu0 0.0
    %1028 = vmatprep.subr.mxu0 0.0
    %1029 = vmatpush1.msra.mxu0 0.0
    %1030 = vmatprep.subr.mxu0 0.0
    %1031 = vmatpush1.msra.mxu0 0.0
    %1032 = vmatprep.subr.mxu0 0.0
    %1033 = vmatpush1.msra.mxu0 0.0
    %1034 = vmatprep.subr.mxu0 0.0
    %1035 = vmatpush1.msra.mxu0 0.0
    %1036 = vmatprep.mubr.f32.mxu0 0.0
    %1037 = vmatmul.mubr.f32.gmra.mrb[0].mxu0 %v303
    %v1038 = vpop.f32.mrb[0].mxu0
    %v1039 = vadd.f32 0.0, %v1038
    %v1040 = vpop.f32.mrb[0].mxu0
    %1041 = vdwg.mxu0
    %1043 = vrot.lane.b32.xlu0 %v220, 120
    %v1044 = vpop.permute.xlu0 %1043
    %1045 = vrot.lane.b32.xlu0 %v221, 120
    %v1046 = vpop.permute.xlu0 %1045
    %v1049 = vsel %vm224, %v966, 0
    %v1051 = vsel %vm228, %v1046, 0
    %1053 = vmatprep.subr.mxu0 0.0
    %1054 = vmatpush1.msra.mxu0 %v1044
    %1055 = vmatprep.subr.mxu0 0.0
    %1056 = vmatpush1.msra.mxu0 %v1051
    %1057 = vmatprep.subr.mxu0 0.0
    %1058 = vmatpush1.msra.mxu0 0.0
    %1059 = vmatprep.subr.mxu0 0.0
    %1060 = vmatpush1.msra.mxu0 0.0
    %1061 = vmatprep.subr.mxu0 0.0
    %1062 = vmatpush1.msra.mxu0 0.0
    %1063 = vmatprep.subr.mxu0 0.0
    %1064 = vmatpush1.msra.mxu0 0.0
    %1065 = vmatprep.subr.mxu0 0.0
    %1066 = vmatpush1.msra.mxu0 0.0
    %1067 = vmatprep.subr.mxu0 0.0
    %1068 = vmatpush1.msra.mxu0 0.0
    %1069 = vmatprep.subr.mxu0 0.0
    %1070 = vmatpush1.msra.mxu0 0.0
    %1071 = vmatprep.subr.mxu0 0.0
    %1072 = vmatpush1.msra.mxu0 0.0
    %1073 = vmatprep.subr.mxu0 0.0
    %1074 = vmatpush1.msra.mxu0 0.0
    %1075 = vmatprep.subr.mxu0 0.0
    %1076 = vmatpush1.msra.mxu0 0.0
    %1077 = vmatprep.subr.mxu0 0.0
    %1078 = vmatpush1.msra.mxu0 0.0
    %1079 = vmatprep.subr.mxu0 0.0
    %1080 = vmatpush1.msra.mxu0 0.0
    %1081 = vmatprep.subr.mxu0 0.0
    %1082 = vmatpush1.msra.mxu0 0.0
    %1083 = vmatprep.subr.mxu0 0.0
    %1084 = vmatpush1.msra.mxu0 0.0
    %1085 = vmatprep.subr.mxu0 0.0
    %1086 = vmatpush1.msra.mxu0 0.0
    %1087 = vmatprep.subr.mxu0 0.0
    %1088 = vmatpush1.msra.mxu0 0.0
    %1089 = vmatprep.subr.mxu0 0.0
    %1090 = vmatpush1.msra.mxu0 0.0
    %1091 = vmatprep.subr.mxu0 0.0
    %1092 = vmatpush1.msra.mxu0 0.0
    %1093 = vmatprep.subr.mxu0 0.0
    %1094 = vmatpush1.msra.mxu0 0.0
    %1095 = vmatprep.subr.mxu0 0.0
    %1096 = vmatpush1.msra.mxu0 0.0
    %1097 = vmatprep.subr.mxu0 0.0
    %1098 = vmatpush1.msra.mxu0 0.0
    %1099 = vmatprep.subr.mxu0 0.0
    %1100 = vmatpush1.msra.mxu0 0.0
    %1101 = vmatprep.subr.mxu0 0.0
    %1102 = vmatpush1.msra.mxu0 0.0
    %1103 = vmatprep.subr.mxu0 0.0
    %1104 = vmatpush1.msra.mxu0 0.0
    %1105 = vmatprep.subr.mxu0 0.0
    %1106 = vmatpush1.msra.mxu0 0.0
    %1107 = vmatprep.subr.mxu0 0.0
    %1108 = vmatpush1.msra.mxu0 0.0
    %1109 = vmatprep.subr.mxu0 0.0
    %1110 = vmatpush1.msra.mxu0 0.0
    %1111 = vmatprep.subr.mxu0 0.0
    %1112 = vmatpush1.msra.mxu0 0.0
    %1113 = vmatprep.subr.mxu0 0.0
    %1114 = vmatpush1.msra.mxu0 0.0
    %1115 = vmatprep.subr.mxu0 0.0
    %1116 = vmatpush1.msra.mxu0 0.0
    %1117 = vmatprep.mubr.f32.mxu0 0.0
    %1118 = vmatmul.mubr.f32.gmra.mrb[0].mxu0 %v1049
    %v1119 = vpop.f32.mrb[0].mxu0
    %v1120 = vadd.f32 0.0, %v1119
    %v1121 = vpop.f32.mrb[0].mxu0
    %1122 = vdwg.mxu0
    %1124 = vrot.lane.b32.xlu0 %v222, 120
    %v1125 = vpop.permute.xlu0 %1124
    %1126 = vrot.lane.b32.xlu0 %v223, 120
    %v1127 = vpop.permute.xlu0 %1126
    %v1130 = vsel %vm224, %v1039, 0
    %v1132 = vsel %vm228, %v1127, 0
    %1134 = vmatprep.subr.mxu0 0.0
    %1135 = vmatpush1.msra.mxu0 %v1125
    %1136 = vmatprep.subr.mxu0 0.0
    %1137 = vmatpush1.msra.mxu0 %v1132
    %1138 = vmatprep.subr.mxu0 0.0
    %1139 = vmatpush1.msra.mxu0 0.0
    %1140 = vmatprep.subr.mxu0 0.0
    %1141 = vmatpush1.msra.mxu0 0.0
    %1142 = vmatprep.subr.mxu0 0.0
    %1143 = vmatpush1.msra.mxu0 0.0
    %1144 = vmatprep.subr.mxu0 0.0
    %1145 = vmatpush1.msra.mxu0 0.0
    %1146 = vmatprep.subr.mxu0 0.0
    %1147 = vmatpush1.msra.mxu0 0.0
    %1148 = vmatprep.subr.mxu0 0.0
    %1149 = vmatpush1.msra.mxu0 0.0
    %1150 = vmatprep.subr.mxu0 0.0
    %1151 = vmatpush1.msra.mxu0 0.0
    %1152 = vmatprep.subr.mxu0 0.0
    %1153 = vmatpush1.msra.mxu0 0.0
    %1154 = vmatprep.subr.mxu0 0.0
    %1155 = vmatpush1.msra.mxu0 0.0
    %1156 = vmatprep.subr.mxu0 0.0
    %1157 = vmatpush1.msra.mxu0 0.0
    %1158 = vmatprep.subr.mxu0 0.0
    %1159 = vmatpush1.msra.mxu0 0.0
    %1160 = vmatprep.subr.mxu0 0.0
    %1161 = vmatpush1.msra.mxu0 0.0
    %1162 = vmatprep.subr.mxu0 0.0
    %1163 = vmatpush1.msra.mxu0 0.0
    %1164 = vmatprep.subr.mxu0 0.0
    %1165 = vmatpush1.msra.mxu0 0.0
    %1166 = vmatprep.subr.mxu0 0.0
    %1167 = vmatpush1.msra.mxu0 0.0
    %1168 = vmatprep.subr.mxu0 0.0
    %1169 = vmatpush1.msra.mxu0 0.0
    %1170 = vmatprep.subr.mxu0 0.0
    %1171 = vmatpush1.msra.mxu0 0.0
    %1172 = vmatprep.subr.mxu0 0.0
    %1173 = vmatpush1.msra.mxu0 0.0
    %1174 = vmatprep.subr.mxu0 0.0
    %1175 = vmatpush1.msra.mxu0 0.0
    %1176 = vmatprep.subr.mxu0 0.0
    %1177 = vmatpush1.msra.mxu0 0.0
    %1178 = vmatprep.subr.mxu0 0.0
    %1179 = vmatpush1.msra.mxu0 0.0
    %1180 = vmatprep.subr.mxu0 0.0
    %1181 = vmatpush1.msra.mxu0 0.0
    %1182 = vmatprep.subr.mxu0 0.0
    %1183 = vmatpush1.msra.mxu0 0.0
    %1184 = vmatprep.subr.mxu0 0.0
    %1185 = vmatpush1.msra.mxu0 0.0
    %1186 = vmatprep.subr.mxu0 0.0
    %1187 = vmatpush1.msra.mxu0 0.0
    %1188 = vmatprep.subr.mxu0 0.0
    %1189 = vmatpush1.msra.mxu0 0.0
    %1190 = vmatprep.subr.mxu0 0.0
    %1191 = vmatpush1.msra.mxu0 0.0
    %1192 = vmatprep.subr.mxu0 0.0
    %1193 = vmatpush1.msra.mxu0 0.0
    %1194 = vmatprep.subr.mxu0 0.0
    %1195 = vmatpush1.msra.mxu0 0.0
    %1196 = vmatprep.subr.mxu0 0.0
    %1197 = vmatpush1.msra.mxu0 0.0
    %1198 = vmatprep.mubr.f32.mxu0 0.0
    %1199 = vmatmul.mubr.f32.gmra.mrb[0].mxu0 %v1130
    %v1200 = vpop.f32.mrb[0].mxu0
    %v1201 = vadd.f32 0.0, %v1200
    %v1202 = vpop.f32.mrb[0].mxu0
    %1203 = vdwg.mxu0
    %v1206 = vcombine.high %v1120, %v1120
    %v1208 = vunpack.c.l.s4 1966171168
    %v1209 = vunpack.c.0.s8 %v1208
    %v1210 = vlaneseq
    %v1211 = vshrl.u32 %v1210, 7
    %v1212 = vsub.s32 %v1209, %v1211
    %v1213 = vrot.slane %v1120, %v1212
    %v1215 = vunpack.c.l.s4 1966171168
    %v1216 = vunpack.c.0.s8 %v1215
    %v1217 = vlaneseq
    %v1218 = vshrl.u32 %v1217, 7
    %v1219 = vsub.s32 %v1216, %v1218
    %v1220 = vrot.slane %v1206, %v1219
    %v1221 = vcombine.high %v1213, %v1213
    %v1222 = vcombine.high %v1220, %v1220
    %v1224 = vunpack.c.l.s4 1966171168
    %v1225 = vunpack.c.0.s8 %v1224
    %v1226 = vlaneseq
    %v1227 = vshrl.u32 %v1226, 7
    %v1228 = vsub.s32 %v1225, %v1227
    %v1229 = vrot.slane %v1213, %v1228
    %v1231 = vunpack.c.l.s4 1966171168
    %v1232 = vunpack.c.0.s8 %v1231
    %v1233 = vlaneseq
    %v1234 = vshrl.u32 %v1233, 7
    %v1235 = vsub.s32 %v1232, %v1234
    %v1236 = vrot.slane %v1220, %v1235
    %v1238 = vunpack.c.l.s4 1966171168
    %v1239 = vunpack.c.0.s8 %v1238
    %v1240 = vlaneseq
    %v1241 = vshrl.u32 %v1240, 7
    %v1242 = vsub.s32 %v1239, %v1241
    %v1243 = vrot.slane %v1221, %v1242
    %v1245 = vunpack.c.l.s4 1966171168
    %v1246 = vunpack.c.0.s8 %v1245
    %v1247 = vlaneseq
    %v1248 = vshrl.u32 %v1247, 7
    %v1249 = vsub.s32 %v1246, %v1248
    %v1250 = vrot.slane %v1222, %v1249
    %v1251 = vcombine.high %v1229, %v1229
    %v1252 = vcombine.high %v1236, %v1236
    %v1253 = vcombine.high %v1243, %v1243
    %v1254 = vcombine.high %v1201, %v1201
    %v1256 = vunpack.c.l.s4 1966171168
    %v1257 = vunpack.c.0.s8 %v1256
    %v1258 = vlaneseq
    %v1259 = vshrl.u32 %v1258, 7
    %v1260 = vsub.s32 %v1257, %v1259
    %v1261 = vrot.slane %v1201, %v1260
    %v1263 = vunpack.c.l.s4 1966171168
    %v1264 = vunpack.c.0.s8 %v1263
    %v1265 = vlaneseq
    %v1266 = vshrl.u32 %v1265, 7
    %v1267 = vsub.s32 %v1264, %v1266
    %v1268 = vrot.slane %v1254, %v1267
    %v1269 = vcombine.high %v1261, %v1261
    %v1270 = vcombine.high %v1268, %v1268
    %v1272 = vunpack.c.l.s4 1966171168
    %v1273 = vunpack.c.0.s8 %v1272
    %v1274 = vlaneseq
    %v1275 = vshrl.u32 %v1274, 7
    %v1276 = vsub.s32 %v1273, %v1275
    %v1277 = vrot.slane %v1261, %v1276
    %v1279 = vunpack.c.l.s4 1966171168
    %v1280 = vunpack.c.0.s8 %v1279
    %v1281 = vlaneseq
    %v1282 = vshrl.u32 %v1281, 7
    %v1283 = vsub.s32 %v1280, %v1282
    %v1284 = vrot.slane %v1268, %v1283
    %v1286 = vunpack.c.l.s4 1966171168
    %v1287 = vunpack.c.0.s8 %v1286
    %v1288 = vlaneseq
    %v1289 = vshrl.u32 %v1288, 7
    %v1290 = vsub.s32 %v1287, %v1289
    %v1291 = vrot.slane %v1269, %v1290
    %v1293 = vunpack.c.l.s4 1966171168
    %v1294 = vunpack.c.0.s8 %v1293
    %v1295 = vlaneseq
    %v1296 = vshrl.u32 %v1295, 7
    %v1297 = vsub.s32 %v1294, %v1296
    %v1298 = vrot.slane %v1270, %v1297
    %v1299 = vcombine.high %v1277, %v1277
    %v1300 = vcombine.high %v1284, %v1284
    %v1301 = vcombine.high %v1291, %v1291
    %v1302 = vld [vmem:[#allocation10 + $0x8] sm:$0xff]
    %v1303 = vcombine.low %v1229, %v1243
    %v1304 = vcombine.low %v1251, %v1253
    %v1305 = vcombine.low %v1236, %v1250
    %v1306 = vcombine.low %v1252, %v1277
    %v1308 = vunpack.c.l.s4 1966171168
    %v1309 = vunpack.c.0.s8 %v1308
    %v1310 = vlaneseq
    %v1311 = vshrl.u32 %v1310, 7
    %v1312 = vsub.s32 %v1309, %v1311
    %v1313 = vrot.slane %v1303, %v1312
    %v1315 = vunpack.c.l.s4 1966171168
    %v1316 = vunpack.c.0.s8 %v1315
    %v1317 = vlaneseq
    %v1318 = vshrl.u32 %v1317, 7
    %v1319 = vsub.s32 %v1316, %v1318
    %v1320 = vrot.slane %v1304, %v1319
    %v1322 = vunpack.c.l.s4 1966171168
    %v1323 = vunpack.c.0.s8 %v1322
    %v1324 = vlaneseq
    %v1325 = vshrl.u32 %v1324, 7
    %v1326 = vsub.s32 %v1323, %v1325
    %v1327 = vrot.slane %v1305, %v1326
    %v1329 = vunpack.c.l.s4 1966171168
    %v1330 = vunpack.c.0.s8 %v1329
    %v1331 = vlaneseq
    %v1332 = vshrl.u32 %v1331, 7
    %v1333 = vsub.s32 %v1330, %v1332
    %v1334 = vrot.slane %v1306, %v1333
    %v1335 = vcombine.low %v1313, %v1320
    %v1336 = vcombine.low %v1327, %v1334
    %v1338 = vunpack.c.l.s4 1966171168
    %v1339 = vunpack.c.0.s8 %v1338
    %v1340 = vlaneseq
    %v1341 = vshrl.u32 %v1340, 7
    %v1342 = vsub.s32 %v1339, %v1341
    %v1343 = vrot.slane %v1335, %v1342
    %v1345 = vunpack.c.l.s4 1966171168
    %v1346 = vunpack.c.0.s8 %v1345
    %v1347 = vlaneseq
    %v1348 = vshrl.u32 %v1347, 7
    %v1349 = vsub.s32 %v1346, %v1348
    %v1350 = vrot.slane %v1336, %v1349
    %v1351 = vcombine.low %v1343, %v1350
    %v1352 = vcombine.low %v1291, %v1299
    %v1353 = vcombine.low %v1301, %v1284
    %v1354 = vcombine.low %v1298, %v1300
    %v1356 = vunpack.c.l.s4 1966171168
    %v1357 = vunpack.c.0.s8 %v1356
    %v1358 = vlaneseq
    %v1359 = vshrl.u32 %v1358, 7
    %v1360 = vsub.s32 %v1357, %v1359
    %v1361 = vrot.slane %v1352, %v1360
    %v1363 = vunpack.c.l.s4 1966171168
    %v1364 = vunpack.c.0.s8 %v1363
    %v1365 = vlaneseq
    %v1366 = vshrl.u32 %v1365, 7
    %v1367 = vsub.s32 %v1364, %v1366
    %v1368 = vrot.slane %v1353, %v1367
    %v1370 = vunpack.c.l.s4 1966171168
    %v1371 = vunpack.c.0.s8 %v1370
    %v1372 = vlaneseq
    %v1373 = vshrl.u32 %v1372, 7
    %v1374 = vsub.s32 %v1371, %v1373
    %v1375 = vrot.slane %v1354, %v1374
    %v1376 = vcombine.low %v1361, %v1368
    %v1378 = vunpack.c.l.s4 1966171168
    %v1379 = vunpack.c.0.s8 %v1378
    %v1380 = vlaneseq
    %v1381 = vshrl.u32 %v1380, 7
    %v1382 = vsub.s32 %v1379, %v1381
    %v1383 = vrot.slane %v1376, %v1382
    %v1385 = vunpack.c.l.s4 1966171168
    %v1386 = vunpack.c.0.s8 %v1385
    %v1387 = vlaneseq
    %v1388 = vshrl.u32 %v1387, 7
    %v1389 = vsub.s32 %v1386, %v1388
    %v1390 = vrot.slane %v1375, %v1389
    %v1391 = vcombine.low %v1383, %v1390
    %vm1392 = vcmask 64512
    %v1393 = vsel %vm1392, %v1351, 0
    %v1395 = vsel %vm1392, %v1391, 0
    %1397 = vmatprep.subr.mxu0 0.0
    %1398 = vmatpush1.msra.mxu0 %v1302
    %1399 = vmatprep.subr.mxu0 0.0
    %1400 = vmatpush1.msra.mxu0 0.0
    %1401 = vmatprep.subr.mxu0 0.0
    %1402 = vmatpush1.msra.mxu0 0.0
    %1403 = vmatprep.subr.mxu0 0.0
    %1404 = vmatpush1.msra.mxu0 0.0
    %1405 = vmatprep.subr.mxu0 0.0
    %1406 = vmatpush1.msra.mxu0 0.0
    %1407 = vmatprep.subr.mxu0 0.0
    %1408 = vmatpush1.msra.mxu0 0.0
    %1409 = vmatprep.subr.mxu0 0.0
    %1410 = vmatpush1.msra.mxu0 0.0
    %1411 = vmatprep.subr.mxu0 0.0
    %1412 = vmatpush1.msra.mxu0 0.0
    %1413 = vmatprep.subr.mxu0 0.0
    %1414 = vmatpush1.msra.mxu0 0.0
    %1415 = vmatprep.subr.mxu0 0.0
    %1416 = vmatpush1.msra.mxu0 0.0
    %1417 = vmatprep.subr.mxu0 0.0
    %1418 = vmatpush1.msra.mxu0 0.0
    %1419 = vmatprep.subr.mxu0 0.0
    %1420 = vmatpush1.msra.mxu0 0.0
    %1421 = vmatprep.subr.mxu0 0.0
    %1422 = vmatpush1.msra.mxu0 0.0
    %1423 = vmatprep.subr.mxu0 0.0
    %1424 = vmatpush1.msra.mxu0 0.0
    %1425 = vmatprep.subr.mxu0 0.0
    %1426 = vmatpush1.msra.mxu0 0.0
    %1427 = vmatprep.subr.mxu0 0.0
    %1428 = vmatpush1.msra.mxu0 0.0
    %1429 = vmatprep.subr.mxu0 0.0
    %1430 = vmatpush1.msra.mxu0 0.0
    %1431 = vmatprep.subr.mxu0 0.0
    %1432 = vmatpush1.msra.mxu0 0.0
    %1433 = vmatprep.subr.mxu0 0.0
    %1434 = vmatpush1.msra.mxu0 0.0
    %1435 = vmatprep.subr.mxu0 0.0
    %1436 = vmatpush1.msra.mxu0 0.0
    %1437 = vmatprep.subr.mxu0 0.0
    %1438 = vmatpush1.msra.mxu0 0.0
    %1439 = vmatprep.subr.mxu0 0.0
    %1440 = vmatpush1.msra.mxu0 0.0
    %1441 = vmatprep.subr.mxu0 0.0
    %1442 = vmatpush1.msra.mxu0 0.0
    %1443 = vmatprep.subr.mxu0 0.0
    %1444 = vmatpush1.msra.mxu0 0.0
    %1445 = vmatprep.subr.mxu0 0.0
    %1446 = vmatpush1.msra.mxu0 0.0
    %1447 = vmatprep.subr.mxu0 0.0
    %1448 = vmatpush1.msra.mxu0 0.0
    %1449 = vmatprep.subr.mxu0 0.0
    %1450 = vmatpush1.msra.mxu0 0.0
    %1451 = vmatprep.subr.mxu0 0.0
    %1452 = vmatpush1.msra.mxu0 0.0
    %1453 = vmatprep.subr.mxu0 0.0
    %1454 = vmatpush1.msra.mxu0 0.0
    %1455 = vmatprep.subr.mxu0 0.0
    %1456 = vmatpush1.msra.mxu0 0.0
    %1457 = vmatprep.subr.mxu0 0.0
    %1458 = vmatpush1.msra.mxu0 0.0
    %1459 = vmatprep.subr.mxu0 0.0
    %1460 = vmatpush1.msra.mxu0 0.0
    %1461 = vmatprep.mubr.f32.mxu0 0.0
    %1462 = vmatmul.mubr.f32.gmra.mrb[0].mxu0 %v1393
    %v1463 = vpop.f32.mrb[0].mxu0
    %v1464 = vadd.f32 0.0, %v1463
    %v1465 = vpop.f32.mrb[0].mxu0
    %1466 = vmatprep.mubr.f32.mxu0 0.0
    %1467 = vmatmul.mubr.f32.gmra.mrb[0].mxu0 %v1395
    %v1468 = vpop.f32.mrb[0].mxu0
    %v1469 = vadd.f32 0.0, %v1468
    %v1470 = vpop.f32.mrb[0].mxu0
    %1471 = vdwg.mxu0
    %v1472 = vcombine.low %v817, %v831
    %v1473 = vcombine.low %v839, %v841
    %v1474 = vcombine.low %v824, %v838
    %v1475 = vcombine.low %v840, %v865
    %v1477 = vunpack.c.l.s4 1966171168
    %v1478 = vunpack.c.0.s8 %v1477
    %v1479 = vlaneseq
    %v1480 = vshrl.u32 %v1479, 7
    %v1481 = vsub.s32 %v1478, %v1480
    %v1482 = vrot.slane %v1472, %v1481
    %v1484 = vunpack.c.l.s4 1966171168
    %v1485 = vunpack.c.0.s8 %v1484
    %v1486 = vlaneseq
    %v1487 = vshrl.u32 %v1486, 7
    %v1488 = vsub.s32 %v1485, %v1487
    %v1489 = vrot.slane %v1473, %v1488
    %v1491 = vunpack.c.l.s4 1966171168
    %v1492 = vunpack.c.0.s8 %v1491
    %v1493 = vlaneseq
    %v1494 = vshrl.u32 %v1493, 7
    %v1495 = vsub.s32 %v1492, %v1494
    %v1496 = vrot.slane %v1474, %v1495
    %v1498 = vunpack.c.l.s4 1966171168
    %v1499 = vunpack.c.0.s8 %v1498
    %v1500 = vlaneseq
    %v1501 = vshrl.u32 %v1500, 7
    %v1502 = vsub.s32 %v1499, %v1501
    %v1503 = vrot.slane %v1475, %v1502
    %v1504 = vcombine.low %v1482, %v1489
    %v1505 = vcombine.low %v1496, %v1503
    %v1507 = vunpack.c.l.s4 1966171168
    %v1508 = vunpack.c.0.s8 %v1507
    %v1509 = vlaneseq
    %v1510 = vshrl.u32 %v1509, 7
    %v1511 = vsub.s32 %v1508, %v1510
    %v1512 = vrot.slane %v1504, %v1511
    %v1514 = vunpack.c.l.s4 1966171168
    %v1515 = vunpack.c.0.s8 %v1514
    %v1516 = vlaneseq
    %v1517 = vshrl.u32 %v1516, 7
    %v1518 = vsub.s32 %v1515, %v1517
    %v1519 = vrot.slane %v1505, %v1518
    %v1520 = vcombine.low %v1512, %v1519
    %v1521 = vcombine.low %v879, %v887
    %v1522 = vcombine.low %v889, %v872
    %v1523 = vcombine.low %v886, %v888
    %v1525 = vunpack.c.l.s4 1966171168
    %v1526 = vunpack.c.0.s8 %v1525
    %v1527 = vlaneseq
    %v1528 = vshrl.u32 %v1527, 7
    %v1529 = vsub.s32 %v1526, %v1528
    %v1530 = vrot.slane %v1521, %v1529
    %v1532 = vunpack.c.l.s4 1966171168
    %v1533 = vunpack.c.0.s8 %v1532
    %v1534 = vlaneseq
    %v1535 = vshrl.u32 %v1534, 7
    %v1536 = vsub.s32 %v1533, %v1535
    %v1537 = vrot.slane %v1522, %v1536
    %v1539 = vunpack.c.l.s4 1966171168
    %v1540 = vunpack.c.0.s8 %v1539
    %v1541 = vlaneseq
    %v1542 = vshrl.u32 %v1541, 7
    %v1543 = vsub.s32 %v1540, %v1542
    %v1544 = vrot.slane %v1523, %v1543
    %v1545 = vcombine.low %v1530, %v1537
    %v1547 = vunpack.c.l.s4 1966171168
    %v1548 = vunpack.c.0.s8 %v1547
    %v1549 = vlaneseq
    %v1550 = vshrl.u32 %v1549, 7
    %v1551 = vsub.s32 %v1548, %v1550
    %v1552 = vrot.slane %v1545, %v1551
    %v1554 = vunpack.c.l.s4 1966171168
    %v1555 = vunpack.c.0.s8 %v1554
    %v1556 = vlaneseq
    %v1557 = vshrl.u32 %v1556, 7
    %v1558 = vsub.s32 %v1555, %v1557
    %v1559 = vrot.slane %v1544, %v1558
    %v1560 = vcombine.low %v1552, %v1559
    %v1561 = vsel %vm1392, %v1520, 0
    %v1563 = vsel %vm1392, %v1560, 0
    %1565 = vmatprep.subr.mxu0 0.0
    %1566 = vmatpush1.msra.mxu0 %v890
    %1567 = vmatprep.subr.mxu0 0.0
    %1568 = vmatpush1.msra.mxu0 0.0
    %1569 = vmatprep.subr.mxu0 0.0
    %1570 = vmatpush1.msra.mxu0 0.0
    %1571 = vmatprep.subr.mxu0 0.0
    %1572 = vmatpush1.msra.mxu0 0.0
    %1573 = vmatprep.subr.mxu0 0.0
    %1574 = vmatpush1.msra.mxu0 0.0
    %1575 = vmatprep.subr.mxu0 0.0
    %1576 = vmatpush1.msra.mxu0 0.0
    %1577 = vmatprep.subr.mxu0 0.0
    %1578 = vmatpush1.msra.mxu0 0.0
    %1579 = vmatprep.subr.mxu0 0.0
    %1580 = vmatpush1.msra.mxu0 0.0
    %1581 = vmatprep.subr.mxu0 0.0
    %1582 = vmatpush1.msra.mxu0 0.0
    %1583 = vmatprep.subr.mxu0 0.0
    %1584 = vmatpush1.msra.mxu0 0.0
    %1585 = vmatprep.subr.mxu0 0.0
    %1586 = vmatpush1.msra.mxu0 0.0
    %1587 = vmatprep.subr.mxu0 0.0
    %1588 = vmatpush1.msra.mxu0 0.0
    %1589 = vmatprep.subr.mxu0 0.0
    %1590 = vmatpush1.msra.mxu0 0.0
    %1591 = vmatprep.subr.mxu0 0.0
    %1592 = vmatpush1.msra.mxu0 0.0
    %1593 = vmatprep.subr.mxu0 0.0
    %1594 = vmatpush1.msra.mxu0 0.0
    %1595 = vmatprep.subr.mxu0 0.0
    %1596 = vmatpush1.msra.mxu0 0.0
    %1597 = vmatprep.subr.mxu0 0.0
    %1598 = vmatpush1.msra.mxu0 0.0
    %1599 = vmatprep.subr.mxu0 0.0
    %1600 = vmatpush1.msra.mxu0 0.0
    %1601 = vmatprep.subr.mxu0 0.0
    %1602 = vmatpush1.msra.mxu0 0.0
    %1603 = vmatprep.subr.mxu0 0.0
    %1604 = vmatpush1.msra.mxu0 0.0
    %1605 = vmatprep.subr.mxu0 0.0
    %1606 = vmatpush1.msra.mxu0 0.0
    %1607 = vmatprep.subr.mxu0 0.0
    %1608 = vmatpush1.msra.mxu0 0.0
    %1609 = vmatprep.subr.mxu0 0.0
    %1610 = vmatpush1.msra.mxu0 0.0
    %1611 = vmatprep.subr.mxu0 0.0
    %1612 = vmatpush1.msra.mxu0 0.0
    %1613 = vmatprep.subr.mxu0 0.0
    %1614 = vmatpush1.msra.mxu0 0.0
    %1615 = vmatprep.subr.mxu0 0.0
    %1616 = vmatpush1.msra.mxu0 0.0
    %1617 = vmatprep.subr.mxu0 0.0
    %1618 = vmatpush1.msra.mxu0 0.0
    %1619 = vmatprep.subr.mxu0 0.0
    %1620 = vmatpush1.msra.mxu0 0.0
    %1621 = vmatprep.subr.mxu0 0.0
    %1622 = vmatpush1.msra.mxu0 0.0
    %1623 = vmatprep.subr.mxu0 0.0
    %1624 = vmatpush1.msra.mxu0 0.0
    %1625 = vmatprep.subr.mxu0 0.0
    %1626 = vmatpush1.msra.mxu0 0.0
    %1627 = vmatprep.subr.mxu0 0.0
    %1628 = vmatpush1.msra.mxu0 0.0
    %1629 = vmatprep.mubr.f32.mxu0 0.0
    %1630 = vmatmul.mubr.f32.gmra.mrb[0].mxu0 %v1561
    %v1631 = vpop.f32.mrb[0].mxu0
    %v1632 = vadd.f32 %v1464, %v1631
    %v1633 = vpop.f32.mrb[0].mxu0
    %1634 = vmatprep.mubr.f32.mxu0 0.0
    %1635 = vmatmul.mubr.f32.gmra.mrb[0].mxu0 %v1563
    %v1636 = vpop.f32.mrb[0].mxu0
    %v1637 = vadd.f32 %v1469, %v1636
    %v1638 = vpop.f32.mrb[0].mxu0
    %1639 = vdwg.mxu0
    %v1642 = vcombine.high %v1632, %v1632
    %v1644 = vunpack.c.l.s4 1966171168
    %v1645 = vunpack.c.0.s8 %v1644
    %v1646 = vlaneseq
    %v1647 = vshrl.u32 %v1646, 7
    %v1648 = vsub.s32 %v1645, %v1647
    %v1649 = vrot.slane %v1632, %v1648
    %v1651 = vunpack.c.l.s4 1966171168
    %v1652 = vunpack.c.0.s8 %v1651
    %v1653 = vlaneseq
    %v1654 = vshrl.u32 %v1653, 7
    %v1655 = vsub.s32 %v1652, %v1654
    %v1656 = vrot.slane %v1642, %v1655
    %v1657 = vcombine.high %v1649, %v1649
    %v1658 = vcombine.high %v1656, %v1656
    %v1660 = vunpack.c.l.s4 1966171168
    %v1661 = vunpack.c.0.s8 %v1660
    %v1662 = vlaneseq
    %v1663 = vshrl.u32 %v1662, 7
    %v1664 = vsub.s32 %v1661, %v1663
    %v1665 = vrot.slane %v1649, %v1664
    %v1667 = vunpack.c.l.s4 1966171168
    %v1668 = vunpack.c.0.s8 %v1667
    %v1669 = vlaneseq
    %v1670 = vshrl.u32 %v1669, 7
    %v1671 = vsub.s32 %v1668, %v1670
    %v1672 = vrot.slane %v1656, %v1671
    %v1674 = vunpack.c.l.s4 1966171168
    %v1675 = vunpack.c.0.s8 %v1674
    %v1676 = vlaneseq
    %v1677 = vshrl.u32 %v1676, 7
    %v1678 = vsub.s32 %v1675, %v1677
    %v1679 = vrot.slane %v1657, %v1678
    %v1681 = vunpack.c.l.s4 1966171168
    %v1682 = vunpack.c.0.s8 %v1681
    %v1683 = vlaneseq
    %v1684 = vshrl.u32 %v1683, 7
    %v1685 = vsub.s32 %v1682, %v1684
    %v1686 = vrot.slane %v1658, %v1685
    %v1687 = vcombine.high %v1665, %v1665
    %v1688 = vcombine.high %v1672, %v1672
    %v1689 = vcombine.high %v1679, %v1679
    %v1690 = vcombine.high %v1686, %v1686
    %v1691 = vcombine.high %v1637, %v1637
    %v1693 = vunpack.c.l.s4 1966171168
    %v1694 = vunpack.c.0.s8 %v1693
    %v1695 = vlaneseq
    %v1696 = vshrl.u32 %v1695, 7
    %v1697 = vsub.s32 %v1694, %v1696
    %v1698 = vrot.slane %v1637, %v1697
    %v1700 = vunpack.c.l.s4 1966171168
    %v1701 = vunpack.c.0.s8 %v1700
    %v1702 = vlaneseq
    %v1703 = vshrl.u32 %v1702, 7
    %v1704 = vsub.s32 %v1701, %v1703
    %v1705 = vrot.slane %v1691, %v1704
    %v1706 = vcombine.high %v1698, %v1698
    %v1707 = vcombine.high %v1705, %v1705
    %v1709 = vunpack.c.l.s4 1966171168
    %v1710 = vunpack.c.0.s8 %v1709
    %v1711 = vlaneseq
    %v1712 = vshrl.u32 %v1711, 7
    %v1713 = vsub.s32 %v1710, %v1712
    %v1714 = vrot.slane %v1698, %v1713
    %v1716 = vunpack.c.l.s4 1966171168
    %v1717 = vunpack.c.0.s8 %v1716
    %v1718 = vlaneseq
    %v1719 = vshrl.u32 %v1718, 7
    %v1720 = vsub.s32 %v1717, %v1719
    %v1721 = vrot.slane %v1705, %v1720
    %v1723 = vunpack.c.l.s4 1966171168
    %v1724 = vunpack.c.0.s8 %v1723
    %v1725 = vlaneseq
    %v1726 = vshrl.u32 %v1725, 7
    %v1727 = vsub.s32 %v1724, %v1726
    %v1728 = vrot.slane %v1706, %v1727
    %v1730 = vunpack.c.l.s4 1966171168
    %v1731 = vunpack.c.0.s8 %v1730
    %v1732 = vlaneseq
    %v1733 = vshrl.u32 %v1732, 7
    %v1734 = vsub.s32 %v1731, %v1733
    %v1735 = vrot.slane %v1707, %v1734
    %v1736 = vcombine.high %v1714, %v1714
    %v1737 = vcombine.high %v1728, %v1728
    %v1752 = vadd.f32 %v403, %v1665
    %v1753 = vadd.f32 %v417, %v1679
    %v1754 = vadd.f32 %v425, %v1687
    %v1755 = vadd.f32 %v427, %v1689
    %v1756 = vadd.f32 %v410, %v1672
    %v1757 = vadd.f32 %v424, %v1686
    %v1758 = vadd.f32 %v426, %v1688
    %v1759 = vadd.f32 %v451, %v1690
    %v1760 = vadd.f32 %v465, %v1714
    %v1761 = vadd.f32 %v473, %v1728
    %v1762 = vadd.f32 %v475, %v1736
    %v1763 = vadd.f32 %v458, %v1737
    %v1764 = vadd.f32 %v472, %v1721
    %v1765 = vadd.f32 %v474, %v1735
    %v1766 = vld [vmem:[#allocation11] sm:$0x1]
    %v1768 = vlaneseq
    %v1769 = vshrl.u32 %v1768, 7
    %v1770 = vsub.s32 0, %v1769
    %v1771 = vrot.slane %v1766, %v1770
    %v1772 = vcombine.high %v1771, %v1771
    %v1774 = vunpack.c.l.s4 1966171168
    %v1775 = vunpack.c.0.s8 %v1774
    %v1776 = vlaneseq
    %v1777 = vshrl.u32 %v1776, 7
    %v1778 = vsub.s32 %v1775, %v1777
    %v1779 = vrot.slane %v1771, %v1778
    %v1781 = vunpack.c.l.s4 1966171168
    %v1782 = vunpack.c.0.s8 %v1781
    %v1783 = vlaneseq
    %v1784 = vshrl.u32 %v1783, 7
    %v1785 = vsub.s32 %v1782, %v1784
    %v1786 = vrot.slane %v1772, %v1785
    %v1787 = vcombine.high %v1779, %v1779
    %v1788 = vcombine.high %v1786, %v1786
    %v1790 = vunpack.c.l.s4 1966171168
    %v1791 = vunpack.c.0.s8 %v1790
    %v1792 = vlaneseq
    %v1793 = vshrl.u32 %v1792, 7
    %v1794 = vsub.s32 %v1791, %v1793
    %v1795 = vrot.slane %v1779, %v1794
    %v1797 = vunpack.c.l.s4 1966171168
    %v1798 = vunpack.c.0.s8 %v1797
    %v1799 = vlaneseq
    %v1800 = vshrl.u32 %v1799, 7
    %v1801 = vsub.s32 %v1798, %v1800
    %v1802 = vrot.slane %v1786, %v1801
    %v1804 = vunpack.c.l.s4 1966171168
    %v1805 = vunpack.c.0.s8 %v1804
    %v1806 = vlaneseq
    %v1807 = vshrl.u32 %v1806, 7
    %v1808 = vsub.s32 %v1805, %v1807
    %v1809 = vrot.slane %v1787, %v1808
    %v1811 = vunpack.c.l.s4 1966171168
    %v1812 = vunpack.c.0.s8 %v1811
    %v1813 = vlaneseq
    %v1814 = vshrl.u32 %v1813, 7
    %v1815 = vsub.s32 %v1812, %v1814
    %v1816 = vrot.slane %v1788, %v1815
    %v1817 = vcombine.high %v1795, %v1795
    %v1818 = vcombine.high %v1802, %v1802
    %v1819 = vcombine.high %v1809, %v1809
    %v1820 = vcombine.high %v1816, %v1816
    %v1829 = vadd.f32 %v1752, %v1795
    %v1830 = vadd.f32 %v1753, %v1809
    %v1831 = vadd.f32 %v1754, %v1817
    %v1832 = vadd.f32 %v1755, %v1819
    %v1833 = vadd.f32 %v1756, %v1802
    %v1834 = vadd.f32 %v1757, %v1816
    %v1835 = vadd.f32 %v1758, %v1818
    %v1836 = vadd.f32 %v1759, %v1820
    %v1837 = vadd.f32 %v1760, %v1795
    %v1838 = vadd.f32 %v1761, %v1809
    %v1839 = vadd.f32 %v1762, %v1817
    %v1840 = vadd.f32 %v1763, %v1819
    %v1841 = vadd.f32 %v1764, %v1802
    %v1842 = vadd.f32 %v1765, %v1816
    %v1843 = vld [vmem:[#allocation13] sm:$0x1]
    %v1844 = vld [vmem:[#allocation14] sm:$0x1]
    %v1859 = vcombine.low %v1829, %v1830
    %v1860 = vcombine.low %v1831, %v1832
    %v1861 = vcombine.low %v1833, %v1834
    %v1862 = vcombine.low %v1835, %v1836
    %v1864 = vunpack.c.l.s4 1966171168
    %v1865 = vunpack.c.0.s8 %v1864
    %v1866 = vlaneseq
    %v1867 = vshrl.u32 %v1866, 7
    %v1868 = vsub.s32 %v1865, %v1867
    %v1869 = vrot.slane %v1859, %v1868
    %v1871 = vunpack.c.l.s4 1966171168
    %v1872 = vunpack.c.0.s8 %v1871
    %v1873 = vlaneseq
    %v1874 = vshrl.u32 %v1873, 7
    %v1875 = vsub.s32 %v1872, %v1874
    %v1876 = vrot.slane %v1860, %v1875
    %v1878 = vunpack.c.l.s4 1966171168
    %v1879 = vunpack.c.0.s8 %v1878
    %v1880 = vlaneseq
    %v1881 = vshrl.u32 %v1880, 7
    %v1882 = vsub.s32 %v1879, %v1881
    %v1883 = vrot.slane %v1861, %v1882
    %v1885 = vunpack.c.l.s4 1966171168
    %v1886 = vunpack.c.0.s8 %v1885
    %v1887 = vlaneseq
    %v1888 = vshrl.u32 %v1887, 7
    %v1889 = vsub.s32 %v1886, %v1888
    %v1890 = vrot.slane %v1862, %v1889
    %v1891 = vcombine.low %v1869, %v1876
    %v1892 = vcombine.low %v1883, %v1890
    %v1894 = vunpack.c.l.s4 1966171168
    %v1895 = vunpack.c.0.s8 %v1894
    %v1896 = vlaneseq
    %v1897 = vshrl.u32 %v1896, 7
    %v1898 = vsub.s32 %v1895, %v1897
    %v1899 = vrot.slane %v1891, %v1898
    %v1901 = vunpack.c.l.s4 1966171168
    %v1902 = vunpack.c.0.s8 %v1901
    %v1903 = vlaneseq
    %v1904 = vshrl.u32 %v1903, 7
    %v1905 = vsub.s32 %v1902, %v1904
    %v1906 = vrot.slane %v1892, %v1905
    %v1907 = vcombine.low %v1899, %v1906
    %v1908 = vcombine.low %v1837, %v1838
    %v1909 = vcombine.low %v1839, %v1840
    %v1910 = vcombine.low %v1841, %v1842
    %v1912 = vunpack.c.l.s4 1966171168
    %v1913 = vunpack.c.0.s8 %v1912
    %v1914 = vlaneseq
    %v1915 = vshrl.u32 %v1914, 7
    %v1916 = vsub.s32 %v1913, %v1915
    %v1917 = vrot.slane %v1908, %v1916
    %v1919 = vunpack.c.l.s4 1966171168
    %v1920 = vunpack.c.0.s8 %v1919
    %v1921 = vlaneseq
    %v1922 = vshrl.u32 %v1921, 7
    %v1923 = vsub.s32 %v1920, %v1922
    %v1924 = vrot.slane %v1909, %v1923
    %v1926 = vunpack.c.l.s4 1966171168
    %v1927 = vunpack.c.0.s8 %v1926
    %v1928 = vlaneseq
    %v1929 = vshrl.u32 %v1928, 7
    %v1930 = vsub.s32 %v1927, %v1929
    %v1931 = vrot.slane %v1910, %v1930
    %v1932 = vcombine.low %v1917, %v1924
    %v1934 = vunpack.c.l.s4 1966171168
    %v1935 = vunpack.c.0.s8 %v1934
    %v1936 = vlaneseq
    %v1937 = vshrl.u32 %v1936, 7
    %v1938 = vsub.s32 %v1935, %v1937
    %v1939 = vrot.slane %v1932, %v1938
    %v1941 = vunpack.c.l.s4 1966171168
    %v1942 = vunpack.c.0.s8 %v1941
    %v1943 = vlaneseq
    %v1944 = vshrl.u32 %v1943, 7
    %v1945 = vsub.s32 %v1942, %v1944
    %v1946 = vrot.slane %v1931, %v1945
    %v1947 = vcombine.low %v1939, %v1946
    %vm1950 = vcmask 261120
    %v1951 = vsel %vm1950, %v1907, 0.0
    %1952 = vadd.xlane.f32.xlu0 %v1951
    %v1953 = vpop.xlane.xlu0 %1952
    %vm1954 = vcmask 259072
    %v1955 = vsel %vm1954, %v1947, 0.0
    %1956 = vadd.xlane.f32.xlu0 %v1955
    %v1957 = vpop.xlane.xlu0 %1956
    %v1958 = vrcp.pop 32.0
    %v1959 = vmul.f32 %v1953, %v1958
    %v1960 = vmul.f32 %v1957, %v1958
    %v1963 = vlaneseq
    %v1964 = vshrl.u32 %v1963, 7
    %v1965 = vsub.s32 0, %v1964
    %v1966 = vrot.slane %v1959, %v1965
    %v1967 = vlaneseq
    %v1968 = vshrl.u32 %v1967, 7
    %v1969 = vsub.s32 1, %v1968
    %v1970 = vrot.slane %v1959, %v1969
    %v1971 = vlaneseq
    %v1972 = vshrl.u32 %v1971, 7
    %v1973 = vsub.s32 2, %v1972
    %v1974 = vrot.slane %v1959, %v1973
    %v1975 = vlaneseq
    %v1976 = vshrl.u32 %v1975, 7
    %v1977 = vsub.s32 3, %v1976
    %v1978 = vrot.slane %v1959, %v1977
    %v1979 = vlaneseq
    %v1980 = vshrl.u32 %v1979, 7
    %v1981 = vsub.s32 4, %v1980
    %v1982 = vrot.slane %v1959, %v1981
    %v1983 = vlaneseq
    %v1984 = vshrl.u32 %v1983, 7
    %v1985 = vsub.s32 5, %v1984
    %v1986 = vrot.slane %v1959, %v1985
    %v1987 = vlaneseq
    %v1988 = vshrl.u32 %v1987, 7
    %v1989 = vsub.s32 6, %v1988
    %v1990 = vrot.slane %v1959, %v1989
    %v1991 = vlaneseq
    %v1992 = vshrl.u32 %v1991, 7
    %v1993 = vsub.s32 7, %v1992
    %v1994 = vrot.slane %v1959, %v1993
    %v1995 = vlaneseq
    %v1996 = vshrl.u32 %v1995, 7
    %v1997 = vsub.s32 0, %v1996
    %v1998 = vrot.slane %v1960, %v1997
    %v1999 = vlaneseq
    %v2000 = vshrl.u32 %v1999, 7
    %v2001 = vsub.s32 1, %v2000
    %v2002 = vrot.slane %v1960, %v2001
    %v2003 = vlaneseq
    %v2004 = vshrl.u32 %v2003, 7
    %v2005 = vsub.s32 2, %v2004
    %v2006 = vrot.slane %v1960, %v2005
    %v2007 = vlaneseq
    %v2008 = vshrl.u32 %v2007, 7
    %v2009 = vsub.s32 3, %v2008
    %v2010 = vrot.slane %v1960, %v2009
    %v2011 = vlaneseq
    %v2012 = vshrl.u32 %v2011, 7
    %v2013 = vsub.s32 4, %v2012
    %v2014 = vrot.slane %v1960, %v2013
    %v2015 = vlaneseq
    %v2016 = vshrl.u32 %v2015, 7
    %v2017 = vsub.s32 5, %v2016
    %v2018 = vrot.slane %v1960, %v2017
    %v2033 = vsub.f32 %v1829, %v1966
    %v2034 = vsub.f32 %v1830, %v1970
    %v2035 = vsub.f32 %v1831, %v1974
    %v2036 = vsub.f32 %v1832, %v1978
    %v2037 = vsub.f32 %v1833, %v1982
    %v2038 = vsub.f32 %v1834, %v1986
    %v2039 = vsub.f32 %v1835, %v1990
    %v2040 = vsub.f32 %v1836, %v1994
    %v2041 = vsub.f32 %v1837, %v1998
    %v2042 = vsub.f32 %v1838, %v2002
    %v2043 = vsub.f32 %v1839, %v2006
    %v2044 = vsub.f32 %v1840, %v2010
    %v2045 = vsub.f32 %v1841, %v2014
    %v2046 = vsub.f32 %v1842, %v2018
    %v2047 = vmul.f32 %v2033, %v2033
    %v2048 = vmul.f32 %v2034, %v2034
    %v2049 = vmul.f32 %v2035, %v2035
    %v2050 = vmul.f32 %v2036, %v2036
    %v2051 = vmul.f32 %v2037, %v2037
    %v2052 = vmul.f32 %v2038, %v2038
    %v2053 = vmul.f32 %v2039, %v2039
    %v2054 = vmul.f32 %v2040, %v2040
    %v2055 = vmul.f32 %v2041, %v2041
    %v2056 = vmul.f32 %v2042, %v2042
    %v2057 = vmul.f32 %v2043, %v2043
    %v2058 = vmul.f32 %v2044, %v2044
    %v2059 = vmul.f32 %v2045, %v2045
    %v2060 = vmul.f32 %v2046, %v2046
    %v2075 = vcombine.low %v2047, %v2048
    %v2076 = vcombine.low %v2049, %v2050
    %v2077 = vcombine.low %v2051, %v2052
    %v2078 = vcombine.low %v2053, %v2054
    %v2080 = vunpack.c.l.s4 1966171168
    %v2081 = vunpack.c.0.s8 %v2080
    %v2082 = vlaneseq
    %v2083 = vshrl.u32 %v2082, 7
    %v2084 = vsub.s32 %v2081, %v2083
    %v2085 = vrot.slane %v2075, %v2084
    %v2087 = vunpack.c.l.s4 1966171168
    %v2088 = vunpack.c.0.s8 %v2087
    %v2089 = vlaneseq
    %v2090 = vshrl.u32 %v2089, 7
    %v2091 = vsub.s32 %v2088, %v2090
    %v2092 = vrot.slane %v2076, %v2091
    %v2094 = vunpack.c.l.s4 1966171168
    %v2095 = vunpack.c.0.s8 %v2094
    %v2096 = vlaneseq
    %v2097 = vshrl.u32 %v2096, 7
    %v2098 = vsub.s32 %v2095, %v2097
    %v2099 = vrot.slane %v2077, %v2098
    %v2101 = vunpack.c.l.s4 1966171168
    %v2102 = vunpack.c.0.s8 %v2101
    %v2103 = vlaneseq
    %v2104 = vshrl.u32 %v2103, 7
    %v2105 = vsub.s32 %v2102, %v2104
    %v2106 = vrot.slane %v2078, %v2105
    %v2107 = vcombine.low %v2085, %v2092
    %v2108 = vcombine.low %v2099, %v2106
    %v2110 = vunpack.c.l.s4 1966171168
    %v2111 = vunpack.c.0.s8 %v2110
    %v2112 = vlaneseq
    %v2113 = vshrl.u32 %v2112, 7
    %v2114 = vsub.s32 %v2111, %v2113
    %v2115 = vrot.slane %v2107, %v2114
    %v2117 = vunpack.c.l.s4 1966171168
    %v2118 = vunpack.c.0.s8 %v2117
    %v2119 = vlaneseq
    %v2120 = vshrl.u32 %v2119, 7
    %v2121 = vsub.s32 %v2118, %v2120
    %v2122 = vrot.slane %v2108, %v2121
    %v2123 = vcombine.low %v2115, %v2122
    %v2124 = vcombine.low %v2055, %v2056
    %v2125 = vcombine.low %v2057, %v2058
    %v2126 = vcombine.low %v2059, %v2060
    %v2128 = vunpack.c.l.s4 1966171168
    %v2129 = vunpack.c.0.s8 %v2128
    %v2130 = vlaneseq
    %v2131 = vshrl.u32 %v2130, 7
    %v2132 = vsub.s32 %v2129, %v2131
    %v2133 = vrot.slane %v2124, %v2132
    %v2135 = vunpack.c.l.s4 1966171168
    %v2136 = vunpack.c.0.s8 %v2135
    %v2137 = vlaneseq
    %v2138 = vshrl.u32 %v2137, 7
    %v2139 = vsub.s32 %v2136, %v2138
    %v2140 = vrot.slane %v2125, %v2139
    %v2142 = vunpack.c.l.s4 1966171168
    %v2143 = vunpack.c.0.s8 %v2142
    %v2144 = vlaneseq
    %v2145 = vshrl.u32 %v2144, 7
    %v2146 = vsub.s32 %v2143, %v2145
    %v2147 = vrot.slane %v2126, %v2146
    %v2148 = vcombine.low %v2133, %v2140
    %v2150 = vunpack.c.l.s4 1966171168
    %v2151 = vunpack.c.0.s8 %v2150
    %v2152 = vlaneseq
    %v2153 = vshrl.u32 %v2152, 7
    %v2154 = vsub.s32 %v2151, %v2153
    %v2155 = vrot.slane %v2148, %v2154
    %v2157 = vunpack.c.l.s4 1966171168
    %v2158 = vunpack.c.0.s8 %v2157
    %v2159 = vlaneseq
    %v2160 = vshrl.u32 %v2159, 7
    %v2161 = vsub.s32 %v2158, %v2160
    %v2162 = vrot.slane %v2147, %v2161
    %v2163 = vcombine.low %v2155, %v2162
    %v2166 = vsel %vm1950, %v2123, 0.0
    %2167 = vadd.xlane.f32.xlu0 %v2166
    %v2168 = vpop.xlane.xlu0 %2167
    %v2169 = vsel %vm1954, %v2163, 0.0
    %2170 = vadd.xlane.f32.xlu0 %v2169
    %v2171 = vpop.xlane.xlu0 %2170
    %v2172 = vmul.f32 %v2168, %v1958
    %v2173 = vmul.f32 %v2171, %v1958
    %v2174 = vadd.f32 %v2172, 1e-05
    %v2175 = vadd.f32 %v2173, 1e-05
    %v2176 = vrsqrt.pop %v2174
    %v2177 = vrsqrt.pop %v2175
    %v2180 = vlaneseq
    %v2181 = vshrl.u32 %v2180, 7
    %v2182 = vsub.s32 0, %v2181
    %v2183 = vrot.slane %v2176, %v2182
    %v2184 = vlaneseq
    %v2185 = vshrl.u32 %v2184, 7
    %v2186 = vsub.s32 1, %v2185
    %v2187 = vrot.slane %v2176, %v2186
    %v2188 = vlaneseq
    %v2189 = vshrl.u32 %v2188, 7
    %v2190 = vsub.s32 2, %v2189
    %v2191 = vrot.slane %v2176, %v2190
    %v2192 = vlaneseq
    %v2193 = vshrl.u32 %v2192, 7
    %v2194 = vsub.s32 3, %v2193
    %v2195 = vrot.slane %v2176, %v2194
    %v2196 = vlaneseq
    %v2197 = vshrl.u32 %v2196, 7
    %v2198 = vsub.s32 4, %v2197
    %v2199 = vrot.slane %v2176, %v2198
    %v2200 = vlaneseq
    %v2201 = vshrl.u32 %v2200, 7
    %v2202 = vsub.s32 5, %v2201
    %v2203 = vrot.slane %v2176, %v2202
    %v2204 = vlaneseq
    %v2205 = vshrl.u32 %v2204, 7
    %v2206 = vsub.s32 6, %v2205
    %v2207 = vrot.slane %v2176, %v2206
    %v2208 = vlaneseq
    %v2209 = vshrl.u32 %v2208, 7
    %v2210 = vsub.s32 7, %v2209
    %v2211 = vrot.slane %v2176, %v2210
    %v2212 = vlaneseq
    %v2213 = vshrl.u32 %v2212, 7
    %v2214 = vsub.s32 0, %v2213
    %v2215 = vrot.slane %v2177, %v2214
    %v2216 = vlaneseq
    %v2217 = vshrl.u32 %v2216, 7
    %v2218 = vsub.s32 1, %v2217
    %v2219 = vrot.slane %v2177, %v2218
    %v2220 = vlaneseq
    %v2221 = vshrl.u32 %v2220, 7
    %v2222 = vsub.s32 2, %v2221
    %v2223 = vrot.slane %v2177, %v2222
    %v2224 = vlaneseq
    %v2225 = vshrl.u32 %v2224, 7
    %v2226 = vsub.s32 3, %v2225
    %v2227 = vrot.slane %v2177, %v2226
    %v2228 = vlaneseq
    %v2229 = vshrl.u32 %v2228, 7
    %v2230 = vsub.s32 4, %v2229
    %v2231 = vrot.slane %v2177, %v2230
    %v2232 = vlaneseq
    %v2233 = vshrl.u32 %v2232, 7
    %v2234 = vsub.s32 5, %v2233
    %v2235 = vrot.slane %v2177, %v2234
    %v2250 = vmul.f32 %v2033, %v2183
    %v2251 = vmul.f32 %v2034, %v2187
    %v2252 = vmul.f32 %v2035, %v2191
    %v2253 = vmul.f32 %v2036, %v2195
    %v2254 = vmul.f32 %v2037, %v2199
    %v2255 = vmul.f32 %v2038, %v2203
    %v2256 = vmul.f32 %v2039, %v2207
    %v2257 = vmul.f32 %v2040, %v2211
    %v2258 = vmul.f32 %v2041, %v2215
    %v2259 = vmul.f32 %v2042, %v2219
    %v2260 = vmul.f32 %v2043, %v2223
    %v2261 = vmul.f32 %v2044, %v2227
    %v2262 = vmul.f32 %v2045, %v2231
    %v2263 = vmul.f32 %v2046, %v2235
    %v2265 = vlaneseq
    %v2266 = vshrl.u32 %v2265, 7
    %v2267 = vsub.s32 0, %v2266
    %v2268 = vrot.slane %v1843, %v2267
    %v2269 = vcombine.high %v2268, %v2268
    %v2271 = vunpack.c.l.s4 1966171168
    %v2272 = vunpack.c.0.s8 %v2271
    %v2273 = vlaneseq
    %v2274 = vshrl.u32 %v2273, 7
    %v2275 = vsub.s32 %v2272, %v2274
    %v2276 = vrot.slane %v2268, %v2275
    %v2278 = vunpack.c.l.s4 1966171168
    %v2279 = vunpack.c.0.s8 %v2278
    %v2280 = vlaneseq
    %v2281 = vshrl.u32 %v2280, 7
    %v2282 = vsub.s32 %v2279, %v2281
    %v2283 = vrot.slane %v2269, %v2282
    %v2284 = vcombine.high %v2276, %v2276
    %v2285 = vcombine.high %v2283, %v2283
    %v2287 = vunpack.c.l.s4 1966171168
    %v2288 = vunpack.c.0.s8 %v2287
    %v2289 = vlaneseq
    %v2290 = vshrl.u32 %v2289, 7
    %v2291 = vsub.s32 %v2288, %v2290
    %v2292 = vrot.slane %v2276, %v2291
    %v2294 = vunpack.c.l.s4 1966171168
    %v2295 = vunpack.c.0.s8 %v2294
    %v2296 = vlaneseq
    %v2297 = vshrl.u32 %v2296, 7
    %v2298 = vsub.s32 %v2295, %v2297
    %v2299 = vrot.slane %v2283, %v2298
    %v2301 = vunpack.c.l.s4 1966171168
    %v2302 = vunpack.c.0.s8 %v2301
    %v2303 = vlaneseq
    %v2304 = vshrl.u32 %v2303, 7
    %v2305 = vsub.s32 %v2302, %v2304
    %v2306 = vrot.slane %v2284, %v2305
    %v2308 = vunpack.c.l.s4 1966171168
    %v2309 = vunpack.c.0.s8 %v2308
    %v2310 = vlaneseq
    %v2311 = vshrl.u32 %v2310, 7
    %v2312 = vsub.s32 %v2309, %v2311
    %v2313 = vrot.slane %v2285, %v2312
    %v2314 = vcombine.high %v2292, %v2292
    %v2315 = vcombine.high %v2299, %v2299
    %v2316 = vcombine.high %v2306, %v2306
    %v2317 = vcombine.high %v2313, %v2313
    %v2326 = vmul.f32 %v2250, %v2292
    %v2327 = vmul.f32 %v2251, %v2306
    %v2328 = vmul.f32 %v2252, %v2314
    %v2329 = vmul.f32 %v2253, %v2316
    %v2330 = vmul.f32 %v2254, %v2299
    %v2331 = vmul.f32 %v2255, %v2313
    %v2332 = vmul.f32 %v2256, %v2315
    %v2333 = vmul.f32 %v2257, %v2317
    %v2334 = vmul.f32 %v2258, %v2292
    %v2335 = vmul.f32 %v2259, %v2306
    %v2336 = vmul.f32 %v2260, %v2314
    %v2337 = vmul.f32 %v2261, %v2316
    %v2338 = vmul.f32 %v2262, %v2299
    %v2339 = vmul.f32 %v2263, %v2313
    %v2341 = vlaneseq
    %v2342 = vshrl.u32 %v2341, 7
    %v2343 = vsub.s32 0, %v2342
    %v2344 = vrot.slane %v1844, %v2343
    %v2345 = vcombine.high %v2344, %v2344
    %v2347 = vunpack.c.l.s4 1966171168
    %v2348 = vunpack.c.0.s8 %v2347
    %v2349 = vlaneseq
    %v2350 = vshrl.u32 %v2349, 7
    %v2351 = vsub.s32 %v2348, %v2350
    %v2352 = vrot.slane %v2344, %v2351
    %v2354 = vunpack.c.l.s4 1966171168
    %v2355 = vunpack.c.0.s8 %v2354
    %v2356 = vlaneseq
    %v2357 = vshrl.u32 %v2356, 7
    %v2358 = vsub.s32 %v2355, %v2357
    %v2359 = vrot.slane %v2345, %v2358
    %v2360 = vcombine.high %v2352, %v2352
    %v2361 = vcombine.high %v2359, %v2359
    %v2363 = vunpack.c.l.s4 1966171168
    %v2364 = vunpack.c.0.s8 %v2363
    %v2365 = vlaneseq
    %v2366 = vshrl.u32 %v2365, 7
    %v2367 = vsub.s32 %v2364, %v2366
    %v2368 = vrot.slane %v2352, %v2367
    %v2370 = vunpack.c.l.s4 1966171168
    %v2371 = vunpack.c.0.s8 %v2370
    %v2372 = vlaneseq
    %v2373 = vshrl.u32 %v2372, 7
    %v2374 = vsub.s32 %v2371, %v2373
    %v2375 = vrot.slane %v2359, %v2374
    %v2377 = vunpack.c.l.s4 1966171168
    %v2378 = vunpack.c.0.s8 %v2377
    %v2379 = vlaneseq
    %v2380 = vshrl.u32 %v2379, 7
    %v2381 = vsub.s32 %v2378, %v2380
    %v2382 = vrot.slane %v2360, %v2381
    %v2384 = vunpack.c.l.s4 1966171168
    %v2385 = vunpack.c.0.s8 %v2384
    %v2386 = vlaneseq
    %v2387 = vshrl.u32 %v2386, 7
    %v2388 = vsub.s32 %v2385, %v2387
    %v2389 = vrot.slane %v2361, %v2388
    %v2390 = vcombine.high %v2368, %v2368
    %v2391 = vcombine.high %v2375, %v2375
    %v2392 = vcombine.high %v2382, %v2382
    %v2393 = vcombine.high %v2389, %v2389
    %v2402 = vadd.f32 %v2326, %v2368
    %v2403 = vadd.f32 %v2327, %v2382
    %v2404 = vadd.f32 %v2328, %v2390
    %v2405 = vadd.f32 %v2329, %v2392
    %v2406 = vadd.f32 %v2330, %v2375
    %v2407 = vadd.f32 %v2331, %v2389
    %v2408 = vadd.f32 %v2332, %v2391
    %v2409 = vadd.f32 %v2333, %v2393
    %v2410 = vadd.f32 %v2334, %v2368
    %v2411 = vadd.f32 %v2335, %v2382
    %v2412 = vadd.f32 %v2336, %v2390
    %v2413 = vadd.f32 %v2337, %v2392
    %v2414 = vadd.f32 %v2338, %v2375
    %v2415 = vadd.f32 %v2339, %v2389
    %v2416 = vld [vmem:[#allocation16] sm:$0xff]
    %v2417 = vld [vmem:[#allocation16 + $0x8] sm:$0xff]
    %v2418 = vld [vmem:[#allocation16 + $0x10] sm:$0xff]
    %v2419 = vld [vmem:[#allocation16 + $0x18] sm:$0xff]
    %v2420 = vld [vmem:[#allocation17] sm:$0x1]
    %v2422 = vlaneseq
    %v2423 = vshrl.u32 %v2422, 7
    %v2424 = vsub.s32 0, %v2423
    %v2425 = vrot.slane %v2420, %v2424
    %v2441 = vcombine.low %v2402, %v2403
    %v2442 = vcombine.low %v2404, %v2405
    %v2443 = vcombine.low %v2406, %v2407
    %v2444 = vcombine.low %v2408, %v2409
    %v2446 = vunpack.c.l.s4 1966171168
    %v2447 = vunpack.c.0.s8 %v2446
    %v2448 = vlaneseq
    %v2449 = vshrl.u32 %v2448, 7
    %v2450 = vsub.s32 %v2447, %v2449
    %v2451 = vrot.slane %v2441, %v2450
    %v2453 = vunpack.c.l.s4 1966171168
    %v2454 = vunpack.c.0.s8 %v2453
    %v2455 = vlaneseq
    %v2456 = vshrl.u32 %v2455, 7
    %v2457 = vsub.s32 %v2454, %v2456
    %v2458 = vrot.slane %v2442, %v2457
    %v2460 = vunpack.c.l.s4 1966171168
    %v2461 = vunpack.c.0.s8 %v2460
    %v2462 = vlaneseq
    %v2463 = vshrl.u32 %v2462, 7
    %v2464 = vsub.s32 %v2461, %v2463
    %v2465 = vrot.slane %v2443, %v2464
    %v2467 = vunpack.c.l.s4 1966171168
    %v2468 = vunpack.c.0.s8 %v2467
    %v2469 = vlaneseq
    %v2470 = vshrl.u32 %v2469, 7
    %v2471 = vsub.s32 %v2468, %v2470
    %v2472 = vrot.slane %v2444, %v2471
    %v2473 = vcombine.low %v2451, %v2458
    %v2474 = vcombine.low %v2465, %v2472
    %v2476 = vunpack.c.l.s4 1966171168
    %v2477 = vunpack.c.0.s8 %v2476
    %v2478 = vlaneseq
    %v2479 = vshrl.u32 %v2478, 7
    %v2480 = vsub.s32 %v2477, %v2479
    %v2481 = vrot.slane %v2473, %v2480
    %v2483 = vunpack.c.l.s4 1966171168
    %v2484 = vunpack.c.0.s8 %v2483
    %v2485 = vlaneseq
    %v2486 = vshrl.u32 %v2485, 7
    %v2487 = vsub.s32 %v2484, %v2486
    %v2488 = vrot.slane %v2474, %v2487
    %v2489 = vcombine.low %v2481, %v2488
    %v2490 = vcombine.low %v2410, %v2411
    %v2491 = vcombine.low %v2412, %v2413
    %v2492 = vcombine.low %v2414, %v2415
    %v2494 = vunpack.c.l.s4 1966171168
    %v2495 = vunpack.c.0.s8 %v2494
    %v2496 = vlaneseq
    %v2497 = vshrl.u32 %v2496, 7
    %v2498 = vsub.s32 %v2495, %v2497
    %v2499 = vrot.slane %v2490, %v2498
    %v2501 = vunpack.c.l.s4 1966171168
    %v2502 = vunpack.c.0.s8 %v2501
    %v2503 = vlaneseq
    %v2504 = vshrl.u32 %v2503, 7
    %v2505 = vsub.s32 %v2502, %v2504
    %v2506 = vrot.slane %v2491, %v2505
    %v2508 = vunpack.c.l.s4 1966171168
    %v2509 = vunpack.c.0.s8 %v2508
    %v2510 = vlaneseq
    %v2511 = vshrl.u32 %v2510, 7
    %v2512 = vsub.s32 %v2509, %v2511
    %v2513 = vrot.slane %v2492, %v2512
    %v2514 = vcombine.low %v2499, %v2506
    %v2516 = vunpack.c.l.s4 1966171168
    %v2517 = vunpack.c.0.s8 %v2516
    %v2518 = vlaneseq
    %v2519 = vshrl.u32 %v2518, 7
    %v2520 = vsub.s32 %v2517, %v2519
    %v2521 = vrot.slane %v2514, %v2520
    %v2523 = vunpack.c.l.s4 1966171168
    %v2524 = vunpack.c.0.s8 %v2523
    %v2525 = vlaneseq
    %v2526 = vshrl.u32 %v2525, 7
    %v2527 = vsub.s32 %v2524, %v2526
    %v2528 = vrot.slane %v2513, %v2527
    %v2529 = vcombine.low %v2521, %v2528
    %v2530 = vsel %vm1950, %v2489, 0
    %v2532 = vsel %vm1950, %v2529, 0
    %2534 = vmatprep.subr.mxu0 0.0
    %2535 = vmatpush1.msra.mxu0 %v2416
    %2536 = vmatprep.subr.mxu0 0.0
    %2537 = vmatpush1.msra.mxu0 %v2417
    %2538 = vmatprep.subr.mxu0 0.0
    %2539 = vmatpush1.msra.mxu0 %v2418
    %2540 = vmatprep.subr.mxu0 0.0
    %2541 = vmatpush1.msra.mxu0 %v2419
    %2542 = vmatprep.subr.mxu0 0.0
    %2543 = vmatpush1.msra.mxu0 0.0
    %2544 = vmatprep.subr.mxu0 0.0
    %2545 = vmatpush1.msra.mxu0 0.0
    %2546 = vmatprep.subr.mxu0 0.0
    %2547 = vmatpush1.msra.mxu0 0.0
    %2548 = vmatprep.subr.mxu0 0.0
    %2549 = vmatpush1.msra.mxu0 0.0
    %2550 = vmatprep.subr.mxu0 0.0
    %2551 = vmatpush1.msra.mxu0 0.0
    %2552 = vmatprep.subr.mxu0 0.0
    %2553 = vmatpush1.msra.mxu0 0.0
    %2554 = vmatprep.subr.mxu0 0.0
    %2555 = vmatpush1.msra.mxu0 0.0
    %2556 = vmatprep.subr.mxu0 0.0
    %2557 = vmatpush1.msra.mxu0 0.0
    %2558 = vmatprep.subr.mxu0 0.0
    %2559 = vmatpush1.msra.mxu0 0.0
    %2560 = vmatprep.subr.mxu0 0.0
    %2561 = vmatpush1.msra.mxu0 0.0
    %2562 = vmatprep.subr.mxu0 0.0
    %2563 = vmatpush1.msra.mxu0 0.0
    %2564 = vmatprep.subr.mxu0 0.0
    %2565 = vmatpush1.msra.mxu0 0.0
    %2566 = vmatprep.subr.mxu0 0.0
    %2567 = vmatpush1.msra.mxu0 0.0
    %2568 = vmatprep.subr.mxu0 0.0
    %2569 = vmatpush1.msra.mxu0 0.0
    %2570 = vmatprep.subr.mxu0 0.0
    %2571 = vmatpush1.msra.mxu0 0.0
    %2572 = vmatprep.subr.mxu0 0.0
    %2573 = vmatpush1.msra.mxu0 0.0
    %2574 = vmatprep.subr.mxu0 0.0
    %2575 = vmatpush1.msra.mxu0 0.0
    %2576 = vmatprep.subr.mxu0 0.0
    %2577 = vmatpush1.msra.mxu0 0.0
    %2578 = vmatprep.subr.mxu0 0.0
    %2579 = vmatpush1.msra.mxu0 0.0
    %2580 = vmatprep.subr.mxu0 0.0
    %2581 = vmatpush1.msra.mxu0 0.0
    %2582 = vmatprep.subr.mxu0 0.0
    %2583 = vmatpush1.msra.mxu0 0.0
    %2584 = vmatprep.subr.mxu0 0.0
    %2585 = vmatpush1.msra.mxu0 0.0
    %2586 = vmatprep.subr.mxu0 0.0
    %2587 = vmatpush1.msra.mxu0 0.0
    %2588 = vmatprep.subr.mxu0 0.0
    %2589 = vmatpush1.msra.mxu0 0.0
    %2590 = vmatprep.subr.mxu0 0.0
    %2591 = vmatpush1.msra.mxu0 0.0
    %2592 = vmatprep.subr.mxu0 0.0
    %2593 = vmatpush1.msra.mxu0 0.0
    %2594 = vmatprep.subr.mxu0 0.0
    %2595 = vmatpush1.msra.mxu0 0.0
    %2596 = vmatprep.subr.mxu0 0.0
    %2597 = vmatpush1.msra.mxu0 0.0
    %2598 = vmatprep.mubr.f32.mxu0 0.0
    %2599 = vmatmul.mubr.f32.gmra.mrb[0].mxu0 %v2530
    %v2600 = vpop.f32.mrb[0].mxu0
    %v2601 = vadd.f32 %v2425, %v2600
    %v2602 = vpop.f32.mrb[0].mxu0
    %2603 = vmatprep.mubr.f32.mxu0 0.0
    %2604 = vmatmul.mubr.f32.gmra.mrb[0].mxu0 %v2532
    %v2605 = vpop.f32.mrb[0].mxu0
    %v2606 = vadd.f32 %v2425, %v2605
    %v2607 = vpop.f32.mrb[0].mxu0
    %2608 = vdwg.mxu0
    %v2609 = vmul.f32 %v2601, 0.5
    %v2610 = vmul.f32 %v2606, 0.5
    %v2611 = vmul.f32 %v2601, 0.70710677
    %v2612 = vmul.f32 %v2606, 0.70710677
    %vm2613 = vcmp.ge.f32.partialorder %v2611, 0.0
    %vm2614 = vcmp.ge.f32.partialorder %v2612, 0.0
    %v2615 = vsel %vm2613, 1.0, -1.0
    %v2616 = vsel %vm2614, 1.0, -1.0
    %v2617 = vand.u32 2147483647, %v2611
    %v2618 = vand.u32 2147483647, %v2612
    %v2619 = vmul.f32 %v2617, 0.3275911
    %v2620 = vmul.f32 %v2618, 0.3275911
    %v2621 = vadd.f32 %v2619, 1.0
    %v2622 = vadd.f32 %v2620, 1.0
    %v2623 = vrcp.pop %v2621
    %v2624 = vmul.f32 1.0, %v2623
    %v2625 = vrcp.pop %v2622
    %v2626 = vmul.f32 1.0, %v2625
    %v2627 = vmul.f32 %v2624, 1.0614054
    %v2628 = vmul.f32 %v2626, 1.0614054
    %v2629 = vadd.f32 %v2627, -1.4531521
    %v2630 = vadd.f32 %v2628, -1.4531521
    %v2631 = vmul.f32 %v2629, %v2624
    %v2632 = vmul.f32 %v2630, %v2626
    %v2633 = vadd.f32 %v2631, 1.4214138
    %v2634 = vadd.f32 %v2632, 1.4214138
    %v2635 = vmul.f32 %v2633, %v2624
    %v2636 = vmul.f32 %v2634, %v2626
    %v2637 = vadd.f32 %v2635, -0.28449672
    %v2638 = vadd.f32 %v2636, -0.28449672
    %v2639 = vmul.f32 %v2637, %v2624
    %v2640 = vmul.f32 %v2638, %v2626
    %v2641 = vadd.f32 %v2639, 0.2548296
    %v2642 = vadd.f32 %v2640, 0.2548296
    %v2643 = vmul.f32 %v2641, %v2624
    %v2644 = vmul.f32 %v2642, %v2626
    %v2645 = vsub.f32 0.0, %v2617
    %v2646 = vsub.f32 0.0, %v2618
    %v2647 = vmul.f32 %v2645, %v2617
    %v2648 = vmul.f32 %v2646, %v2618
    %v2649 = vmul.f32 %v2647, 1.442695
    %v2650 = vpow.pop %v2649
    %v2651 = vmul.f32 %v2648, 1.442695
    %v2652 = vpow.pop %v2651
    %v2653 = vmul.f32 %v2643, %v2650
    %v2654 = vmul.f32 %v2644, %v2652
    %v2655 = vsub.f32 1.0, %v2653
    %v2656 = vsub.f32 1.0, %v2654
    %v2657 = vmul.f32 %v2615, %v2655
    %v2658 = vmul.f32 %v2616, %v2656
    %v2659 = vadd.f32 %v2657, 1.0
    %v2660 = vadd.f32 %v2658, 1.0
    %v2661 = vmul.f32 %v2609, %v2659
    %v2662 = vmul.f32 %v2610, %v2660
    %v2663 = vld [vmem:[#allocation19] sm:$0xff]
    %v2664 = vld [vmem:[#allocation19 + $0x8] sm:$0xff]
    %v2665 = vld [vmem:[#allocation19 + $0x10] sm:$0xff]
    %v2666 = vld [vmem:[#allocation19 + $0x18] sm:$0xff]
    %v2667 = vld [vmem:[#allocation19 + $0x20] sm:$0xff]
    %v2668 = vld [vmem:[#allocation19 + $0x28] sm:$0xff]
    %v2669 = vld [vmem:[#allocation19 + $0x30] sm:$0xff]
    %v2670 = vld [vmem:[#allocation19 + $0x38] sm:$0xff]
    %v2671 = vld [vmem:[#allocation20] sm:$0x1]
    %v2673 = vlaneseq
    %v2674 = vshrl.u32 %v2673, 7
    %v2675 = vsub.s32 0, %v2674
    %v2676 = vrot.slane %v2671, %v2675
    %vm2678 = vcmask 523264
    %v2680 = vsel %vm2678, %v2661, 0
    %v2683 = vsel %vm2678, %v2662, 0
    %2685 = vmatprep.subr.mxu0 0.0
    %2686 = vmatpush1.msra.mxu0 %v2663
    %2687 = vmatprep.subr.mxu0 0.0
    %2688 = vmatpush1.msra.mxu0 %v2664
    %2689 = vmatprep.subr.mxu0 0.0
    %2690 = vmatpush1.msra.mxu0 %v2665
    %2691 = vmatprep.subr.mxu0 0.0
    %2692 = vmatpush1.msra.mxu0 %v2666
    %2693 = vmatprep.subr.mxu0 0.0
    %2694 = vmatpush1.msra.mxu0 %v2667
    %2695 = vmatprep.subr.mxu0 0.0
    %2696 = vmatpush1.msra.mxu0 %v2668
    %2697 = vmatprep.subr.mxu0 0.0
    %2698 = vmatpush1.msra.mxu0 %v2669
    %2699 = vmatprep.subr.mxu0 0.0
    %2700 = vmatpush1.msra.mxu0 %v2670
    %2701 = vmatprep.subr.mxu0 0.0
    %2702 = vmatpush1.msra.mxu0 0.0
    %2703 = vmatprep.subr.mxu0 0.0
    %2704 = vmatpush1.msra.mxu0 0.0
    %2705 = vmatprep.subr.mxu0 0.0
    %2706 = vmatpush1.msra.mxu0 0.0
    %2707 = vmatprep.subr.mxu0 0.0
    %2708 = vmatpush1.msra.mxu0 0.0
    %2709 = vmatprep.subr.mxu0 0.0
    %2710 = vmatpush1.msra.mxu0 0.0
    %2711 = vmatprep.subr.mxu0 0.0
    %2712 = vmatpush1.msra.mxu0 0.0
    %2713 = vmatprep.subr.mxu0 0.0
    %2714 = vmatpush1.msra.mxu0 0.0
    %2715 = vmatprep.subr.mxu0 0.0
    %2716 = vmatpush1.msra.mxu0 0.0
    %2717 = vmatprep.subr.mxu0 0.0
    %2718 = vmatpush1.msra.mxu0 0.0
    %2719 = vmatprep.subr.mxu0 0.0
    %2720 = vmatpush1.msra.mxu0 0.0
    %2721 = vmatprep.subr.mxu0 0.0
    %2722 = vmatpush1.msra.mxu0 0.0
    %2723 = vmatprep.subr.mxu0 0.0
    %2724 = vmatpush1.msra.mxu0 0.0
    %2725 = vmatprep.subr.mxu0 0.0
    %2726 = vmatpush1.msra.mxu0 0.0
    %2727 = vmatprep.subr.mxu0 0.0
    %2728 = vmatpush1.msra.mxu0 0.0
    %2729 = vmatprep.subr.mxu0 0.0
    %2730 = vmatpush1.msra.mxu0 0.0
    %2731 = vmatprep.subr.mxu0 0.0
    %2732 = vmatpush1.msra.mxu0 0.0
    %2733 = vmatprep.subr.mxu0 0.0
    %2734 = vmatpush1.msra.mxu0 0.0
    %2735 = vmatprep.subr.mxu0 0.0
    %2736 = vmatpush1.msra.mxu0 0.0
    %2737 = vmatprep.subr.mxu0 0.0
    %2738 = vmatpush1.msra.mxu0 0.0
    %2739 = vmatprep.subr.mxu0 0.0
    %2740 = vmatpush1.msra.mxu0 0.0
    %2741 = vmatprep.subr.mxu0 0.0
    %2742 = vmatpush1.msra.mxu0 0.0
    %2743 = vmatprep.subr.mxu0 0.0
    %2744 = vmatpush1.msra.mxu0 0.0
    %2745 = vmatprep.subr.mxu0 0.0
    %2746 = vmatpush1.msra.mxu0 0.0
    %2747 = vmatprep.subr.mxu0 0.0
    %2748 = vmatpush1.msra.mxu0 0.0
    %2749 = vmatprep.mubr.f32.mxu0 0.0
    %2750 = vmatmul.mubr.f32.gmra.mrb[0].mxu0 %v2680
    %v2751 = vpop.f32.mrb[0].mxu0
    %v2752 = vadd.f32 %v2676, %v2751
    %v2753 = vpop.f32.mrb[0].mxu0
    %2754 = vmatprep.mubr.f32.mxu0 0.0
    %2755 = vmatmul.mubr.f32.gmra.mrb[0].mxu0 %v2683
    %v2756 = vpop.f32.mrb[0].mxu0
    %v2757 = vadd.f32 %v2676, %v2756
    %v2758 = vpop.f32.mrb[0].mxu0
    %2759 = vdwg.mxu0
    %v2762 = vcombine.high %v2752, %v2752
    %v2764 = vunpack.c.l.s4 1966171168
    %v2765 = vunpack.c.0.s8 %v2764
    %v2766 = vlaneseq
    %v2767 = vshrl.u32 %v2766, 7
    %v2768 = vsub.s32 %v2765, %v2767
    %v2769 = vrot.slane %v2752, %v2768
    %v2771 = vunpack.c.l.s4 1966171168
    %v2772 = vunpack.c.0.s8 %v2771
    %v2773 = vlaneseq
    %v2774 = vshrl.u32 %v2773, 7
    %v2775 = vsub.s32 %v2772, %v2774
    %v2776 = vrot.slane %v2762, %v2775
    %v2777 = vcombine.high %v2769, %v2769
    %v2778 = vcombine.high %v2776, %v2776
    %v2780 = vunpack.c.l.s4 1966171168
    %v2781 = vunpack.c.0.s8 %v2780
    %v2782 = vlaneseq
    %v2783 = vshrl.u32 %v2782, 7
    %v2784 = vsub.s32 %v2781, %v2783
    %v2785 = vrot.slane %v2769, %v2784
    %v2787 = vunpack.c.l.s4 1966171168
    %v2788 = vunpack.c.0.s8 %v2787
    %v2789 = vlaneseq
    %v2790 = vshrl.u32 %v2789, 7
    %v2791 = vsub.s32 %v2788, %v2790
    %v2792 = vrot.slane %v2776, %v2791
    %v2794 = vunpack.c.l.s4 1966171168
    %v2795 = vunpack.c.0.s8 %v2794
    %v2796 = vlaneseq
    %v2797 = vshrl.u32 %v2796, 7
    %v2798 = vsub.s32 %v2795, %v2797
    %v2799 = vrot.slane %v2777, %v2798
    %v2801 = vunpack.c.l.s4 1966171168
    %v2802 = vunpack.c.0.s8 %v2801
    %v2803 = vlaneseq
    %v2804 = vshrl.u32 %v2803, 7
    %v2805 = vsub.s32 %v2802, %v2804
    %v2806 = vrot.slane %v2778, %v2805
    %v2807 = vcombine.high %v2785, %v2785
    %v2808 = vcombine.high %v2792, %v2792
    %v2809 = vcombine.high %v2799, %v2799
    %v2810 = vcombine.high %v2806, %v2806
    %v2811 = vcombine.high %v2757, %v2757
    %v2813 = vunpack.c.l.s4 1966171168
    %v2814 = vunpack.c.0.s8 %v2813
    %v2815 = vlaneseq
    %v2816 = vshrl.u32 %v2815, 7
    %v2817 = vsub.s32 %v2814, %v2816
    %v2818 = vrot.slane %v2757, %v2817
    %v2820 = vunpack.c.l.s4 1966171168
    %v2821 = vunpack.c.0.s8 %v2820
    %v2822 = vlaneseq
    %v2823 = vshrl.u32 %v2822, 7
    %v2824 = vsub.s32 %v2821, %v2823
    %v2825 = vrot.slane %v2811, %v2824
    %v2826 = vcombine.high %v2818, %v2818
    %v2827 = vcombine.high %v2825, %v2825
    %v2829 = vunpack.c.l.s4 1966171168
    %v2830 = vunpack.c.0.s8 %v2829
    %v2831 = vlaneseq
    %v2832 = vshrl.u32 %v2831, 7
    %v2833 = vsub.s32 %v2830, %v2832
    %v2834 = vrot.slane %v2818, %v2833
    %v2836 = vunpack.c.l.s4 1966171168
    %v2837 = vunpack.c.0.s8 %v2836
    %v2838 = vlaneseq
    %v2839 = vshrl.u32 %v2838, 7
    %v2840 = vsub.s32 %v2837, %v2839
    %v2841 = vrot.slane %v2825, %v2840
    %v2843 = vunpack.c.l.s4 1966171168
    %v2844 = vunpack.c.0.s8 %v2843
    %v2845 = vlaneseq
    %v2846 = vshrl.u32 %v2845, 7
    %v2847 = vsub.s32 %v2844, %v2846
    %v2848 = vrot.slane %v2826, %v2847
    %v2850 = vunpack.c.l.s4 1966171168
    %v2851 = vunpack.c.0.s8 %v2850
    %v2852 = vlaneseq
    %v2853 = vshrl.u32 %v2852, 7
    %v2854 = vsub.s32 %v2851, %v2853
    %v2855 = vrot.slane %v2827, %v2854
    %v2856 = vcombine.high %v2834, %v2834
    %v2857 = vcombine.high %v2848, %v2848
    %v2872 = vadd.f32 %v1829, %v2785
    %v2873 = vadd.f32 %v1830, %v2799
    %v2874 = vadd.f32 %v1831, %v2807
    %v2875 = vadd.f32 %v1832, %v2809
    %v2876 = vadd.f32 %v1833, %v2792
    %v2877 = vadd.f32 %v1834, %v2806
    %v2878 = vadd.f32 %v1835, %v2808
    %v2879 = vadd.f32 %v1836, %v2810
    %v2880 = vadd.f32 %v1837, %v2834
    %v2881 = vadd.f32 %v1838, %v2848
    %v2882 = vadd.f32 %v1839, %v2856
    %v2883 = vadd.f32 %v1840, %v2857
    %v2884 = vadd.f32 %v1841, %v2841
    %v2885 = vadd.f32 %v1842, %v2855
    %v2900 = vcombine.low %v2872, %v2873
    %v2901 = vcombine.low %v2874, %v2875
    %v2902 = vcombine.low %v2876, %v2877
    %v2903 = vcombine.low %v2878, %v2879
    %v2905 = vunpack.c.l.s4 1966171168
    %v2906 = vunpack.c.0.s8 %v2905
    %v2907 = vlaneseq
    %v2908 = vshrl.u32 %v2907, 7
    %v2909 = vsub.s32 %v2906, %v2908
    %v2910 = vrot.slane %v2900, %v2909
    %v2912 = vunpack.c.l.s4 1966171168
    %v2913 = vunpack.c.0.s8 %v2912
    %v2914 = vlaneseq
    %v2915 = vshrl.u32 %v2914, 7
    %v2916 = vsub.s32 %v2913, %v2915
    %v2917 = vrot.slane %v2901, %v2916
    %v2919 = vunpack.c.l.s4 1966171168
    %v2920 = vunpack.c.0.s8 %v2919
    %v2921 = vlaneseq
    %v2922 = vshrl.u32 %v2921, 7
    %v2923 = vsub.s32 %v2920, %v2922
    %v2924 = vrot.slane %v2902, %v2923
    %v2926 = vunpack.c.l.s4 1966171168
    %v2927 = vunpack.c.0.s8 %v2926
    %v2928 = vlaneseq
    %v2929 = vshrl.u32 %v2928, 7
    %v2930 = vsub.s32 %v2927, %v2929
    %v2931 = vrot.slane %v2903, %v2930
    %v2932 = vcombine.low %v2910, %v2917
    %v2933 = vcombine.low %v2924, %v2931
    %v2935 = vunpack.c.l.s4 1966171168
    %v2936 = vunpack.c.0.s8 %v2935
    %v2937 = vlaneseq
    %v2938 = vshrl.u32 %v2937, 7
    %v2939 = vsub.s32 %v2936, %v2938
    %v2940 = vrot.slane %v2932, %v2939
    %v2942 = vunpack.c.l.s4 1966171168
    %v2943 = vunpack.c.0.s8 %v2942
    %v2944 = vlaneseq
    %v2945 = vshrl.u32 %v2944, 7
    %v2946 = vsub.s32 %v2943, %v2945
    %v2947 = vrot.slane %v2933, %v2946
    %v2948 = vcombine.low %v2940, %v2947
    %v2949 = vcombine.low %v2880, %v2881
    %v2950 = vcombine.low %v2882, %v2883
    %v2951 = vcombine.low %v2884, %v2885
    %v2953 = vunpack.c.l.s4 1966171168
    %v2954 = vunpack.c.0.s8 %v2953
    %v2955 = vlaneseq
    %v2956 = vshrl.u32 %v2955, 7
    %v2957 = vsub.s32 %v2954, %v2956
    %v2958 = vrot.slane %v2949, %v2957
    %v2960 = vunpack.c.l.s4 1966171168
    %v2961 = vunpack.c.0.s8 %v2960
    %v2962 = vlaneseq
    %v2963 = vshrl.u32 %v2962, 7
    %v2964 = vsub.s32 %v2961, %v2963
    %v2965 = vrot.slane %v2950, %v2964
    %v2967 = vunpack.c.l.s4 1966171168
    %v2968 = vunpack.c.0.s8 %v2967
    %v2969 = vlaneseq
    %v2970 = vshrl.u32 %v2969, 7
    %v2971 = vsub.s32 %v2968, %v2970
    %v2972 = vrot.slane %v2951, %v2971
    %v2973 = vcombine.low %v2958, %v2965
    %v2975 = vunpack.c.l.s4 1966171168
    %v2976 = vunpack.c.0.s8 %v2975
    %v2977 = vlaneseq
    %v2978 = vshrl.u32 %v2977, 7
    %v2979 = vsub.s32 %v2976, %v2978
    %v2980 = vrot.slane %v2973, %v2979
    %v2982 = vunpack.c.l.s4 1966171168
    %v2983 = vunpack.c.0.s8 %v2982
    %v2984 = vlaneseq
    %v2985 = vshrl.u32 %v2984, 7
    %v2986 = vsub.s32 %v2983, %v2985
    %v2987 = vrot.slane %v2972, %v2986
    %v2988 = vcombine.low %v2980, %v2987
    %2991 = vst.msk [vmem:[#allocation22] sm:$0xff] %vm1950, %v2948
    %2992 = vst.msk [vmem:[#allocation22 + $0x8] sm:$0x3f] %vm1954, %v2988
    // Predicated region
    $region98: #{transformer_forward.5} parent=1 // pred_check
      _
    $region99: #{transformer_forward.5} parent=1 // pred_check_branch
      %2994 = sbr.rel (0) target = $region101
    $region100: #{transformer_forward.5} parent=1 // pred_region
      %s2996 = ssub.s32 256, 256
      %2997 = vsyncadd [#allocation4], %s2996
      %s2998 = sshll.u32 [#allocation22], 4
      %s2999 = int_to_ptr.vmem [resolvable:$true] %s2998
      %3004 = dma.vmem_to_hbm [thread:$0]  %s2999, 256, %s12, [#allocation4], 128, 128, 8
    $region101: #{transformer_forward.5} parent=1 // pred_fallthru
      _
    // Predicated region
    $region102: #{transformer_forward.5} parent=1 // pred_check
      _
    $region103: #{transformer_forward.5} parent=1 // pred_check_branch
      %3006 = sbr.rel (0) target = $region105
    $region104: #{transformer_forward.5} parent=1 // pred_region
      %3007 = dma.done [#allocation4], 256
    $region105: #{transformer_forward.5} parent=1 // pred_fallthru
      _
    %3008 = vsyncpa [#allocation3], 1
    %3009 = vsyncpa [#allocation6], 1
    %3010 = vsyncpa [#allocation9], 1
    %3011 = vsyncpa [#allocation12], 1
    %3012 = vsyncpa [#allocation15], 1
    %3013 = vsyncpa [#allocation18], 1
    %3014 = vsyncpa [#allocation21], 1
    %3015 = vsyncpa [#allocation4], 1

// kernel: transformer_forward.7
$region0: #{transformer_forward.7}
  #allocation0 [shape = 'u32[]', space=smem, size = 0x4, offset = 0x4, fixed_abs, tag = 'smem constant byte address 0x4 - core index']
  #allocation1 [shape = 'u32[144,128]{1,0:T(1,128)}', space=vmem, size = 0x12000, scoped, tag = 'internal scratch']
  %s0 = inlined_call_operand.hbm [shape: s32[2,5], index: 0, kind: input, shape index: {}]
  %s1 = inlined_call_operand.hbm [shape: f32[2,2,7,7], index: 1, kind: input, shape index: {}]
  %s2 = inlined_call_operand.hbm [shape: f32[2,7,16], index: 2, kind: input, shape index: {}]
  %s3 = inlined_call_operand.hbm [shape: f32[2,7,32], index: 3, kind: input, shape index: {}]
  %s4 = inlined_call_operand.hbm [shape: f32[16,32], index: 4, kind: input, shape index: {}]
  %s5 = inlined_call_operand.hbm [shape: f32[1,32], index: 5, kind: input, shape index: {}]
  %s6 = inlined_call_operand.hbm [shape: f32[1,32], index: 6, kind: input, shape index: {}]
  %s7 = inlined_call_operand.hbm [shape: f32[1,32], index: 7, kind: input, shape index: {}]
  %s8 = inlined_call_operand.hbm [shape: f32[32,64], index: 8, kind: input, shape index: {}]
  %s9 = inlined_call_operand.hbm [shape: f32[1,64], index: 9, kind: input, shape index: {}]
  %s10 = inlined_call_operand.hbm [shape: f32[64,32], index: 10, kind: input, shape index: {}]
  %s11 = inlined_call_operand.hbm [shape: f32[1,32], index: 11, kind: input, shape index: {}]
  %s12 = inlined_call_operand.hbm [shape: f32[10,32], index: 12, kind: output, shape index: {}]
  %s13 = sld [smem:[#allocation0]]
  $region106: #{transformer_forward.7} parent=0
    _
  %s15 = ssub.s32 1, %s13
  %s16 = scalar_select 0, %s15, %s13
  $region1: #{transformer_forward.7} parent=0
    #allocation2 [shape = 'u8[1024]{0}', space=vmem, size = 0x400, scoped, tag = 'input window, operand 0, single buffered']
    #allocation3 [shape = 's32[1]{0}', space=sflag, size = 0x4, scoped, tag = 'scoped memory for transformer_forward.7']
    #allocation4 [shape = 's32[1]{0}', space=sflag, size = 0x4, scoped, tag = 'scoped memory for transformer_forward.7']
    #allocation5 [shape = 'u8[16384]{0}', space=vmem, size = 0x4000, scoped, tag = 'input window, operand 1, single buffered']
    #allocation6 [shape = 's32[1]{0}', space=sflag, size = 0x4, scoped, tag = 'scoped memory for transformer_forward.7']
    #allocation7 [shape = 'u8[8192]{0}', space=vmem, size = 0x2000, scoped, tag = 'input window, operand 2, single buffered']
    #allocation8 [shape = 'u8[8192]{0}', space=vmem, size = 0x2000, scoped, tag = 'input window, operand 3, single buffered']
    #allocation9 [shape = 's32[1]{0}', space=sflag, size = 0x4, scoped, tag = 'scoped memory for transformer_forward.7']
    #allocation10 [shape = 'u8[8192]{0}', space=vmem, size = 0x2000, scoped, tag = 'input window, operand 4, single buffered']
    #allocation11 [shape = 'u8[512]{0}', space=vmem, size = 0x400, scoped, tag = 'input window, operand 5, single buffered']
    #allocation12 [shape = 's32[1]{0}', space=sflag, size = 0x4, scoped, tag = 'scoped memory for transformer_forward.7']
    #allocation13 [shape = 'u8[512]{0}', space=vmem, size = 0x400, scoped, tag = 'input window, operand 6, single buffered']
    #allocation14 [shape = 'u8[512]{0}', space=vmem, size = 0x400, scoped, tag = 'input window, operand 7, single buffered']
    #allocation15 [shape = 's32[1]{0}', space=sflag, size = 0x4, scoped, tag = 'scoped memory for transformer_forward.7']
    #allocation16 [shape = 'u8[16384]{0}', space=vmem, size = 0x4000, scoped, tag = 'input window, operand 8, single buffered']
    #allocation17 [shape = 'u8[512]{0}', space=vmem, size = 0x400, scoped, tag = 'input window, operand 9, single buffered']
    #allocation18 [shape = 's32[1]{0}', space=sflag, size = 0x4, scoped, tag = 'scoped memory for transformer_forward.7']
    #allocation19 [shape = 'u8[32768]{0}', space=vmem, size = 0x8000, scoped, tag = 'input window, operand 10, single buffered']
    #allocation20 [shape = 'u8[512]{0}', space=vmem, size = 0x400, scoped, tag = 'input window, operand 11, single buffered']
    #allocation21 [shape = 's32[1]{0}', space=sflag, size = 0x4, scoped, tag = 'scoped memory for transformer_forward.7']
    #allocation22 [shape = 'u8[8192]{0}', space=vmem, size = 0x2000, scoped, tag = 'output window, operand 0, single buffered']
    %17 = vsyncpa [#allocation3], 0
    %18 = vsyncpa [#allocation6], 0
    %19 = vsyncpa [#allocation9], 0
    %20 = vsyncpa [#allocation12], 0
    %21 = vsyncpa [#allocation15], 0
    %22 = vsyncpa [#allocation18], 0
    %23 = vsyncpa [#allocation21], 0
    %24 = vsyncpa [#allocation4], 0
    // Predicated region
    $region2: #{transformer_forward.7} parent=1 // pred_check
      _
    $region3: #{transformer_forward.7} parent=1 // pred_check_branch
      %26 = sbr.rel (0) target = $region5
    $region4: #{transformer_forward.7} parent=1 // pred_region
      %s28 = ssub.s32 32, 32
      %29 = vsyncadd [#allocation3], %s28
      %s31 = sshll.u32 [#allocation2], 4
      %s32 = int_to_ptr.vmem [resolvable:$true] %s31
      %34 = dma.hbm_to_vmem [thread:$0]  %s0, 32, %s32, [#allocation3]
    $region5: #{transformer_forward.7} parent=1 // pred_fallthru
      _
    // Predicated region
    $region6: #{transformer_forward.7} parent=1 // pred_check
      _
    $region7: #{transformer_forward.7} parent=1 // pred_check_branch
      %36 = sbr.rel (0) target = $region9
    $region8: #{transformer_forward.7} parent=1 // pred_region
      %s38 = ssub.s32 512, 512
      %39 = vsyncadd [#allocation6], %s38
      %s40 = sshll.u32 [#allocation5], 4
      %s41 = int_to_ptr.vmem [resolvable:$true] %s40
      %46 = dma.hbm_to_vmem [thread:$0]  %s1, 512, %s41, [#allocation6], 128, 128, 8
    $region9: #{transformer_forward.7} parent=1 // pred_fallthru
      _
    // Predicated region
    $region10: #{transformer_forward.7} parent=1 // pred_check
      _
    $region11: #{transformer_forward.7} parent=1 // pred_check_branch
      %48 = sbr.rel (0) target = $region13
    $region12: #{transformer_forward.7} parent=1 // pred_region
      %s50 = ssub.s32 256, 256
      %51 = vsyncadd [#allocation6], %s50
      %s52 = sshll.u32 [#allocation7], 4
      %s53 = int_to_ptr.vmem [resolvable:$true] %s52
      %58 = dma.hbm_to_vmem [thread:$0]  %s2, 256, %s53, [#allocation6], 128, 128, 8
    $region13: #{transformer_forward.7} parent=1 // pred_fallthru
      _
    // Predicated region
    $region14: #{transformer_forward.7} parent=1 // pred_check
      _
    $region15: #{transformer_forward.7} parent=1 // pred_check_branch
      %60 = sbr.rel (0) target = $region17
    $region16: #{transformer_forward.7} parent=1 // pred_region
      %s62 = ssub.s32 256, 256
      %63 = vsyncadd [#allocation9], %s62
      %s64 = sshll.u32 [#allocation8], 4
      %s65 = int_to_ptr.vmem [resolvable:$true] %s64
      %70 = dma.hbm_to_vmem [thread:$0]  %s3, 256, %s65, [#allocation9], 128, 128, 8
    $region17: #{transformer_forward.7} parent=1 // pred_fallthru
      _
    // Predicated region
    $region18: #{transformer_forward.7} parent=1 // pred_check
      _
    $region19: #{transformer_forward.7} parent=1 // pred_check_branch
      %72 = sbr.rel (0) target = $region21
    $region20: #{transformer_forward.7} parent=1 // pred_region
      %s74 = ssub.s32 256, 256
      %75 = vsyncadd [#allocation9], %s74
      %s76 = sshll.u32 [#allocation10], 4
      %s77 = int_to_ptr.vmem [resolvable:$true] %s76
      %82 = dma.hbm_to_vmem [thread:$0]  %s4, 256, %s77, [#allocation9], 128, 128, 8
    $region21: #{transformer_forward.7} parent=1 // pred_fallthru
      _
    // Predicated region
    $region22: #{transformer_forward.7} parent=1 // pred_check
      _
    $region23: #{transformer_forward.7} parent=1 // pred_check_branch
      %84 = sbr.rel (0) target = $region25
    $region24: #{transformer_forward.7} parent=1 // pred_region
      %s86 = ssub.s32 16, 16
      %87 = vsyncadd [#allocation12], %s86
      %s89 = sshll.u32 [#allocation11], 4
      %s90 = int_to_ptr.vmem [resolvable:$true] %s89
      %92 = dma.hbm_to_vmem [thread:$0]  %s5, 16, %s90, [#allocation12]
    $region25: #{transformer_forward.7} parent=1 // pred_fallthru
      _
    // Predicated region
    $region26: #{transformer_forward.7} parent=1 // pred_check
      _
    $region27: #{transformer_forward.7} parent=1 // pred_check_branch
      %94 = sbr.rel (0) target = $region29
    $region28: #{transformer_forward.7} parent=1 // pred_region
      %s96 = ssub.s32 16, 16
      %97 = vsyncadd [#allocation12], %s96
      %s99 = sshll.u32 [#allocation13], 4
      %s100 = int_to_ptr.vmem [resolvable:$true] %s99
      %102 = dma.hbm_to_vmem [thread:$0]  %s6, 16, %s100, [#allocation12]
    $region29: #{transformer_forward.7} parent=1 // pred_fallthru
      _
    // Predicated region
    $region30: #{transformer_forward.7} parent=1 // pred_check
      _
    $region31: #{transformer_forward.7} parent=1 // pred_check_branch
      %104 = sbr.rel (0) target = $region33
    $region32: #{transformer_forward.7} parent=1 // pred_region
      %s106 = ssub.s32 16, 16
      %107 = vsyncadd [#allocation15], %s106
      %s109 = sshll.u32 [#allocation14], 4
      %s110 = int_to_ptr.vmem [resolvable:$true] %s109
      %112 = dma.hbm_to_vmem [thread:$0]  %s7, 16, %s110, [#allocation15]
    $region33: #{transformer_forward.7} parent=1 // pred_fallthru
      _
    // Predicated region
    $region34: #{transformer_forward.7} parent=1 // pred_check
      _
    $region35: #{transformer_forward.7} parent=1 // pred_check_branch
      %114 = sbr.rel (0) target = $region37
    $region36: #{transformer_forward.7} parent=1 // pred_region
      %s116 = ssub.s32 512, 512
      %117 = vsyncadd [#allocation15], %s116
      %s118 = sshll.u32 [#allocation16], 4
      %s119 = int_to_ptr.vmem [resolvable:$true] %s118
      %124 = dma.hbm_to_vmem [thread:$0]  %s8, 512, %s119, [#allocation15], 128, 128, 8
    $region37: #{transformer_forward.7} parent=1 // pred_fallthru
      _
    // Predicated region
    $region38: #{transformer_forward.7} parent=1 // pred_check
      _
    $region39: #{transformer_forward.7} parent=1 // pred_check_branch
      %126 = sbr.rel (0) target = $region41
    $region40: #{transformer_forward.7} parent=1 // pred_region
      %s128 = ssub.s32 16, 16
      %129 = vsyncadd [#allocation18], %s128
      %s131 = sshll.u32 [#allocation17], 4
      %s132 = int_to_ptr.vmem [resolvable:$true] %s131
      %134 = dma.hbm_to_vmem [thread:$0]  %s9, 16, %s132, [#allocation18]
    $region41: #{transformer_forward.7} parent=1 // pred_fallthru
      _
    // Predicated region
    $region42: #{transformer_forward.7} parent=1 // pred_check
      _
    $region43: #{transformer_forward.7} parent=1 // pred_check_branch
      %136 = sbr.rel (0) target = $region45
    $region44: #{transformer_forward.7} parent=1 // pred_region
      %s138 = ssub.s32 1024, 1024
      %139 = vsyncadd [#allocation18], %s138
      %s140 = sshll.u32 [#allocation19], 4
      %s141 = int_to_ptr.vmem [resolvable:$true] %s140
      %146 = dma.hbm_to_vmem [thread:$0]  %s10, 1024, %s141, [#allocation18], 128, 128, 8
    $region45: #{transformer_forward.7} parent=1 // pred_fallthru
      _
    // Predicated region
    $region46: #{transformer_forward.7} parent=1 // pred_check
      _
    $region47: #{transformer_forward.7} parent=1 // pred_check_branch
      %148 = sbr.rel (0) target = $region49
    $region48: #{transformer_forward.7} parent=1 // pred_region
      %s150 = ssub.s32 16, 16
      %151 = vsyncadd [#allocation21], %s150
      %s153 = sshll.u32 [#allocation20], 4
      %s154 = int_to_ptr.vmem [resolvable:$true] %s153
      %156 = dma.hbm_to_vmem [thread:$0]  %s11, 16, %s154, [#allocation21]
    $region49: #{transformer_forward.7} parent=1 // pred_fallthru
      _
    // Predicated region
    $region50: #{transformer_forward.7} parent=1 // pred_check
      _
    $region51: #{transformer_forward.7} parent=1 // pred_check_branch
      %158 = sbr.rel (0) target = $region53
    $region52: #{transformer_forward.7} parent=1 // pred_region
      %159 = dma.done [#allocation3], 32
    $region53: #{transformer_forward.7} parent=1 // pred_fallthru
      _
    // Predicated region
    $region54: #{transformer_forward.7} parent=1 // pred_check
      _
    $region55: #{transformer_forward.7} parent=1 // pred_check_branch
      %161 = sbr.rel (0) target = $region57
    $region56: #{transformer_forward.7} parent=1 // pred_region
      %162 = dma.done [#allocation6], 512
    $region57: #{transformer_forward.7} parent=1 // pred_fallthru
      _
    // Predicated region
    $region58: #{transformer_forward.7} parent=1 // pred_check
      _
    $region59: #{transformer_forward.7} parent=1 // pred_check_branch
      %164 = sbr.rel (0) target = $region61
    $region60: #{transformer_forward.7} parent=1 // pred_region
      %165 = dma.done [#allocation6], 256
    $region61: #{transformer_forward.7} parent=1 // pred_fallthru
      _
    // Predicated region
    $region62: #{transformer_forward.7} parent=1 // pred_check
      _
    $region63: #{transformer_forward.7} parent=1 // pred_check_branch
      %167 = sbr.rel (0) target = $region65
    $region64: #{transformer_forward.7} parent=1 // pred_region
      %168 = dma.done [#allocation9], 256
    $region65: #{transformer_forward.7} parent=1 // pred_fallthru
      _
    // Predicated region
    $region66: #{transformer_forward.7} parent=1 // pred_check
      _
    $region67: #{transformer_forward.7} parent=1 // pred_check_branch
      %170 = sbr.rel (0) target = $region69
    $region68: #{transformer_forward.7} parent=1 // pred_region
      %171 = dma.done [#allocation9], 256
    $region69: #{transformer_forward.7} parent=1 // pred_fallthru
      _
    // Predicated region
    $region70: #{transformer_forward.7} parent=1 // pred_check
      _
    $region71: #{transformer_forward.7} parent=1 // pred_check_branch
      %173 = sbr.rel (0) target = $region73
    $region72: #{transformer_forward.7} parent=1 // pred_region
      %174 = dma.done [#allocation12], 16
    $region73: #{transformer_forward.7} parent=1 // pred_fallthru
      _
    // Predicated region
    $region74: #{transformer_forward.7} parent=1 // pred_check
      _
    $region75: #{transformer_forward.7} parent=1 // pred_check_branch
      %176 = sbr.rel (0) target = $region77
    $region76: #{transformer_forward.7} parent=1 // pred_region
      %177 = dma.done [#allocation12], 16
    $region77: #{transformer_forward.7} parent=1 // pred_fallthru
      _
    // Predicated region
    $region78: #{transformer_forward.7} parent=1 // pred_check
      _
    $region79: #{transformer_forward.7} parent=1 // pred_check_branch
      %179 = sbr.rel (0) target = $region81
    $region80: #{transformer_forward.7} parent=1 // pred_region
      %180 = dma.done [#allocation15], 16
    $region81: #{transformer_forward.7} parent=1 // pred_fallthru
      _
    // Predicated region
    $region82: #{transformer_forward.7} parent=1 // pred_check
      _
    $region83: #{transformer_forward.7} parent=1 // pred_check_branch
      %182 = sbr.rel (0) target = $region85
    $region84: #{transformer_forward.7} parent=1 // pred_region
      %183 = dma.done [#allocation15], 512
    $region85: #{transformer_forward.7} parent=1 // pred_fallthru
      _
    // Predicated region
    $region86: #{transformer_forward.7} parent=1 // pred_check
      _
    $region87: #{transformer_forward.7} parent=1 // pred_check_branch
      %185 = sbr.rel (0) target = $region89
    $region88: #{transformer_forward.7} parent=1 // pred_region
      %186 = dma.done [#allocation18], 16
    $region89: #{transformer_forward.7} parent=1 // pred_fallthru
      _
    // Predicated region
    $region90: #{transformer_forward.7} parent=1 // pred_check
      _
    $region91: #{transformer_forward.7} parent=1 // pred_check_branch
      %188 = sbr.rel (0) target = $region93
    $region92: #{transformer_forward.7} parent=1 // pred_region
      %189 = dma.done [#allocation18], 1024
    $region93: #{transformer_forward.7} parent=1 // pred_fallthru
      _
    // Predicated region
    $region94: #{transformer_forward.7} parent=1 // pred_check
      _
    $region95: #{transformer_forward.7} parent=1 // pred_check_branch
      %191 = sbr.rel (0) target = $region97
    $region96: #{transformer_forward.7} parent=1 // pred_region
      %192 = dma.done [#allocation21], 16
    $region97: #{transformer_forward.7} parent=1 // pred_fallthru
      _
    %v193 = vld [vmem:[#allocation2] sm:$0x3]
    %v194 = vlaneseq
    %v195 = vand.u32 %v194, 127
    %v196 = vlaneseq
    %v197 = vshrl.u32 %v196, 7
    %v198 = vsub.s32 0, %v197
    %v199 = vrot.slane %v193, %v198
    %201 = vbcast.lane.b32.xlu0 %v199, 256
    %v202 = vpop.permute.xlu0 %201
    %v203 = vlaneseq
    %v204 = vshrl.u32 %v203, 7
    %v205 = vsub.s32 1, %v204
    %v206 = vrot.slane %v193, %v205
    %208 = vbcast.lane.b32.xlu0 %v206, 256
    %v209 = vpop.permute.xlu0 %208
    %vm210 = vcmp.eq.s32.totalorder %v202, %v195
    %vm211 = vcmp.eq.s32.totalorder %v209, %v195
    %v212 = vsel %vm210, 1, 0
    %v213 = vsel %vm211, 1, 0
    %v214 = vcvt.s32.f32 %v212
    %v215 = vcvt.s32.f32 %v213
    %v216 = vld [vmem:[#allocation8] sm:$0x7f]
    %v217 = vld [vmem:[#allocation8 + $0x8] sm:$0x7f]
    %v218 = vld [vmem:[#allocation7] sm:$0x7f]
    %v219 = vld [vmem:[#allocation7 + $0x8] sm:$0x7f]
    %vm220 = vcmask 56320
    %v222 = vsel %vm220, %v214, 0
    %vm224 = vcmask 1046528
    %v226 = vsel %vm224, %v216, 0
    %228 = vmatprep.subr.mxu0 0.0
    %229 = vmatpush1.msra.mxu0 %v226
    %230 = vmatprep.subr.mxu0 0.0
    %231 = vmatpush1.msra.mxu0 0.0
    %232 = vmatprep.subr.mxu0 0.0
    %233 = vmatpush1.msra.mxu0 0.0
    %234 = vmatprep.subr.mxu0 0.0
    %235 = vmatpush1.msra.mxu0 0.0
    %236 = vmatprep.subr.mxu0 0.0
    %237 = vmatpush1.msra.mxu0 0.0
    %238 = vmatprep.subr.mxu0 0.0
    %239 = vmatpush1.msra.mxu0 0.0
    %240 = vmatprep.subr.mxu0 0.0
    %241 = vmatpush1.msra.mxu0 0.0
    %242 = vmatprep.subr.mxu0 0.0
    %243 = vmatpush1.msra.mxu0 0.0
    %244 = vmatprep.subr.mxu0 0.0
    %245 = vmatpush1.msra.mxu0 0.0
    %246 = vmatprep.subr.mxu0 0.0
    %247 = vmatpush1.msra.mxu0 0.0
    %248 = vmatprep.subr.mxu0 0.0
    %249 = vmatpush1.msra.mxu0 0.0
    %250 = vmatprep.subr.mxu0 0.0
    %251 = vmatpush1.msra.mxu0 0.0
    %252 = vmatprep.subr.mxu0 0.0
    %253 = vmatpush1.msra.mxu0 0.0
    %254 = vmatprep.subr.mxu0 0.0
    %255 = vmatpush1.msra.mxu0 0.0
    %256 = vmatprep.subr.mxu0 0.0
    %257 = vmatpush1.msra.mxu0 0.0
    %258 = vmatprep.subr.mxu0 0.0
    %259 = vmatpush1.msra.mxu0 0.0
    %260 = vmatprep.subr.mxu0 0.0
    %261 = vmatpush1.msra.mxu0 0.0
    %262 = vmatprep.subr.mxu0 0.0
    %263 = vmatpush1.msra.mxu0 0.0
    %264 = vmatprep.subr.mxu0 0.0
    %265 = vmatpush1.msra.mxu0 0.0
    %266 = vmatprep.subr.mxu0 0.0
    %267 = vmatpush1.msra.mxu0 0.0
    %268 = vmatprep.subr.mxu0 0.0
    %269 = vmatpush1.msra.mxu0 0.0
    %270 = vmatprep.subr.mxu0 0.0
    %271 = vmatpush1.msra.mxu0 0.0
    %272 = vmatprep.subr.mxu0 0.0
    %273 = vmatpush1.msra.mxu0 0.0
    %274 = vmatprep.subr.mxu0 0.0
    %275 = vmatpush1.msra.mxu0 0.0
    %276 = vmatprep.subr.mxu0 0.0
    %277 = vmatpush1.msra.mxu0 0.0
    %278 = vmatprep.subr.mxu0 0.0
    %279 = vmatpush1.msra.mxu0 0.0
    %280 = vmatprep.subr.mxu0 0.0
    %281 = vmatpush1.msra.mxu0 0.0
    %282 = vmatprep.subr.mxu0 0.0
    %283 = vmatpush1.msra.mxu0 0.0
    %284 = vmatprep.subr.mxu0 0.0
    %285 = vmatpush1.msra.mxu0 0.0
    %286 = vmatprep.subr.mxu0 0.0
    %287 = vmatpush1.msra.mxu0 0.0
    %288 = vmatprep.subr.mxu0 0.0
    %289 = vmatpush1.msra.mxu0 0.0
    %290 = vmatprep.subr.mxu0 0.0
    %291 = vmatpush1.msra.mxu0 0.0
    %292 = vmatprep.mubr.f32.mxu0 0.0
    %293 = vmatmul.mubr.f32.gmra.mrb[0].mxu0 %v222
    %v294 = vpop.f32.mrb[0].mxu0
    %v295 = vadd.f32 0.0, %v294
    %v296 = vpop.f32.mrb[0].mxu0
    %297 = vdwg.mxu0
    %v299 = vsel %vm220, %v215, 0
    %v302 = vsel %vm224, %v217, 0
    %304 = vmatprep.subr.mxu0 0.0
    %305 = vmatpush1.msra.mxu0 %v302
    %306 = vmatprep.subr.mxu0 0.0
    %307 = vmatpush1.msra.mxu0 0.0
    %308 = vmatprep.subr.mxu0 0.0
    %309 = vmatpush1.msra.mxu0 0.0
    %310 = vmatprep.subr.mxu0 0.0
    %311 = vmatpush1.msra.mxu0 0.0
    %312 = vmatprep.subr.mxu0 0.0
    %313 = vmatpush1.msra.mxu0 0.0
    %314 = vmatprep.subr.mxu0 0.0
    %315 = vmatpush1.msra.mxu0 0.0
    %316 = vmatprep.subr.mxu0 0.0
    %317 = vmatpush1.msra.mxu0 0.0
    %318 = vmatprep.subr.mxu0 0.0
    %319 = vmatpush1.msra.mxu0 0.0
    %320 = vmatprep.subr.mxu0 0.0
    %321 = vmatpush1.msra.mxu0 0.0
    %322 = vmatprep.subr.mxu0 0.0
    %323 = vmatpush1.msra.mxu0 0.0
    %324 = vmatprep.subr.mxu0 0.0
    %325 = vmatpush1.msra.mxu0 0.0
    %326 = vmatprep.subr.mxu0 0.0
    %327 = vmatpush1.msra.mxu0 0.0
    %328 = vmatprep.subr.mxu0 0.0
    %329 = vmatpush1.msra.mxu0 0.0
    %330 = vmatprep.subr.mxu0 0.0
    %331 = vmatpush1.msra.mxu0 0.0
    %332 = vmatprep.subr.mxu0 0.0
    %333 = vmatpush1.msra.mxu0 0.0
    %334 = vmatprep.subr.mxu0 0.0
    %335 = vmatpush1.msra.mxu0 0.0
    %336 = vmatprep.subr.mxu0 0.0
    %337 = vmatpush1.msra.mxu0 0.0
    %338 = vmatprep.subr.mxu0 0.0
    %339 = vmatpush1.msra.mxu0 0.0
    %340 = vmatprep.subr.mxu0 0.0
    %341 = vmatpush1.msra.mxu0 0.0
    %342 = vmatprep.subr.mxu0 0.0
    %343 = vmatpush1.msra.mxu0 0.0
    %344 = vmatprep.subr.mxu0 0.0
    %345 = vmatpush1.msra.mxu0 0.0
    %346 = vmatprep.subr.mxu0 0.0
    %347 = vmatpush1.msra.mxu0 0.0
    %348 = vmatprep.subr.mxu0 0.0
    %349 = vmatpush1.msra.mxu0 0.0
    %350 = vmatprep.subr.mxu0 0.0
    %351 = vmatpush1.msra.mxu0 0.0
    %352 = vmatprep.subr.mxu0 0.0
    %353 = vmatpush1.msra.mxu0 0.0
    %354 = vmatprep.subr.mxu0 0.0
    %355 = vmatpush1.msra.mxu0 0.0
    %356 = vmatprep.subr.mxu0 0.0
    %357 = vmatpush1.msra.mxu0 0.0
    %358 = vmatprep.subr.mxu0 0.0
    %359 = vmatpush1.msra.mxu0 0.0
    %360 = vmatprep.subr.mxu0 0.0
    %361 = vmatpush1.msra.mxu0 0.0
    %362 = vmatprep.subr.mxu0 0.0
    %363 = vmatpush1.msra.mxu0 0.0
    %364 = vmatprep.subr.mxu0 0.0
    %365 = vmatpush1.msra.mxu0 0.0
    %366 = vmatprep.subr.mxu0 0.0
    %367 = vmatpush1.msra.mxu0 0.0
    %368 = vmatprep.mubr.f32.mxu0 0.0
    %369 = vmatmul.mubr.f32.gmra.mrb[0].mxu0 %v299
    %v370 = vpop.f32.mrb[0].mxu0
    %v371 = vadd.f32 0.0, %v370
    %v372 = vpop.f32.mrb[0].mxu0
    %373 = vdwg.mxu0
    %v376 = vcombine.high %v295, %v295
    %v378 = vunpack.c.l.s4 1966171168
    %v379 = vunpack.c.0.s8 %v378
    %v380 = vlaneseq
    %v381 = vshrl.u32 %v380, 7
    %v382 = vsub.s32 %v379, %v381
    %v383 = vrot.slane %v295, %v382
    %v385 = vunpack.c.l.s4 1966171168
    %v386 = vunpack.c.0.s8 %v385
    %v387 = vlaneseq
    %v388 = vshrl.u32 %v387, 7
    %v389 = vsub.s32 %v386, %v388
    %v390 = vrot.slane %v376, %v389
    %v391 = vcombine.high %v383, %v383
    %v393 = vunpack.c.l.s4 1966171168
    %v394 = vunpack.c.0.s8 %v393
    %v395 = vlaneseq
    %v396 = vshrl.u32 %v395, 7
    %v397 = vsub.s32 %v394, %v396
    %v398 = vrot.slane %v383, %v397
    %v400 = vunpack.c.l.s4 1966171168
    %v401 = vunpack.c.0.s8 %v400
    %v402 = vlaneseq
    %v403 = vshrl.u32 %v402, 7
    %v404 = vsub.s32 %v401, %v403
    %v405 = vrot.slane %v390, %v404
    %v407 = vunpack.c.l.s4 1966171168
    %v408 = vunpack.c.0.s8 %v407
    %v409 = vlaneseq
    %v410 = vshrl.u32 %v409, 7
    %v411 = vsub.s32 %v408, %v410
    %v412 = vrot.slane %v391, %v411
    %v413 = vcombine.high %v398, %v398
    %v414 = vcombine.high %v412, %v412
    %v415 = vcombine.high %v371, %v371
    %v417 = vunpack.c.l.s4 1966171168
    %v418 = vunpack.c.0.s8 %v417
    %v419 = vlaneseq
    %v420 = vshrl.u32 %v419, 7
    %v421 = vsub.s32 %v418, %v420
    %v422 = vrot.slane %v371, %v421
    %v424 = vunpack.c.l.s4 1966171168
    %v425 = vunpack.c.0.s8 %v424
    %v426 = vlaneseq
    %v427 = vshrl.u32 %v426, 7
    %v428 = vsub.s32 %v425, %v427
    %v429 = vrot.slane %v415, %v428
    %v430 = vcombine.high %v422, %v422
    %v432 = vunpack.c.l.s4 1966171168
    %v433 = vunpack.c.0.s8 %v432
    %v434 = vlaneseq
    %v435 = vshrl.u32 %v434, 7
    %v436 = vsub.s32 %v433, %v435
    %v437 = vrot.slane %v422, %v436
    %v439 = vunpack.c.l.s4 1966171168
    %v440 = vunpack.c.0.s8 %v439
    %v441 = vlaneseq
    %v442 = vshrl.u32 %v441, 7
    %v443 = vsub.s32 %v440, %v442
    %v444 = vrot.slane %v429, %v443
    %v446 = vunpack.c.l.s4 1966171168
    %v447 = vunpack.c.0.s8 %v446
    %v448 = vlaneseq
    %v449 = vshrl.u32 %v448, 7
    %v450 = vsub.s32 %v447, %v449
    %v451 = vrot.slane %v430, %v450
    %v452 = vcombine.high %v437, %v437
    %v453 = vcombine.high %v451, %v451
    %v464 = vld [vmem:[#allocation5] sm:$0x7f]
    %v465 = vld [vmem:[#allocation5 + $0x8] sm:$0x7f]
    %v467 = vsel %vm224, %v464, 0
    %469 = vmatprep.subr.mxu0 0.0
    %470 = vmatpush1.msra.mxu0 %v467
    %471 = vmatprep.subr.mxu0 0.0
    %472 = vmatpush1.msra.mxu0 0.0
    %473 = vmatprep.subr.mxu0 0.0
    %474 = vmatpush1.msra.mxu0 0.0
    %475 = vmatprep.subr.mxu0 0.0
    %476 = vmatpush1.msra.mxu0 0.0
    %477 = vmatprep.subr.mxu0 0.0
    %478 = vmatpush1.msra.mxu0 0.0
    %479 = vmatprep.subr.mxu0 0.0
    %480 = vmatpush1.msra.mxu0 0.0
    %481 = vmatprep.subr.mxu0 0.0
    %482 = vmatpush1.msra.mxu0 0.0
    %483 = vmatprep.subr.mxu0 0.0
    %484 = vmatpush1.msra.mxu0 0.0
    %485 = vmatprep.subr.mxu0 0.0
    %486 = vmatpush1.msra.mxu0 0.0
    %487 = vmatprep.subr.mxu0 0.0
    %488 = vmatpush1.msra.mxu0 0.0
    %489 = vmatprep.subr.mxu0 0.0
    %490 = vmatpush1.msra.mxu0 0.0
    %491 = vmatprep.subr.mxu0 0.0
    %492 = vmatpush1.msra.mxu0 0.0
    %493 = vmatprep.subr.mxu0 0.0
    %494 = vmatpush1.msra.mxu0 0.0
    %495 = vmatprep.subr.mxu0 0.0
    %496 = vmatpush1.msra.mxu0 0.0
    %497 = vmatprep.subr.mxu0 0.0
    %498 = vmatpush1.msra.mxu0 0.0
    %499 = vmatprep.subr.mxu0 0.0
    %500 = vmatpush1.msra.mxu0 0.0
    %501 = vmatprep.subr.mxu0 0.0
    %502 = vmatpush1.msra.mxu0 0.0
    %503 = vmatprep.subr.mxu0 0.0
    %504 = vmatpush1.msra.mxu0 0.0
    %505 = vmatprep.subr.mxu0 0.0
    %506 = vmatpush1.msra.mxu0 0.0
    %507 = vmatprep.subr.mxu0 0.0
    %508 = vmatpush1.msra.mxu0 0.0
    %509 = vmatprep.subr.mxu0 0.0
    %510 = vmatpush1.msra.mxu0 0.0
    %511 = vmatprep.subr.mxu0 0.0
    %512 = vmatpush1.msra.mxu0 0.0
    %513 = vmatprep.subr.mxu0 0.0
    %514 = vmatpush1.msra.mxu0 0.0
    %515 = vmatprep.subr.mxu0 0.0
    %516 = vmatpush1.msra.mxu0 0.0
    %517 = vmatprep.subr.mxu0 0.0
    %518 = vmatpush1.msra.mxu0 0.0
    %519 = vmatprep.subr.mxu0 0.0
    %520 = vmatpush1.msra.mxu0 0.0
    %521 = vmatprep.subr.mxu0 0.0
    %522 = vmatpush1.msra.mxu0 0.0
    %523 = vmatprep.subr.mxu0 0.0
    %524 = vmatpush1.msra.mxu0 0.0
    %525 = vmatprep.subr.mxu0 0.0
    %526 = vmatpush1.msra.mxu0 0.0
    %527 = vmatprep.subr.mxu0 0.0
    %528 = vmatpush1.msra.mxu0 0.0
    %529 = vmatprep.subr.mxu0 0.0
    %530 = vmatpush1.msra.mxu0 0.0
    %531 = vmatprep.subr.mxu0 0.0
    %532 = vmatpush1.msra.mxu0 0.0
    %533 = vmatprep.mubr.f32.mxu0 0.0
    %534 = vmatmul.mubr.f32.gmra.mrb[0].mxu0 %v222
    %v535 = vpop.f32.mrb[0].mxu0
    %v536 = vadd.f32 0.0, %v535
    %v537 = vpop.f32.mrb[0].mxu0
    %538 = vdwg.mxu0
    %v540 = vsel %vm224, %v465, 0
    %542 = vmatprep.subr.mxu0 0.0
    %543 = vmatpush1.msra.mxu0 %v540
    %544 = vmatprep.subr.mxu0 0.0
    %545 = vmatpush1.msra.mxu0 0.0
    %546 = vmatprep.subr.mxu0 0.0
    %547 = vmatpush1.msra.mxu0 0.0
    %548 = vmatprep.subr.mxu0 0.0
    %549 = vmatpush1.msra.mxu0 0.0
    %550 = vmatprep.subr.mxu0 0.0
    %551 = vmatpush1.msra.mxu0 0.0
    %552 = vmatprep.subr.mxu0 0.0
    %553 = vmatpush1.msra.mxu0 0.0
    %554 = vmatprep.subr.mxu0 0.0
    %555 = vmatpush1.msra.mxu0 0.0
    %556 = vmatprep.subr.mxu0 0.0
    %557 = vmatpush1.msra.mxu0 0.0
    %558 = vmatprep.subr.mxu0 0.0
    %559 = vmatpush1.msra.mxu0 0.0
    %560 = vmatprep.subr.mxu0 0.0
    %561 = vmatpush1.msra.mxu0 0.0
    %562 = vmatprep.subr.mxu0 0.0
    %563 = vmatpush1.msra.mxu0 0.0
    %564 = vmatprep.subr.mxu0 0.0
    %565 = vmatpush1.msra.mxu0 0.0
    %566 = vmatprep.subr.mxu0 0.0
    %567 = vmatpush1.msra.mxu0 0.0
    %568 = vmatprep.subr.mxu0 0.0
    %569 = vmatpush1.msra.mxu0 0.0
    %570 = vmatprep.subr.mxu0 0.0
    %571 = vmatpush1.msra.mxu0 0.0
    %572 = vmatprep.subr.mxu0 0.0
    %573 = vmatpush1.msra.mxu0 0.0
    %574 = vmatprep.subr.mxu0 0.0
    %575 = vmatpush1.msra.mxu0 0.0
    %576 = vmatprep.subr.mxu0 0.0
    %577 = vmatpush1.msra.mxu0 0.0
    %578 = vmatprep.subr.mxu0 0.0
    %579 = vmatpush1.msra.mxu0 0.0
    %580 = vmatprep.subr.mxu0 0.0
    %581 = vmatpush1.msra.mxu0 0.0
    %582 = vmatprep.subr.mxu0 0.0
    %583 = vmatpush1.msra.mxu0 0.0
    %584 = vmatprep.subr.mxu0 0.0
    %585 = vmatpush1.msra.mxu0 0.0
    %586 = vmatprep.subr.mxu0 0.0
    %587 = vmatpush1.msra.mxu0 0.0
    %588 = vmatprep.subr.mxu0 0.0
    %589 = vmatpush1.msra.mxu0 0.0
    %590 = vmatprep.subr.mxu0 0.0
    %591 = vmatpush1.msra.mxu0 0.0
    %592 = vmatprep.subr.mxu0 0.0
    %593 = vmatpush1.msra.mxu0 0.0
    %594 = vmatprep.subr.mxu0 0.0
    %595 = vmatpush1.msra.mxu0 0.0
    %596 = vmatprep.subr.mxu0 0.0
    %597 = vmatpush1.msra.mxu0 0.0
    %598 = vmatprep.subr.mxu0 0.0
    %599 = vmatpush1.msra.mxu0 0.0
    %600 = vmatprep.subr.mxu0 0.0
    %601 = vmatpush1.msra.mxu0 0.0
    %602 = vmatprep.subr.mxu0 0.0
    %603 = vmatpush1.msra.mxu0 0.0
    %604 = vmatprep.subr.mxu0 0.0
    %605 = vmatpush1.msra.mxu0 0.0
    %606 = vmatprep.mubr.f32.mxu0 0.0
    %607 = vmatmul.mubr.f32.gmra.mrb[0].mxu0 %v299
    %v608 = vpop.f32.mrb[0].mxu0
    %v609 = vadd.f32 0.0, %v608
    %v610 = vpop.f32.mrb[0].mxu0
    %611 = vdwg.mxu0
    %v613 = vsel %vm220, %v536, 0
    %v616 = vsel %vm224, %v218, 0
    %618 = vmatprep.subr.mxu0 0.0
    %619 = vmatpush1.msra.mxu0 %v616
    %620 = vmatprep.subr.mxu0 0.0
    %621 = vmatpush1.msra.mxu0 0.0
    %622 = vmatprep.subr.mxu0 0.0
    %623 = vmatpush1.msra.mxu0 0.0
    %624 = vmatprep.subr.mxu0 0.0
    %625 = vmatpush1.msra.mxu0 0.0
    %626 = vmatprep.subr.mxu0 0.0
    %627 = vmatpush1.msra.mxu0 0.0
    %628 = vmatprep.subr.mxu0 0.0
    %629 = vmatpush1.msra.mxu0 0.0
    %630 = vmatprep.subr.mxu0 0.0
    %631 = vmatpush1.msra.mxu0 0.0
    %632 = vmatprep.subr.mxu0 0.0
    %633 = vmatpush1.msra.mxu0 0.0
    %634 = vmatprep.subr.mxu0 0.0
    %635 = vmatpush1.msra.mxu0 0.0
    %636 = vmatprep.subr.mxu0 0.0
    %637 = vmatpush1.msra.mxu0 0.0
    %638 = vmatprep.subr.mxu0 0.0
    %639 = vmatpush1.msra.mxu0 0.0
    %640 = vmatprep.subr.mxu0 0.0
    %641 = vmatpush1.msra.mxu0 0.0
    %642 = vmatprep.subr.mxu0 0.0
    %643 = vmatpush1.msra.mxu0 0.0
    %644 = vmatprep.subr.mxu0 0.0
    %645 = vmatpush1.msra.mxu0 0.0
    %646 = vmatprep.subr.mxu0 0.0
    %647 = vmatpush1.msra.mxu0 0.0
    %648 = vmatprep.subr.mxu0 0.0
    %649 = vmatpush1.msra.mxu0 0.0
    %650 = vmatprep.subr.mxu0 0.0
    %651 = vmatpush1.msra.mxu0 0.0
    %652 = vmatprep.subr.mxu0 0.0
    %653 = vmatpush1.msra.mxu0 0.0
    %654 = vmatprep.subr.mxu0 0.0
    %655 = vmatpush1.msra.mxu0 0.0
    %656 = vmatprep.subr.mxu0 0.0
    %657 = vmatpush1.msra.mxu0 0.0
    %658 = vmatprep.subr.mxu0 0.0
    %659 = vmatpush1.msra.mxu0 0.0
    %660 = vmatprep.subr.mxu0 0.0
    %661 = vmatpush1.msra.mxu0 0.0
    %662 = vmatprep.subr.mxu0 0.0
    %663 = vmatpush1.msra.mxu0 0.0
    %664 = vmatprep.subr.mxu0 0.0
    %665 = vmatpush1.msra.mxu0 0.0
    %666 = vmatprep.subr.mxu0 0.0
    %667 = vmatpush1.msra.mxu0 0.0
    %668 = vmatprep.subr.mxu0 0.0
    %669 = vmatpush1.msra.mxu0 0.0
    %670 = vmatprep.subr.mxu0 0.0
    %671 = vmatpush1.msra.mxu0 0.0
    %672 = vmatprep.subr.mxu0 0.0
    %673 = vmatpush1.msra.mxu0 0.0
    %674 = vmatprep.subr.mxu0 0.0
    %675 = vmatpush1.msra.mxu0 0.0
    %676 = vmatprep.subr.mxu0 0.0
    %677 = vmatpush1.msra.mxu0 0.0
    %678 = vmatprep.subr.mxu0 0.0
    %679 = vmatpush1.msra.mxu0 0.0
    %680 = vmatprep.subr.mxu0 0.0
    %681 = vmatpush1.msra.mxu0 0.0
    %682 = vmatprep.mubr.f32.mxu0 0.0
    %683 = vmatmul.mubr.f32.gmra.mrb[0].mxu0 %v613
    %v684 = vpop.f32.mrb[0].mxu0
    %v685 = vadd.f32 0.0, %v684
    %v686 = vpop.f32.mrb[0].mxu0
    %687 = vdwg.mxu0
    %v689 = vsel %vm220, %v609, 0
    %v692 = vsel %vm224, %v219, 0
    %694 = vmatprep.subr.mxu0 0.0
    %695 = vmatpush1.msra.mxu0 %v692
    %696 = vmatprep.subr.mxu0 0.0
    %697 = vmatpush1.msra.mxu0 0.0
    %698 = vmatprep.subr.mxu0 0.0
    %699 = vmatpush1.msra.mxu0 0.0
    %700 = vmatprep.subr.mxu0 0.0
    %701 = vmatpush1.msra.mxu0 0.0
    %702 = vmatprep.subr.mxu0 0.0
    %703 = vmatpush1.msra.mxu0 0.0
    %704 = vmatprep.subr.mxu0 0.0
    %705 = vmatpush1.msra.mxu0 0.0
    %706 = vmatprep.subr.mxu0 0.0
    %707 = vmatpush1.msra.mxu0 0.0
    %708 = vmatprep.subr.mxu0 0.0
    %709 = vmatpush1.msra.mxu0 0.0
    %710 = vmatprep.subr.mxu0 0.0
    %711 = vmatpush1.msra.mxu0 0.0
    %712 = vmatprep.subr.mxu0 0.0
    %713 = vmatpush1.msra.mxu0 0.0
    %714 = vmatprep.subr.mxu0 0.0
    %715 = vmatpush1.msra.mxu0 0.0
    %716 = vmatprep.subr.mxu0 0.0
    %717 = vmatpush1.msra.mxu0 0.0
    %718 = vmatprep.subr.mxu0 0.0
    %719 = vmatpush1.msra.mxu0 0.0
    %720 = vmatprep.subr.mxu0 0.0
    %721 = vmatpush1.msra.mxu0 0.0
    %722 = vmatprep.subr.mxu0 0.0
    %723 = vmatpush1.msra.mxu0 0.0
    %724 = vmatprep.subr.mxu0 0.0
    %725 = vmatpush1.msra.mxu0 0.0
    %726 = vmatprep.subr.mxu0 0.0
    %727 = vmatpush1.msra.mxu0 0.0
    %728 = vmatprep.subr.mxu0 0.0
    %729 = vmatpush1.msra.mxu0 0.0
    %730 = vmatprep.subr.mxu0 0.0
    %731 = vmatpush1.msra.mxu0 0.0
    %732 = vmatprep.subr.mxu0 0.0
    %733 = vmatpush1.msra.mxu0 0.0
    %734 = vmatprep.subr.mxu0 0.0
    %735 = vmatpush1.msra.mxu0 0.0
    %736 = vmatprep.subr.mxu0 0.0
    %737 = vmatpush1.msra.mxu0 0.0
    %738 = vmatprep.subr.mxu0 0.0
    %739 = vmatpush1.msra.mxu0 0.0
    %740 = vmatprep.subr.mxu0 0.0
    %741 = vmatpush1.msra.mxu0 0.0
    %742 = vmatprep.subr.mxu0 0.0
    %743 = vmatpush1.msra.mxu0 0.0
    %744 = vmatprep.subr.mxu0 0.0
    %745 = vmatpush1.msra.mxu0 0.0
    %746 = vmatprep.subr.mxu0 0.0
    %747 = vmatpush1.msra.mxu0 0.0
    %748 = vmatprep.subr.mxu0 0.0
    %749 = vmatpush1.msra.mxu0 0.0
    %750 = vmatprep.subr.mxu0 0.0
    %751 = vmatpush1.msra.mxu0 0.0
    %752 = vmatprep.subr.mxu0 0.0
    %753 = vmatpush1.msra.mxu0 0.0
    %754 = vmatprep.subr.mxu0 0.0
    %755 = vmatpush1.msra.mxu0 0.0
    %756 = vmatprep.subr.mxu0 0.0
    %757 = vmatpush1.msra.mxu0 0.0
    %758 = vmatprep.mubr.f32.mxu0 0.0
    %759 = vmatmul.mubr.f32.gmra.mrb[0].mxu0 %v689
    %v760 = vpop.f32.mrb[0].mxu0
    %v761 = vadd.f32 0.0, %v760
    %v762 = vpop.f32.mrb[0].mxu0
    %763 = vdwg.mxu0
    %v766 = vcombine.high %v685, %v685
    %v768 = vunpack.c.l.s4 1966171168
    %v769 = vunpack.c.0.s8 %v768
    %v770 = vlaneseq
    %v771 = vshrl.u32 %v770, 7
    %v772 = vsub.s32 %v769, %v771
    %v773 = vrot.slane %v685, %v772
    %v775 = vunpack.c.l.s4 1966171168
    %v776 = vunpack.c.0.s8 %v775
    %v777 = vlaneseq
    %v778 = vshrl.u32 %v777, 7
    %v779 = vsub.s32 %v776, %v778
    %v780 = vrot.slane %v766, %v779
    %v781 = vcombine.high %v773, %v773
    %v783 = vunpack.c.l.s4 1966171168
    %v784 = vunpack.c.0.s8 %v783
    %v785 = vlaneseq
    %v786 = vshrl.u32 %v785, 7
    %v787 = vsub.s32 %v784, %v786
    %v788 = vrot.slane %v773, %v787
    %v790 = vunpack.c.l.s4 1966171168
    %v791 = vunpack.c.0.s8 %v790
    %v792 = vlaneseq
    %v793 = vshrl.u32 %v792, 7
    %v794 = vsub.s32 %v791, %v793
    %v795 = vrot.slane %v780, %v794
    %v797 = vunpack.c.l.s4 1966171168
    %v798 = vunpack.c.0.s8 %v797
    %v799 = vlaneseq
    %v800 = vshrl.u32 %v799, 7
    %v801 = vsub.s32 %v798, %v800
    %v802 = vrot.slane %v781, %v801
    %v803 = vcombine.high %v788, %v788
    %v804 = vcombine.high %v802, %v802
    %v805 = vcombine.high %v761, %v761
    %v807 = vunpack.c.l.s4 1966171168
    %v808 = vunpack.c.0.s8 %v807
    %v809 = vlaneseq
    %v810 = vshrl.u32 %v809, 7
    %v811 = vsub.s32 %v808, %v810
    %v812 = vrot.slane %v761, %v811
    %v814 = vunpack.c.l.s4 1966171168
    %v815 = vunpack.c.0.s8 %v814
    %v816 = vlaneseq
    %v817 = vshrl.u32 %v816, 7
    %v818 = vsub.s32 %v815, %v817
    %v819 = vrot.slane %v805, %v818
    %v820 = vcombine.high %v812, %v812
    %v822 = vunpack.c.l.s4 1966171168
    %v823 = vunpack.c.0.s8 %v822
    %v824 = vlaneseq
    %v825 = vshrl.u32 %v824, 7
    %v826 = vsub.s32 %v823, %v825
    %v827 = vrot.slane %v812, %v826
    %v829 = vunpack.c.l.s4 1966171168
    %v830 = vunpack.c.0.s8 %v829
    %v831 = vlaneseq
    %v832 = vshrl.u32 %v831, 7
    %v833 = vsub.s32 %v830, %v832
    %v834 = vrot.slane %v819, %v833
    %v836 = vunpack.c.l.s4 1966171168
    %v837 = vunpack.c.0.s8 %v836
    %v838 = vlaneseq
    %v839 = vshrl.u32 %v838, 7
    %v840 = vsub.s32 %v837, %v839
    %v841 = vrot.slane %v820, %v840
    %v842 = vcombine.high %v827, %v827
    %v843 = vcombine.high %v841, %v841
    %v844 = vld [vmem:[#allocation10] sm:$0xff]
    %s845 = scalar_lea.vmem [#allocation5], 16
    %v846 = vld [vmem:[%s845] sm:$0x7f]
    %v847 = vld [vmem:[%s845 + $0x8] sm:$0x7f]
    %v849 = vsel %vm224, %v846, 0
    %851 = vmatprep.subr.mxu0 0.0
    %852 = vmatpush1.msra.mxu0 %v849
    %853 = vmatprep.subr.mxu0 0.0
    %854 = vmatpush1.msra.mxu0 0.0
    %855 = vmatprep.subr.mxu0 0.0
    %856 = vmatpush1.msra.mxu0 0.0
    %857 = vmatprep.subr.mxu0 0.0
    %858 = vmatpush1.msra.mxu0 0.0
    %859 = vmatprep.subr.mxu0 0.0
    %860 = vmatpush1.msra.mxu0 0.0
    %861 = vmatprep.subr.mxu0 0.0
    %862 = vmatpush1.msra.mxu0 0.0
    %863 = vmatprep.subr.mxu0 0.0
    %864 = vmatpush1.msra.mxu0 0.0
    %865 = vmatprep.subr.mxu0 0.0
    %866 = vmatpush1.msra.mxu0 0.0
    %867 = vmatprep.subr.mxu0 0.0
    %868 = vmatpush1.msra.mxu0 0.0
    %869 = vmatprep.subr.mxu0 0.0
    %870 = vmatpush1.msra.mxu0 0.0
    %871 = vmatprep.subr.mxu0 0.0
    %872 = vmatpush1.msra.mxu0 0.0
    %873 = vmatprep.subr.mxu0 0.0
    %874 = vmatpush1.msra.mxu0 0.0
    %875 = vmatprep.subr.mxu0 0.0
    %876 = vmatpush1.msra.mxu0 0.0
    %877 = vmatprep.subr.mxu0 0.0
    %878 = vmatpush1.msra.mxu0 0.0
    %879 = vmatprep.subr.mxu0 0.0
    %880 = vmatpush1.msra.mxu0 0.0
    %881 = vmatprep.subr.mxu0 0.0
    %882 = vmatpush1.msra.mxu0 0.0
    %883 = vmatprep.subr.mxu0 0.0
    %884 = vmatpush1.msra.mxu0 0.0
    %885 = vmatprep.subr.mxu0 0.0
    %886 = vmatpush1.msra.mxu0 0.0
    %887 = vmatprep.subr.mxu0 0.0
    %888 = vmatpush1.msra.mxu0 0.0
    %889 = vmatprep.subr.mxu0 0.0
    %890 = vmatpush1.msra.mxu0 0.0
    %891 = vmatprep.subr.mxu0 0.0
    %892 = vmatpush1.msra.mxu0 0.0
    %893 = vmatprep.subr.mxu0 0.0
    %894 = vmatpush1.msra.mxu0 0.0
    %895 = vmatprep.subr.mxu0 0.0
    %896 = vmatpush1.msra.mxu0 0.0
    %897 = vmatprep.subr.mxu0 0.0
    %898 = vmatpush1.msra.mxu0 0.0
    %899 = vmatprep.subr.mxu0 0.0
    %900 = vmatpush1.msra.mxu0 0.0
    %901 = vmatprep.subr.mxu0 0.0
    %902 = vmatpush1.msra.mxu0 0.0
    %903 = vmatprep.subr.mxu0 0.0
    %904 = vmatpush1.msra.mxu0 0.0
    %905 = vmatprep.subr.mxu0 0.0
    %906 = vmatpush1.msra.mxu0 0.0
    %907 = vmatprep.subr.mxu0 0.0
    %908 = vmatpush1.msra.mxu0 0.0
    %909 = vmatprep.subr.mxu0 0.0
    %910 = vmatpush1.msra.mxu0 0.0
    %911 = vmatprep.subr.mxu0 0.0
    %912 = vmatpush1.msra.mxu0 0.0
    %913 = vmatprep.subr.mxu0 0.0
    %914 = vmatpush1.msra.mxu0 0.0
    %915 = vmatprep.mubr.f32.mxu0 0.0
    %916 = vmatmul.mubr.f32.gmra.mrb[0].mxu0 %v222
    %v917 = vpop.f32.mrb[0].mxu0
    %v918 = vadd.f32 0.0, %v917
    %v919 = vpop.f32.mrb[0].mxu0
    %920 = vdwg.mxu0
    %v922 = vsel %vm224, %v847, 0
    %924 = vmatprep.subr.mxu0 0.0
    %925 = vmatpush1.msra.mxu0 %v922
    %926 = vmatprep.subr.mxu0 0.0
    %927 = vmatpush1.msra.mxu0 0.0
    %928 = vmatprep.subr.mxu0 0.0
    %929 = vmatpush1.msra.mxu0 0.0
    %930 = vmatprep.subr.mxu0 0.0
    %931 = vmatpush1.msra.mxu0 0.0
    %932 = vmatprep.subr.mxu0 0.0
    %933 = vmatpush1.msra.mxu0 0.0
    %934 = vmatprep.subr.mxu0 0.0
    %935 = vmatpush1.msra.mxu0 0.0
    %936 = vmatprep.subr.mxu0 0.0
    %937 = vmatpush1.msra.mxu0 0.0
    %938 = vmatprep.subr.mxu0 0.0
    %939 = vmatpush1.msra.mxu0 0.0
    %940 = vmatprep.subr.mxu0 0.0
    %941 = vmatpush1.msra.mxu0 0.0
    %942 = vmatprep.subr.mxu0 0.0
    %943 = vmatpush1.msra.mxu0 0.0
    %944 = vmatprep.subr.mxu0 0.0
    %945 = vmatpush1.msra.mxu0 0.0
    %946 = vmatprep.subr.mxu0 0.0
    %947 = vmatpush1.msra.mxu0 0.0
    %948 = vmatprep.subr.mxu0 0.0
    %949 = vmatpush1.msra.mxu0 0.0
    %950 = vmatprep.subr.mxu0 0.0
    %951 = vmatpush1.msra.mxu0 0.0
    %952 = vmatprep.subr.mxu0 0.0
    %953 = vmatpush1.msra.mxu0 0.0
    %954 = vmatprep.subr.mxu0 0.0
    %955 = vmatpush1.msra.mxu0 0.0
    %956 = vmatprep.subr.mxu0 0.0
    %957 = vmatpush1.msra.mxu0 0.0
    %958 = vmatprep.subr.mxu0 0.0
    %959 = vmatpush1.msra.mxu0 0.0
    %960 = vmatprep.subr.mxu0 0.0
    %961 = vmatpush1.msra.mxu0 0.0
    %962 = vmatprep.subr.mxu0 0.0
    %963 = vmatpush1.msra.mxu0 0.0
    %964 = vmatprep.subr.mxu0 0.0
    %965 = vmatpush1.msra.mxu0 0.0
    %966 = vmatprep.subr.mxu0 0.0
    %967 = vmatpush1.msra.mxu0 0.0
    %968 = vmatprep.subr.mxu0 0.0
    %969 = vmatpush1.msra.mxu0 0.0
    %970 = vmatprep.subr.mxu0 0.0
    %971 = vmatpush1.msra.mxu0 0.0
    %972 = vmatprep.subr.mxu0 0.0
    %973 = vmatpush1.msra.mxu0 0.0
    %974 = vmatprep.subr.mxu0 0.0
    %975 = vmatpush1.msra.mxu0 0.0
    %976 = vmatprep.subr.mxu0 0.0
    %977 = vmatpush1.msra.mxu0 0.0
    %978 = vmatprep.subr.mxu0 0.0
    %979 = vmatpush1.msra.mxu0 0.0
    %980 = vmatprep.subr.mxu0 0.0
    %981 = vmatpush1.msra.mxu0 0.0
    %982 = vmatprep.subr.mxu0 0.0
    %983 = vmatpush1.msra.mxu0 0.0
    %984 = vmatprep.subr.mxu0 0.0
    %985 = vmatpush1.msra.mxu0 0.0
    %986 = vmatprep.subr.mxu0 0.0
    %987 = vmatpush1.msra.mxu0 0.0
    %988 = vmatprep.mubr.f32.mxu0 0.0
    %989 = vmatmul.mubr.f32.gmra.mrb[0].mxu0 %v299
    %v990 = vpop.f32.mrb[0].mxu0
    %v991 = vadd.f32 0.0, %v990
    %v992 = vpop.f32.mrb[0].mxu0
    %993 = vdwg.mxu0
    %994 = vrot.lane.b32.xlu0 %v218, 120
    %v995 = vpop.permute.xlu0 %994
    %v997 = vsel %vm220, %v918, 0
    %v999 = vsel %vm224, %v995, 0
    %1001 = vmatprep.subr.mxu0 0.0
    %1002 = vmatpush1.msra.mxu0 %v999
    %1003 = vmatprep.subr.mxu0 0.0
    %1004 = vmatpush1.msra.mxu0 0.0
    %1005 = vmatprep.subr.mxu0 0.0
    %1006 = vmatpush1.msra.mxu0 0.0
    %1007 = vmatprep.subr.mxu0 0.0
    %1008 = vmatpush1.msra.mxu0 0.0
    %1009 = vmatprep.subr.mxu0 0.0
    %1010 = vmatpush1.msra.mxu0 0.0
    %1011 = vmatprep.subr.mxu0 0.0
    %1012 = vmatpush1.msra.mxu0 0.0
    %1013 = vmatprep.subr.mxu0 0.0
    %1014 = vmatpush1.msra.mxu0 0.0
    %1015 = vmatprep.subr.mxu0 0.0
    %1016 = vmatpush1.msra.mxu0 0.0
    %1017 = vmatprep.subr.mxu0 0.0
    %1018 = vmatpush1.msra.mxu0 0.0
    %1019 = vmatprep.subr.mxu0 0.0
    %1020 = vmatpush1.msra.mxu0 0.0
    %1021 = vmatprep.subr.mxu0 0.0
    %1022 = vmatpush1.msra.mxu0 0.0
    %1023 = vmatprep.subr.mxu0 0.0
    %1024 = vmatpush1.msra.mxu0 0.0
    %1025 = vmatprep.subr.mxu0 0.0
    %1026 = vmatpush1.msra.mxu0 0.0
    %1027 = vmatprep.subr.mxu0 0.0
    %1028 = vmatpush1.msra.mxu0 0.0
    %1029 = vmatprep.subr.mxu0 0.0
    %1030 = vmatpush1.msra.mxu0 0.0
    %1031 = vmatprep.subr.mxu0 0.0
    %1032 = vmatpush1.msra.mxu0 0.0
    %1033 = vmatprep.subr.mxu0 0.0
    %1034 = vmatpush1.msra.mxu0 0.0
    %1035 = vmatprep.subr.mxu0 0.0
    %1036 = vmatpush1.msra.mxu0 0.0
    %1037 = vmatprep.subr.mxu0 0.0
    %1038 = vmatpush1.msra.mxu0 0.0
    %1039 = vmatprep.subr.mxu0 0.0
    %1040 = vmatpush1.msra.mxu0 0.0
    %1041 = vmatprep.subr.mxu0 0.0
    %1042 = vmatpush1.msra.mxu0 0.0
    %1043 = vmatprep.subr.mxu0 0.0
    %1044 = vmatpush1.msra.mxu0 0.0
    %1045 = vmatprep.subr.mxu0 0.0
    %1046 = vmatpush1.msra.mxu0 0.0
    %1047 = vmatprep.subr.mxu0 0.0
    %1048 = vmatpush1.msra.mxu0 0.0
    %1049 = vmatprep.subr.mxu0 0.0
    %1050 = vmatpush1.msra.mxu0 0.0
    %1051 = vmatprep.subr.mxu0 0.0
    %1052 = vmatpush1.msra.mxu0 0.0
    %1053 = vmatprep.subr.mxu0 0.0
    %1054 = vmatpush1.msra.mxu0 0.0
    %1055 = vmatprep.subr.mxu0 0.0
    %1056 = vmatpush1.msra.mxu0 0.0
    %1057 = vmatprep.subr.mxu0 0.0
    %1058 = vmatpush1.msra.mxu0 0.0
    %1059 = vmatprep.subr.mxu0 0.0
    %1060 = vmatpush1.msra.mxu0 0.0
    %1061 = vmatprep.subr.mxu0 0.0
    %1062 = vmatpush1.msra.mxu0 0.0
    %1063 = vmatprep.subr.mxu0 0.0
    %1064 = vmatpush1.msra.mxu0 0.0
    %1065 = vmatprep.mubr.f32.mxu0 0.0
    %1066 = vmatmul.mubr.f32.gmra.mrb[0].mxu0 %v997
    %v1067 = vpop.f32.mrb[0].mxu0
    %v1068 = vadd.f32 0.0, %v1067
    %v1069 = vpop.f32.mrb[0].mxu0
    %1070 = vdwg.mxu0
    %1071 = vrot.lane.b32.xlu0 %v219, 120
    %v1072 = vpop.permute.xlu0 %1071
    %v1074 = vsel %vm220, %v991, 0
    %v1076 = vsel %vm224, %v1072, 0
    %1078 = vmatprep.subr.mxu0 0.0
    %1079 = vmatpush1.msra.mxu0 %v1076
    %1080 = vmatprep.subr.mxu0 0.0
    %1081 = vmatpush1.msra.mxu0 0.0
    %1082 = vmatprep.subr.mxu0 0.0
    %1083 = vmatpush1.msra.mxu0 0.0
    %1084 = vmatprep.subr.mxu0 0.0
    %1085 = vmatpush1.msra.mxu0 0.0
    %1086 = vmatprep.subr.mxu0 0.0
    %1087 = vmatpush1.msra.mxu0 0.0
    %1088 = vmatprep.subr.mxu0 0.0
    %1089 = vmatpush1.msra.mxu0 0.0
    %1090 = vmatprep.subr.mxu0 0.0
    %1091 = vmatpush1.msra.mxu0 0.0
    %1092 = vmatprep.subr.mxu0 0.0
    %1093 = vmatpush1.msra.mxu0 0.0
    %1094 = vmatprep.subr.mxu0 0.0
    %1095 = vmatpush1.msra.mxu0 0.0
    %1096 = vmatprep.subr.mxu0 0.0
    %1097 = vmatpush1.msra.mxu0 0.0
    %1098 = vmatprep.subr.mxu0 0.0
    %1099 = vmatpush1.msra.mxu0 0.0
    %1100 = vmatprep.subr.mxu0 0.0
    %1101 = vmatpush1.msra.mxu0 0.0
    %1102 = vmatprep.subr.mxu0 0.0
    %1103 = vmatpush1.msra.mxu0 0.0
    %1104 = vmatprep.subr.mxu0 0.0
    %1105 = vmatpush1.msra.mxu0 0.0
    %1106 = vmatprep.subr.mxu0 0.0
    %1107 = vmatpush1.msra.mxu0 0.0
    %1108 = vmatprep.subr.mxu0 0.0
    %1109 = vmatpush1.msra.mxu0 0.0
    %1110 = vmatprep.subr.mxu0 0.0
    %1111 = vmatpush1.msra.mxu0 0.0
    %1112 = vmatprep.subr.mxu0 0.0
    %1113 = vmatpush1.msra.mxu0 0.0
    %1114 = vmatprep.subr.mxu0 0.0
    %1115 = vmatpush1.msra.mxu0 0.0
    %1116 = vmatprep.subr.mxu0 0.0
    %1117 = vmatpush1.msra.mxu0 0.0
    %1118 = vmatprep.subr.mxu0 0.0
    %1119 = vmatpush1.msra.mxu0 0.0
    %1120 = vmatprep.subr.mxu0 0.0
    %1121 = vmatpush1.msra.mxu0 0.0
    %1122 = vmatprep.subr.mxu0 0.0
    %1123 = vmatpush1.msra.mxu0 0.0
    %1124 = vmatprep.subr.mxu0 0.0
    %1125 = vmatpush1.msra.mxu0 0.0
    %1126 = vmatprep.subr.mxu0 0.0
    %1127 = vmatpush1.msra.mxu0 0.0
    %1128 = vmatprep.subr.mxu0 0.0
    %1129 = vmatpush1.msra.mxu0 0.0
    %1130 = vmatprep.subr.mxu0 0.0
    %1131 = vmatpush1.msra.mxu0 0.0
    %1132 = vmatprep.subr.mxu0 0.0
    %1133 = vmatpush1.msra.mxu0 0.0
    %1134 = vmatprep.subr.mxu0 0.0
    %1135 = vmatpush1.msra.mxu0 0.0
    %1136 = vmatprep.subr.mxu0 0.0
    %1137 = vmatpush1.msra.mxu0 0.0
    %1138 = vmatprep.subr.mxu0 0.0
    %1139 = vmatpush1.msra.mxu0 0.0
    %1140 = vmatprep.subr.mxu0 0.0
    %1141 = vmatpush1.msra.mxu0 0.0
    %1142 = vmatprep.mubr.f32.mxu0 0.0
    %1143 = vmatmul.mubr.f32.gmra.mrb[0].mxu0 %v1074
    %v1144 = vpop.f32.mrb[0].mxu0
    %v1145 = vadd.f32 0.0, %v1144
    %v1146 = vpop.f32.mrb[0].mxu0
    %1147 = vdwg.mxu0
    %v1150 = vcombine.high %v1068, %v1068
    %v1152 = vunpack.c.l.s4 1966171168
    %v1153 = vunpack.c.0.s8 %v1152
    %v1154 = vlaneseq
    %v1155 = vshrl.u32 %v1154, 7
    %v1156 = vsub.s32 %v1153, %v1155
    %v1157 = vrot.slane %v1068, %v1156
    %v1159 = vunpack.c.l.s4 1966171168
    %v1160 = vunpack.c.0.s8 %v1159
    %v1161 = vlaneseq
    %v1162 = vshrl.u32 %v1161, 7
    %v1163 = vsub.s32 %v1160, %v1162
    %v1164 = vrot.slane %v1150, %v1163
    %v1165 = vcombine.high %v1157, %v1157
    %v1167 = vunpack.c.l.s4 1966171168
    %v1168 = vunpack.c.0.s8 %v1167
    %v1169 = vlaneseq
    %v1170 = vshrl.u32 %v1169, 7
    %v1171 = vsub.s32 %v1168, %v1170
    %v1172 = vrot.slane %v1157, %v1171
    %v1174 = vunpack.c.l.s4 1966171168
    %v1175 = vunpack.c.0.s8 %v1174
    %v1176 = vlaneseq
    %v1177 = vshrl.u32 %v1176, 7
    %v1178 = vsub.s32 %v1175, %v1177
    %v1179 = vrot.slane %v1164, %v1178
    %v1181 = vunpack.c.l.s4 1966171168
    %v1182 = vunpack.c.0.s8 %v1181
    %v1183 = vlaneseq
    %v1184 = vshrl.u32 %v1183, 7
    %v1185 = vsub.s32 %v1182, %v1184
    %v1186 = vrot.slane %v1165, %v1185
    %v1187 = vcombine.high %v1172, %v1172
    %v1188 = vcombine.high %v1186, %v1186
    %v1189 = vcombine.high %v1145, %v1145
    %v1191 = vunpack.c.l.s4 1966171168
    %v1192 = vunpack.c.0.s8 %v1191
    %v1193 = vlaneseq
    %v1194 = vshrl.u32 %v1193, 7
    %v1195 = vsub.s32 %v1192, %v1194
    %v1196 = vrot.slane %v1145, %v1195
    %v1198 = vunpack.c.l.s4 1966171168
    %v1199 = vunpack.c.0.s8 %v1198
    %v1200 = vlaneseq
    %v1201 = vshrl.u32 %v1200, 7
    %v1202 = vsub.s32 %v1199, %v1201
    %v1203 = vrot.slane %v1189, %v1202
    %v1204 = vcombine.high %v1196, %v1196
    %v1206 = vunpack.c.l.s4 1966171168
    %v1207 = vunpack.c.0.s8 %v1206
    %v1208 = vlaneseq
    %v1209 = vshrl.u32 %v1208, 7
    %v1210 = vsub.s32 %v1207, %v1209
    %v1211 = vrot.slane %v1196, %v1210
    %v1213 = vunpack.c.l.s4 1966171168
    %v1214 = vunpack.c.0.s8 %v1213
    %v1215 = vlaneseq
    %v1216 = vshrl.u32 %v1215, 7
    %v1217 = vsub.s32 %v1214, %v1216
    %v1218 = vrot.slane %v1203, %v1217
    %v1220 = vunpack.c.l.s4 1966171168
    %v1221 = vunpack.c.0.s8 %v1220
    %v1222 = vlaneseq
    %v1223 = vshrl.u32 %v1222, 7
    %v1224 = vsub.s32 %v1221, %v1223
    %v1225 = vrot.slane %v1204, %v1224
    %v1226 = vcombine.high %v1211, %v1211
    %v1227 = vcombine.high %v1225, %v1225
    %v1228 = vld [vmem:[#allocation10 + $0x8] sm:$0xff]
    %v1229 = vcombine.low %v1172, %v1186
    %v1230 = vcombine.low %v1187, %v1188
    %v1231 = vcombine.low %v1179, %v1211
    %v1232 = vcombine.low %v1225, %v1226
    %v1234 = vunpack.c.l.s4 1966171168
    %v1235 = vunpack.c.0.s8 %v1234
    %v1236 = vlaneseq
    %v1237 = vshrl.u32 %v1236, 7
    %v1238 = vsub.s32 %v1235, %v1237
    %v1239 = vrot.slane %v1229, %v1238
    %v1241 = vunpack.c.l.s4 1966171168
    %v1242 = vunpack.c.0.s8 %v1241
    %v1243 = vlaneseq
    %v1244 = vshrl.u32 %v1243, 7
    %v1245 = vsub.s32 %v1242, %v1244
    %v1246 = vrot.slane %v1230, %v1245
    %v1248 = vunpack.c.l.s4 1966171168
    %v1249 = vunpack.c.0.s8 %v1248
    %v1250 = vlaneseq
    %v1251 = vshrl.u32 %v1250, 7
    %v1252 = vsub.s32 %v1249, %v1251
    %v1253 = vrot.slane %v1231, %v1252
    %v1255 = vunpack.c.l.s4 1966171168
    %v1256 = vunpack.c.0.s8 %v1255
    %v1257 = vlaneseq
    %v1258 = vshrl.u32 %v1257, 7
    %v1259 = vsub.s32 %v1256, %v1258
    %v1260 = vrot.slane %v1232, %v1259
    %v1261 = vcombine.low %v1239, %v1246
    %v1262 = vcombine.low %v1253, %v1260
    %v1264 = vunpack.c.l.s4 1966171168
    %v1265 = vunpack.c.0.s8 %v1264
    %v1266 = vlaneseq
    %v1267 = vshrl.u32 %v1266, 7
    %v1268 = vsub.s32 %v1265, %v1267
    %v1269 = vrot.slane %v1261, %v1268
    %v1271 = vunpack.c.l.s4 1966171168
    %v1272 = vunpack.c.0.s8 %v1271
    %v1273 = vlaneseq
    %v1274 = vshrl.u32 %v1273, 7
    %v1275 = vsub.s32 %v1272, %v1274
    %v1276 = vrot.slane %v1262, %v1275
    %v1277 = vcombine.low %v1269, %v1276
    %v1278 = vcombine.low %v1227, %v1218
    %v1280 = vunpack.c.l.s4 1966171168
    %v1281 = vunpack.c.0.s8 %v1280
    %v1282 = vlaneseq
    %v1283 = vshrl.u32 %v1282, 7
    %v1284 = vsub.s32 %v1281, %v1283
    %v1285 = vrot.slane %v1278, %v1284
    %v1287 = vunpack.c.l.s4 1966171168
    %v1288 = vunpack.c.0.s8 %v1287
    %v1289 = vlaneseq
    %v1290 = vshrl.u32 %v1289, 7
    %v1291 = vsub.s32 %v1288, %v1290
    %v1292 = vrot.slane %v1285, %v1291
    %vm1293 = vcmask 64512
    %v1294 = vsel %vm1293, %v1277, 0
    %v1296 = vsel %vm1293, %v1292, 0
    %1298 = vmatprep.subr.mxu0 0.0
    %1299 = vmatpush1.msra.mxu0 %v1228
    %1300 = vmatprep.subr.mxu0 0.0
    %1301 = vmatpush1.msra.mxu0 0.0
    %1302 = vmatprep.subr.mxu0 0.0
    %1303 = vmatpush1.msra.mxu0 0.0
    %1304 = vmatprep.subr.mxu0 0.0
    %1305 = vmatpush1.msra.mxu0 0.0
    %1306 = vmatprep.subr.mxu0 0.0
    %1307 = vmatpush1.msra.mxu0 0.0
    %1308 = vmatprep.subr.mxu0 0.0
    %1309 = vmatpush1.msra.mxu0 0.0
    %1310 = vmatprep.subr.mxu0 0.0
    %1311 = vmatpush1.msra.mxu0 0.0
    %1312 = vmatprep.subr.mxu0 0.0
    %1313 = vmatpush1.msra.mxu0 0.0
    %1314 = vmatprep.subr.mxu0 0.0
    %1315 = vmatpush1.msra.mxu0 0.0
    %1316 = vmatprep.subr.mxu0 0.0
    %1317 = vmatpush1.msra.mxu0 0.0
    %1318 = vmatprep.subr.mxu0 0.0
    %1319 = vmatpush1.msra.mxu0 0.0
    %1320 = vmatprep.subr.mxu0 0.0
    %1321 = vmatpush1.msra.mxu0 0.0
    %1322 = vmatprep.subr.mxu0 0.0
    %1323 = vmatpush1.msra.mxu0 0.0
    %1324 = vmatprep.subr.mxu0 0.0
    %1325 = vmatpush1.msra.mxu0 0.0
    %1326 = vmatprep.subr.mxu0 0.0
    %1327 = vmatpush1.msra.mxu0 0.0
    %1328 = vmatprep.subr.mxu0 0.0
    %1329 = vmatpush1.msra.mxu0 0.0
    %1330 = vmatprep.subr.mxu0 0.0
    %1331 = vmatpush1.msra.mxu0 0.0
    %1332 = vmatprep.subr.mxu0 0.0
    %1333 = vmatpush1.msra.mxu0 0.0
    %1334 = vmatprep.subr.mxu0 0.0
    %1335 = vmatpush1.msra.mxu0 0.0
    %1336 = vmatprep.subr.mxu0 0.0
    %1337 = vmatpush1.msra.mxu0 0.0
    %1338 = vmatprep.subr.mxu0 0.0
    %1339 = vmatpush1.msra.mxu0 0.0
    %1340 = vmatprep.subr.mxu0 0.0
    %1341 = vmatpush1.msra.mxu0 0.0
    %1342 = vmatprep.subr.mxu0 0.0
    %1343 = vmatpush1.msra.mxu0 0.0
    %1344 = vmatprep.subr.mxu0 0.0
    %1345 = vmatpush1.msra.mxu0 0.0
    %1346 = vmatprep.subr.mxu0 0.0
    %1347 = vmatpush1.msra.mxu0 0.0
    %1348 = vmatprep.subr.mxu0 0.0
    %1349 = vmatpush1.msra.mxu0 0.0
    %1350 = vmatprep.subr.mxu0 0.0
    %1351 = vmatpush1.msra.mxu0 0.0
    %1352 = vmatprep.subr.mxu0 0.0
    %1353 = vmatpush1.msra.mxu0 0.0
    %1354 = vmatprep.subr.mxu0 0.0
    %1355 = vmatpush1.msra.mxu0 0.0
    %1356 = vmatprep.subr.mxu0 0.0
    %1357 = vmatpush1.msra.mxu0 0.0
    %1358 = vmatprep.subr.mxu0 0.0
    %1359 = vmatpush1.msra.mxu0 0.0
    %1360 = vmatprep.subr.mxu0 0.0
    %1361 = vmatpush1.msra.mxu0 0.0
    %1362 = vmatprep.mubr.f32.mxu0 0.0
    %1363 = vmatmul.mubr.f32.gmra.mrb[0].mxu0 %v1294
    %v1364 = vpop.f32.mrb[0].mxu0
    %v1365 = vadd.f32 0.0, %v1364
    %v1366 = vpop.f32.mrb[0].mxu0
    %1367 = vmatprep.mubr.f32.mxu0 0.0
    %1368 = vmatmul.mubr.f32.gmra.mrb[0].mxu0 %v1296
    %v1369 = vpop.f32.mrb[0].mxu0
    %v1370 = vadd.f32 0.0, %v1369
    %v1371 = vpop.f32.mrb[0].mxu0
    %1372 = vdwg.mxu0
    %v1373 = vcombine.low %v788, %v802
    %v1374 = vcombine.low %v803, %v804
    %v1375 = vcombine.low %v795, %v827
    %v1376 = vcombine.low %v841, %v842
    %v1378 = vunpack.c.l.s4 1966171168
    %v1379 = vunpack.c.0.s8 %v1378
    %v1380 = vlaneseq
    %v1381 = vshrl.u32 %v1380, 7
    %v1382 = vsub.s32 %v1379, %v1381
    %v1383 = vrot.slane %v1373, %v1382
    %v1385 = vunpack.c.l.s4 1966171168
    %v1386 = vunpack.c.0.s8 %v1385
    %v1387 = vlaneseq
    %v1388 = vshrl.u32 %v1387, 7
    %v1389 = vsub.s32 %v1386, %v1388
    %v1390 = vrot.slane %v1374, %v1389
    %v1392 = vunpack.c.l.s4 1966171168
    %v1393 = vunpack.c.0.s8 %v1392
    %v1394 = vlaneseq
    %v1395 = vshrl.u32 %v1394, 7
    %v1396 = vsub.s32 %v1393, %v1395
    %v1397 = vrot.slane %v1375, %v1396
    %v1399 = vunpack.c.l.s4 1966171168
    %v1400 = vunpack.c.0.s8 %v1399
    %v1401 = vlaneseq
    %v1402 = vshrl.u32 %v1401, 7
    %v1403 = vsub.s32 %v1400, %v1402
    %v1404 = vrot.slane %v1376, %v1403
    %v1405 = vcombine.low %v1383, %v1390
    %v1406 = vcombine.low %v1397, %v1404
    %v1408 = vunpack.c.l.s4 1966171168
    %v1409 = vunpack.c.0.s8 %v1408
    %v1410 = vlaneseq
    %v1411 = vshrl.u32 %v1410, 7
    %v1412 = vsub.s32 %v1409, %v1411
    %v1413 = vrot.slane %v1405, %v1412
    %v1415 = vunpack.c.l.s4 1966171168
    %v1416 = vunpack.c.0.s8 %v1415
    %v1417 = vlaneseq
    %v1418 = vshrl.u32 %v1417, 7
    %v1419 = vsub.s32 %v1416, %v1418
    %v1420 = vrot.slane %v1406, %v1419
    %v1421 = vcombine.low %v1413, %v1420
    %v1422 = vcombine.low %v843, %v834
    %v1424 = vunpack.c.l.s4 1966171168
    %v1425 = vunpack.c.0.s8 %v1424
    %v1426 = vlaneseq
    %v1427 = vshrl.u32 %v1426, 7
    %v1428 = vsub.s32 %v1425, %v1427
    %v1429 = vrot.slane %v1422, %v1428
    %v1431 = vunpack.c.l.s4 1966171168
    %v1432 = vunpack.c.0.s8 %v1431
    %v1433 = vlaneseq
    %v1434 = vshrl.u32 %v1433, 7
    %v1435 = vsub.s32 %v1432, %v1434
    %v1436 = vrot.slane %v1429, %v1435
    %v1437 = vsel %vm1293, %v1421, 0
    %v1439 = vsel %vm1293, %v1436, 0
    %1441 = vmatprep.subr.mxu0 0.0
    %1442 = vmatpush1.msra.mxu0 %v844
    %1443 = vmatprep.subr.mxu0 0.0
    %1444 = vmatpush1.msra.mxu0 0.0
    %1445 = vmatprep.subr.mxu0 0.0
    %1446 = vmatpush1.msra.mxu0 0.0
    %1447 = vmatprep.subr.mxu0 0.0
    %1448 = vmatpush1.msra.mxu0 0.0
    %1449 = vmatprep.subr.mxu0 0.0
    %1450 = vmatpush1.msra.mxu0 0.0
    %1451 = vmatprep.subr.mxu0 0.0
    %1452 = vmatpush1.msra.mxu0 0.0
    %1453 = vmatprep.subr.mxu0 0.0
    %1454 = vmatpush1.msra.mxu0 0.0
    %1455 = vmatprep.subr.mxu0 0.0
    %1456 = vmatpush1.msra.mxu0 0.0
    %1457 = vmatprep.subr.mxu0 0.0
    %1458 = vmatpush1.msra.mxu0 0.0
    %1459 = vmatprep.subr.mxu0 0.0
    %1460 = vmatpush1.msra.mxu0 0.0
    %1461 = vmatprep.subr.mxu0 0.0
    %1462 = vmatpush1.msra.mxu0 0.0
    %1463 = vmatprep.subr.mxu0 0.0
    %1464 = vmatpush1.msra.mxu0 0.0
    %1465 = vmatprep.subr.mxu0 0.0
    %1466 = vmatpush1.msra.mxu0 0.0
    %1467 = vmatprep.subr.mxu0 0.0
    %1468 = vmatpush1.msra.mxu0 0.0
    %1469 = vmatprep.subr.mxu0 0.0
    %1470 = vmatpush1.msra.mxu0 0.0
    %1471 = vmatprep.subr.mxu0 0.0
    %1472 = vmatpush1.msra.mxu0 0.0
    %1473 = vmatprep.subr.mxu0 0.0
    %1474 = vmatpush1.msra.mxu0 0.0
    %1475 = vmatprep.subr.mxu0 0.0
    %1476 = vmatpush1.msra.mxu0 0.0
    %1477 = vmatprep.subr.mxu0 0.0
    %1478 = vmatpush1.msra.mxu0 0.0
    %1479 = vmatprep.subr.mxu0 0.0
    %1480 = vmatpush1.msra.mxu0 0.0
    %1481 = vmatprep.subr.mxu0 0.0
    %1482 = vmatpush1.msra.mxu0 0.0
    %1483 = vmatprep.subr.mxu0 0.0
    %1484 = vmatpush1.msra.mxu0 0.0
    %1485 = vmatprep.subr.mxu0 0.0
    %1486 = vmatpush1.msra.mxu0 0.0
    %1487 = vmatprep.subr.mxu0 0.0
    %1488 = vmatpush1.msra.mxu0 0.0
    %1489 = vmatprep.subr.mxu0 0.0
    %1490 = vmatpush1.msra.mxu0 0.0
    %1491 = vmatprep.subr.mxu0 0.0
    %1492 = vmatpush1.msra.mxu0 0.0
    %1493 = vmatprep.subr.mxu0 0.0
    %1494 = vmatpush1.msra.mxu0 0.0
    %1495 = vmatprep.subr.mxu0 0.0
    %1496 = vmatpush1.msra.mxu0 0.0
    %1497 = vmatprep.subr.mxu0 0.0
    %1498 = vmatpush1.msra.mxu0 0.0
    %1499 = vmatprep.subr.mxu0 0.0
    %1500 = vmatpush1.msra.mxu0 0.0
    %1501 = vmatprep.subr.mxu0 0.0
    %1502 = vmatpush1.msra.mxu0 0.0
    %1503 = vmatprep.subr.mxu0 0.0
    %1504 = vmatpush1.msra.mxu0 0.0
    %1505 = vmatprep.mubr.f32.mxu0 0.0
    %1506 = vmatmul.mubr.f32.gmra.mrb[0].mxu0 %v1437
    %v1507 = vpop.f32.mrb[0].mxu0
    %v1508 = vadd.f32 %v1365, %v1507
    %v1509 = vpop.f32.mrb[0].mxu0
    %1510 = vmatprep.mubr.f32.mxu0 0.0
    %1511 = vmatmul.mubr.f32.gmra.mrb[0].mxu0 %v1439
    %v1512 = vpop.f32.mrb[0].mxu0
    %v1513 = vadd.f32 %v1370, %v1512
    %v1514 = vpop.f32.mrb[0].mxu0
    %1515 = vdwg.mxu0
    %v1518 = vcombine.high %v1508, %v1508
    %v1520 = vunpack.c.l.s4 1966171168
    %v1521 = vunpack.c.0.s8 %v1520
    %v1522 = vlaneseq
    %v1523 = vshrl.u32 %v1522, 7
    %v1524 = vsub.s32 %v1521, %v1523
    %v1525 = vrot.slane %v1508, %v1524
    %v1527 = vunpack.c.l.s4 1966171168
    %v1528 = vunpack.c.0.s8 %v1527
    %v1529 = vlaneseq
    %v1530 = vshrl.u32 %v1529, 7
    %v1531 = vsub.s32 %v1528, %v1530
    %v1532 = vrot.slane %v1518, %v1531
    %v1533 = vcombine.high %v1525, %v1525
    %v1534 = vcombine.high %v1532, %v1532
    %v1536 = vunpack.c.l.s4 1966171168
    %v1537 = vunpack.c.0.s8 %v1536
    %v1538 = vlaneseq
    %v1539 = vshrl.u32 %v1538, 7
    %v1540 = vsub.s32 %v1537, %v1539
    %v1541 = vrot.slane %v1525, %v1540
    %v1543 = vunpack.c.l.s4 1966171168
    %v1544 = vunpack.c.0.s8 %v1543
    %v1545 = vlaneseq
    %v1546 = vshrl.u32 %v1545, 7
    %v1547 = vsub.s32 %v1544, %v1546
    %v1548 = vrot.slane %v1532, %v1547
    %v1550 = vunpack.c.l.s4 1966171168
    %v1551 = vunpack.c.0.s8 %v1550
    %v1552 = vlaneseq
    %v1553 = vshrl.u32 %v1552, 7
    %v1554 = vsub.s32 %v1551, %v1553
    %v1555 = vrot.slane %v1533, %v1554
    %v1557 = vunpack.c.l.s4 1966171168
    %v1558 = vunpack.c.0.s8 %v1557
    %v1559 = vlaneseq
    %v1560 = vshrl.u32 %v1559, 7
    %v1561 = vsub.s32 %v1558, %v1560
    %v1562 = vrot.slane %v1534, %v1561
    %v1563 = vcombine.high %v1541, %v1541
    %v1564 = vcombine.high %v1548, %v1548
    %v1565 = vcombine.high %v1555, %v1555
    %v1566 = vcombine.high %v1562, %v1562
    %v1568 = vunpack.c.l.s4 1966171168
    %v1569 = vunpack.c.0.s8 %v1568
    %v1570 = vlaneseq
    %v1571 = vshrl.u32 %v1570, 7
    %v1572 = vsub.s32 %v1569, %v1571
    %v1573 = vrot.slane %v1513, %v1572
    %v1574 = vcombine.high %v1573, %v1573
    %v1576 = vunpack.c.l.s4 1966171168
    %v1577 = vunpack.c.0.s8 %v1576
    %v1578 = vlaneseq
    %v1579 = vshrl.u32 %v1578, 7
    %v1580 = vsub.s32 %v1577, %v1579
    %v1581 = vrot.slane %v1573, %v1580
    %v1583 = vunpack.c.l.s4 1966171168
    %v1584 = vunpack.c.0.s8 %v1583
    %v1585 = vlaneseq
    %v1586 = vshrl.u32 %v1585, 7
    %v1587 = vsub.s32 %v1584, %v1586
    %v1588 = vrot.slane %v1574, %v1587
    %v1599 = vadd.f32 %v398, %v1541
    %v1600 = vadd.f32 %v412, %v1555
    %v1601 = vadd.f32 %v413, %v1563
    %v1602 = vadd.f32 %v414, %v1565
    %v1603 = vadd.f32 %v405, %v1548
    %v1604 = vadd.f32 %v437, %v1562
    %v1605 = vadd.f32 %v451, %v1564
    %v1606 = vadd.f32 %v452, %v1566
    %v1607 = vadd.f32 %v453, %v1581
    %v1608 = vadd.f32 %v444, %v1588
    %v1609 = vld [vmem:[#allocation11] sm:$0x1]
    %v1611 = vlaneseq
    %v1612 = vshrl.u32 %v1611, 7
    %v1613 = vsub.s32 0, %v1612
    %v1614 = vrot.slane %v1609, %v1613
    %v1615 = vcombine.high %v1614, %v1614
    %v1617 = vunpack.c.l.s4 1966171168
    %v1618 = vunpack.c.0.s8 %v1617
    %v1619 = vlaneseq
    %v1620 = vshrl.u32 %v1619, 7
    %v1621 = vsub.s32 %v1618, %v1620
    %v1622 = vrot.slane %v1614, %v1621
    %v1624 = vunpack.c.l.s4 1966171168
    %v1625 = vunpack.c.0.s8 %v1624
    %v1626 = vlaneseq
    %v1627 = vshrl.u32 %v1626, 7
    %v1628 = vsub.s32 %v1625, %v1627
    %v1629 = vrot.slane %v1615, %v1628
    %v1630 = vcombine.high %v1622, %v1622
    %v1631 = vcombine.high %v1629, %v1629
    %v1633 = vunpack.c.l.s4 1966171168
    %v1634 = vunpack.c.0.s8 %v1633
    %v1635 = vlaneseq
    %v1636 = vshrl.u32 %v1635, 7
    %v1637 = vsub.s32 %v1634, %v1636
    %v1638 = vrot.slane %v1622, %v1637
    %v1640 = vunpack.c.l.s4 1966171168
    %v1641 = vunpack.c.0.s8 %v1640
    %v1642 = vlaneseq
    %v1643 = vshrl.u32 %v1642, 7
    %v1644 = vsub.s32 %v1641, %v1643
    %v1645 = vrot.slane %v1629, %v1644
    %v1647 = vunpack.c.l.s4 1966171168
    %v1648 = vunpack.c.0.s8 %v1647
    %v1649 = vlaneseq
    %v1650 = vshrl.u32 %v1649, 7
    %v1651 = vsub.s32 %v1648, %v1650
    %v1652 = vrot.slane %v1630, %v1651
    %v1654 = vunpack.c.l.s4 1966171168
    %v1655 = vunpack.c.0.s8 %v1654
    %v1656 = vlaneseq
    %v1657 = vshrl.u32 %v1656, 7
    %v1658 = vsub.s32 %v1655, %v1657
    %v1659 = vrot.slane %v1631, %v1658
    %v1660 = vcombine.high %v1638, %v1638
    %v1661 = vcombine.high %v1645, %v1645
    %v1662 = vcombine.high %v1652, %v1652
    %v1663 = vcombine.high %v1659, %v1659
    %v1672 = vadd.f32 %v1599, %v1638
    %v1673 = vadd.f32 %v1600, %v1652
    %v1674 = vadd.f32 %v1601, %v1660
    %v1675 = vadd.f32 %v1602, %v1662
    %v1676 = vadd.f32 %v1603, %v1645
    %v1677 = vadd.f32 %v1604, %v1659
    %v1678 = vadd.f32 %v1605, %v1661
    %v1679 = vadd.f32 %v1606, %v1663
    %v1680 = vadd.f32 %v1607, %v1638
    %v1681 = vadd.f32 %v1608, %v1652
    %v1682 = vld [vmem:[#allocation13] sm:$0x1]
    %v1683 = vld [vmem:[#allocation14] sm:$0x1]
    %v1694 = vcombine.low %v1672, %v1673
    %v1695 = vcombine.low %v1674, %v1675
    %v1696 = vcombine.low %v1676, %v1677
    %v1697 = vcombine.low %v1678, %v1679
    %v1699 = vunpack.c.l.s4 1966171168
    %v1700 = vunpack.c.0.s8 %v1699
    %v1701 = vlaneseq
    %v1702 = vshrl.u32 %v1701, 7
    %v1703 = vsub.s32 %v1700, %v1702
    %v1704 = vrot.slane %v1694, %v1703
    %v1706 = vunpack.c.l.s4 1966171168
    %v1707 = vunpack.c.0.s8 %v1706
    %v1708 = vlaneseq
    %v1709 = vshrl.u32 %v1708, 7
    %v1710 = vsub.s32 %v1707, %v1709
    %v1711 = vrot.slane %v1695, %v1710
    %v1713 = vunpack.c.l.s4 1966171168
    %v1714 = vunpack.c.0.s8 %v1713
    %v1715 = vlaneseq
    %v1716 = vshrl.u32 %v1715, 7
    %v1717 = vsub.s32 %v1714, %v1716
    %v1718 = vrot.slane %v1696, %v1717
    %v1720 = vunpack.c.l.s4 1966171168
    %v1721 = vunpack.c.0.s8 %v1720
    %v1722 = vlaneseq
    %v1723 = vshrl.u32 %v1722, 7
    %v1724 = vsub.s32 %v1721, %v1723
    %v1725 = vrot.slane %v1697, %v1724
    %v1726 = vcombine.low %v1704, %v1711
    %v1727 = vcombine.low %v1718, %v1725
    %v1729 = vunpack.c.l.s4 1966171168
    %v1730 = vunpack.c.0.s8 %v1729
    %v1731 = vlaneseq
    %v1732 = vshrl.u32 %v1731, 7
    %v1733 = vsub.s32 %v1730, %v1732
    %v1734 = vrot.slane %v1726, %v1733
    %v1736 = vunpack.c.l.s4 1966171168
    %v1737 = vunpack.c.0.s8 %v1736
    %v1738 = vlaneseq
    %v1739 = vshrl.u32 %v1738, 7
    %v1740 = vsub.s32 %v1737, %v1739
    %v1741 = vrot.slane %v1727, %v1740
    %v1742 = vcombine.low %v1734, %v1741
    %v1743 = vcombine.low %v1680, %v1681
    %v1745 = vunpack.c.l.s4 1966171168
    %v1746 = vunpack.c.0.s8 %v1745
    %v1747 = vlaneseq
    %v1748 = vshrl.u32 %v1747, 7
    %v1749 = vsub.s32 %v1746, %v1748
    %v1750 = vrot.slane %v1743, %v1749
    %v1752 = vunpack.c.l.s4 1966171168
    %v1753 = vunpack.c.0.s8 %v1752
    %v1754 = vlaneseq
    %v1755 = vshrl.u32 %v1754, 7
    %v1756 = vsub.s32 %v1753, %v1755
    %v1757 = vrot.slane %v1750, %v1756
    %vm1760 = vcmask 261120
    %v1761 = vsel %vm1760, %v1742, 0.0
    %1762 = vadd.xlane.f32.xlu0 %v1761
    %v1763 = vpop.xlane.xlu0 %1762
    %vm1764 = vcmask 254976
    %v1765 = vsel %vm1764, %v1757, 0.0
    %1766 = vadd.xlane.f32.xlu0 %v1765
    %v1767 = vpop.xlane.xlu0 %1766
    %v1768 = vrcp.pop 32.0
    %v1769 = vmul.f32 %v1763, %v1768
    %v1770 = vmul.f32 %v1767, %v1768
    %v1773 = vlaneseq
    %v1774 = vshrl.u32 %v1773, 7
    %v1775 = vsub.s32 0, %v1774
    %v1776 = vrot.slane %v1769, %v1775
    %v1777 = vlaneseq
    %v1778 = vshrl.u32 %v1777, 7
    %v1779 = vsub.s32 1, %v1778
    %v1780 = vrot.slane %v1769, %v1779
    %v1781 = vlaneseq
    %v1782 = vshrl.u32 %v1781, 7
    %v1783 = vsub.s32 2, %v1782
    %v1784 = vrot.slane %v1769, %v1783
    %v1785 = vlaneseq
    %v1786 = vshrl.u32 %v1785, 7
    %v1787 = vsub.s32 3, %v1786
    %v1788 = vrot.slane %v1769, %v1787
    %v1789 = vlaneseq
    %v1790 = vshrl.u32 %v1789, 7
    %v1791 = vsub.s32 4, %v1790
    %v1792 = vrot.slane %v1769, %v1791
    %v1793 = vlaneseq
    %v1794 = vshrl.u32 %v1793, 7
    %v1795 = vsub.s32 5, %v1794
    %v1796 = vrot.slane %v1769, %v1795
    %v1797 = vlaneseq
    %v1798 = vshrl.u32 %v1797, 7
    %v1799 = vsub.s32 6, %v1798
    %v1800 = vrot.slane %v1769, %v1799
    %v1801 = vlaneseq
    %v1802 = vshrl.u32 %v1801, 7
    %v1803 = vsub.s32 7, %v1802
    %v1804 = vrot.slane %v1769, %v1803
    %v1805 = vlaneseq
    %v1806 = vshrl.u32 %v1805, 7
    %v1807 = vsub.s32 0, %v1806
    %v1808 = vrot.slane %v1770, %v1807
    %v1809 = vlaneseq
    %v1810 = vshrl.u32 %v1809, 7
    %v1811 = vsub.s32 1, %v1810
    %v1812 = vrot.slane %v1770, %v1811
    %v1823 = vsub.f32 %v1672, %v1776
    %v1824 = vsub.f32 %v1673, %v1780
    %v1825 = vsub.f32 %v1674, %v1784
    %v1826 = vsub.f32 %v1675, %v1788
    %v1827 = vsub.f32 %v1676, %v1792
    %v1828 = vsub.f32 %v1677, %v1796
    %v1829 = vsub.f32 %v1678, %v1800
    %v1830 = vsub.f32 %v1679, %v1804
    %v1831 = vsub.f32 %v1680, %v1808
    %v1832 = vsub.f32 %v1681, %v1812
    %v1833 = vmul.f32 %v1823, %v1823
    %v1834 = vmul.f32 %v1824, %v1824
    %v1835 = vmul.f32 %v1825, %v1825
    %v1836 = vmul.f32 %v1826, %v1826
    %v1837 = vmul.f32 %v1827, %v1827
    %v1838 = vmul.f32 %v1828, %v1828
    %v1839 = vmul.f32 %v1829, %v1829
    %v1840 = vmul.f32 %v1830, %v1830
    %v1841 = vmul.f32 %v1831, %v1831
    %v1842 = vmul.f32 %v1832, %v1832
    %v1853 = vcombine.low %v1833, %v1834
    %v1854 = vcombine.low %v1835, %v1836
    %v1855 = vcombine.low %v1837, %v1838
    %v1856 = vcombine.low %v1839, %v1840
    %v1858 = vunpack.c.l.s4 1966171168
    %v1859 = vunpack.c.0.s8 %v1858
    %v1860 = vlaneseq
    %v1861 = vshrl.u32 %v1860, 7
    %v1862 = vsub.s32 %v1859, %v1861
    %v1863 = vrot.slane %v1853, %v1862
    %v1865 = vunpack.c.l.s4 1966171168
    %v1866 = vunpack.c.0.s8 %v1865
    %v1867 = vlaneseq
    %v1868 = vshrl.u32 %v1867, 7
    %v1869 = vsub.s32 %v1866, %v1868
    %v1870 = vrot.slane %v1854, %v1869
    %v1872 = vunpack.c.l.s4 1966171168
    %v1873 = vunpack.c.0.s8 %v1872
    %v1874 = vlaneseq
    %v1875 = vshrl.u32 %v1874, 7
    %v1876 = vsub.s32 %v1873, %v1875
    %v1877 = vrot.slane %v1855, %v1876
    %v1879 = vunpack.c.l.s4 1966171168
    %v1880 = vunpack.c.0.s8 %v1879
    %v1881 = vlaneseq
    %v1882 = vshrl.u32 %v1881, 7
    %v1883 = vsub.s32 %v1880, %v1882
    %v1884 = vrot.slane %v1856, %v1883
    %v1885 = vcombine.low %v1863, %v1870
    %v1886 = vcombine.low %v1877, %v1884
    %v1888 = vunpack.c.l.s4 1966171168
    %v1889 = vunpack.c.0.s8 %v1888
    %v1890 = vlaneseq
    %v1891 = vshrl.u32 %v1890, 7
    %v1892 = vsub.s32 %v1889, %v1891
    %v1893 = vrot.slane %v1885, %v1892
    %v1895 = vunpack.c.l.s4 1966171168
    %v1896 = vunpack.c.0.s8 %v1895
    %v1897 = vlaneseq
    %v1898 = vshrl.u32 %v1897, 7
    %v1899 = vsub.s32 %v1896, %v1898
    %v1900 = vrot.slane %v1886, %v1899
    %v1901 = vcombine.low %v1893, %v1900
    %v1902 = vcombine.low %v1841, %v1842
    %v1904 = vunpack.c.l.s4 1966171168
    %v1905 = vunpack.c.0.s8 %v1904
    %v1906 = vlaneseq
    %v1907 = vshrl.u32 %v1906, 7
    %v1908 = vsub.s32 %v1905, %v1907
    %v1909 = vrot.slane %v1902, %v1908
    %v1911 = vunpack.c.l.s4 1966171168
    %v1912 = vunpack.c.0.s8 %v1911
    %v1913 = vlaneseq
    %v1914 = vshrl.u32 %v1913, 7
    %v1915 = vsub.s32 %v1912, %v1914
    %v1916 = vrot.slane %v1909, %v1915
    %v1919 = vsel %vm1760, %v1901, 0.0
    %1920 = vadd.xlane.f32.xlu0 %v1919
    %v1921 = vpop.xlane.xlu0 %1920
    %v1922 = vsel %vm1764, %v1916, 0.0
    %1923 = vadd.xlane.f32.xlu0 %v1922
    %v1924 = vpop.xlane.xlu0 %1923
    %v1925 = vmul.f32 %v1921, %v1768
    %v1926 = vmul.f32 %v1924, %v1768
    %v1927 = vadd.f32 %v1925, 1e-05
    %v1928 = vadd.f32 %v1926, 1e-05
    %v1929 = vrsqrt.pop %v1927
    %v1930 = vrsqrt.pop %v1928
    %v1933 = vlaneseq
    %v1934 = vshrl.u32 %v1933, 7
    %v1935 = vsub.s32 0, %v1934
    %v1936 = vrot.slane %v1929, %v1935
    %v1937 = vlaneseq
    %v1938 = vshrl.u32 %v1937, 7
    %v1939 = vsub.s32 1, %v1938
    %v1940 = vrot.slane %v1929, %v1939
    %v1941 = vlaneseq
    %v1942 = vshrl.u32 %v1941, 7
    %v1943 = vsub.s32 2, %v1942
    %v1944 = vrot.slane %v1929, %v1943
    %v1945 = vlaneseq
    %v1946 = vshrl.u32 %v1945, 7
    %v1947 = vsub.s32 3, %v1946
    %v1948 = vrot.slane %v1929, %v1947
    %v1949 = vlaneseq
    %v1950 = vshrl.u32 %v1949, 7
    %v1951 = vsub.s32 4, %v1950
    %v1952 = vrot.slane %v1929, %v1951
    %v1953 = vlaneseq
    %v1954 = vshrl.u32 %v1953, 7
    %v1955 = vsub.s32 5, %v1954
    %v1956 = vrot.slane %v1929, %v1955
    %v1957 = vlaneseq
    %v1958 = vshrl.u32 %v1957, 7
    %v1959 = vsub.s32 6, %v1958
    %v1960 = vrot.slane %v1929, %v1959
    %v1961 = vlaneseq
    %v1962 = vshrl.u32 %v1961, 7
    %v1963 = vsub.s32 7, %v1962
    %v1964 = vrot.slane %v1929, %v1963
    %v1965 = vlaneseq
    %v1966 = vshrl.u32 %v1965, 7
    %v1967 = vsub.s32 0, %v1966
    %v1968 = vrot.slane %v1930, %v1967
    %v1969 = vlaneseq
    %v1970 = vshrl.u32 %v1969, 7
    %v1971 = vsub.s32 1, %v1970
    %v1972 = vrot.slane %v1930, %v1971
    %v1983 = vmul.f32 %v1823, %v1936
    %v1984 = vmul.f32 %v1824, %v1940
    %v1985 = vmul.f32 %v1825, %v1944
    %v1986 = vmul.f32 %v1826, %v1948
    %v1987 = vmul.f32 %v1827, %v1952
    %v1988 = vmul.f32 %v1828, %v1956
    %v1989 = vmul.f32 %v1829, %v1960
    %v1990 = vmul.f32 %v1830, %v1964
    %v1991 = vmul.f32 %v1831, %v1968
    %v1992 = vmul.f32 %v1832, %v1972
    %v1994 = vlaneseq
    %v1995 = vshrl.u32 %v1994, 7
    %v1996 = vsub.s32 0, %v1995
    %v1997 = vrot.slane %v1682, %v1996
    %v1998 = vcombine.high %v1997, %v1997
    %v2000 = vunpack.c.l.s4 1966171168
    %v2001 = vunpack.c.0.s8 %v2000
    %v2002 = vlaneseq
    %v2003 = vshrl.u32 %v2002, 7
    %v2004 = vsub.s32 %v2001, %v2003
    %v2005 = vrot.slane %v1997, %v2004
    %v2007 = vunpack.c.l.s4 1966171168
    %v2008 = vunpack.c.0.s8 %v2007
    %v2009 = vlaneseq
    %v2010 = vshrl.u32 %v2009, 7
    %v2011 = vsub.s32 %v2008, %v2010
    %v2012 = vrot.slane %v1998, %v2011
    %v2013 = vcombine.high %v2005, %v2005
    %v2014 = vcombine.high %v2012, %v2012
    %v2016 = vunpack.c.l.s4 1966171168
    %v2017 = vunpack.c.0.s8 %v2016
    %v2018 = vlaneseq
    %v2019 = vshrl.u32 %v2018, 7
    %v2020 = vsub.s32 %v2017, %v2019
    %v2021 = vrot.slane %v2005, %v2020
    %v2023 = vunpack.c.l.s4 1966171168
    %v2024 = vunpack.c.0.s8 %v2023
    %v2025 = vlaneseq
    %v2026 = vshrl.u32 %v2025, 7
    %v2027 = vsub.s32 %v2024, %v2026
    %v2028 = vrot.slane %v2012, %v2027
    %v2030 = vunpack.c.l.s4 1966171168
    %v2031 = vunpack.c.0.s8 %v2030
    %v2032 = vlaneseq
    %v2033 = vshrl.u32 %v2032, 7
    %v2034 = vsub.s32 %v2031, %v2033
    %v2035 = vrot.slane %v2013, %v2034
    %v2037 = vunpack.c.l.s4 1966171168
    %v2038 = vunpack.c.0.s8 %v2037
    %v2039 = vlaneseq
    %v2040 = vshrl.u32 %v2039, 7
    %v2041 = vsub.s32 %v2038, %v2040
    %v2042 = vrot.slane %v2014, %v2041
    %v2043 = vcombine.high %v2021, %v2021
    %v2044 = vcombine.high %v2028, %v2028
    %v2045 = vcombine.high %v2035, %v2035
    %v2046 = vcombine.high %v2042, %v2042
    %v2055 = vmul.f32 %v1983, %v2021
    %v2056 = vmul.f32 %v1984, %v2035
    %v2057 = vmul.f32 %v1985, %v2043
    %v2058 = vmul.f32 %v1986, %v2045
    %v2059 = vmul.f32 %v1987, %v2028
    %v2060 = vmul.f32 %v1988, %v2042
    %v2061 = vmul.f32 %v1989, %v2044
    %v2062 = vmul.f32 %v1990, %v2046
    %v2063 = vmul.f32 %v1991, %v2021
    %v2064 = vmul.f32 %v1992, %v2035
    %v2066 = vlaneseq
    %v2067 = vshrl.u32 %v2066, 7
    %v2068 = vsub.s32 0, %v2067
    %v2069 = vrot.slane %v1683, %v2068
    %v2070 = vcombine.high %v2069, %v2069
    %v2072 = vunpack.c.l.s4 1966171168
    %v2073 = vunpack.c.0.s8 %v2072
    %v2074 = vlaneseq
    %v2075 = vshrl.u32 %v2074, 7
    %v2076 = vsub.s32 %v2073, %v2075
    %v2077 = vrot.slane %v2069, %v2076
    %v2079 = vunpack.c.l.s4 1966171168
    %v2080 = vunpack.c.0.s8 %v2079
    %v2081 = vlaneseq
    %v2082 = vshrl.u32 %v2081, 7
    %v2083 = vsub.s32 %v2080, %v2082
    %v2084 = vrot.slane %v2070, %v2083
    %v2085 = vcombine.high %v2077, %v2077
    %v2086 = vcombine.high %v2084, %v2084
    %v2088 = vunpack.c.l.s4 1966171168
    %v2089 = vunpack.c.0.s8 %v2088
    %v2090 = vlaneseq
    %v2091 = vshrl.u32 %v2090, 7
    %v2092 = vsub.s32 %v2089, %v2091
    %v2093 = vrot.slane %v2077, %v2092
    %v2095 = vunpack.c.l.s4 1966171168
    %v2096 = vunpack.c.0.s8 %v2095
    %v2097 = vlaneseq
    %v2098 = vshrl.u32 %v2097, 7
    %v2099 = vsub.s32 %v2096, %v2098
    %v2100 = vrot.slane %v2084, %v2099
    %v2102 = vunpack.c.l.s4 1966171168
    %v2103 = vunpack.c.0.s8 %v2102
    %v2104 = vlaneseq
    %v2105 = vshrl.u32 %v2104, 7
    %v2106 = vsub.s32 %v2103, %v2105
    %v2107 = vrot.slane %v2085, %v2106
    %v2109 = vunpack.c.l.s4 1966171168
    %v2110 = vunpack.c.0.s8 %v2109
    %v2111 = vlaneseq
    %v2112 = vshrl.u32 %v2111, 7
    %v2113 = vsub.s32 %v2110, %v2112
    %v2114 = vrot.slane %v2086, %v2113
    %v2115 = vcombine.high %v2093, %v2093
    %v2116 = vcombine.high %v2100, %v2100
    %v2117 = vcombine.high %v2107, %v2107
    %v2118 = vcombine.high %v2114, %v2114
    %v2127 = vadd.f32 %v2055, %v2093
    %v2128 = vadd.f32 %v2056, %v2107
    %v2129 = vadd.f32 %v2057, %v2115
    %v2130 = vadd.f32 %v2058, %v2117
    %v2131 = vadd.f32 %v2059, %v2100
    %v2132 = vadd.f32 %v2060, %v2114
    %v2133 = vadd.f32 %v2061, %v2116
    %v2134 = vadd.f32 %v2062, %v2118
    %v2135 = vadd.f32 %v2063, %v2093
    %v2136 = vadd.f32 %v2064, %v2107
    %v2137 = vld [vmem:[#allocation16] sm:$0xff]
    %v2138 = vld [vmem:[#allocation16 + $0x8] sm:$0xff]
    %v2139 = vld [vmem:[#allocation16 + $0x10] sm:$0xff]
    %v2140 = vld [vmem:[#allocation16 + $0x18] sm:$0xff]
    %v2141 = vld [vmem:[#allocation17] sm:$0x1]
    %v2143 = vlaneseq
    %v2144 = vshrl.u32 %v2143, 7
    %v2145 = vsub.s32 0, %v2144
    %v2146 = vrot.slane %v2141, %v2145
    %v2158 = vcombine.low %v2127, %v2128
    %v2159 = vcombine.low %v2129, %v2130
    %v2160 = vcombine.low %v2131, %v2132
    %v2161 = vcombine.low %v2133, %v2134
    %v2163 = vunpack.c.l.s4 1966171168
    %v2164 = vunpack.c.0.s8 %v2163
    %v2165 = vlaneseq
    %v2166 = vshrl.u32 %v2165, 7
    %v2167 = vsub.s32 %v2164, %v2166
    %v2168 = vrot.slane %v2158, %v2167
    %v2170 = vunpack.c.l.s4 1966171168
    %v2171 = vunpack.c.0.s8 %v2170
    %v2172 = vlaneseq
    %v2173 = vshrl.u32 %v2172, 7
    %v2174 = vsub.s32 %v2171, %v2173
    %v2175 = vrot.slane %v2159, %v2174
    %v2177 = vunpack.c.l.s4 1966171168
    %v2178 = vunpack.c.0.s8 %v2177
    %v2179 = vlaneseq
    %v2180 = vshrl.u32 %v2179, 7
    %v2181 = vsub.s32 %v2178, %v2180
    %v2182 = vrot.slane %v2160, %v2181
    %v2184 = vunpack.c.l.s4 1966171168
    %v2185 = vunpack.c.0.s8 %v2184
    %v2186 = vlaneseq
    %v2187 = vshrl.u32 %v2186, 7
    %v2188 = vsub.s32 %v2185, %v2187
    %v2189 = vrot.slane %v2161, %v2188
    %v2190 = vcombine.low %v2168, %v2175
    %v2191 = vcombine.low %v2182, %v2189
    %v2193 = vunpack.c.l.s4 1966171168
    %v2194 = vunpack.c.0.s8 %v2193
    %v2195 = vlaneseq
    %v2196 = vshrl.u32 %v2195, 7
    %v2197 = vsub.s32 %v2194, %v2196
    %v2198 = vrot.slane %v2190, %v2197
    %v2200 = vunpack.c.l.s4 1966171168
    %v2201 = vunpack.c.0.s8 %v2200
    %v2202 = vlaneseq
    %v2203 = vshrl.u32 %v2202, 7
    %v2204 = vsub.s32 %v2201, %v2203
    %v2205 = vrot.slane %v2191, %v2204
    %v2206 = vcombine.low %v2198, %v2205
    %v2207 = vcombine.low %v2135, %v2136
    %v2209 = vunpack.c.l.s4 1966171168
    %v2210 = vunpack.c.0.s8 %v2209
    %v2211 = vlaneseq
    %v2212 = vshrl.u32 %v2211, 7
    %v2213 = vsub.s32 %v2210, %v2212
    %v2214 = vrot.slane %v2207, %v2213
    %v2216 = vunpack.c.l.s4 1966171168
    %v2217 = vunpack.c.0.s8 %v2216
    %v2218 = vlaneseq
    %v2219 = vshrl.u32 %v2218, 7
    %v2220 = vsub.s32 %v2217, %v2219
    %v2221 = vrot.slane %v2214, %v2220
    %v2222 = vsel %vm1760, %v2206, 0
    %v2224 = vsel %vm1760, %v2221, 0
    %2226 = vmatprep.subr.mxu0 0.0
    %2227 = vmatpush1.msra.mxu0 %v2137
    %2228 = vmatprep.subr.mxu0 0.0
    %2229 = vmatpush1.msra.mxu0 %v2138
    %2230 = vmatprep.subr.mxu0 0.0
    %2231 = vmatpush1.msra.mxu0 %v2139
    %2232 = vmatprep.subr.mxu0 0.0
    %2233 = vmatpush1.msra.mxu0 %v2140
    %2234 = vmatprep.subr.mxu0 0.0
    %2235 = vmatpush1.msra.mxu0 0.0
    %2236 = vmatprep.subr.mxu0 0.0
    %2237 = vmatpush1.msra.mxu0 0.0
    %2238 = vmatprep.subr.mxu0 0.0
    %2239 = vmatpush1.msra.mxu0 0.0
    %2240 = vmatprep.subr.mxu0 0.0
    %2241 = vmatpush1.msra.mxu0 0.0
    %2242 = vmatprep.subr.mxu0 0.0
    %2243 = vmatpush1.msra.mxu0 0.0
    %2244 = vmatprep.subr.mxu0 0.0
    %2245 = vmatpush1.msra.mxu0 0.0
    %2246 = vmatprep.subr.mxu0 0.0
    %2247 = vmatpush1.msra.mxu0 0.0
    %2248 = vmatprep.subr.mxu0 0.0
    %2249 = vmatpush1.msra.mxu0 0.0
    %2250 = vmatprep.subr.mxu0 0.0
    %2251 = vmatpush1.msra.mxu0 0.0
    %2252 = vmatprep.subr.mxu0 0.0
    %2253 = vmatpush1.msra.mxu0 0.0
    %2254 = vmatprep.subr.mxu0 0.0
    %2255 = vmatpush1.msra.mxu0 0.0
    %2256 = vmatprep.subr.mxu0 0.0
    %2257 = vmatpush1.msra.mxu0 0.0
    %2258 = vmatprep.subr.mxu0 0.0
    %2259 = vmatpush1.msra.mxu0 0.0
    %2260 = vmatprep.subr.mxu0 0.0
    %2261 = vmatpush1.msra.mxu0 0.0
    %2262 = vmatprep.subr.mxu0 0.0
    %2263 = vmatpush1.msra.mxu0 0.0
    %2264 = vmatprep.subr.mxu0 0.0
    %2265 = vmatpush1.msra.mxu0 0.0
    %2266 = vmatprep.subr.mxu0 0.0
    %2267 = vmatpush1.msra.mxu0 0.0
    %2268 = vmatprep.subr.mxu0 0.0
    %2269 = vmatpush1.msra.mxu0 0.0
    %2270 = vmatprep.subr.mxu0 0.0
    %2271 = vmatpush1.msra.mxu0 0.0
    %2272 = vmatprep.subr.mxu0 0.0
    %2273 = vmatpush1.msra.mxu0 0.0
    %2274 = vmatprep.subr.mxu0 0.0
    %2275 = vmatpush1.msra.mxu0 0.0
    %2276 = vmatprep.subr.mxu0 0.0
    %2277 = vmatpush1.msra.mxu0 0.0
    %2278 = vmatprep.subr.mxu0 0.0
    %2279 = vmatpush1.msra.mxu0 0.0
    %2280 = vmatprep.subr.mxu0 0.0
    %2281 = vmatpush1.msra.mxu0 0.0
    %2282 = vmatprep.subr.mxu0 0.0
    %2283 = vmatpush1.msra.mxu0 0.0
    %2284 = vmatprep.subr.mxu0 0.0
    %2285 = vmatpush1.msra.mxu0 0.0
    %2286 = vmatprep.subr.mxu0 0.0
    %2287 = vmatpush1.msra.mxu0 0.0
    %2288 = vmatprep.subr.mxu0 0.0
    %2289 = vmatpush1.msra.mxu0 0.0
    %2290 = vmatprep.mubr.f32.mxu0 0.0
    %2291 = vmatmul.mubr.f32.gmra.mrb[0].mxu0 %v2222
    %v2292 = vpop.f32.mrb[0].mxu0
    %v2293 = vadd.f32 %v2146, %v2292
    %v2294 = vpop.f32.mrb[0].mxu0
    %2295 = vmatprep.mubr.f32.mxu0 0.0
    %2296 = vmatmul.mubr.f32.gmra.mrb[0].mxu0 %v2224
    %v2297 = vpop.f32.mrb[0].mxu0
    %v2298 = vadd.f32 %v2146, %v2297
    %v2299 = vpop.f32.mrb[0].mxu0
    %2300 = vdwg.mxu0
    %v2301 = vmul.f32 %v2293, 0.5
    %v2302 = vmul.f32 %v2298, 0.5
    %v2303 = vmul.f32 %v2293, 0.70710677
    %v2304 = vmul.f32 %v2298, 0.70710677
    %vm2305 = vcmp.ge.f32.partialorder %v2303, 0.0
    %vm2306 = vcmp.ge.f32.partialorder %v2304, 0.0
    %v2307 = vsel %vm2305, 1.0, -1.0
    %v2308 = vsel %vm2306, 1.0, -1.0
    %v2309 = vand.u32 2147483647, %v2303
    %v2310 = vand.u32 2147483647, %v2304
    %v2311 = vmul.f32 %v2309, 0.3275911
    %v2312 = vmul.f32 %v2310, 0.3275911
    %v2313 = vadd.f32 %v2311, 1.0
    %v2314 = vadd.f32 %v2312, 1.0
    %v2315 = vrcp.pop %v2313
    %v2316 = vmul.f32 1.0, %v2315
    %v2317 = vrcp.pop %v2314
    %v2318 = vmul.f32 1.0, %v2317
    %v2319 = vmul.f32 %v2316, 1.0614054
    %v2320 = vmul.f32 %v2318, 1.0614054
    %v2321 = vadd.f32 %v2319, -1.4531521
    %v2322 = vadd.f32 %v2320, -1.4531521
    %v2323 = vmul.f32 %v2321, %v2316
    %v2324 = vmul.f32 %v2322, %v2318
    %v2325 = vadd.f32 %v2323, 1.4214138
    %v2326 = vadd.f32 %v2324, 1.4214138
    %v2327 = vmul.f32 %v2325, %v2316
    %v2328 = vmul.f32 %v2326, %v2318
    %v2329 = vadd.f32 %v2327, -0.28449672
    %v2330 = vadd.f32 %v2328, -0.28449672
    %v2331 = vmul.f32 %v2329, %v2316
    %v2332 = vmul.f32 %v2330, %v2318
    %v2333 = vadd.f32 %v2331, 0.2548296
    %v2334 = vadd.f32 %v2332, 0.2548296
    %v2335 = vmul.f32 %v2333, %v2316
    %v2336 = vmul.f32 %v2334, %v2318
    %v2337 = vsub.f32 0.0, %v2309
    %v2338 = vsub.f32 0.0, %v2310
    %v2339 = vmul.f32 %v2337, %v2309
    %v2340 = vmul.f32 %v2338, %v2310
    %v2341 = vmul.f32 %v2339, 1.442695
    %v2342 = vpow.pop %v2341
    %v2343 = vmul.f32 %v2340, 1.442695
    %v2344 = vpow.pop %v2343
    %v2345 = vmul.f32 %v2335, %v2342
    %v2346 = vmul.f32 %v2336, %v2344
    %v2347 = vsub.f32 1.0, %v2345
    %v2348 = vsub.f32 1.0, %v2346
    %v2349 = vmul.f32 %v2307, %v2347
    %v2350 = vmul.f32 %v2308, %v2348
    %v2351 = vadd.f32 %v2349, 1.0
    %v2352 = vadd.f32 %v2350, 1.0
    %v2353 = vmul.f32 %v2301, %v2351
    %v2354 = vmul.f32 %v2302, %v2352
    %v2355 = vld [vmem:[#allocation19] sm:$0xff]
    %v2356 = vld [vmem:[#allocation19 + $0x8] sm:$0xff]
    %v2357 = vld [vmem:[#allocation19 + $0x10] sm:$0xff]
    %v2358 = vld [vmem:[#allocation19 + $0x18] sm:$0xff]
    %v2359 = vld [vmem:[#allocation19 + $0x20] sm:$0xff]
    %v2360 = vld [vmem:[#allocation19 + $0x28] sm:$0xff]
    %v2361 = vld [vmem:[#allocation19 + $0x30] sm:$0xff]
    %v2362 = vld [vmem:[#allocation19 + $0x38] sm:$0xff]
    %v2363 = vld [vmem:[#allocation20] sm:$0x1]
    %v2365 = vlaneseq
    %v2366 = vshrl.u32 %v2365, 7
    %v2367 = vsub.s32 0, %v2366
    %v2368 = vrot.slane %v2363, %v2367
    %vm2370 = vcmask 523264
    %v2372 = vsel %vm2370, %v2353, 0
    %v2375 = vsel %vm2370, %v2354, 0
    %2377 = vmatprep.subr.mxu0 0.0
    %2378 = vmatpush1.msra.mxu0 %v2355
    %2379 = vmatprep.subr.mxu0 0.0
    %2380 = vmatpush1.msra.mxu0 %v2356
    %2381 = vmatprep.subr.mxu0 0.0
    %2382 = vmatpush1.msra.mxu0 %v2357
    %2383 = vmatprep.subr.mxu0 0.0
    %2384 = vmatpush1.msra.mxu0 %v2358
    %2385 = vmatprep.subr.mxu0 0.0
    %2386 = vmatpush1.msra.mxu0 %v2359
    %2387 = vmatprep.subr.mxu0 0.0
    %2388 = vmatpush1.msra.mxu0 %v2360
    %2389 = vmatprep.subr.mxu0 0.0
    %2390 = vmatpush1.msra.mxu0 %v2361
    %2391 = vmatprep.subr.mxu0 0.0
    %2392 = vmatpush1.msra.mxu0 %v2362
    %2393 = vmatprep.subr.mxu0 0.0
    %2394 = vmatpush1.msra.mxu0 0.0
    %2395 = vmatprep.subr.mxu0 0.0
    %2396 = vmatpush1.msra.mxu0 0.0
    %2397 = vmatprep.subr.mxu0 0.0
    %2398 = vmatpush1.msra.mxu0 0.0
    %2399 = vmatprep.subr.mxu0 0.0
    %2400 = vmatpush1.msra.mxu0 0.0
    %2401 = vmatprep.subr.mxu0 0.0
    %2402 = vmatpush1.msra.mxu0 0.0
    %2403 = vmatprep.subr.mxu0 0.0
    %2404 = vmatpush1.msra.mxu0 0.0
    %2405 = vmatprep.subr.mxu0 0.0
    %2406 = vmatpush1.msra.mxu0 0.0
    %2407 = vmatprep.subr.mxu0 0.0
    %2408 = vmatpush1.msra.mxu0 0.0
    %2409 = vmatprep.subr.mxu0 0.0
    %2410 = vmatpush1.msra.mxu0 0.0
    %2411 = vmatprep.subr.mxu0 0.0
    %2412 = vmatpush1.msra.mxu0 0.0
    %2413 = vmatprep.subr.mxu0 0.0
    %2414 = vmatpush1.msra.mxu0 0.0
    %2415 = vmatprep.subr.mxu0 0.0
    %2416 = vmatpush1.msra.mxu0 0.0
    %2417 = vmatprep.subr.mxu0 0.0
    %2418 = vmatpush1.msra.mxu0 0.0
    %2419 = vmatprep.subr.mxu0 0.0
    %2420 = vmatpush1.msra.mxu0 0.0
    %2421 = vmatprep.subr.mxu0 0.0
    %2422 = vmatpush1.msra.mxu0 0.0
    %2423 = vmatprep.subr.mxu0 0.0
    %2424 = vmatpush1.msra.mxu0 0.0
    %2425 = vmatprep.subr.mxu0 0.0
    %2426 = vmatpush1.msra.mxu0 0.0
    %2427 = vmatprep.subr.mxu0 0.0
    %2428 = vmatpush1.msra.mxu0 0.0
    %2429 = vmatprep.subr.mxu0 0.0
    %2430 = vmatpush1.msra.mxu0 0.0
    %2431 = vmatprep.subr.mxu0 0.0
    %2432 = vmatpush1.msra.mxu0 0.0
    %2433 = vmatprep.subr.mxu0 0.0
    %2434 = vmatpush1.msra.mxu0 0.0
    %2435 = vmatprep.subr.mxu0 0.0
    %2436 = vmatpush1.msra.mxu0 0.0
    %2437 = vmatprep.subr.mxu0 0.0
    %2438 = vmatpush1.msra.mxu0 0.0
    %2439 = vmatprep.subr.mxu0 0.0
    %2440 = vmatpush1.msra.mxu0 0.0
    %2441 = vmatprep.mubr.f32.mxu0 0.0
    %2442 = vmatmul.mubr.f32.gmra.mrb[0].mxu0 %v2372
    %v2443 = vpop.f32.mrb[0].mxu0
    %v2444 = vadd.f32 %v2368, %v2443
    %v2445 = vpop.f32.mrb[0].mxu0
    %2446 = vmatprep.mubr.f32.mxu0 0.0
    %2447 = vmatmul.mubr.f32.gmra.mrb[0].mxu0 %v2375
    %v2448 = vpop.f32.mrb[0].mxu0
    %v2449 = vadd.f32 %v2368, %v2448
    %v2450 = vpop.f32.mrb[0].mxu0
    %2451 = vdwg.mxu0
    %v2454 = vcombine.high %v2444, %v2444
    %v2456 = vunpack.c.l.s4 1966171168
    %v2457 = vunpack.c.0.s8 %v2456
    %v2458 = vlaneseq
    %v2459 = vshrl.u32 %v2458, 7
    %v2460 = vsub.s32 %v2457, %v2459
    %v2461 = vrot.slane %v2444, %v2460
    %v2463 = vunpack.c.l.s4 1966171168
    %v2464 = vunpack.c.0.s8 %v2463
    %v2465 = vlaneseq
    %v2466 = vshrl.u32 %v2465, 7
    %v2467 = vsub.s32 %v2464, %v2466
    %v2468 = vrot.slane %v2454, %v2467
    %v2469 = vcombine.high %v2461, %v2461
    %v2470 = vcombine.high %v2468, %v2468
    %v2472 = vunpack.c.l.s4 1966171168
    %v2473 = vunpack.c.0.s8 %v2472
    %v2474 = vlaneseq
    %v2475 = vshrl.u32 %v2474, 7
    %v2476 = vsub.s32 %v2473, %v2475
    %v2477 = vrot.slane %v2461, %v2476
    %v2479 = vunpack.c.l.s4 1966171168
    %v2480 = vunpack.c.0.s8 %v2479
    %v2481 = vlaneseq
    %v2482 = vshrl.u32 %v2481, 7
    %v2483 = vsub.s32 %v2480, %v2482
    %v2484 = vrot.slane %v2468, %v2483
    %v2486 = vunpack.c.l.s4 1966171168
    %v2487 = vunpack.c.0.s8 %v2486
    %v2488 = vlaneseq
    %v2489 = vshrl.u32 %v2488, 7
    %v2490 = vsub.s32 %v2487, %v2489
    %v2491 = vrot.slane %v2469, %v2490
    %v2493 = vunpack.c.l.s4 1966171168
    %v2494 = vunpack.c.0.s8 %v2493
    %v2495 = vlaneseq
    %v2496 = vshrl.u32 %v2495, 7
    %v2497 = vsub.s32 %v2494, %v2496
    %v2498 = vrot.slane %v2470, %v2497
    %v2499 = vcombine.high %v2477, %v2477
    %v2500 = vcombine.high %v2484, %v2484
    %v2501 = vcombine.high %v2491, %v2491
    %v2502 = vcombine.high %v2498, %v2498
    %v2504 = vunpack.c.l.s4 1966171168
    %v2505 = vunpack.c.0.s8 %v2504
    %v2506 = vlaneseq
    %v2507 = vshrl.u32 %v2506, 7
    %v2508 = vsub.s32 %v2505, %v2507
    %v2509 = vrot.slane %v2449, %v2508
    %v2510 = vcombine.high %v2509, %v2509
    %v2512 = vunpack.c.l.s4 1966171168
    %v2513 = vunpack.c.0.s8 %v2512
    %v2514 = vlaneseq
    %v2515 = vshrl.u32 %v2514, 7
    %v2516 = vsub.s32 %v2513, %v2515
    %v2517 = vrot.slane %v2509, %v2516
    %v2519 = vunpack.c.l.s4 1966171168
    %v2520 = vunpack.c.0.s8 %v2519
    %v2521 = vlaneseq
    %v2522 = vshrl.u32 %v2521, 7
    %v2523 = vsub.s32 %v2520, %v2522
    %v2524 = vrot.slane %v2510, %v2523
    %v2535 = vadd.f32 %v1672, %v2477
    %v2536 = vadd.f32 %v1673, %v2491
    %v2537 = vadd.f32 %v1674, %v2499
    %v2538 = vadd.f32 %v1675, %v2501
    %v2539 = vadd.f32 %v1676, %v2484
    %v2540 = vadd.f32 %v1677, %v2498
    %v2541 = vadd.f32 %v1678, %v2500
    %v2542 = vadd.f32 %v1679, %v2502
    %v2543 = vadd.f32 %v1680, %v2517
    %v2544 = vadd.f32 %v1681, %v2524
    %v2555 = vcombine.low %v2535, %v2536
    %v2556 = vcombine.low %v2537, %v2538
    %v2557 = vcombine.low %v2539, %v2540
    %v2558 = vcombine.low %v2541, %v2542
    %v2560 = vunpack.c.l.s4 1966171168
    %v2561 = vunpack.c.0.s8 %v2560
    %v2562 = vlaneseq
    %v2563 = vshrl.u32 %v2562, 7
    %v2564 = vsub.s32 %v2561, %v2563
    %v2565 = vrot.slane %v2555, %v2564
    %v2567 = vunpack.c.l.s4 1966171168
    %v2568 = vunpack.c.0.s8 %v2567
    %v2569 = vlaneseq
    %v2570 = vshrl.u32 %v2569, 7
    %v2571 = vsub.s32 %v2568, %v2570
    %v2572 = vrot.slane %v2556, %v2571
    %v2574 = vunpack.c.l.s4 1966171168
    %v2575 = vunpack.c.0.s8 %v2574
    %v2576 = vlaneseq
    %v2577 = vshrl.u32 %v2576, 7
    %v2578 = vsub.s32 %v2575, %v2577
    %v2579 = vrot.slane %v2557, %v2578
    %v2581 = vunpack.c.l.s4 1966171168
    %v2582 = vunpack.c.0.s8 %v2581
    %v2583 = vlaneseq
    %v2584 = vshrl.u32 %v2583, 7
    %v2585 = vsub.s32 %v2582, %v2584
    %v2586 = vrot.slane %v2558, %v2585
    %v2587 = vcombine.low %v2565, %v2572
    %v2588 = vcombine.low %v2579, %v2586
    %v2590 = vunpack.c.l.s4 1966171168
    %v2591 = vunpack.c.0.s8 %v2590
    %v2592 = vlaneseq
    %v2593 = vshrl.u32 %v2592, 7
    %v2594 = vsub.s32 %v2591, %v2593
    %v2595 = vrot.slane %v2587, %v2594
    %v2597 = vunpack.c.l.s4 1966171168
    %v2598 = vunpack.c.0.s8 %v2597
    %v2599 = vlaneseq
    %v2600 = vshrl.u32 %v2599, 7
    %v2601 = vsub.s32 %v2598, %v2600
    %v2602 = vrot.slane %v2588, %v2601
    %v2603 = vcombine.low %v2595, %v2602
    %v2604 = vcombine.low %v2543, %v2544
    %v2606 = vunpack.c.l.s4 1966171168
    %v2607 = vunpack.c.0.s8 %v2606
    %v2608 = vlaneseq
    %v2609 = vshrl.u32 %v2608, 7
    %v2610 = vsub.s32 %v2607, %v2609
    %v2611 = vrot.slane %v2604, %v2610
    %v2613 = vunpack.c.l.s4 1966171168
    %v2614 = vunpack.c.0.s8 %v2613
    %v2615 = vlaneseq
    %v2616 = vshrl.u32 %v2615, 7
    %v2617 = vsub.s32 %v2614, %v2616
    %v2618 = vrot.slane %v2611, %v2617
    %2621 = vst.msk [vmem:[#allocation22] sm:$0xff] %vm1760, %v2603
    %2622 = vst.msk [vmem:[#allocation22 + $0x8] sm:$0x3] %vm1764, %v2618
    // Predicated region
    $region98: #{transformer_forward.7} parent=1 // pred_check
      _
    $region99: #{transformer_forward.7} parent=1 // pred_check_branch
      %2624 = sbr.rel (0) target = $region101
    $region100: #{transformer_forward.7} parent=1 // pred_region
      %s2626 = ssub.s32 256, 256
      %2627 = vsyncadd [#allocation4], %s2626
      %s2628 = sshll.u32 [#allocation22], 4
      %s2629 = int_to_ptr.vmem [resolvable:$true] %s2628
      %2634 = dma.vmem_to_hbm [thread:$0]  %s2629, 256, %s12, [#allocation4], 128, 128, 8
    $region101: #{transformer_forward.7} parent=1 // pred_fallthru
      _
    // Predicated region
    $region102: #{transformer_forward.7} parent=1 // pred_check
      _
    $region103: #{transformer_forward.7} parent=1 // pred_check_branch
      %2636 = sbr.rel (0) target = $region105
    $region104: #{transformer_forward.7} parent=1 // pred_region
      %2637 = dma.done [#allocation4], 256
    $region105: #{transformer_forward.7} parent=1 // pred_fallthru
      _
    %2638 = vsyncpa [#allocation3], 1
    %2639 = vsyncpa [#allocation6], 1
    %2640 = vsyncpa [#allocation9], 1
    %2641 = vsyncpa [#allocation12], 1
    %2642 = vsyncpa [#allocation15], 1
    %2643 = vsyncpa [#allocation18], 1
    %2644 = vsyncpa [#allocation21], 1
    %2645 = vsyncpa [#allocation4], 1

</llo_original>
